<compile_context>
chip_gen: v7x
topology: tpu7x:2x2x1
jax: 0.10.0
libtpu: 0.0.40
codegen_flags: <defaults>
</compile_context>

<pallas_src>
import math
import functools

import jax
import jax.numpy as jnp
from jax.experimental import pallas as pl
from jax.experimental.pallas import tpu as pltpu

INV_SQRT2 = 1.0 / math.sqrt(2.0)
LRELU_SLOPE = 0.2
_COL_OFF = 16  # aligned column offset of the intermediate inside the padded scratch


def _leaky(v):
    return jnp.where(v >= 0.0, v, LRELU_SLOPE * v)


# ---------------------------------------------------------------------------
# Fused kernel: entire ResidualCCBlock for one batch element per grid step.
# ---------------------------------------------------------------------------
def _residual_cc_kernel(xpad_ref, xsub_ref, w1_ref, w2_ref, wp_ref, bp_ref,
                        cmap1_ref, cmap2_ref, sel_ref, o_ref, h1pad_ref,
                        *, H, W):
    """
    xpad_ref : (1, H+2, W+2, Cin)  bf16   zero-padded input (NHWC)
    xsub_ref : (1, Ho*Wo, Cin)     bf16   input at even pixels (for 1x1 s2 proj)
    w1_ref   : (9, Cin,  Cout)     bf16   conv1 taps (coord channels excluded)
    w2_ref   : (9, Cout, Cout)     bf16   conv2 taps (coord channels excluded)
    wp_ref   : (Cin, Cout)         bf16   1x1 projection weight
    bp_ref   : (1, Cout)           f32    projection bias
    cmap1_ref: (H*W, Cout)         f32    coord-channel contribution + bias (conv1)
    cmap2_ref: (H*W, Cout)         f32    coord-channel contribution + bias (conv2)
    sel_ref  : (Ho*Wo, H*W)        f32    even-pixel (stride-2) selection matrix
    o_ref    : (1, Ho*Wo, Cout)    f32    block output
    h1pad_ref: (H+2, _COL_OFF+W+2, Cout) bf16 VMEM scratch (padded intermediate)
    """
    Cin = xpad_ref.shape[-1]
    Cout = w1_ref.shape[-1]

    # ---- conv1: 3x3, stride 1, pad 1 (coords + bias folded into cmap1) ----
    acc1 = cmap1_ref[...]                                        # (H*W, Cout) f32
    for kh in range(3):
        for kw in range(3):
            tap = xpad_ref[0, pl.ds(kh, H), pl.ds(kw, W), :]     # (H, W, Cin) bf16
            acc1 = acc1 + jnp.dot(tap.reshape(H * W, Cin),
                                  w1_ref[kh * 3 + kw],
                                  preferred_element_type=jnp.float32)
    y1 = _leaky(acc1)                                            # LeakyReLU(0.2)

    # stash zero-padded y1 in VMEM scratch (aligned column offset) for conv2
    h1pad_ref[...] = jnp.zeros(h1pad_ref.shape, h1pad_ref.dtype)
    h1pad_ref[pl.ds(1, H), pl.ds(_COL_OFF, W), :] = (
        y1.reshape(H, W, -1).astype(h1pad_ref.dtype))

    # ---- conv2: dense 3x3 stride-1 conv; stride 2 applied by selection below ----
    acc2 = cmap2_ref[...]                                        # (H*W, Cout) f32
    for kh in range(3):
        for kw in range(3):
            tap = h1pad_ref[pl.ds(kh, H), pl.ds(_COL_OFF - 1 + kw, W), :]
            acc2 = acc2 + jnp.dot(tap.reshape(H * W, Cout),
                                  w2_ref[kh * 3 + kw],
                                  preferred_element_type=jnp.float32)
    y2 = _leaky(acc2)
    # exact stride-2 subsample (picks pixels (2*oh, 2*ow)) as one MXU matmul
    y2s = jnp.dot(sel_ref[...], y2, preferred_element_type=jnp.float32)

    # ---- 1x1 stride-2 projection skip ----
    skip = jnp.dot(xsub_ref[0], wp_ref[...],
                   preferred_element_type=jnp.float32) + bp_ref[...]

    o_ref[0] = ((y2s + skip) * INV_SQRT2).astype(o_ref.dtype)


# ---------------------------------------------------------------------------
# Trace-time helpers (plain XLA, tiny)
# ---------------------------------------------------------------------------
def _coord_planes(H, W):
    # AddCoords: channel 0 varies along H (torch "xx"), channel 1 along W ("yy").
    xx = jnp.broadcast_to(jnp.linspace(-1.0, 1.0, H)[:, None, None], (H, W, 1))
    yy = jnp.broadcast_to(jnp.linspace(-1.0, 1.0, W)[None, :, None], (H, W, 1))
    return jnp.concatenate([xx, yy], axis=-1).astype(jnp.float32)   # (H, W, 2)


def _coord_bias_map(H, W, w_coord, bias):
    """Additive per-pixel map of the two coordinate channels + bias for a
    3x3 / stride-1 / pad-1 conv.  w_coord: (9, 2, Cout); bias: (Cout,)."""
    cpad = jnp.pad(_coord_planes(H, W), ((1, 1), (1, 1), (0, 0)))
    acc = jnp.broadcast_to(bias[None, :].astype(jnp.float32),
                           (H * W, bias.shape[0]))
    for kh in range(3):
        for kw in range(3):
            tap = cpad[kh:kh + H, kw:kw + W, :].reshape(H * W, 2)
            acc = acc + tap @ w_coord[kh * 3 + kw].astype(jnp.float32)
    return acc


def _even_pixel_selector(H, W):
    Ho, Wo = (H + 1) // 2, (W + 1) // 2
    rows = jnp.arange(Ho * Wo)
    src = (rows // Wo) * 2 * W + (rows % Wo) * 2
    return (src[:, None] == jnp.arange(H * W)[None, :]).astype(jnp.float32)


# ---------------------------------------------------------------------------
# Forward wrapper
# ---------------------------------------------------------------------------
@jax.jit
def residual_cc_block(params, x_nchw):
    """ResidualCCBlock forward.  x_nchw: (N, Cin, H, W) -> (N, Cout, H/2, W/2)."""
    x = jnp.transpose(x_nchw, (0, 2, 3, 1)).astype(jnp.float32)   # NHWC
    N, H, W, Cin = x.shape
    Cout = params["w1_main"].shape[-1]
    Ho, Wo = (H + 1) // 2, (W + 1) // 2

    # bf16 MXU operands; accumulation stays f32 inside the kernel.
    xpad = jnp.pad(x, ((0, 0), (1, 1), (1, 1), (0, 0))).astype(jnp.bfloat16)
    xsub = x[:, ::2, ::2, :].reshape(N, Ho * Wo, Cin).astype(jnp.bfloat16)
    w1 = params["w1_main"].astype(jnp.bfloat16)
    w2 = params["w2_main"].astype(jnp.bfloat16)
    wp = params["proj_w"].astype(jnp.bfloat16)
    bp = params["proj_b"].reshape(1, Cout).astype(jnp.float32)

    cmap1 = _coord_bias_map(H, W, params["w1_coord"], params["b1"])
    cmap2 = _coord_bias_map(H, W, params["w2_coord"], params["b2"])
    sel = _even_pixel_selector(H, W)

    kernel = functools.partial(_residual_cc_kernel, H=H, W=W)
    out = pl.pallas_call(
        kernel,
        out_shape=jax.ShapeDtypeStruct((N, Ho * Wo, Cout), jnp.float32),
        grid=(N,),
        in_specs=[
            pl.BlockSpec((1, H + 2, W + 2, Cin), lambda n: (n, 0, 0, 0)),
            pl.BlockSpec((1, Ho * Wo, Cin), lambda n: (n, 0, 0)),
            pl.BlockSpec((9, Cin, Cout), lambda n: (0, 0, 0)),
            pl.BlockSpec((9, Cout, Cout), lambda n: (0, 0, 0)),
            pl.BlockSpec((Cin, Cout), lambda n: (0, 0)),
            pl.BlockSpec((1, Cout), lambda n: (0, 0)),
            pl.BlockSpec((H * W, Cout), lambda n: (0, 0)),
            pl.BlockSpec((H * W, Cout), lambda n: (0, 0)),
            pl.BlockSpec((Ho * Wo, H * W), lambda n: (0, 0)),
        ],
        out_specs=pl.BlockSpec((1, Ho * Wo, Cout), lambda n: (n, 0, 0)),
        scratch_shapes=[
            pltpu.VMEM((H + 2, _COL_OFF + W + 2, Cout), jnp.bfloat16),
        ],
        compiler_params=pltpu.CompilerParams(
            dimension_semantics=("parallel",),         # megacore-shard the batch
            vmem_limit_bytes=48 * 1024 * 1024,         # <= v7x physical 64 MiB
        ),
    )(xpad, xsub, w1, w2, wp, bp, cmap1, cmap2, sel)

    out = out.reshape(N, Ho, Wo, Cout)
    return jnp.transpose(out, (0, 3, 1, 2))            # NCHW, matches torch


# ---------------------------------------------------------------------------
# Pure-XLA reference (mirrors the kernel's bf16 operand rounding)
# ---------------------------------------------------------------------------
def residual_cc_block_reference(params, x_nchw):
    f32 = jnp.float32
    bf = lambda a: a.astype(jnp.bfloat16).astype(f32)
    x = jnp.transpose(x_nchw, (0, 2, 3, 1)).astype(f32)           # NHWC
    N, H, W, Cin = x.shape
    Cout = params["w1_main"].shape[-1]
    coords = jnp.broadcast_to(_coord_planes(H, W)[None], (N, H, W, 2))

    def conv3x3(inp, w_main, w_coord, b, stride):
        w = jnp.concatenate(
            [bf(w_main).reshape(3, 3, -1, Cout),
             w_coord.reshape(3, 3, 2, Cout).astype(f32)], axis=2)
        full = jnp.concatenate([inp, coords], axis=-1)
        out = jax.lax.conv_general_dilated(
            full, w, window_strides=(stride, stride),
            padding=((1, 1), (1, 1)),
            dimension_numbers=("NHWC", "HWIO", "NHWC"))
        return out + b[None, None, None, :]

    h1 = _leaky(conv3x3(bf(x), params["w1_main"], params["w1_coord"],
                        params["b1"], 1))
    y2 = _leaky(conv3x3(bf(h1), params["w2_main"], params["w2_coord"],
                        params["b2"], 2))
    wp = bf(params["proj_w"]).reshape(1, 1, Cin, Cout)
    skip = jax.lax.conv_general_dilated(
        bf(x), wp, window_strides=(2, 2), padding=((0, 0), (0, 0)),
        dimension_numbers=("NHWC", "HWIO", "NHWC"))
    skip = skip + params["proj_b"][None, None, None, :]
    y = (y2 + skip) * INV_SQRT2
    return jnp.transpose(y, (0, 3, 1, 2))


# ---------------------------------------------------------------------------
# Parameter init (random, torch-like scaling)
# ---------------------------------------------------------------------------
def init_params(key, inplanes, planes):
    ks = jax.random.split(key, 8)

    def nrm(k, shape, fan_in):
        return jax.random.normal(k, shape, jnp.float32) / math.sqrt(fan_in)

    fan1 = 9 * (inplanes + 2)
    fan2 = 9 * (planes + 2)
    return {
        "w1_main": nrm(ks[0], (9, inplanes, planes), fan1),
        "w1_coord": nrm(ks[1], (9, 2, planes), fan1),
        "b1": nrm(ks[2], (planes,), planes) * 0.1,
        "w2_main": nrm(ks[3], (9, planes, planes), fan2),
        "w2_coord": nrm(ks[4], (9, 2, planes), fan2),
        "b2": nrm(ks[5], (planes,), planes) * 0.1,
        "proj_w": nrm(ks[6], (inplanes, planes), inplanes),
        "proj_b": nrm(ks[7], (planes,), planes) * 0.1,
    }


if __name__ == "__main__":
    key = jax.random.PRNGKey(0)
    kp, kx = jax.random.split(key)

    N, Cin, Cout, H, W = 2, 64, 128, 16, 16
    params = init_params(kp, Cin, Cout)
    x = jax.random.normal(kx, (N, Cin, H, W), jnp.float32)   # NCHW (torch layout)

    out = residual_cc_block(params, x)
    out = jax.block_until_ready(out)

    assert out.shape == (N, Cout, H // 2, W // 2), out.shape
    assert bool(jnp.all(jnp.isfinite(out)))

    ref = residual_cc_block_reference(params, x)
    max_err = float(jnp.max(jnp.abs(out - ref)))
    assert bool(jnp.allclose(out, ref, rtol=5e-2, atol=5e-2)), max_err

    print("KERNEL_OK")
</pallas_src>

<mosaic_0001>
module attributes {stable_mosaic.version = 11 : i64} {
  func.func @_residual_cc_kernel(%arg0: i32, %arg1: memref<1x18x18x64xbf16, #tpu.memory_space<vmem>>, %arg2: memref<1x64x64xbf16, #tpu.memory_space<vmem>>, %arg3: memref<9x64x128xbf16, #tpu.memory_space<vmem>>, %arg4: memref<9x128x128xbf16, #tpu.memory_space<vmem>>, %arg5: memref<64x128xbf16, #tpu.memory_space<vmem>>, %arg6: memref<1x128xf32, #tpu.memory_space<vmem>>, %arg7: memref<256x128xf32, #tpu.memory_space<vmem>>, %arg8: memref<256x128xf32, #tpu.memory_space<vmem>>, %arg9: memref<64x256xf32, #tpu.memory_space<vmem>>, %arg10: memref<1x64x128xf32, #tpu.memory_space<vmem>>, %arg11: memref<18x34x128xbf16, #tpu.memory_space<vmem>>) attributes {dimension_semantics = [#tpu.dimension_semantics<parallel>], iteration_bounds = array<i64: 2>, scalar_prefetch = 0 : i64, scratch_operands = 1 : i64, tpu.core_type = #tpu.core_type<tc>, window_params = [{transform_indices = @transform_0, window_bounds = array<i64: 1, 18, 18, 64>}, {transform_indices = @transform_1, window_bounds = array<i64: 1, 64, 64>}, {pipeline_mode = #tpu.pipeline_mode<synchronous>, transform_indices = @transform_2, window_bounds = array<i64: 9, 64, 128>}, {pipeline_mode = #tpu.pipeline_mode<synchronous>, transform_indices = @transform_3, window_bounds = array<i64: 9, 128, 128>}, {pipeline_mode = #tpu.pipeline_mode<synchronous>, transform_indices = @transform_4, window_bounds = array<i64: 64, 128>}, {pipeline_mode = #tpu.pipeline_mode<synchronous>, transform_indices = @transform_5, window_bounds = array<i64: 1, 128>}, {pipeline_mode = #tpu.pipeline_mode<synchronous>, transform_indices = @transform_6, window_bounds = array<i64: 256, 128>}, {pipeline_mode = #tpu.pipeline_mode<synchronous>, transform_indices = @transform_7, window_bounds = array<i64: 256, 128>}, {pipeline_mode = #tpu.pipeline_mode<synchronous>, transform_indices = @transform_8, window_bounds = array<i64: 64, 256>}, {transform_indices = @transform_9, window_bounds = array<i64: 1, 64, 128>}]} {
    %c0 = arith.constant 0 : index
    %c0_0 = arith.constant 0 : index
    %0 = vector.load %arg7[%c0, %c0_0] : memref<256x128xf32, #tpu.memory_space<vmem>>, vector<256x128xf32>
    %c0_1 = arith.constant 0 : index
    %c0_2 = arith.constant 0 : index
    %c0_3 = arith.constant 0 : index
    %c0_4 = arith.constant 0 : index
    %1 = vector.load %arg1[%c0_1, %c0_2, %c0_3, %c0_4] : memref<1x18x18x64xbf16, #tpu.memory_space<vmem>>, vector<1x16x16x64xbf16>
    %2 = vector.shape_cast %1 : vector<1x16x16x64xbf16> to vector<16x16x64xbf16>
    %3 = vector.shape_cast %2 : vector<16x16x64xbf16> to vector<256x64xbf16>
    %c0_5 = arith.constant 0 : index
    %c0_6 = arith.constant 0 : index
    %c0_7 = arith.constant 0 : index
    %4 = vector.load %arg3[%c0_5, %c0_6, %c0_7] : memref<9x64x128xbf16, #tpu.memory_space<vmem>>, vector<1x64x128xbf16>
    %5 = vector.shape_cast %4 : vector<1x64x128xbf16> to vector<64x128xbf16>
    %cst = arith.constant dense<0.000000e+00> : vector<256x128xf32>
    %6 = tpu.matmul %3, %5, %cst {dimension_numbers = #tpu.dot_dimension_numbers<[1], [0], [0], [1], [0, 0, 1, 1], [], []>} : vector<256x64xbf16>, vector<64x128xbf16>, vector<256x128xf32> -> vector<256x128xf32>
    %7 = arith.addf %0, %6 : vector<256x128xf32>
    %c0_8 = arith.constant 0 : index
    %c0_9 = arith.constant 0 : index
    %c1 = arith.constant 1 : index
    %c0_10 = arith.constant 0 : index
    %8 = vector.load %arg1[%c0_8, %c0_9, %c1, %c0_10] : memref<1x18x18x64xbf16, #tpu.memory_space<vmem>>, vector<1x16x16x64xbf16>
    %9 = vector.shape_cast %8 : vector<1x16x16x64xbf16> to vector<16x16x64xbf16>
    %10 = vector.shape_cast %9 : vector<16x16x64xbf16> to vector<256x64xbf16>
    %c1_11 = arith.constant 1 : index
    %c0_12 = arith.constant 0 : index
    %c0_13 = arith.constant 0 : index
    %11 = vector.load %arg3[%c1_11, %c0_12, %c0_13] : memref<9x64x128xbf16, #tpu.memory_space<vmem>>, vector<1x64x128xbf16>
    %12 = vector.shape_cast %11 : vector<1x64x128xbf16> to vector<64x128xbf16>
    %cst_14 = arith.constant dense<0.000000e+00> : vector<256x128xf32>
    %13 = tpu.matmul %10, %12, %cst_14 {dimension_numbers = #tpu.dot_dimension_numbers<[1], [0], [0], [1], [0, 0, 1, 1], [], []>} : vector<256x64xbf16>, vector<64x128xbf16>, vector<256x128xf32> -> vector<256x128xf32>
    %14 = arith.addf %7, %13 : vector<256x128xf32>
    %c0_15 = arith.constant 0 : index
    %c0_16 = arith.constant 0 : index
    %c2 = arith.constant 2 : index
    %c0_17 = arith.constant 0 : index
    %15 = vector.load %arg1[%c0_15, %c0_16, %c2, %c0_17] : memref<1x18x18x64xbf16, #tpu.memory_space<vmem>>, vector<1x16x16x64xbf16>
    %16 = vector.shape_cast %15 : vector<1x16x16x64xbf16> to vector<16x16x64xbf16>
    %17 = vector.shape_cast %16 : vector<16x16x64xbf16> to vector<256x64xbf16>
    %c2_18 = arith.constant 2 : index
    %c0_19 = arith.constant 0 : index
    %c0_20 = arith.constant 0 : index
    %18 = vector.load %arg3[%c2_18, %c0_19, %c0_20] : memref<9x64x128xbf16, #tpu.memory_space<vmem>>, vector<1x64x128xbf16>
    %19 = vector.shape_cast %18 : vector<1x64x128xbf16> to vector<64x128xbf16>
    %cst_21 = arith.constant dense<0.000000e+00> : vector<256x128xf32>
    %20 = tpu.matmul %17, %19, %cst_21 {dimension_numbers = #tpu.dot_dimension_numbers<[1], [0], [0], [1], [0, 0, 1, 1], [], []>} : vector<256x64xbf16>, vector<64x128xbf16>, vector<256x128xf32> -> vector<256x128xf32>
    %21 = arith.addf %14, %20 : vector<256x128xf32>
    %c0_22 = arith.constant 0 : index
    %c1_23 = arith.constant 1 : index
    %c0_24 = arith.constant 0 : index
    %c0_25 = arith.constant 0 : index
    %22 = vector.load %arg1[%c0_22, %c1_23, %c0_24, %c0_25] : memref<1x18x18x64xbf16, #tpu.memory_space<vmem>>, vector<1x16x16x64xbf16>
    %23 = vector.shape_cast %22 : vector<1x16x16x64xbf16> to vector<16x16x64xbf16>
    %24 = vector.shape_cast %23 : vector<16x16x64xbf16> to vector<256x64xbf16>
    %c3 = arith.constant 3 : index
    %c0_26 = arith.constant 0 : index
    %c0_27 = arith.constant 0 : index
    %25 = vector.load %arg3[%c3, %c0_26, %c0_27] : memref<9x64x128xbf16, #tpu.memory_space<vmem>>, vector<1x64x128xbf16>
    %26 = vector.shape_cast %25 : vector<1x64x128xbf16> to vector<64x128xbf16>
    %cst_28 = arith.constant dense<0.000000e+00> : vector<256x128xf32>
    %27 = tpu.matmul %24, %26, %cst_28 {dimension_numbers = #tpu.dot_dimension_numbers<[1], [0], [0], [1], [0, 0, 1, 1], [], []>} : vector<256x64xbf16>, vector<64x128xbf16>, vector<256x128xf32> -> vector<256x128xf32>
    %28 = arith.addf %21, %27 : vector<256x128xf32>
    %c0_29 = arith.constant 0 : index
    %c1_30 = arith.constant 1 : index
    %c1_31 = arith.constant 1 : index
    %c0_32 = arith.constant 0 : index
    %29 = vector.load %arg1[%c0_29, %c1_30, %c1_31, %c0_32] : memref<1x18x18x64xbf16, #tpu.memory_space<vmem>>, vector<1x16x16x64xbf16>
    %30 = vector.shape_cast %29 : vector<1x16x16x64xbf16> to vector<16x16x64xbf16>
    %31 = vector.shape_cast %30 : vector<16x16x64xbf16> to vector<256x64xbf16>
    %c4 = arith.constant 4 : index
    %c0_33 = arith.constant 0 : index
    %c0_34 = arith.constant 0 : index
    %32 = vector.load %arg3[%c4, %c0_33, %c0_34] : memref<9x64x128xbf16, #tpu.memory_space<vmem>>, vector<1x64x128xbf16>
    %33 = vector.shape_cast %32 : vector<1x64x128xbf16> to vector<64x128xbf16>
    %cst_35 = arith.constant dense<0.000000e+00> : vector<256x128xf32>
    %34 = tpu.matmul %31, %33, %cst_35 {dimension_numbers = #tpu.dot_dimension_numbers<[1], [0], [0], [1], [0, 0, 1, 1], [], []>} : vector<256x64xbf16>, vector<64x128xbf16>, vector<256x128xf32> -> vector<256x128xf32>
    %35 = arith.addf %28, %34 : vector<256x128xf32>
    %c0_36 = arith.constant 0 : index
    %c1_37 = arith.constant 1 : index
    %c2_38 = arith.constant 2 : index
    %c0_39 = arith.constant 0 : index
    %36 = vector.load %arg1[%c0_36, %c1_37, %c2_38, %c0_39] : memref<1x18x18x64xbf16, #tpu.memory_space<vmem>>, vector<1x16x16x64xbf16>
    %37 = vector.shape_cast %36 : vector<1x16x16x64xbf16> to vector<16x16x64xbf16>
    %38 = vector.shape_cast %37 : vector<16x16x64xbf16> to vector<256x64xbf16>
    %c5 = arith.constant 5 : index
    %c0_40 = arith.constant 0 : index
    %c0_41 = arith.constant 0 : index
    %39 = vector.load %arg3[%c5, %c0_40, %c0_41] : memref<9x64x128xbf16, #tpu.memory_space<vmem>>, vector<1x64x128xbf16>
    %40 = vector.shape_cast %39 : vector<1x64x128xbf16> to vector<64x128xbf16>
    %cst_42 = arith.constant dense<0.000000e+00> : vector<256x128xf32>
    %41 = tpu.matmul %38, %40, %cst_42 {dimension_numbers = #tpu.dot_dimension_numbers<[1], [0], [0], [1], [0, 0, 1, 1], [], []>} : vector<256x64xbf16>, vector<64x128xbf16>, vector<256x128xf32> -> vector<256x128xf32>
    %42 = arith.addf %35, %41 : vector<256x128xf32>
    %c0_43 = arith.constant 0 : index
    %c2_44 = arith.constant 2 : index
    %c0_45 = arith.constant 0 : index
    %c0_46 = arith.constant 0 : index
    %43 = vector.load %arg1[%c0_43, %c2_44, %c0_45, %c0_46] : memref<1x18x18x64xbf16, #tpu.memory_space<vmem>>, vector<1x16x16x64xbf16>
    %44 = vector.shape_cast %43 : vector<1x16x16x64xbf16> to vector<16x16x64xbf16>
    %45 = vector.shape_cast %44 : vector<16x16x64xbf16> to vector<256x64xbf16>
    %c6 = arith.constant 6 : index
    %c0_47 = arith.constant 0 : index
    %c0_48 = arith.constant 0 : index
    %46 = vector.load %arg3[%c6, %c0_47, %c0_48] : memref<9x64x128xbf16, #tpu.memory_space<vmem>>, vector<1x64x128xbf16>
    %47 = vector.shape_cast %46 : vector<1x64x128xbf16> to vector<64x128xbf16>
    %cst_49 = arith.constant dense<0.000000e+00> : vector<256x128xf32>
    %48 = tpu.matmul %45, %47, %cst_49 {dimension_numbers = #tpu.dot_dimension_numbers<[1], [0], [0], [1], [0, 0, 1, 1], [], []>} : vector<256x64xbf16>, vector<64x128xbf16>, vector<256x128xf32> -> vector<256x128xf32>
    %49 = arith.addf %42, %48 : vector<256x128xf32>
    %c0_50 = arith.constant 0 : index
    %c2_51 = arith.constant 2 : index
    %c1_52 = arith.constant 1 : index
    %c0_53 = arith.constant 0 : index
    %50 = vector.load %arg1[%c0_50, %c2_51, %c1_52, %c0_53] : memref<1x18x18x64xbf16, #tpu.memory_space<vmem>>, vector<1x16x16x64xbf16>
    %51 = vector.shape_cast %50 : vector<1x16x16x64xbf16> to vector<16x16x64xbf16>
    %52 = vector.shape_cast %51 : vector<16x16x64xbf16> to vector<256x64xbf16>
    %c7 = arith.constant 7 : index
    %c0_54 = arith.constant 0 : index
    %c0_55 = arith.constant 0 : index
    %53 = vector.load %arg3[%c7, %c0_54, %c0_55] : memref<9x64x128xbf16, #tpu.memory_space<vmem>>, vector<1x64x128xbf16>
    %54 = vector.shape_cast %53 : vector<1x64x128xbf16> to vector<64x128xbf16>
    %cst_56 = arith.constant dense<0.000000e+00> : vector<256x128xf32>
    %55 = tpu.matmul %52, %54, %cst_56 {dimension_numbers = #tpu.dot_dimension_numbers<[1], [0], [0], [1], [0, 0, 1, 1], [], []>} : vector<256x64xbf16>, vector<64x128xbf16>, vector<256x128xf32> -> vector<256x128xf32>
    %56 = arith.addf %49, %55 : vector<256x128xf32>
    %c0_57 = arith.constant 0 : index
    %c2_58 = arith.constant 2 : index
    %c2_59 = arith.constant 2 : index
    %c0_60 = arith.constant 0 : index
    %57 = vector.load %arg1[%c0_57, %c2_58, %c2_59, %c0_60] : memref<1x18x18x64xbf16, #tpu.memory_space<vmem>>, vector<1x16x16x64xbf16>
    %58 = vector.shape_cast %57 : vector<1x16x16x64xbf16> to vector<16x16x64xbf16>
    %59 = vector.shape_cast %58 : vector<16x16x64xbf16> to vector<256x64xbf16>
    %c8 = arith.constant 8 : index
    %c0_61 = arith.constant 0 : index
    %c0_62 = arith.constant 0 : index
    %60 = vector.load %arg3[%c8, %c0_61, %c0_62] : memref<9x64x128xbf16, #tpu.memory_space<vmem>>, vector<1x64x128xbf16>
    %61 = vector.shape_cast %60 : vector<1x64x128xbf16> to vector<64x128xbf16>
    %cst_63 = arith.constant dense<0.000000e+00> : vector<256x128xf32>
    %62 = tpu.matmul %59, %61, %cst_63 {dimension_numbers = #tpu.dot_dimension_numbers<[1], [0], [0], [1], [0, 0, 1, 1], [], []>} : vector<256x64xbf16>, vector<64x128xbf16>, vector<256x128xf32> -> vector<256x128xf32>
    %63 = arith.addf %56, %62 : vector<256x128xf32>
    %cst_64 = arith.constant 0.000000e+00 : f32
    %64 = vector.broadcast %cst_64 : f32 to vector<256x128xf32>
    %65 = arith.cmpf oge, %63, %64 : vector<256x128xf32>
    %cst_65 = arith.constant 2.000000e-01 : f32
    %66 = vector.broadcast %cst_65 : f32 to vector<256x128xf32>
    %67 = arith.mulf %66, %63 : vector<256x128xf32>
    %68 = arith.select %65, %63, %67 : vector<256x128xi1>, vector<256x128xf32>
    %cst_66 = arith.constant 0.000000e+00 : bf16
    %69 = vector.broadcast %cst_66 : bf16 to vector<18x34x128xbf16>
    %c0_67 = arith.constant 0 : index
    %c0_68 = arith.constant 0 : index
    %c0_69 = arith.constant 0 : index
    %70 = vector.load %arg11[%c0_67, %c0_68, %c0_69] : memref<18x34x128xbf16, #tpu.memory_space<vmem>>, vector<18x34x128xbf16>
    tpu.vector_store %arg11[%c0_67, %c0_68, %c0_69], %69 {strides = array<i32>} : memref<18x34x128xbf16, #tpu.memory_space<vmem>>, vector<18x34x128xbf16>,
    %71 = vector.shape_cast %68 : vector<256x128xf32> to vector<16x16x128xf32>
    %72 = arith.truncf %71 : vector<16x16x128xf32> to vector<16x16x128xbf16>
    %c1_70 = arith.constant 1 : index
    %c16 = arith.constant 16 : index
    %c0_71 = arith.constant 0 : index
    %73 = vector.load %arg11[%c1_70, %c16, %c0_71] : memref<18x34x128xbf16, #tpu.memory_space<vmem>>, vector<16x16x128xbf16>
    tpu.vector_store %arg11[%c1_70, %c16, %c0_71], %72 {strides = array<i32>} : memref<18x34x128xbf16, #tpu.memory_space<vmem>>, vector<16x16x128xbf16>,
    %c0_72 = arith.constant 0 : index
    %c0_73 = arith.constant 0 : index
    %74 = vector.load %arg8[%c0_72, %c0_73] : memref<256x128xf32, #tpu.memory_space<vmem>>, vector<256x128xf32>
    %c0_74 = arith.constant 0 : index
    %c15 = arith.constant 15 : index
    %c0_75 = arith.constant 0 : index
    %75 = vector.load %arg11[%c0_74, %c15, %c0_75] : memref<18x34x128xbf16, #tpu.memory_space<vmem>>, vector<16x16x128xbf16>
    %76 = vector.shape_cast %75 : vector<16x16x128xbf16> to vector<256x128xbf16>
    %c0_76 = arith.constant 0 : index
    %c0_77 = arith.constant 0 : index
    %c0_78 = arith.constant 0 : index
    %77 = vector.load %arg4[%c0_76, %c0_77, %c0_78] : memref<9x128x128xbf16, #tpu.memory_space<vmem>>, vector<1x128x128xbf16>
    %78 = vector.shape_cast %77 : vector<1x128x128xbf16> to vector<128x128xbf16>
    %cst_79 = arith.constant dense<0.000000e+00> : vector<256x128xf32>
    %79 = tpu.matmul %76, %78, %cst_79 {dimension_numbers = #tpu.dot_dimension_numbers<[1], [0], [0], [1], [0, 0, 1, 1], [], []>} : vector<256x128xbf16>, vector<128x128xbf16>, vector<256x128xf32> -> vector<256x128xf32>
    %80 = arith.addf %74, %79 : vector<256x128xf32>
    %c0_80 = arith.constant 0 : index
    %c16_81 = arith.constant 16 : index
    %c0_82 = arith.constant 0 : index
    %81 = vector.load %arg11[%c0_80, %c16_81, %c0_82] : memref<18x34x128xbf16, #tpu.memory_space<vmem>>, vector<16x16x128xbf16>
    %82 = vector.shape_cast %81 : vector<16x16x128xbf16> to vector<256x128xbf16>
    %c1_83 = arith.constant 1 : index
    %c0_84 = arith.constant 0 : index
    %c0_85 = arith.constant 0 : index
    %83 = vector.load %arg4[%c1_83, %c0_84, %c0_85] : memref<9x128x128xbf16, #tpu.memory_space<vmem>>, vector<1x128x128xbf16>
    %84 = vector.shape_cast %83 : vector<1x128x128xbf16> to vector<128x128xbf16>
    %cst_86 = arith.constant dense<0.000000e+00> : vector<256x128xf32>
    %85 = tpu.matmul %82, %84, %cst_86 {dimension_numbers = #tpu.dot_dimension_numbers<[1], [0], [0], [1], [0, 0, 1, 1], [], []>} : vector<256x128xbf16>, vector<128x128xbf16>, vector<256x128xf32> -> vector<256x128xf32>
    %86 = arith.addf %80, %85 : vector<256x128xf32>
    %c0_87 = arith.constant 0 : index
    %c17 = arith.constant 17 : index
    %c0_88 = arith.constant 0 : index
    %87 = vector.load %arg11[%c0_87, %c17, %c0_88] : memref<18x34x128xbf16, #tpu.memory_space<vmem>>, vector<16x16x128xbf16>
    %88 = vector.shape_cast %87 : vector<16x16x128xbf16> to vector<256x128xbf16>
    %c2_89 = arith.constant 2 : index
    %c0_90 = arith.constant 0 : index
    %c0_91 = arith.constant 0 : index
    %89 = vector.load %arg4[%c2_89, %c0_90, %c0_91] : memref<9x128x128xbf16, #tpu.memory_space<vmem>>, vector<1x128x128xbf16>
    %90 = vector.shape_cast %89 : vector<1x128x128xbf16> to vector<128x128xbf16>
    %cst_92 = arith.constant dense<0.000000e+00> : vector<256x128xf32>
    %91 = tpu.matmul %88, %90, %cst_92 {dimension_numbers = #tpu.dot_dimension_numbers<[1], [0], [0], [1], [0, 0, 1, 1], [], []>} : vector<256x128xbf16>, vector<128x128xbf16>, vector<256x128xf32> -> vector<256x128xf32>
    %92 = arith.addf %86, %91 : vector<256x128xf32>
    %c1_93 = arith.constant 1 : index
    %c15_94 = arith.constant 15 : index
    %c0_95 = arith.constant 0 : index
    %93 = vector.load %arg11[%c1_93, %c15_94, %c0_95] : memref<18x34x128xbf16, #tpu.memory_space<vmem>>, vector<16x16x128xbf16>
    %94 = vector.shape_cast %93 : vector<16x16x128xbf16> to vector<256x128xbf16>
    %c3_96 = arith.constant 3 : index
    %c0_97 = arith.constant 0 : index
    %c0_98 = arith.constant 0 : index
    %95 = vector.load %arg4[%c3_96, %c0_97, %c0_98] : memref<9x128x128xbf16, #tpu.memory_space<vmem>>, vector<1x128x128xbf16>
    %96 = vector.shape_cast %95 : vector<1x128x128xbf16> to vector<128x128xbf16>
    %cst_99 = arith.constant dense<0.000000e+00> : vector<256x128xf32>
    %97 = tpu.matmul %94, %96, %cst_99 {dimension_numbers = #tpu.dot_dimension_numbers<[1], [0], [0], [1], [0, 0, 1, 1], [], []>} : vector<256x128xbf16>, vector<128x128xbf16>, vector<256x128xf32> -> vector<256x128xf32>
    %98 = arith.addf %92, %97 : vector<256x128xf32>
    %c1_100 = arith.constant 1 : index
    %c16_101 = arith.constant 16 : index
    %c0_102 = arith.constant 0 : index
    %99 = vector.load %arg11[%c1_100, %c16_101, %c0_102] : memref<18x34x128xbf16, #tpu.memory_space<vmem>>, vector<16x16x128xbf16>
    %100 = vector.shape_cast %99 : vector<16x16x128xbf16> to vector<256x128xbf16>
    %c4_103 = arith.constant 4 : index
    %c0_104 = arith.constant 0 : index
    %c0_105 = arith.constant 0 : index
    %101 = vector.load %arg4[%c4_103, %c0_104, %c0_105] : memref<9x128x128xbf16, #tpu.memory_space<vmem>>, vector<1x128x128xbf16>
    %102 = vector.shape_cast %101 : vector<1x128x128xbf16> to vector<128x128xbf16>
    %cst_106 = arith.constant dense<0.000000e+00> : vector<256x128xf32>
    %103 = tpu.matmul %100, %102, %cst_106 {dimension_numbers = #tpu.dot_dimension_numbers<[1], [0], [0], [1], [0, 0, 1, 1], [], []>} : vector<256x128xbf16>, vector<128x128xbf16>, vector<256x128xf32> -> vector<256x128xf32>
    %104 = arith.addf %98, %103 : vector<256x128xf32>
    %c1_107 = arith.constant 1 : index
    %c17_108 = arith.constant 17 : index
    %c0_109 = arith.constant 0 : index
    %105 = vector.load %arg11[%c1_107, %c17_108, %c0_109] : memref<18x34x128xbf16, #tpu.memory_space<vmem>>, vector<16x16x128xbf16>
    %106 = vector.shape_cast %105 : vector<16x16x128xbf16> to vector<256x128xbf16>
    %c5_110 = arith.constant 5 : index
    %c0_111 = arith.constant 0 : index
    %c0_112 = arith.constant 0 : index
    %107 = vector.load %arg4[%c5_110, %c0_111, %c0_112] : memref<9x128x128xbf16, #tpu.memory_space<vmem>>, vector<1x128x128xbf16>
    %108 = vector.shape_cast %107 : vector<1x128x128xbf16> to vector<128x128xbf16>
    %cst_113 = arith.constant dense<0.000000e+00> : vector<256x128xf32>
    %109 = tpu.matmul %106, %108, %cst_113 {dimension_numbers = #tpu.dot_dimension_numbers<[1], [0], [0], [1], [0, 0, 1, 1], [], []>} : vector<256x128xbf16>, vector<128x128xbf16>, vector<256x128xf32> -> vector<256x128xf32>
    %110 = arith.addf %104, %109 : vector<256x128xf32>
    %c2_114 = arith.constant 2 : index
    %c15_115 = arith.constant 15 : index
    %c0_116 = arith.constant 0 : index
    %111 = vector.load %arg11[%c2_114, %c15_115, %c0_116] : memref<18x34x128xbf16, #tpu.memory_space<vmem>>, vector<16x16x128xbf16>
    %112 = vector.shape_cast %111 : vector<16x16x128xbf16> to vector<256x128xbf16>
    %c6_117 = arith.constant 6 : index
    %c0_118 = arith.constant 0 : index
    %c0_119 = arith.constant 0 : index
    %113 = vector.load %arg4[%c6_117, %c0_118, %c0_119] : memref<9x128x128xbf16, #tpu.memory_space<vmem>>, vector<1x128x128xbf16>
    %114 = vector.shape_cast %113 : vector<1x128x128xbf16> to vector<128x128xbf16>
    %cst_120 = arith.constant dense<0.000000e+00> : vector<256x128xf32>
    %115 = tpu.matmul %112, %114, %cst_120 {dimension_numbers = #tpu.dot_dimension_numbers<[1], [0], [0], [1], [0, 0, 1, 1], [], []>} : vector<256x128xbf16>, vector<128x128xbf16>, vector<256x128xf32> -> vector<256x128xf32>
    %116 = arith.addf %110, %115 : vector<256x128xf32>
    %c2_121 = arith.constant 2 : index
    %c16_122 = arith.constant 16 : index
    %c0_123 = arith.constant 0 : index
    %117 = vector.load %arg11[%c2_121, %c16_122, %c0_123] : memref<18x34x128xbf16, #tpu.memory_space<vmem>>, vector<16x16x128xbf16>
    %118 = vector.shape_cast %117 : vector<16x16x128xbf16> to vector<256x128xbf16>
    %c7_124 = arith.constant 7 : index
    %c0_125 = arith.constant 0 : index
    %c0_126 = arith.constant 0 : index
    %119 = vector.load %arg4[%c7_124, %c0_125, %c0_126] : memref<9x128x128xbf16, #tpu.memory_space<vmem>>, vector<1x128x128xbf16>
    %120 = vector.shape_cast %119 : vector<1x128x128xbf16> to vector<128x128xbf16>
    %cst_127 = arith.constant dense<0.000000e+00> : vector<256x128xf32>
    %121 = tpu.matmul %118, %120, %cst_127 {dimension_numbers = #tpu.dot_dimension_numbers<[1], [0], [0], [1], [0, 0, 1, 1], [], []>} : vector<256x128xbf16>, vector<128x128xbf16>, vector<256x128xf32> -> vector<256x128xf32>
    %122 = arith.addf %116, %121 : vector<256x128xf32>
    %c2_128 = arith.constant 2 : index
    %c17_129 = arith.constant 17 : index
    %c0_130 = arith.constant 0 : index
    %123 = vector.load %arg11[%c2_128, %c17_129, %c0_130] : memref<18x34x128xbf16, #tpu.memory_space<vmem>>, vector<16x16x128xbf16>
    %124 = vector.shape_cast %123 : vector<16x16x128xbf16> to vector<256x128xbf16>
    %c8_131 = arith.constant 8 : index
    %c0_132 = arith.constant 0 : index
    %c0_133 = arith.constant 0 : index
    %125 = vector.load %arg4[%c8_131, %c0_132, %c0_133] : memref<9x128x128xbf16, #tpu.memory_space<vmem>>, vector<1x128x128xbf16>
    %126 = vector.shape_cast %125 : vector<1x128x128xbf16> to vector<128x128xbf16>
    %cst_134 = arith.constant dense<0.000000e+00> : vector<256x128xf32>
    %127 = tpu.matmul %124, %126, %cst_134 {dimension_numbers = #tpu.dot_dimension_numbers<[1], [0], [0], [1], [0, 0, 1, 1], [], []>} : vector<256x128xbf16>, vector<128x128xbf16>, vector<256x128xf32> -> vector<256x128xf32>
    %128 = arith.addf %122, %127 : vector<256x128xf32>
    %cst_135 = arith.constant 0.000000e+00 : f32
    %129 = vector.broadcast %cst_135 : f32 to vector<256x128xf32>
    %130 = arith.cmpf oge, %128, %129 : vector<256x128xf32>
    %cst_136 = arith.constant 2.000000e-01 : f32
    %131 = vector.broadcast %cst_136 : f32 to vector<256x128xf32>
    %132 = arith.mulf %131, %128 : vector<256x128xf32>
    %133 = arith.select %130, %128, %132 : vector<256x128xi1>, vector<256x128xf32>
    %c0_137 = arith.constant 0 : index
    %c0_138 = arith.constant 0 : index
    %134 = vector.load %arg9[%c0_137, %c0_138] : memref<64x256xf32, #tpu.memory_space<vmem>>, vector<64x256xf32>
    %cst_139 = arith.constant dense<0.000000e+00> : vector<64x128xf32>
    %135 = tpu.matmul %134, %133, %cst_139 {dimension_numbers = #tpu.dot_dimension_numbers<[1], [0], [0], [1], [0, 0, 1, 1], [], []>} : vector<64x256xf32>, vector<256x128xf32>, vector<64x128xf32> -> vector<64x128xf32>
    %c0_140 = arith.constant 0 : index
    %c0_141 = arith.constant 0 : index
    %c0_142 = arith.constant 0 : index
    %136 = vector.load %arg2[%c0_140, %c0_141, %c0_142] : memref<1x64x64xbf16, #tpu.memory_space<vmem>>, vector<1x64x64xbf16>
    %137 = vector.shape_cast %136 : vector<1x64x64xbf16> to vector<64x64xbf16>
    %c0_143 = arith.constant 0 : index
    %c0_144 = arith.constant 0 : index
    %138 = vector.load %arg5[%c0_143, %c0_144] : memref<64x128xbf16, #tpu.memory_space<vmem>>, vector<64x128xbf16>
    %cst_145 = arith.constant dense<0.000000e+00> : vector<64x128xf32>
    %139 = tpu.matmul %137, %138, %cst_145 {dimension_numbers = #tpu.dot_dimension_numbers<[1], [0], [0], [1], [0, 0, 1, 1], [], []>} : vector<64x64xbf16>, vector<64x128xbf16>, vector<64x128xf32> -> vector<64x128xf32>
    %c0_146 = arith.constant 0 : index
    %c0_147 = arith.constant 0 : index
    %140 = vector.load %arg6[%c0_146, %c0_147] : memref<1x128xf32, #tpu.memory_space<vmem>>, vector<1x128xf32>
    %141 = vector.broadcast %140 : vector<1x128xf32> to vector<64x128xf32>
    %142 = arith.addf %139, %141 : vector<64x128xf32>
    %143 = arith.addf %135, %142 : vector<64x128xf32>
    %cst_148 = arith.constant 0.707106769 : f32
    %144 = vector.broadcast %cst_148 : f32 to vector<64x128xf32>
    %145 = arith.mulf %143, %144 : vector<64x128xf32>
    %c0_149 = arith.constant 0 : index
    %c0_150 = arith.constant 0 : index
    %c0_151 = arith.constant 0 : index
    %146 = vector.load %arg10[%c0_149, %c0_150, %c0_151] : memref<1x64x128xf32, #tpu.memory_space<vmem>>, vector<1x64x128xf32>
    %147 = vector.shape_cast %146 : vector<1x64x128xf32> to vector<64x128xf32>
    %148 = vector.shape_cast %145 : vector<64x128xf32> to vector<1x64x128xf32>
    tpu.vector_store %arg10[%c0_149, %c0_150, %c0_151], %148 {strides = array<i32>} : memref<1x64x128xf32, #tpu.memory_space<vmem>>, vector<1x64x128xf32>,
    return
  }
  func.func @transform_0(%arg0: i32) -> (i32, i32, i32, i32) {
    %c0_i32 = arith.constant 0 : i32
    %c0_i32_0 = arith.constant 0 : i32
    %c0_i32_1 = arith.constant 0 : i32
    %c0_i32_2 = arith.constant 0 : i32
    return %arg0, %c0_i32, %c0_i32_0, %c0_i32_1 : i32, i32, i32, i32
  }
  func.func @transform_1(%arg0: i32) -> (i32, i32, i32) {
    %c0_i32 = arith.constant 0 : i32
    %c0_i32_0 = arith.constant 0 : i32
    %c0_i32_1 = arith.constant 0 : i32
    return %arg0, %c0_i32, %c0_i32_0 : i32, i32, i32
  }
  func.func @transform_2(%arg0: i32) -> (i32, i32, i32) {
    %c0_i32 = arith.constant 0 : i32
    %c0_i32_0 = arith.constant 0 : i32
    %c0_i32_1 = arith.constant 0 : i32
    %c0_i32_2 = arith.constant 0 : i32
    return %c0_i32, %c0_i32_0, %c0_i32_1 : i32, i32, i32
  }
  func.func @transform_3(%arg0: i32) -> (i32, i32, i32) {
    %c0_i32 = arith.constant 0 : i32
    %c0_i32_0 = arith.constant 0 : i32
    %c0_i32_1 = arith.constant 0 : i32
    %c0_i32_2 = arith.constant 0 : i32
    return %c0_i32, %c0_i32_0, %c0_i32_1 : i32, i32, i32
  }
  func.func @transform_4(%arg0: i32) -> (i32, i32) {
    %c0_i32 = arith.constant 0 : i32
    %c0_i32_0 = arith.constant 0 : i32
    %c0_i32_1 = arith.constant 0 : i32
    return %c0_i32, %c0_i32_0 : i32, i32
  }
  func.func @transform_5(%arg0: i32) -> (i32, i32) {
    %c0_i32 = arith.constant 0 : i32
    %c0_i32_0 = arith.constant 0 : i32
    %c0_i32_1 = arith.constant 0 : i32
    return %c0_i32, %c0_i32_0 : i32, i32
  }
  func.func @transform_6(%arg0: i32) -> (i32, i32) {
    %c0_i32 = arith.constant 0 : i32
    %c0_i32_0 = arith.constant 0 : i32
    %c0_i32_1 = arith.constant 0 : i32
    return %c0_i32, %c0_i32_0 : i32, i32
  }
  func.func @transform_7(%arg0: i32) -> (i32, i32) {
    %c0_i32 = arith.constant 0 : i32
    %c0_i32_0 = arith.constant 0 : i32
    %c0_i32_1 = arith.constant 0 : i32
    return %c0_i32, %c0_i32_0 : i32, i32
  }
  func.func @transform_8(%arg0: i32) -> (i32, i32) {
    %c0_i32 = arith.constant 0 : i32
    %c0_i32_0 = arith.constant 0 : i32
    %c0_i32_1 = arith.constant 0 : i32
    return %c0_i32, %c0_i32_0 : i32, i32
  }
  func.func @transform_9(%arg0: i32) -> (i32, i32, i32) {
    %c0_i32 = arith.constant 0 : i32
    %c0_i32_0 = arith.constant 0 : i32
    %c0_i32_1 = arith.constant 0 : i32
    return %arg0, %c0_i32, %c0_i32_0 : i32, i32, i32
  }
}

</mosaic_0001>

<llo_original>
// kernel: residual_cc_block.1
$region0: #{residual_cc_block.1}
  #allocation0 [shape = 'u32[]', space=smem, size = 0x4, offset = 0x4, fixed_abs, tag = 'smem constant byte address 0x4 - core index']
  #allocation1 [shape = 'u32[144,128]{1,0:T(1,128)}', space=vmem, size = 0x12000, scoped, tag = 'internal scratch']
  #allocation2 [shape = 'bf16[18,34,128]{2,1,0:T(8,128)(2,1)}', space=vmem, size = 0x2d000, scoped, tag = 'scratch operand']
  %s0 = inlined_call_operand.vmem [shape: bf16[2,18,18,64], index: 0, kind: input, shape index: {}]
  %s1 = inlined_call_operand.vmem [shape: bf16[2,64,64], index: 1, kind: input, shape index: {}]
  %s2 = inlined_call_operand.vmem [shape: bf16[9,64,128], index: 2, kind: input, shape index: {}]
  %s3 = inlined_call_operand.vmem [shape: bf16[9,128,128], index: 3, kind: input, shape index: {}]
  %s4 = inlined_call_operand.vmem [shape: bf16[64,128], index: 4, kind: input, shape index: {}]
  %s5 = inlined_call_operand.vmem [shape: f32[1,128], index: 5, kind: input, shape index: {}]
  %s6 = inlined_call_operand.vmem [shape: f32[256,128], index: 6, kind: input, shape index: {}]
  %s7 = inlined_call_operand.vmem [shape: f32[256,128], index: 7, kind: input, shape index: {}]
  %s8 = inlined_call_operand.vmem [shape: f32[64,256], index: 8, kind: input, shape index: {}]
  %s9 = inlined_call_operand.hbm [shape: f32[2,64,128], index: 9, kind: output, shape index: {}]
  %s10 = sld [smem:[#allocation0]]
  $region69: #{residual_cc_block.1} parent=0
    _
  %s12 = ssub.s32 1, %s10
  %s13 = scalar_select 0, %s12, %s10
  $region1: #{residual_cc_block.1} parent=0
    #allocation3 [shape = 'u8[65536]{0}', space=vmem, size = 0x10000, scoped, tag = 'output window, operand 0']
    #allocation4 [shape = 's32[2]{0}', space=sflag, size = 0x8, scoped, tag = 'scoped memory for residual_cc_block.1']
    %14 = vsyncpa [#allocation4], 0
    %s15 = scalar_lea.sflag [#allocation4], 1
    %16 = vsyncpa %s15, 0
    loop: start=0, step=1, limit=4
    $region2: #{residual_cc_block.1} parent=1 // loop_pre_header
      _
    $region3: #{residual_cc_block.1} parent=1 // loop_header
      %s18 = sphi 0, %s22
      %p19 = scmp.ge.s32.totalorder %s18, 4
      %s28 = sphi 0, %s30
      %s31 = sphi 0, %s28
      %s32 = sphi 0, %s31
      %s48 = sphi 0, %s32
      %s54 = sphi 0, %s56
      %s57 = sphi 0, %s54
      %s58 = sphi 0, %s57
      %s74 = sphi 0, %s58
      %s78 = sphi 0, %s78
      %s80 = sphi 0, %s78
      %s81 = sphi 0, %s80
      %s95 = sphi 0, %s81
      %s99 = sphi 0, %s99
      %s101 = sphi 0, %s99
      %s102 = sphi 0, %s101
      %s116 = sphi 0, %s102
      %s120 = sphi 0, %s120
      %s122 = sphi 0, %s120
      %s123 = sphi 0, %s122
      %s137 = sphi 0, %s123
      %s141 = sphi 0, %s141
      %s143 = sphi 0, %s141
      %s144 = sphi 0, %s143
      %s158 = sphi 0, %s144
      %s162 = sphi 0, %s162
      %s164 = sphi 0, %s162
      %s165 = sphi 0, %s164
      %s179 = sphi 0, %s165
      %s183 = sphi 0, %s183
      %s185 = sphi 0, %s183
      %s186 = sphi 0, %s185
      %s200 = sphi 0, %s186
      %s204 = sphi 0, %s204
      %s206 = sphi 0, %s204
      %s207 = sphi 0, %s206
      %s221 = sphi 0, %s207
      %s227 = sphi 0, %s229
      %s230 = sphi 0, %s227
      %s231 = sphi 0, %s230
      %s247 = sphi 0, %s231
    $region4: #{residual_cc_block.1} parent=1 // loop_header_branch
      %21 = sbr.rel (%p19) target = $region8
    $region5: #{residual_cc_block.1} parent=1 // loop_body
      %s23 = ssub.s32 %s18, 1
      %s24 = ssub.s32 %s18, 2
      %s25 = sadd.s32 %s18, 1
      %s26 = ssub.s32 %s18, %s25
      %p27 = scmp.eq.s32.totalorder %s26, 0
      %s29 = sadd.s32 %s28, 1
      %s30 = scalar_select %p27, %s28, %s29
      %p33 = pneg %p27
      %p34 = scmp.eq.s32.totalorder %s18, 1
      %p35 = por %p33, %p34
      %p36 = scmp.ne.s32.totalorder %s28, %s31
      %p37 = scmp.eq.s32.totalorder %s18, 0
      %p38 = por %p36, %p37
      %p39 = scmp.ne.s32.totalorder %s28, %s31
      %p40 = scmp.eq.s32.totalorder %s23, 1
      %p41 = por %p39, %p40
      %p42 = scmp.ne.s32.totalorder %s31, %s32
      %p43 = scmp.eq.s32.totalorder %s23, 0
      %p44 = por %p42, %p43
      %p45 = scmp.ne.s32.totalorder %s31, %s32
      %p46 = scmp.eq.s32.totalorder %s24, 1
      %p47 = por %p45, %p46
      %p49 = scmp.ne.s32.totalorder %s32, %s48
      %p50 = scmp.eq.s32.totalorder %s24, 0
      %p51 = por %p49, %p50
      %s52 = ssub.s32 %s18, %s25
      %p53 = scmp.eq.s32.totalorder %s52, 0
      %s55 = sadd.s32 %s54, 1
      %s56 = scalar_select %p53, %s54, %s55
      %p59 = pneg %p53
      %p60 = scmp.eq.s32.totalorder %s18, 1
      %p61 = por %p59, %p60
      %p62 = scmp.ne.s32.totalorder %s54, %s57
      %p63 = scmp.eq.s32.totalorder %s18, 0
      %p64 = por %p62, %p63
      %p65 = scmp.ne.s32.totalorder %s54, %s57
      %p66 = scmp.eq.s32.totalorder %s23, 1
      %p67 = por %p65, %p66
      %p68 = scmp.ne.s32.totalorder %s57, %s58
      %p69 = scmp.eq.s32.totalorder %s23, 0
      %p70 = por %p68, %p69
      %p71 = scmp.ne.s32.totalorder %s57, %s58
      %p72 = scmp.eq.s32.totalorder %s24, 1
      %p73 = por %p71, %p72
      %p75 = scmp.ne.s32.totalorder %s58, %s74
      %p76 = scmp.eq.s32.totalorder %s24, 0
      %p77 = por %p75, %p76
      %s79 = sadd.s32 %s78, 1
      %p82 = scmp.eq.s32.totalorder %s18, 1
      %p83 = scmp.ne.s32.totalorder %s78, %s80
      %p84 = scmp.eq.s32.totalorder %s18, 0
      %p85 = por %p83, %p84
      %p86 = scmp.ne.s32.totalorder %s78, %s80
      %p87 = scmp.eq.s32.totalorder %s23, 1
      %p88 = por %p86, %p87
      %p89 = scmp.ne.s32.totalorder %s80, %s81
      %p90 = scmp.eq.s32.totalorder %s23, 0
      %p91 = por %p89, %p90
      %p92 = scmp.ne.s32.totalorder %s80, %s81
      %p93 = scmp.eq.s32.totalorder %s24, 1
      %p94 = por %p92, %p93
      %p96 = scmp.ne.s32.totalorder %s81, %s95
      %p97 = scmp.eq.s32.totalorder %s24, 0
      %p98 = por %p96, %p97
      %s100 = sadd.s32 %s99, 1
      %p103 = scmp.eq.s32.totalorder %s18, 1
      %p104 = scmp.ne.s32.totalorder %s99, %s101
      %p105 = scmp.eq.s32.totalorder %s18, 0
      %p106 = por %p104, %p105
      %p107 = scmp.ne.s32.totalorder %s99, %s101
      %p108 = scmp.eq.s32.totalorder %s23, 1
      %p109 = por %p107, %p108
      %p110 = scmp.ne.s32.totalorder %s101, %s102
      %p111 = scmp.eq.s32.totalorder %s23, 0
      %p112 = por %p110, %p111
      %p113 = scmp.ne.s32.totalorder %s101, %s102
      %p114 = scmp.eq.s32.totalorder %s24, 1
      %p115 = por %p113, %p114
      %p117 = scmp.ne.s32.totalorder %s102, %s116
      %p118 = scmp.eq.s32.totalorder %s24, 0
      %p119 = por %p117, %p118
      %s121 = sadd.s32 %s120, 1
      %p124 = scmp.eq.s32.totalorder %s18, 1
      %p125 = scmp.ne.s32.totalorder %s120, %s122
      %p126 = scmp.eq.s32.totalorder %s18, 0
      %p127 = por %p125, %p126
      %p128 = scmp.ne.s32.totalorder %s120, %s122
      %p129 = scmp.eq.s32.totalorder %s23, 1
      %p130 = por %p128, %p129
      %p131 = scmp.ne.s32.totalorder %s122, %s123
      %p132 = scmp.eq.s32.totalorder %s23, 0
      %p133 = por %p131, %p132
      %p134 = scmp.ne.s32.totalorder %s122, %s123
      %p135 = scmp.eq.s32.totalorder %s24, 1
      %p136 = por %p134, %p135
      %p138 = scmp.ne.s32.totalorder %s123, %s137
      %p139 = scmp.eq.s32.totalorder %s24, 0
      %p140 = por %p138, %p139
      %s142 = sadd.s32 %s141, 1
      %p145 = scmp.eq.s32.totalorder %s18, 1
      %p146 = scmp.ne.s32.totalorder %s141, %s143
      %p147 = scmp.eq.s32.totalorder %s18, 0
      %p148 = por %p146, %p147
      %p149 = scmp.ne.s32.totalorder %s141, %s143
      %p150 = scmp.eq.s32.totalorder %s23, 1
      %p151 = por %p149, %p150
      %p152 = scmp.ne.s32.totalorder %s143, %s144
      %p153 = scmp.eq.s32.totalorder %s23, 0
      %p154 = por %p152, %p153
      %p155 = scmp.ne.s32.totalorder %s143, %s144
      %p156 = scmp.eq.s32.totalorder %s24, 1
      %p157 = por %p155, %p156
      %p159 = scmp.ne.s32.totalorder %s144, %s158
      %p160 = scmp.eq.s32.totalorder %s24, 0
      %p161 = por %p159, %p160
      %s163 = sadd.s32 %s162, 1
      %p166 = scmp.eq.s32.totalorder %s18, 1
      %p167 = scmp.ne.s32.totalorder %s162, %s164
      %p168 = scmp.eq.s32.totalorder %s18, 0
      %p169 = por %p167, %p168
      %p170 = scmp.ne.s32.totalorder %s162, %s164
      %p171 = scmp.eq.s32.totalorder %s23, 1
      %p172 = por %p170, %p171
      %p173 = scmp.ne.s32.totalorder %s164, %s165
      %p174 = scmp.eq.s32.totalorder %s23, 0
      %p175 = por %p173, %p174
      %p176 = scmp.ne.s32.totalorder %s164, %s165
      %p177 = scmp.eq.s32.totalorder %s24, 1
      %p178 = por %p176, %p177
      %p180 = scmp.ne.s32.totalorder %s165, %s179
      %p181 = scmp.eq.s32.totalorder %s24, 0
      %p182 = por %p180, %p181
      %s184 = sadd.s32 %s183, 1
      %p187 = scmp.eq.s32.totalorder %s18, 1
      %p188 = scmp.ne.s32.totalorder %s183, %s185
      %p189 = scmp.eq.s32.totalorder %s18, 0
      %p190 = por %p188, %p189
      %p191 = scmp.ne.s32.totalorder %s183, %s185
      %p192 = scmp.eq.s32.totalorder %s23, 1
      %p193 = por %p191, %p192
      %p194 = scmp.ne.s32.totalorder %s185, %s186
      %p195 = scmp.eq.s32.totalorder %s23, 0
      %p196 = por %p194, %p195
      %p197 = scmp.ne.s32.totalorder %s185, %s186
      %p198 = scmp.eq.s32.totalorder %s24, 1
      %p199 = por %p197, %p198
      %p201 = scmp.ne.s32.totalorder %s186, %s200
      %p202 = scmp.eq.s32.totalorder %s24, 0
      %p203 = por %p201, %p202
      %s205 = sadd.s32 %s204, 1
      %p208 = scmp.eq.s32.totalorder %s18, 1
      %p209 = scmp.ne.s32.totalorder %s204, %s206
      %p210 = scmp.eq.s32.totalorder %s18, 0
      %p211 = por %p209, %p210
      %p212 = scmp.ne.s32.totalorder %s204, %s206
      %p213 = scmp.eq.s32.totalorder %s23, 1
      %p214 = por %p212, %p213
      %p215 = scmp.ne.s32.totalorder %s206, %s207
      %p216 = scmp.eq.s32.totalorder %s23, 0
      %p217 = por %p215, %p216
      %p218 = scmp.ne.s32.totalorder %s206, %s207
      %p219 = scmp.eq.s32.totalorder %s24, 1
      %p220 = por %p218, %p219
      %p222 = scmp.ne.s32.totalorder %s207, %s221
      %p223 = scmp.eq.s32.totalorder %s24, 0
      %p224 = por %p222, %p223
      %s225 = ssub.s32 %s18, %s25
      %p226 = scmp.eq.s32.totalorder %s225, 0
      %s228 = sadd.s32 %s227, 1
      %s229 = scalar_select %p226, %s227, %s228
      %p232 = pneg %p226
      %p233 = scmp.eq.s32.totalorder %s18, 1
      %p234 = por %p232, %p233
      %p235 = scmp.ne.s32.totalorder %s227, %s230
      %p236 = scmp.eq.s32.totalorder %s18, 0
      %p237 = por %p235, %p236
      %p238 = scmp.ne.s32.totalorder %s227, %s230
      %p239 = scmp.eq.s32.totalorder %s23, 1
      %p240 = por %p238, %p239
      %p241 = scmp.ne.s32.totalorder %s230, %s231
      %p242 = scmp.eq.s32.totalorder %s23, 0
      %p243 = por %p241, %p242
      %p244 = scmp.ne.s32.totalorder %s230, %s231
      %p245 = scmp.eq.s32.totalorder %s24, 1
      %p246 = por %p244, %p245
      %p248 = scmp.ne.s32.totalorder %s231, %s247
      %p249 = scmp.eq.s32.totalorder %s24, 0
      %p250 = por %p248, %p249
      %p251 = scmp.le.s32.totalorder 1, %s18
      %p252 = scmp.lt.s32.totalorder %s18, 3
      %p253 = pnand %p251, %p252
      %p254 = pneg %p253
      // Predicated region
      $region9: #{residual_cc_block.1} parent=5 // pred_check
        _
      $region10: #{residual_cc_block.1} parent=5 // pred_check_branch
        %256 = sbr.rel (%p253) target = $region12
      $region11: #{residual_cc_block.1} parent=5 // pred_region
        %s257 = ssub.s32 %s18, 1
        // Predicated region
        $region13: #{residual_cc_block.1} parent=11 // pred_check
          %p258 = pneg %p91
        $region14: #{residual_cc_block.1} parent=11 // pred_check_branch
          %260 = sbr.rel (%p258) target = $region16
        $region15: #{residual_cc_block.1} parent=11 // pred_region
          _
        $region16: #{residual_cc_block.1} parent=11 // pred_fallthru
          _
        // Predicated region
        $region17: #{residual_cc_block.1} parent=11 // pred_check
          %p261 = pneg %p112
        $region18: #{residual_cc_block.1} parent=11 // pred_check_branch
          %263 = sbr.rel (%p261) target = $region20
        $region19: #{residual_cc_block.1} parent=11 // pred_region
          _
        $region20: #{residual_cc_block.1} parent=11 // pred_fallthru
          _
        // Predicated region
        $region21: #{residual_cc_block.1} parent=11 // pred_check
          %p264 = pneg %p133
        $region22: #{residual_cc_block.1} parent=11 // pred_check_branch
          %266 = sbr.rel (%p264) target = $region24
        $region23: #{residual_cc_block.1} parent=11 // pred_region
          _
        $region24: #{residual_cc_block.1} parent=11 // pred_fallthru
          _
        // Predicated region
        $region25: #{residual_cc_block.1} parent=11 // pred_check
          %p267 = pneg %p154
        $region26: #{residual_cc_block.1} parent=11 // pred_check_branch
          %269 = sbr.rel (%p267) target = $region28
        $region27: #{residual_cc_block.1} parent=11 // pred_region
          _
        $region28: #{residual_cc_block.1} parent=11 // pred_fallthru
          _
        // Predicated region
        $region29: #{residual_cc_block.1} parent=11 // pred_check
          %p270 = pneg %p175
        $region30: #{residual_cc_block.1} parent=11 // pred_check_branch
          %272 = sbr.rel (%p270) target = $region32
        $region31: #{residual_cc_block.1} parent=11 // pred_region
          _
        $region32: #{residual_cc_block.1} parent=11 // pred_fallthru
          _
        // Predicated region
        $region33: #{residual_cc_block.1} parent=11 // pred_check
          %p273 = pneg %p196
        $region34: #{residual_cc_block.1} parent=11 // pred_check_branch
          %275 = sbr.rel (%p273) target = $region36
        $region35: #{residual_cc_block.1} parent=11 // pred_region
          _
        $region36: #{residual_cc_block.1} parent=11 // pred_fallthru
          _
        // Predicated region
        $region37: #{residual_cc_block.1} parent=11 // pred_check
          %p276 = pneg %p217
        $region38: #{residual_cc_block.1} parent=11 // pred_check_branch
          %278 = sbr.rel (%p276) target = $region40
        $region39: #{residual_cc_block.1} parent=11 // pred_region
          _
        $region40: #{residual_cc_block.1} parent=11 // pred_fallthru
          _
      $region12: #{residual_cc_block.1} parent=5 // pred_fallthru
        _
      %p279 = scmp.lt.s32.totalorder %s18, 2
      // Predicated region
      $region41: #{residual_cc_block.1} parent=5 // pred_check
        %p280 = pneg %p279
      $region42: #{residual_cc_block.1} parent=5 // pred_check_branch
        %282 = sbr.rel (%p280) target = $region44
      $region43: #{residual_cc_block.1} parent=5 // pred_region
        // Predicated region
        $region45: #{residual_cc_block.1} parent=43 // pred_check
          %p283 = pneg %p38
        $region46: #{residual_cc_block.1} parent=43 // pred_check_branch
          %285 = sbr.rel (%p283) target = $region48
        $region47: #{residual_cc_block.1} parent=43 // pred_region
          %p286 = scmp.lt.s32.totalorder %s18, 1
          %s287 = scalar_select %p286, %s18, 1
          %s288 = smul.addr %s287, 54
          %s289 = smul.addr %s288, 4
          %s290 = scalar_lea.vmem %s0, %s289
        $region48: #{residual_cc_block.1} parent=43 // pred_fallthru
          _
        // Predicated region
        $region49: #{residual_cc_block.1} parent=43 // pred_check
          %p291 = pneg %p64
        $region50: #{residual_cc_block.1} parent=43 // pred_check_branch
          %293 = sbr.rel (%p291) target = $region52
        $region51: #{residual_cc_block.1} parent=43 // pred_region
          %p294 = scmp.lt.s32.totalorder %s18, 1
          %s295 = scalar_select %p294, %s18, 1
          %s296 = smul.addr %s295, 8
          %s297 = smul.addr %s296, 4
          %s298 = scalar_lea.vmem %s1, %s297
        $region52: #{residual_cc_block.1} parent=43 // pred_fallthru
          _
      $region44: #{residual_cc_block.1} parent=5 // pred_fallthru
        _
      %p299 = scmp.le.s32.totalorder 1, %s18
      %p300 = scmp.lt.s32.totalorder %s18, 3
      %p301 = pnand %p299, %p300
      %p302 = pneg %p301
      // Predicated region
      $region53: #{residual_cc_block.1} parent=5 // pred_check
        _
      $region54: #{residual_cc_block.1} parent=5 // pred_check_branch
        %304 = sbr.rel (%p301) target = $region56
      $region55: #{residual_cc_block.1} parent=5 // pred_region
        %s305 = ssub.s32 %s18, 1
        %p306 = scmp.lt.s32.totalorder %s23, 1
        %s307 = scalar_select %p306, %s23, 1
        %s308 = smul.addr %s307, 54
        %s309 = smul.addr %s308, 4
        %s310 = scalar_lea.vmem %s0, %s309
        %p311 = pneg %p44
        %p312 = pneg %p41
        %p313 = scmp.lt.s32.totalorder %s23, 1
        %s314 = scalar_select %p313, %s23, 1
        %s315 = smul.addr %s314, 8
        %s316 = smul.addr %s315, 4
        %s317 = scalar_lea.vmem %s1, %s316
        %p318 = pneg %p70
        %p319 = pneg %p67
        %p320 = pneg %p91
        %p321 = pneg %p88
        %p322 = pneg %p112
        %p323 = pneg %p109
        %p324 = pneg %p133
        %p325 = pneg %p130
        %p326 = pneg %p154
        %p327 = pneg %p151
        %p328 = pneg %p175
        %p329 = pneg %p172
        %p330 = pneg %p196
        %p331 = pneg %p193
        %p332 = pneg %p217
        %p333 = pneg %p214
        %p334 = pneg %p243
        %p335 = pneg %p240
        %s336 = sand.u32 %s230, 1
        %s337 = scalar_lea.sflag [#allocation4], %s336
        %s338 = sand.u32 %s230, 1
        %s339 = smul.addr %s338, 64
        %s340 = scalar_lea.vmem [#allocation3], %s339
        %p341 = scmp.lt.s32.totalorder %s23, 1
        %s342 = scalar_select %p341, %s23, 1
        %s343 = smul.addr %s342, 54
        %s344 = smul.addr %s343, 4
        %s345 = scalar_lea.vmem %s0, %s344
        %p346 = scmp.lt.s32.totalorder %s23, 1
        %s347 = scalar_select %p346, %s23, 1
        %s348 = smul.addr %s347, 8
        %s349 = smul.addr %s348, 4
        %s350 = scalar_lea.vmem %s1, %s349
        %v352 = vld [vmem:[%s6] sm:$0xff]
        %v353 = vld [vmem:[%s6 + $0x8] sm:$0xff]
        %v354 = vld [vmem:[%s6 + $0x10] sm:$0xff]
        %v355 = vld [vmem:[%s6 + $0x18] sm:$0xff]
        %v356 = vld [vmem:[%s6 + $0x20] sm:$0xff]
        %v357 = vld [vmem:[%s6 + $0x28] sm:$0xff]
        %v358 = vld [vmem:[%s6 + $0x30] sm:$0xff]
        %v359 = vld [vmem:[%s6 + $0x38] sm:$0xff]
        %v360 = vld [vmem:[%s6 + $0x40] sm:$0xff]
        %v361 = vld [vmem:[%s6 + $0x48] sm:$0xff]
        %v362 = vld [vmem:[%s6 + $0x50] sm:$0xff]
        %v363 = vld [vmem:[%s6 + $0x58] sm:$0xff]
        %v364 = vld [vmem:[%s6 + $0x60] sm:$0xff]
        %v365 = vld [vmem:[%s6 + $0x68] sm:$0xff]
        %v366 = vld [vmem:[%s6 + $0x70] sm:$0xff]
        %v367 = vld [vmem:[%s6 + $0x78] sm:$0xff]
        %v368 = vld [vmem:[%s6 + $0x80] sm:$0xff]
        %v369 = vld [vmem:[%s6 + $0x88] sm:$0xff]
        %v370 = vld [vmem:[%s6 + $0x90] sm:$0xff]
        %v371 = vld [vmem:[%s6 + $0x98] sm:$0xff]
        %v372 = vld [vmem:[%s6 + $0xa0] sm:$0xff]
        %v373 = vld [vmem:[%s6 + $0xa8] sm:$0xff]
        %v374 = vld [vmem:[%s6 + $0xb0] sm:$0xff]
        %v375 = vld [vmem:[%s6 + $0xb8] sm:$0xff]
        %v376 = vld [vmem:[%s6 + $0xc0] sm:$0xff]
        %v377 = vld [vmem:[%s6 + $0xc8] sm:$0xff]
        %v378 = vld [vmem:[%s6 + $0xd0] sm:$0xff]
        %v379 = vld [vmem:[%s6 + $0xd8] sm:$0xff]
        %v380 = vld [vmem:[%s6 + $0xe0] sm:$0xff]
        %v381 = vld [vmem:[%s6 + $0xe8] sm:$0xff]
        %v382 = vld [vmem:[%s6 + $0xf0] sm:$0xff]
        %v383 = vld [vmem:[%s6 + $0xf8] sm:$0xff]
        %v384 = vld [vmem:[%s345] sm:$0xf]
        %v385 = vld [vmem:[%s345 + $0x4] sm:$0xf]
        %v386 = vld [vmem:[%s345 + $0xc] sm:$0xf]
        %v387 = vld [vmem:[%s345 + $0x10] sm:$0xf]
        %v388 = vld [vmem:[%s345 + $0x18] sm:$0xf]
        %v389 = vld [vmem:[%s345 + $0x1c] sm:$0xf]
        %v390 = vld [vmem:[%s345 + $0x24] sm:$0xf]
        %v391 = vld [vmem:[%s345 + $0x28] sm:$0xf]
        %v392 = vld [vmem:[%s345 + $0x30] sm:$0xf]
        %v393 = vld [vmem:[%s345 + $0x34] sm:$0xf]
        %v394 = vld [vmem:[%s345 + $0x3c] sm:$0xf]
        %v395 = vld [vmem:[%s345 + $0x40] sm:$0xf]
        %v396 = vld [vmem:[%s345 + $0x48] sm:$0xf]
        %v397 = vld [vmem:[%s345 + $0x4c] sm:$0xf]
        %v398 = vld [vmem:[%s345 + $0x54] sm:$0xf]
        %v399 = vld [vmem:[%s345 + $0x58] sm:$0xf]
        %v400 = vld [vmem:[%s345 + $0x60] sm:$0xf]
        %v401 = vld [vmem:[%s345 + $0x64] sm:$0xf]
        %v402 = vld [vmem:[%s345 + $0x6c] sm:$0xf]
        %v403 = vld [vmem:[%s345 + $0x70] sm:$0xf]
        %v404 = vld [vmem:[%s345 + $0x78] sm:$0xf]
        %v405 = vld [vmem:[%s345 + $0x7c] sm:$0xf]
        %v406 = vld [vmem:[%s345 + $0x84] sm:$0xf]
        %v407 = vld [vmem:[%s345 + $0x88] sm:$0xf]
        %v408 = vld [vmem:[%s345 + $0x90] sm:$0xf]
        %v409 = vld [vmem:[%s345 + $0x94] sm:$0xf]
        %v410 = vld [vmem:[%s345 + $0x9c] sm:$0xf]
        %v411 = vld [vmem:[%s345 + $0xa0] sm:$0xf]
        %v412 = vld [vmem:[%s345 + $0xa8] sm:$0xf]
        %v413 = vld [vmem:[%s345 + $0xac] sm:$0xf]
        %v414 = vld [vmem:[%s345 + $0xb4] sm:$0xf]
        %v415 = vld [vmem:[%s345 + $0xb8] sm:$0xf]
        %v416 = vld [vmem:[%s2] sm:$0xf]
        %v417 = vld [vmem:[%s2 + $0x4] sm:$0xf]
        %v418 = vld [vmem:[%s2 + $0x8] sm:$0xf]
        %v419 = vld [vmem:[%s2 + $0xc] sm:$0xf]
        %v420 = vld [vmem:[%s2 + $0x10] sm:$0xf]
        %v421 = vld [vmem:[%s2 + $0x14] sm:$0xf]
        %v422 = vld [vmem:[%s2 + $0x18] sm:$0xf]
        %v423 = vld [vmem:[%s2 + $0x1c] sm:$0xf]
        %v456 = vunpack.c.l.b16 %v384
        %v457 = vunpack.c.l.b16 %v385
        %v458 = vunpack.c.l.b16 %v386
        %v459 = vunpack.c.l.b16 %v387
        %v460 = vunpack.c.l.b16 %v388
        %v461 = vunpack.c.l.b16 %v389
        %v462 = vunpack.c.l.b16 %v390
        %v463 = vunpack.c.l.b16 %v391
        %v464 = vunpack.c.l.b16 %v392
        %v465 = vunpack.c.l.b16 %v393
        %v466 = vunpack.c.l.b16 %v394
        %v467 = vunpack.c.l.b16 %v395
        %v468 = vunpack.c.l.b16 %v396
        %v469 = vunpack.c.l.b16 %v397
        %v470 = vunpack.c.l.b16 %v398
        %v471 = vunpack.c.l.b16 %v399
        %v472 = vunpack.c.l.b16 %v400
        %v473 = vunpack.c.l.b16 %v401
        %v474 = vunpack.c.l.b16 %v402
        %v475 = vunpack.c.l.b16 %v403
        %v476 = vunpack.c.l.b16 %v404
        %v477 = vunpack.c.l.b16 %v405
        %v478 = vunpack.c.l.b16 %v406
        %v479 = vunpack.c.l.b16 %v407
        %v480 = vunpack.c.l.b16 %v408
        %v481 = vunpack.c.l.b16 %v409
        %v482 = vunpack.c.l.b16 %v410
        %v483 = vunpack.c.l.b16 %v411
        %v484 = vunpack.c.l.b16 %v412
        %v485 = vunpack.c.l.b16 %v413
        %v486 = vunpack.c.l.b16 %v414
        %v487 = vunpack.c.l.b16 %v415
        %v488 = vpack.c.b16 %v457, %v456
        %v489 = vpack.c.b16 %v459, %v458
        %v490 = vpack.c.b16 %v461, %v460
        %v491 = vpack.c.b16 %v463, %v462
        %v492 = vpack.c.b16 %v465, %v464
        %v493 = vpack.c.b16 %v467, %v466
        %v494 = vpack.c.b16 %v469, %v468
        %v495 = vpack.c.b16 %v471, %v470
        %v496 = vpack.c.b16 %v473, %v472
        %v497 = vpack.c.b16 %v475, %v474
        %v498 = vpack.c.b16 %v477, %v476
        %v499 = vpack.c.b16 %v479, %v478
        %v500 = vpack.c.b16 %v481, %v480
        %v501 = vpack.c.b16 %v483, %v482
        %v502 = vpack.c.b16 %v485, %v484
        %v503 = vpack.c.b16 %v487, %v486
        %v512 = vunpack.c.l.b16 %v416
        %v513 = vunpack.c.l.b16 %v417
        %v514 = vunpack.c.l.b16 %v418
        %v515 = vunpack.c.l.b16 %v419
        %v516 = vunpack.c.l.b16 %v420
        %v517 = vunpack.c.l.b16 %v421
        %v518 = vunpack.c.l.b16 %v422
        %v519 = vunpack.c.l.b16 %v423
        %v520 = vpack.c.b16 %v513, %v512
        %v521 = vpack.c.b16 %v515, %v514
        %v522 = vpack.c.b16 %v517, %v516
        %v523 = vpack.c.b16 %v519, %v518
        %vm528 = vcmask 523264
        %v530 = vsel %vm528, %v488, 0
        %v533 = vsel %vm528, %v489, 0
        %v536 = vsel %vm528, %v490, 0
        %v539 = vsel %vm528, %v491, 0
        %v542 = vsel %vm528, %v492, 0
        %v545 = vsel %vm528, %v493, 0
        %v548 = vsel %vm528, %v494, 0
        %v551 = vsel %vm528, %v495, 0
        %v554 = vsel %vm528, %v496, 0
        %v557 = vsel %vm528, %v497, 0
        %v560 = vsel %vm528, %v498, 0
        %v563 = vsel %vm528, %v499, 0
        %v566 = vsel %vm528, %v500, 0
        %v569 = vsel %vm528, %v501, 0
        %v572 = vsel %vm528, %v502, 0
        %v575 = vsel %vm528, %v503, 0
        %577 = vmatprep.subr.bf16.mxu0 0
        %578 = vmatpush1.bf16.msra.mxu0 %v520
        %579 = vmatprep.subr.bf16.mxu0 0
        %580 = vmatpush1.bf16.msra.mxu0 %v521
        %581 = vmatprep.subr.bf16.mxu0 0
        %582 = vmatpush1.bf16.msra.mxu0 %v522
        %583 = vmatprep.subr.bf16.mxu0 0
        %584 = vmatpush1.bf16.msra.mxu0 %v523
        %585 = vmatprep.subr.bf16.mxu0 0
        %586 = vmatpush1.bf16.msra.mxu0 0
        %587 = vmatprep.subr.bf16.mxu0 0
        %588 = vmatpush1.bf16.msra.mxu0 0
        %589 = vmatprep.subr.bf16.mxu0 0
        %590 = vmatpush1.bf16.msra.mxu0 0
        %591 = vmatprep.subr.bf16.mxu0 0
        %592 = vmatpush1.bf16.msra.mxu0 0
        %593 = vmatprep.subr.bf16.mxu0 0
        %594 = vmatpush1.bf16.msra.mxu0 0
        %595 = vmatprep.subr.bf16.mxu0 0
        %596 = vmatpush1.bf16.msra.mxu0 0
        %597 = vmatprep.subr.bf16.mxu0 0
        %598 = vmatpush1.bf16.msra.mxu0 0
        %599 = vmatprep.subr.bf16.mxu0 0
        %600 = vmatpush1.bf16.msra.mxu0 0
        %601 = vmatprep.subr.bf16.mxu0 0
        %602 = vmatpush1.bf16.msra.mxu0 0
        %603 = vmatprep.subr.bf16.mxu0 0
        %604 = vmatpush1.bf16.msra.mxu0 0
        %605 = vmatprep.subr.bf16.mxu0 0
        %606 = vmatpush1.bf16.msra.mxu0 0
        %607 = vmatprep.subr.bf16.mxu0 0
        %608 = vmatpush1.bf16.msra.mxu0 0
        %609 = vmatprep.mubr.bf16.mxu0 0
        %610 = vmatmul.mubr.bf16.gmra.mrb[0].mxu0 %v530
        %v611 = vpop.f32.mrb[0].mxu0
        %v612 = vadd.f32 0.0, %v611
        %v613 = vpop.f32.mrb[0].mxu0
        %v614 = vpop.f32.mrb[0].mxu0
        %v615 = vadd.f32 0.0, %v614
        %v616 = vpop.f32.mrb[0].mxu0
        %617 = vmatprep.mubr.bf16.mxu0 0
        %618 = vmatmul.mubr.bf16.gmra.mrb[0].mxu0 %v533
        %v619 = vpop.f32.mrb[0].mxu0
        %v620 = vadd.f32 0.0, %v619
        %v621 = vpop.f32.mrb[0].mxu0
        %v622 = vpop.f32.mrb[0].mxu0
        %v623 = vadd.f32 0.0, %v622
        %v624 = vpop.f32.mrb[0].mxu0
        %625 = vmatprep.mubr.bf16.mxu0 0
        %626 = vmatmul.mubr.bf16.gmra.mrb[0].mxu0 %v536
        %v627 = vpop.f32.mrb[0].mxu0
        %v628 = vadd.f32 0.0, %v627
        %v629 = vpop.f32.mrb[0].mxu0
        %v630 = vpop.f32.mrb[0].mxu0
        %v631 = vadd.f32 0.0, %v630
        %v632 = vpop.f32.mrb[0].mxu0
        %633 = vmatprep.mubr.bf16.mxu0 0
        %634 = vmatmul.mubr.bf16.gmra.mrb[0].mxu0 %v539
        %v635 = vpop.f32.mrb[0].mxu0
        %v636 = vadd.f32 0.0, %v635
        %v637 = vpop.f32.mrb[0].mxu0
        %v638 = vpop.f32.mrb[0].mxu0
        %v639 = vadd.f32 0.0, %v638
        %v640 = vpop.f32.mrb[0].mxu0
        %641 = vmatprep.mubr.bf16.mxu0 0
        %642 = vmatmul.mubr.bf16.gmra.mrb[0].mxu0 %v542
        %v643 = vpop.f32.mrb[0].mxu0
        %v644 = vadd.f32 0.0, %v643
        %v645 = vpop.f32.mrb[0].mxu0
        %v646 = vpop.f32.mrb[0].mxu0
        %v647 = vadd.f32 0.0, %v646
        %v648 = vpop.f32.mrb[0].mxu0
        %649 = vmatprep.mubr.bf16.mxu0 0
        %650 = vmatmul.mubr.bf16.gmra.mrb[0].mxu0 %v545
        %v651 = vpop.f32.mrb[0].mxu0
        %v652 = vadd.f32 0.0, %v651
        %v653 = vpop.f32.mrb[0].mxu0
        %v654 = vpop.f32.mrb[0].mxu0
        %v655 = vadd.f32 0.0, %v654
        %v656 = vpop.f32.mrb[0].mxu0
        %657 = vmatprep.mubr.bf16.mxu0 0
        %658 = vmatmul.mubr.bf16.gmra.mrb[0].mxu0 %v548
        %v659 = vpop.f32.mrb[0].mxu0
        %v660 = vadd.f32 0.0, %v659
        %v661 = vpop.f32.mrb[0].mxu0
        %v662 = vpop.f32.mrb[0].mxu0
        %v663 = vadd.f32 0.0, %v662
        %v664 = vpop.f32.mrb[0].mxu0
        %665 = vmatprep.mubr.bf16.mxu0 0
        %666 = vmatmul.mubr.bf16.gmra.mrb[0].mxu0 %v551
        %v667 = vpop.f32.mrb[0].mxu0
        %v668 = vadd.f32 0.0, %v667
        %v669 = vpop.f32.mrb[0].mxu0
        %v670 = vpop.f32.mrb[0].mxu0
        %v671 = vadd.f32 0.0, %v670
        %v672 = vpop.f32.mrb[0].mxu0
        %673 = vmatprep.mubr.bf16.mxu0 0
        %674 = vmatmul.mubr.bf16.gmra.mrb[0].mxu0 %v554
        %v675 = vpop.f32.mrb[0].mxu0
        %v676 = vadd.f32 0.0, %v675
        %v677 = vpop.f32.mrb[0].mxu0
        %v678 = vpop.f32.mrb[0].mxu0
        %v679 = vadd.f32 0.0, %v678
        %v680 = vpop.f32.mrb[0].mxu0
        %681 = vmatprep.mubr.bf16.mxu0 0
        %682 = vmatmul.mubr.bf16.gmra.mrb[0].mxu0 %v557
        %v683 = vpop.f32.mrb[0].mxu0
        %v684 = vadd.f32 0.0, %v683
        %v685 = vpop.f32.mrb[0].mxu0
        %v686 = vpop.f32.mrb[0].mxu0
        %v687 = vadd.f32 0.0, %v686
        %v688 = vpop.f32.mrb[0].mxu0
        %689 = vmatprep.mubr.bf16.mxu0 0
        %690 = vmatmul.mubr.bf16.gmra.mrb[0].mxu0 %v560
        %v691 = vpop.f32.mrb[0].mxu0
        %v692 = vadd.f32 0.0, %v691
        %v693 = vpop.f32.mrb[0].mxu0
        %v694 = vpop.f32.mrb[0].mxu0
        %v695 = vadd.f32 0.0, %v694
        %v696 = vpop.f32.mrb[0].mxu0
        %697 = vmatprep.mubr.bf16.mxu0 0
        %698 = vmatmul.mubr.bf16.gmra.mrb[0].mxu0 %v563
        %v699 = vpop.f32.mrb[0].mxu0
        %v700 = vadd.f32 0.0, %v699
        %v701 = vpop.f32.mrb[0].mxu0
        %v702 = vpop.f32.mrb[0].mxu0
        %v703 = vadd.f32 0.0, %v702
        %v704 = vpop.f32.mrb[0].mxu0
        %705 = vmatprep.mubr.bf16.mxu0 0
        %706 = vmatmul.mubr.bf16.gmra.mrb[0].mxu0 %v566
        %v707 = vpop.f32.mrb[0].mxu0
        %v708 = vadd.f32 0.0, %v707
        %v709 = vpop.f32.mrb[0].mxu0
        %v710 = vpop.f32.mrb[0].mxu0
        %v711 = vadd.f32 0.0, %v710
        %v712 = vpop.f32.mrb[0].mxu0
        %713 = vmatprep.mubr.bf16.mxu0 0
        %714 = vmatmul.mubr.bf16.gmra.mrb[0].mxu0 %v569
        %v715 = vpop.f32.mrb[0].mxu0
        %v716 = vadd.f32 0.0, %v715
        %v717 = vpop.f32.mrb[0].mxu0
        %v718 = vpop.f32.mrb[0].mxu0
        %v719 = vadd.f32 0.0, %v718
        %v720 = vpop.f32.mrb[0].mxu0
        %721 = vmatprep.mubr.bf16.mxu0 0
        %722 = vmatmul.mubr.bf16.gmra.mrb[0].mxu0 %v572
        %v723 = vpop.f32.mrb[0].mxu0
        %v724 = vadd.f32 0.0, %v723
        %v725 = vpop.f32.mrb[0].mxu0
        %v726 = vpop.f32.mrb[0].mxu0
        %v727 = vadd.f32 0.0, %v726
        %v728 = vpop.f32.mrb[0].mxu0
        %729 = vmatprep.mubr.bf16.mxu0 0
        %730 = vmatmul.mubr.bf16.gmra.mrb[0].mxu0 %v575
        %v731 = vpop.f32.mrb[0].mxu0
        %v732 = vadd.f32 0.0, %v731
        %v733 = vpop.f32.mrb[0].mxu0
        %v734 = vpop.f32.mrb[0].mxu0
        %v735 = vadd.f32 0.0, %v734
        %v736 = vpop.f32.mrb[0].mxu0
        %737 = vdwg.mxu0
        %v738 = vadd.f32 %v352, %v612
        %v739 = vadd.f32 %v353, %v615
        %v740 = vadd.f32 %v354, %v620
        %v741 = vadd.f32 %v355, %v623
        %v742 = vadd.f32 %v356, %v628
        %v743 = vadd.f32 %v357, %v631
        %v744 = vadd.f32 %v358, %v636
        %v745 = vadd.f32 %v359, %v639
        %v746 = vadd.f32 %v360, %v644
        %v747 = vadd.f32 %v361, %v647
        %v748 = vadd.f32 %v362, %v652
        %v749 = vadd.f32 %v363, %v655
        %v750 = vadd.f32 %v364, %v660
        %v751 = vadd.f32 %v365, %v663
        %v752 = vadd.f32 %v366, %v668
        %v753 = vadd.f32 %v367, %v671
        %v754 = vadd.f32 %v368, %v676
        %v755 = vadd.f32 %v369, %v679
        %v756 = vadd.f32 %v370, %v684
        %v757 = vadd.f32 %v371, %v687
        %v758 = vadd.f32 %v372, %v692
        %v759 = vadd.f32 %v373, %v695
        %v760 = vadd.f32 %v374, %v700
        %v761 = vadd.f32 %v375, %v703
        %v762 = vadd.f32 %v376, %v708
        %v763 = vadd.f32 %v377, %v711
        %v764 = vadd.f32 %v378, %v716
        %v765 = vadd.f32 %v379, %v719
        %v766 = vadd.f32 %v380, %v724
        %v767 = vadd.f32 %v381, %v727
        %v768 = vadd.f32 %v382, %v732
        %v769 = vadd.f32 %v383, %v735
        %v770 = vld [vmem:[%s345] sm:$0xf]
        %v771 = vld [vmem:[%s345 + $0x4] sm:$0xf]
        %v772 = vld [vmem:[%s345 + $0x8] sm:$0x1]
        %v773 = vld [vmem:[%s345 + $0xc] sm:$0xf]
        %v774 = vld [vmem:[%s345 + $0x10] sm:$0xf]
        %v775 = vld [vmem:[%s345 + $0x14] sm:$0x1]
        %v776 = vld [vmem:[%s345 + $0x18] sm:$0xf]
        %v777 = vld [vmem:[%s345 + $0x1c] sm:$0xf]
        %v778 = vld [vmem:[%s345 + $0x20] sm:$0x1]
        %v779 = vld [vmem:[%s345 + $0x24] sm:$0xf]
        %v780 = vld [vmem:[%s345 + $0x28] sm:$0xf]
        %v781 = vld [vmem:[%s345 + $0x2c] sm:$0x1]
        %v782 = vld [vmem:[%s345 + $0x30] sm:$0xf]
        %v783 = vld [vmem:[%s345 + $0x34] sm:$0xf]
        %v784 = vld [vmem:[%s345 + $0x38] sm:$0x1]
        %v785 = vld [vmem:[%s345 + $0x3c] sm:$0xf]
        %v786 = vld [vmem:[%s345 + $0x40] sm:$0xf]
        %v787 = vld [vmem:[%s345 + $0x44] sm:$0x1]
        %v788 = vld [vmem:[%s345 + $0x48] sm:$0xf]
        %v789 = vld [vmem:[%s345 + $0x4c] sm:$0xf]
        %v790 = vld [vmem:[%s345 + $0x50] sm:$0x1]
        %v791 = vld [vmem:[%s345 + $0x54] sm:$0xf]
        %v792 = vld [vmem:[%s345 + $0x58] sm:$0xf]
        %v793 = vld [vmem:[%s345 + $0x5c] sm:$0x1]
        %v794 = vld [vmem:[%s345 + $0x60] sm:$0xf]
        %v795 = vld [vmem:[%s345 + $0x64] sm:$0xf]
        %v796 = vld [vmem:[%s345 + $0x68] sm:$0x1]
        %v797 = vld [vmem:[%s345 + $0x6c] sm:$0xf]
        %v798 = vld [vmem:[%s345 + $0x70] sm:$0xf]
        %v799 = vld [vmem:[%s345 + $0x74] sm:$0x1]
        %v800 = vld [vmem:[%s345 + $0x78] sm:$0xf]
        %v801 = vld [vmem:[%s345 + $0x7c] sm:$0xf]
        %v802 = vld [vmem:[%s345 + $0x80] sm:$0x1]
        %v803 = vld [vmem:[%s345 + $0x84] sm:$0xf]
        %v804 = vld [vmem:[%s345 + $0x88] sm:$0xf]
        %v805 = vld [vmem:[%s345 + $0x8c] sm:$0x1]
        %v806 = vld [vmem:[%s345 + $0x90] sm:$0xf]
        %v807 = vld [vmem:[%s345 + $0x94] sm:$0xf]
        %v808 = vld [vmem:[%s345 + $0x98] sm:$0x1]
        %v809 = vld [vmem:[%s345 + $0x9c] sm:$0xf]
        %v810 = vld [vmem:[%s345 + $0xa0] sm:$0xf]
        %v811 = vld [vmem:[%s345 + $0xa4] sm:$0x1]
        %v812 = vld [vmem:[%s345 + $0xa8] sm:$0xf]
        %v813 = vld [vmem:[%s345 + $0xac] sm:$0xf]
        %v814 = vld [vmem:[%s345 + $0xb0] sm:$0x1]
        %v815 = vld [vmem:[%s345 + $0xb4] sm:$0xf]
        %v816 = vld [vmem:[%s345 + $0xb8] sm:$0xf]
        %v817 = vld [vmem:[%s345 + $0xbc] sm:$0x1]
        %vm818 = vsmask.f32 3328
        %vm819 = vsmask.f32 7440
        %vm820 = vmor %vm818, %vm819
        %v822 = vshrl.u32 %v770, 16
        %v824 = vrot.slane %v822, 4
        %v825 = vshll.u32 %v770, 16
        %v827 = vrot.slane %v825, 5
        %v828 = vor.u32 %v824, %v827
        %v829 = vrot.slane %v828, 4
        %v831 = vshll.u32 %v771, 16
        %v833 = vrot.slane %v831, 5
        %v834 = vsel %vm820, %v829, %v833
        %v835 = vshrl.u32 %v771, 16
        %v837 = vrot.slane %v835, 4
        %v838 = vor.u32 %v837, %v833
        %v839 = vrot.slane %v838, 4
        %v841 = vshll.u32 %v772, 16
        %v843 = vrot.slane %v841, 5
        %v844 = vsel %vm820, %v839, %v843
        %v846 = vshrl.u32 %v773, 16
        %v848 = vrot.slane %v846, 4
        %v849 = vshll.u32 %v773, 16
        %v851 = vrot.slane %v849, 5
        %v852 = vor.u32 %v848, %v851
        %v853 = vrot.slane %v852, 4
        %v855 = vshll.u32 %v774, 16
        %v857 = vrot.slane %v855, 5
        %v858 = vsel %vm820, %v853, %v857
        %v859 = vshrl.u32 %v774, 16
        %v861 = vrot.slane %v859, 4
        %v862 = vor.u32 %v861, %v857
        %v863 = vrot.slane %v862, 4
        %v865 = vshll.u32 %v775, 16
        %v867 = vrot.slane %v865, 5
        %v868 = vsel %vm820, %v863, %v867
        %v870 = vshrl.u32 %v776, 16
        %v872 = vrot.slane %v870, 4
        %v873 = vshll.u32 %v776, 16
        %v875 = vrot.slane %v873, 5
        %v876 = vor.u32 %v872, %v875
        %v877 = vrot.slane %v876, 4
        %v879 = vshll.u32 %v777, 16
        %v881 = vrot.slane %v879, 5
        %v882 = vsel %vm820, %v877, %v881
        %v883 = vshrl.u32 %v777, 16
        %v885 = vrot.slane %v883, 4
        %v886 = vor.u32 %v885, %v881
        %v887 = vrot.slane %v886, 4
        %v889 = vshll.u32 %v778, 16
        %v891 = vrot.slane %v889, 5
        %v892 = vsel %vm820, %v887, %v891
        %v894 = vshrl.u32 %v779, 16
        %v896 = vrot.slane %v894, 4
        %v897 = vshll.u32 %v779, 16
        %v899 = vrot.slane %v897, 5
        %v900 = vor.u32 %v896, %v899
        %v901 = vrot.slane %v900, 4
        %v903 = vshll.u32 %v780, 16
        %v905 = vrot.slane %v903, 5
        %v906 = vsel %vm820, %v901, %v905
        %v907 = vshrl.u32 %v780, 16
        %v909 = vrot.slane %v907, 4
        %v910 = vor.u32 %v909, %v905
        %v911 = vrot.slane %v910, 4
        %v913 = vshll.u32 %v781, 16
        %v915 = vrot.slane %v913, 5
        %v916 = vsel %vm820, %v911, %v915
        %v918 = vshrl.u32 %v782, 16
        %v920 = vrot.slane %v918, 4
        %v921 = vshll.u32 %v782, 16
        %v923 = vrot.slane %v921, 5
        %v924 = vor.u32 %v920, %v923
        %v925 = vrot.slane %v924, 4
        %v927 = vshll.u32 %v783, 16
        %v929 = vrot.slane %v927, 5
        %v930 = vsel %vm820, %v925, %v929
        %v931 = vshrl.u32 %v783, 16
        %v933 = vrot.slane %v931, 4
        %v934 = vor.u32 %v933, %v929
        %v935 = vrot.slane %v934, 4
        %v937 = vshll.u32 %v784, 16
        %v939 = vrot.slane %v937, 5
        %v940 = vsel %vm820, %v935, %v939
        %v942 = vshrl.u32 %v785, 16
        %v944 = vrot.slane %v942, 4
        %v945 = vshll.u32 %v785, 16
        %v947 = vrot.slane %v945, 5
        %v948 = vor.u32 %v944, %v947
        %v949 = vrot.slane %v948, 4
        %v951 = vshll.u32 %v786, 16
        %v953 = vrot.slane %v951, 5
        %v954 = vsel %vm820, %v949, %v953
        %v955 = vshrl.u32 %v786, 16
        %v957 = vrot.slane %v955, 4
        %v958 = vor.u32 %v957, %v953
        %v959 = vrot.slane %v958, 4
        %v961 = vshll.u32 %v787, 16
        %v963 = vrot.slane %v961, 5
        %v964 = vsel %vm820, %v959, %v963
        %v966 = vshrl.u32 %v788, 16
        %v968 = vrot.slane %v966, 4
        %v969 = vshll.u32 %v788, 16
        %v971 = vrot.slane %v969, 5
        %v972 = vor.u32 %v968, %v971
        %v973 = vrot.slane %v972, 4
        %v975 = vshll.u32 %v789, 16
        %v977 = vrot.slane %v975, 5
        %v978 = vsel %vm820, %v973, %v977
        %v979 = vshrl.u32 %v789, 16
        %v981 = vrot.slane %v979, 4
        %v982 = vor.u32 %v981, %v977
        %v983 = vrot.slane %v982, 4
        %v985 = vshll.u32 %v790, 16
        %v987 = vrot.slane %v985, 5
        %v988 = vsel %vm820, %v983, %v987
        %v990 = vshrl.u32 %v791, 16
        %v992 = vrot.slane %v990, 4
        %v993 = vshll.u32 %v791, 16
        %v995 = vrot.slane %v993, 5
        %v996 = vor.u32 %v992, %v995
        %v997 = vrot.slane %v996, 4
        %v999 = vshll.u32 %v792, 16
        %v1001 = vrot.slane %v999, 5
        %v1002 = vsel %vm820, %v997, %v1001
        %v1003 = vshrl.u32 %v792, 16
        %v1005 = vrot.slane %v1003, 4
        %v1006 = vor.u32 %v1005, %v1001
        %v1007 = vrot.slane %v1006, 4
        %v1009 = vshll.u32 %v793, 16
        %v1011 = vrot.slane %v1009, 5
        %v1012 = vsel %vm820, %v1007, %v1011
        %v1014 = vshrl.u32 %v794, 16
        %v1016 = vrot.slane %v1014, 4
        %v1017 = vshll.u32 %v794, 16
        %v1019 = vrot.slane %v1017, 5
        %v1020 = vor.u32 %v1016, %v1019
        %v1021 = vrot.slane %v1020, 4
        %v1023 = vshll.u32 %v795, 16
        %v1025 = vrot.slane %v1023, 5
        %v1026 = vsel %vm820, %v1021, %v1025
        %v1027 = vshrl.u32 %v795, 16
        %v1029 = vrot.slane %v1027, 4
        %v1030 = vor.u32 %v1029, %v1025
        %v1031 = vrot.slane %v1030, 4
        %v1033 = vshll.u32 %v796, 16
        %v1035 = vrot.slane %v1033, 5
        %v1036 = vsel %vm820, %v1031, %v1035
        %v1038 = vshrl.u32 %v797, 16
        %v1040 = vrot.slane %v1038, 4
        %v1041 = vshll.u32 %v797, 16
        %v1043 = vrot.slane %v1041, 5
        %v1044 = vor.u32 %v1040, %v1043
        %v1045 = vrot.slane %v1044, 4
        %v1047 = vshll.u32 %v798, 16
        %v1049 = vrot.slane %v1047, 5
        %v1050 = vsel %vm820, %v1045, %v1049
        %v1051 = vshrl.u32 %v798, 16
        %v1053 = vrot.slane %v1051, 4
        %v1054 = vor.u32 %v1053, %v1049
        %v1055 = vrot.slane %v1054, 4
        %v1057 = vshll.u32 %v799, 16
        %v1059 = vrot.slane %v1057, 5
        %v1060 = vsel %vm820, %v1055, %v1059
        %v1062 = vshrl.u32 %v800, 16
        %v1064 = vrot.slane %v1062, 4
        %v1065 = vshll.u32 %v800, 16
        %v1067 = vrot.slane %v1065, 5
        %v1068 = vor.u32 %v1064, %v1067
        %v1069 = vrot.slane %v1068, 4
        %v1071 = vshll.u32 %v801, 16
        %v1073 = vrot.slane %v1071, 5
        %v1074 = vsel %vm820, %v1069, %v1073
        %v1075 = vshrl.u32 %v801, 16
        %v1077 = vrot.slane %v1075, 4
        %v1078 = vor.u32 %v1077, %v1073
        %v1079 = vrot.slane %v1078, 4
        %v1081 = vshll.u32 %v802, 16
        %v1083 = vrot.slane %v1081, 5
        %v1084 = vsel %vm820, %v1079, %v1083
        %v1086 = vshrl.u32 %v803, 16
        %v1088 = vrot.slane %v1086, 4
        %v1089 = vshll.u32 %v803, 16
        %v1091 = vrot.slane %v1089, 5
        %v1092 = vor.u32 %v1088, %v1091
        %v1093 = vrot.slane %v1092, 4
        %v1095 = vshll.u32 %v804, 16
        %v1097 = vrot.slane %v1095, 5
        %v1098 = vsel %vm820, %v1093, %v1097
        %v1099 = vshrl.u32 %v804, 16
        %v1101 = vrot.slane %v1099, 4
        %v1102 = vor.u32 %v1101, %v1097
        %v1103 = vrot.slane %v1102, 4
        %v1105 = vshll.u32 %v805, 16
        %v1107 = vrot.slane %v1105, 5
        %v1108 = vsel %vm820, %v1103, %v1107
        %v1110 = vshrl.u32 %v806, 16
        %v1112 = vrot.slane %v1110, 4
        %v1113 = vshll.u32 %v806, 16
        %v1115 = vrot.slane %v1113, 5
        %v1116 = vor.u32 %v1112, %v1115
        %v1117 = vrot.slane %v1116, 4
        %v1119 = vshll.u32 %v807, 16
        %v1121 = vrot.slane %v1119, 5
        %v1122 = vsel %vm820, %v1117, %v1121
        %v1123 = vshrl.u32 %v807, 16
        %v1125 = vrot.slane %v1123, 4
        %v1126 = vor.u32 %v1125, %v1121
        %v1127 = vrot.slane %v1126, 4
        %v1129 = vshll.u32 %v808, 16
        %v1131 = vrot.slane %v1129, 5
        %v1132 = vsel %vm820, %v1127, %v1131
        %v1134 = vshrl.u32 %v809, 16
        %v1136 = vrot.slane %v1134, 4
        %v1137 = vshll.u32 %v809, 16
        %v1139 = vrot.slane %v1137, 5
        %v1140 = vor.u32 %v1136, %v1139
        %v1141 = vrot.slane %v1140, 4
        %v1143 = vshll.u32 %v810, 16
        %v1145 = vrot.slane %v1143, 5
        %v1146 = vsel %vm820, %v1141, %v1145
        %v1147 = vshrl.u32 %v810, 16
        %v1149 = vrot.slane %v1147, 4
        %v1150 = vor.u32 %v1149, %v1145
        %v1151 = vrot.slane %v1150, 4
        %v1153 = vshll.u32 %v811, 16
        %v1155 = vrot.slane %v1153, 5
        %v1156 = vsel %vm820, %v1151, %v1155
        %v1158 = vshrl.u32 %v812, 16
        %v1160 = vrot.slane %v1158, 4
        %v1161 = vshll.u32 %v812, 16
        %v1163 = vrot.slane %v1161, 5
        %v1164 = vor.u32 %v1160, %v1163
        %v1165 = vrot.slane %v1164, 4
        %v1167 = vshll.u32 %v813, 16
        %v1169 = vrot.slane %v1167, 5
        %v1170 = vsel %vm820, %v1165, %v1169
        %v1171 = vshrl.u32 %v813, 16
        %v1173 = vrot.slane %v1171, 4
        %v1174 = vor.u32 %v1173, %v1169
        %v1175 = vrot.slane %v1174, 4
        %v1177 = vshll.u32 %v814, 16
        %v1179 = vrot.slane %v1177, 5
        %v1180 = vsel %vm820, %v1175, %v1179
        %v1182 = vshrl.u32 %v815, 16
        %v1184 = vrot.slane %v1182, 4
        %v1185 = vshll.u32 %v815, 16
        %v1187 = vrot.slane %v1185, 5
        %v1188 = vor.u32 %v1184, %v1187
        %v1189 = vrot.slane %v1188, 4
        %v1191 = vshll.u32 %v816, 16
        %v1193 = vrot.slane %v1191, 5
        %v1194 = vsel %vm820, %v1189, %v1193
        %v1195 = vshrl.u32 %v816, 16
        %v1197 = vrot.slane %v1195, 4
        %v1198 = vor.u32 %v1197, %v1193
        %v1199 = vrot.slane %v1198, 4
        %v1201 = vshll.u32 %v817, 16
        %v1203 = vrot.slane %v1201, 5
        %v1204 = vsel %vm820, %v1199, %v1203
        %s1205 = scalar_lea.vmem %s2, 32
        %v1206 = vld [vmem:[%s1205] sm:$0xf]
        %v1207 = vld [vmem:[%s1205 + $0x4] sm:$0xf]
        %v1208 = vld [vmem:[%s1205 + $0x8] sm:$0xf]
        %v1209 = vld [vmem:[%s1205 + $0xc] sm:$0xf]
        %v1210 = vld [vmem:[%s1205 + $0x10] sm:$0xf]
        %v1211 = vld [vmem:[%s1205 + $0x14] sm:$0xf]
        %v1212 = vld [vmem:[%s1205 + $0x18] sm:$0xf]
        %v1213 = vld [vmem:[%s1205 + $0x1c] sm:$0xf]
        %v1214 = vunpack.c.l.b16 %v834
        %v1215 = vunpack.c.l.b16 %v844
        %v1216 = vunpack.c.l.b16 %v858
        %v1217 = vunpack.c.l.b16 %v868
        %v1218 = vunpack.c.l.b16 %v882
        %v1219 = vunpack.c.l.b16 %v892
        %v1220 = vunpack.c.l.b16 %v906
        %v1221 = vunpack.c.l.b16 %v916
        %v1222 = vunpack.c.l.b16 %v930
        %v1223 = vunpack.c.l.b16 %v940
        %v1224 = vunpack.c.l.b16 %v954
        %v1225 = vunpack.c.l.b16 %v964
        %v1226 = vunpack.c.l.b16 %v978
        %v1227 = vunpack.c.l.b16 %v988
        %v1228 = vunpack.c.l.b16 %v1002
        %v1229 = vunpack.c.l.b16 %v1012
        %v1230 = vunpack.c.l.b16 %v1026
        %v1231 = vunpack.c.l.b16 %v1036
        %v1232 = vunpack.c.l.b16 %v1050
        %v1233 = vunpack.c.l.b16 %v1060
        %v1234 = vunpack.c.l.b16 %v1074
        %v1235 = vunpack.c.l.b16 %v1084
        %v1236 = vunpack.c.l.b16 %v1098
        %v1237 = vunpack.c.l.b16 %v1108
        %v1238 = vunpack.c.l.b16 %v1122
        %v1239 = vunpack.c.l.b16 %v1132
        %v1240 = vunpack.c.l.b16 %v1146
        %v1241 = vunpack.c.l.b16 %v1156
        %v1242 = vunpack.c.l.b16 %v1170
        %v1243 = vunpack.c.l.b16 %v1180
        %v1244 = vunpack.c.l.b16 %v1194
        %v1245 = vunpack.c.l.b16 %v1204
        %v1246 = vpack.c.b16 %v1215, %v1214
        %v1247 = vpack.c.b16 %v1217, %v1216
        %v1248 = vpack.c.b16 %v1219, %v1218
        %v1249 = vpack.c.b16 %v1221, %v1220
        %v1250 = vpack.c.b16 %v1223, %v1222
        %v1251 = vpack.c.b16 %v1225, %v1224
        %v1252 = vpack.c.b16 %v1227, %v1226
        %v1253 = vpack.c.b16 %v1229, %v1228
        %v1254 = vpack.c.b16 %v1231, %v1230
        %v1255 = vpack.c.b16 %v1233, %v1232
        %v1256 = vpack.c.b16 %v1235, %v1234
        %v1257 = vpack.c.b16 %v1237, %v1236
        %v1258 = vpack.c.b16 %v1239, %v1238
        %v1259 = vpack.c.b16 %v1241, %v1240
        %v1260 = vpack.c.b16 %v1243, %v1242
        %v1261 = vpack.c.b16 %v1245, %v1244
        %v1270 = vunpack.c.l.b16 %v1206
        %v1271 = vunpack.c.l.b16 %v1207
        %v1272 = vunpack.c.l.b16 %v1208
        %v1273 = vunpack.c.l.b16 %v1209
        %v1274 = vunpack.c.l.b16 %v1210
        %v1275 = vunpack.c.l.b16 %v1211
        %v1276 = vunpack.c.l.b16 %v1212
        %v1277 = vunpack.c.l.b16 %v1213
        %v1278 = vpack.c.b16 %v1271, %v1270
        %v1279 = vpack.c.b16 %v1273, %v1272
        %v1280 = vpack.c.b16 %v1275, %v1274
        %v1281 = vpack.c.b16 %v1277, %v1276
        %v1287 = vsel %vm528, %v1246, 0
        %v1290 = vsel %vm528, %v1247, 0
        %v1293 = vsel %vm528, %v1248, 0
        %v1296 = vsel %vm528, %v1249, 0
        %v1299 = vsel %vm528, %v1250, 0
        %v1302 = vsel %vm528, %v1251, 0
        %v1305 = vsel %vm528, %v1252, 0
        %v1308 = vsel %vm528, %v1253, 0
        %v1311 = vsel %vm528, %v1254, 0
        %v1314 = vsel %vm528, %v1255, 0
        %v1317 = vsel %vm528, %v1256, 0
        %v1320 = vsel %vm528, %v1257, 0
        %v1323 = vsel %vm528, %v1258, 0
        %v1326 = vsel %vm528, %v1259, 0
        %v1329 = vsel %vm528, %v1260, 0
        %v1332 = vsel %vm528, %v1261, 0
        %1334 = vmatprep.subr.bf16.mxu0 0
        %1335 = vmatpush1.bf16.msra.mxu0 %v1278
        %1336 = vmatprep.subr.bf16.mxu0 0
        %1337 = vmatpush1.bf16.msra.mxu0 %v1279
        %1338 = vmatprep.subr.bf16.mxu0 0
        %1339 = vmatpush1.bf16.msra.mxu0 %v1280
        %1340 = vmatprep.subr.bf16.mxu0 0
        %1341 = vmatpush1.bf16.msra.mxu0 %v1281
        %1342 = vmatprep.subr.bf16.mxu0 0
        %1343 = vmatpush1.bf16.msra.mxu0 0
        %1344 = vmatprep.subr.bf16.mxu0 0
        %1345 = vmatpush1.bf16.msra.mxu0 0
        %1346 = vmatprep.subr.bf16.mxu0 0
        %1347 = vmatpush1.bf16.msra.mxu0 0
        %1348 = vmatprep.subr.bf16.mxu0 0
        %1349 = vmatpush1.bf16.msra.mxu0 0
        %1350 = vmatprep.subr.bf16.mxu0 0
        %1351 = vmatpush1.bf16.msra.mxu0 0
        %1352 = vmatprep.subr.bf16.mxu0 0
        %1353 = vmatpush1.bf16.msra.mxu0 0
        %1354 = vmatprep.subr.bf16.mxu0 0
        %1355 = vmatpush1.bf16.msra.mxu0 0
        %1356 = vmatprep.subr.bf16.mxu0 0
        %1357 = vmatpush1.bf16.msra.mxu0 0
        %1358 = vmatprep.subr.bf16.mxu0 0
        %1359 = vmatpush1.bf16.msra.mxu0 0
        %1360 = vmatprep.subr.bf16.mxu0 0
        %1361 = vmatpush1.bf16.msra.mxu0 0
        %1362 = vmatprep.subr.bf16.mxu0 0
        %1363 = vmatpush1.bf16.msra.mxu0 0
        %1364 = vmatprep.subr.bf16.mxu0 0
        %1365 = vmatpush1.bf16.msra.mxu0 0
        %1366 = vmatprep.mubr.bf16.mxu0 0
        %1367 = vmatmul.mubr.bf16.gmra.mrb[0].mxu0 %v1287
        %v1368 = vpop.f32.mrb[0].mxu0
        %v1369 = vadd.f32 0.0, %v1368
        %v1370 = vpop.f32.mrb[0].mxu0
        %v1371 = vpop.f32.mrb[0].mxu0
        %v1372 = vadd.f32 0.0, %v1371
        %v1373 = vpop.f32.mrb[0].mxu0
        %1374 = vmatprep.mubr.bf16.mxu0 0
        %1375 = vmatmul.mubr.bf16.gmra.mrb[0].mxu0 %v1290
        %v1376 = vpop.f32.mrb[0].mxu0
        %v1377 = vadd.f32 0.0, %v1376
        %v1378 = vpop.f32.mrb[0].mxu0
        %v1379 = vpop.f32.mrb[0].mxu0
        %v1380 = vadd.f32 0.0, %v1379
        %v1381 = vpop.f32.mrb[0].mxu0
        %1382 = vmatprep.mubr.bf16.mxu0 0
        %1383 = vmatmul.mubr.bf16.gmra.mrb[0].mxu0 %v1293
        %v1384 = vpop.f32.mrb[0].mxu0
        %v1385 = vadd.f32 0.0, %v1384
        %v1386 = vpop.f32.mrb[0].mxu0
        %v1387 = vpop.f32.mrb[0].mxu0
        %v1388 = vadd.f32 0.0, %v1387
        %v1389 = vpop.f32.mrb[0].mxu0
        %1390 = vmatprep.mubr.bf16.mxu0 0
        %1391 = vmatmul.mubr.bf16.gmra.mrb[0].mxu0 %v1296
        %v1392 = vpop.f32.mrb[0].mxu0
        %v1393 = vadd.f32 0.0, %v1392
        %v1394 = vpop.f32.mrb[0].mxu0
        %v1395 = vpop.f32.mrb[0].mxu0
        %v1396 = vadd.f32 0.0, %v1395
        %v1397 = vpop.f32.mrb[0].mxu0
        %1398 = vmatprep.mubr.bf16.mxu0 0
        %1399 = vmatmul.mubr.bf16.gmra.mrb[0].mxu0 %v1299
        %v1400 = vpop.f32.mrb[0].mxu0
        %v1401 = vadd.f32 0.0, %v1400
        %v1402 = vpop.f32.mrb[0].mxu0
        %v1403 = vpop.f32.mrb[0].mxu0
        %v1404 = vadd.f32 0.0, %v1403
        %v1405 = vpop.f32.mrb[0].mxu0
        %1406 = vmatprep.mubr.bf16.mxu0 0
        %1407 = vmatmul.mubr.bf16.gmra.mrb[0].mxu0 %v1302
        %v1408 = vpop.f32.mrb[0].mxu0
        %v1409 = vadd.f32 0.0, %v1408
        %v1410 = vpop.f32.mrb[0].mxu0
        %v1411 = vpop.f32.mrb[0].mxu0
        %v1412 = vadd.f32 0.0, %v1411
        %v1413 = vpop.f32.mrb[0].mxu0
        %1414 = vmatprep.mubr.bf16.mxu0 0
        %1415 = vmatmul.mubr.bf16.gmra.mrb[0].mxu0 %v1305
        %v1416 = vpop.f32.mrb[0].mxu0
        %v1417 = vadd.f32 0.0, %v1416
        %v1418 = vpop.f32.mrb[0].mxu0
        %v1419 = vpop.f32.mrb[0].mxu0
        %v1420 = vadd.f32 0.0, %v1419
        %v1421 = vpop.f32.mrb[0].mxu0
        %1422 = vmatprep.mubr.bf16.mxu0 0
        %1423 = vmatmul.mubr.bf16.gmra.mrb[0].mxu0 %v1308
        %v1424 = vpop.f32.mrb[0].mxu0
        %v1425 = vadd.f32 0.0, %v1424
        %v1426 = vpop.f32.mrb[0].mxu0
        %v1427 = vpop.f32.mrb[0].mxu0
        %v1428 = vadd.f32 0.0, %v1427
        %v1429 = vpop.f32.mrb[0].mxu0
        %1430 = vmatprep.mubr.bf16.mxu0 0
        %1431 = vmatmul.mubr.bf16.gmra.mrb[0].mxu0 %v1311
        %v1432 = vpop.f32.mrb[0].mxu0
        %v1433 = vadd.f32 0.0, %v1432
        %v1434 = vpop.f32.mrb[0].mxu0
        %v1435 = vpop.f32.mrb[0].mxu0
        %v1436 = vadd.f32 0.0, %v1435
        %v1437 = vpop.f32.mrb[0].mxu0
        %1438 = vmatprep.mubr.bf16.mxu0 0
        %1439 = vmatmul.mubr.bf16.gmra.mrb[0].mxu0 %v1314
        %v1440 = vpop.f32.mrb[0].mxu0
        %v1441 = vadd.f32 0.0, %v1440
        %v1442 = vpop.f32.mrb[0].mxu0
        %v1443 = vpop.f32.mrb[0].mxu0
        %v1444 = vadd.f32 0.0, %v1443
        %v1445 = vpop.f32.mrb[0].mxu0
        %1446 = vmatprep.mubr.bf16.mxu0 0
        %1447 = vmatmul.mubr.bf16.gmra.mrb[0].mxu0 %v1317
        %v1448 = vpop.f32.mrb[0].mxu0
        %v1449 = vadd.f32 0.0, %v1448
        %v1450 = vpop.f32.mrb[0].mxu0
        %v1451 = vpop.f32.mrb[0].mxu0
        %v1452 = vadd.f32 0.0, %v1451
        %v1453 = vpop.f32.mrb[0].mxu0
        %1454 = vmatprep.mubr.bf16.mxu0 0
        %1455 = vmatmul.mubr.bf16.gmra.mrb[0].mxu0 %v1320
        %v1456 = vpop.f32.mrb[0].mxu0
        %v1457 = vadd.f32 0.0, %v1456
        %v1458 = vpop.f32.mrb[0].mxu0
        %v1459 = vpop.f32.mrb[0].mxu0
        %v1460 = vadd.f32 0.0, %v1459
        %v1461 = vpop.f32.mrb[0].mxu0
        %1462 = vmatprep.mubr.bf16.mxu0 0
        %1463 = vmatmul.mubr.bf16.gmra.mrb[0].mxu0 %v1323
        %v1464 = vpop.f32.mrb[0].mxu0
        %v1465 = vadd.f32 0.0, %v1464
        %v1466 = vpop.f32.mrb[0].mxu0
        %v1467 = vpop.f32.mrb[0].mxu0
        %v1468 = vadd.f32 0.0, %v1467
        %v1469 = vpop.f32.mrb[0].mxu0
        %1470 = vmatprep.mubr.bf16.mxu0 0
        %1471 = vmatmul.mubr.bf16.gmra.mrb[0].mxu0 %v1326
        %v1472 = vpop.f32.mrb[0].mxu0
        %v1473 = vadd.f32 0.0, %v1472
        %v1474 = vpop.f32.mrb[0].mxu0
        %v1475 = vpop.f32.mrb[0].mxu0
        %v1476 = vadd.f32 0.0, %v1475
        %v1477 = vpop.f32.mrb[0].mxu0
        %1478 = vmatprep.mubr.bf16.mxu0 0
        %1479 = vmatmul.mubr.bf16.gmra.mrb[0].mxu0 %v1329
        %v1480 = vpop.f32.mrb[0].mxu0
        %v1481 = vadd.f32 0.0, %v1480
        %v1482 = vpop.f32.mrb[0].mxu0
        %v1483 = vpop.f32.mrb[0].mxu0
        %v1484 = vadd.f32 0.0, %v1483
        %v1485 = vpop.f32.mrb[0].mxu0
        %1486 = vmatprep.mubr.bf16.mxu0 0
        %1487 = vmatmul.mubr.bf16.gmra.mrb[0].mxu0 %v1332
        %v1488 = vpop.f32.mrb[0].mxu0
        %v1489 = vadd.f32 0.0, %v1488
        %v1490 = vpop.f32.mrb[0].mxu0
        %v1491 = vpop.f32.mrb[0].mxu0
        %v1492 = vadd.f32 0.0, %v1491
        %v1493 = vpop.f32.mrb[0].mxu0
        %1494 = vdwg.mxu0
        %v1495 = vadd.f32 %v738, %v1369
        %v1496 = vadd.f32 %v739, %v1372
        %v1497 = vadd.f32 %v740, %v1377
        %v1498 = vadd.f32 %v741, %v1380
        %v1499 = vadd.f32 %v742, %v1385
        %v1500 = vadd.f32 %v743, %v1388
        %v1501 = vadd.f32 %v744, %v1393
        %v1502 = vadd.f32 %v745, %v1396
        %v1503 = vadd.f32 %v746, %v1401
        %v1504 = vadd.f32 %v747, %v1404
        %v1505 = vadd.f32 %v748, %v1409
        %v1506 = vadd.f32 %v749, %v1412
        %v1507 = vadd.f32 %v750, %v1417
        %v1508 = vadd.f32 %v751, %v1420
        %v1509 = vadd.f32 %v752, %v1425
        %v1510 = vadd.f32 %v753, %v1428
        %v1511 = vadd.f32 %v754, %v1433
        %v1512 = vadd.f32 %v755, %v1436
        %v1513 = vadd.f32 %v756, %v1441
        %v1514 = vadd.f32 %v757, %v1444
        %v1515 = vadd.f32 %v758, %v1449
        %v1516 = vadd.f32 %v759, %v1452
        %v1517 = vadd.f32 %v760, %v1457
        %v1518 = vadd.f32 %v761, %v1460
        %v1519 = vadd.f32 %v762, %v1465
        %v1520 = vadd.f32 %v763, %v1468
        %v1521 = vadd.f32 %v764, %v1473
        %v1522 = vadd.f32 %v765, %v1476
        %v1523 = vadd.f32 %v766, %v1481
        %v1524 = vadd.f32 %v767, %v1484
        %v1525 = vadd.f32 %v768, %v1489
        %v1526 = vadd.f32 %v769, %v1492
        %v1527 = vld [vmem:[%s345] sm:$0xe]
        %v1528 = vld [vmem:[%s345 + $0xc] sm:$0xe]
        %v1529 = vld [vmem:[%s345 + $0x18] sm:$0xe]
        %v1530 = vld [vmem:[%s345 + $0x24] sm:$0xe]
        %v1531 = vld [vmem:[%s345 + $0x30] sm:$0xe]
        %v1532 = vld [vmem:[%s345 + $0x3c] sm:$0xe]
        %v1533 = vld [vmem:[%s345 + $0x48] sm:$0xe]
        %v1534 = vld [vmem:[%s345 + $0x54] sm:$0xe]
        %v1535 = vld [vmem:[%s345 + $0x60] sm:$0xe]
        %v1536 = vld [vmem:[%s345 + $0x6c] sm:$0xe]
        %v1537 = vld [vmem:[%s345 + $0x78] sm:$0xe]
        %v1538 = vld [vmem:[%s345 + $0x84] sm:$0xe]
        %v1539 = vld [vmem:[%s345 + $0x90] sm:$0xe]
        %v1540 = vld [vmem:[%s345 + $0x9c] sm:$0xe]
        %v1541 = vld [vmem:[%s345 + $0xa8] sm:$0xe]
        %v1542 = vld [vmem:[%s345 + $0xb4] sm:$0xe]
        %vm1591 = vcmask 1042432
        %vm1592 = vcmask 1046532
        %vm1593 = vmor %vm1591, %vm1592
        %v1594 = vrot.slane %v1527, 5
        %v1595 = vrot.slane %v1594, 4
        %v1596 = vrot.slane %v771, 5
        %v1597 = vsel %vm1593, %v1595, %v1596
        %v1598 = vrot.slane %v1596, 4
        %v1599 = vrot.slane %v772, 5
        %v1600 = vsel %vm1593, %v1598, %v1599
        %v1601 = vrot.slane %v1528, 5
        %v1602 = vrot.slane %v1601, 4
        %v1603 = vrot.slane %v774, 5
        %v1604 = vsel %vm1593, %v1602, %v1603
        %v1605 = vrot.slane %v1603, 4
        %v1606 = vrot.slane %v775, 5
        %v1607 = vsel %vm1593, %v1605, %v1606
        %v1608 = vrot.slane %v1529, 5
        %v1609 = vrot.slane %v1608, 4
        %v1610 = vrot.slane %v777, 5
        %v1611 = vsel %vm1593, %v1609, %v1610
        %v1612 = vrot.slane %v1610, 4
        %v1613 = vrot.slane %v778, 5
        %v1614 = vsel %vm1593, %v1612, %v1613
        %v1615 = vrot.slane %v1530, 5
        %v1616 = vrot.slane %v1615, 4
        %v1617 = vrot.slane %v780, 5
        %v1618 = vsel %vm1593, %v1616, %v1617
        %v1619 = vrot.slane %v1617, 4
        %v1620 = vrot.slane %v781, 5
        %v1621 = vsel %vm1593, %v1619, %v1620
        %v1622 = vrot.slane %v1531, 5
        %v1623 = vrot.slane %v1622, 4
        %v1624 = vrot.slane %v783, 5
        %v1625 = vsel %vm1593, %v1623, %v1624
        %v1626 = vrot.slane %v1624, 4
        %v1627 = vrot.slane %v784, 5
        %v1628 = vsel %vm1593, %v1626, %v1627
        %v1629 = vrot.slane %v1532, 5
        %v1630 = vrot.slane %v1629, 4
        %v1631 = vrot.slane %v786, 5
        %v1632 = vsel %vm1593, %v1630, %v1631
        %v1633 = vrot.slane %v1631, 4
        %v1634 = vrot.slane %v787, 5
        %v1635 = vsel %vm1593, %v1633, %v1634
        %v1636 = vrot.slane %v1533, 5
        %v1637 = vrot.slane %v1636, 4
        %v1638 = vrot.slane %v789, 5
        %v1639 = vsel %vm1593, %v1637, %v1638
        %v1640 = vrot.slane %v1638, 4
        %v1641 = vrot.slane %v790, 5
        %v1642 = vsel %vm1593, %v1640, %v1641
        %v1643 = vrot.slane %v1534, 5
        %v1644 = vrot.slane %v1643, 4
        %v1645 = vrot.slane %v792, 5
        %v1646 = vsel %vm1593, %v1644, %v1645
        %v1647 = vrot.slane %v1645, 4
        %v1648 = vrot.slane %v793, 5
        %v1649 = vsel %vm1593, %v1647, %v1648
        %v1650 = vrot.slane %v1535, 5
        %v1651 = vrot.slane %v1650, 4
        %v1652 = vrot.slane %v795, 5
        %v1653 = vsel %vm1593, %v1651, %v1652
        %v1654 = vrot.slane %v1652, 4
        %v1655 = vrot.slane %v796, 5
        %v1656 = vsel %vm1593, %v1654, %v1655
        %v1657 = vrot.slane %v1536, 5
        %v1658 = vrot.slane %v1657, 4
        %v1659 = vrot.slane %v798, 5
        %v1660 = vsel %vm1593, %v1658, %v1659
        %v1661 = vrot.slane %v1659, 4
        %v1662 = vrot.slane %v799, 5
        %v1663 = vsel %vm1593, %v1661, %v1662
        %v1664 = vrot.slane %v1537, 5
        %v1665 = vrot.slane %v1664, 4
        %v1666 = vrot.slane %v801, 5
        %v1667 = vsel %vm1593, %v1665, %v1666
        %v1668 = vrot.slane %v1666, 4
        %v1669 = vrot.slane %v802, 5
        %v1670 = vsel %vm1593, %v1668, %v1669
        %v1671 = vrot.slane %v1538, 5
        %v1672 = vrot.slane %v1671, 4
        %v1673 = vrot.slane %v804, 5
        %v1674 = vsel %vm1593, %v1672, %v1673
        %v1675 = vrot.slane %v1673, 4
        %v1676 = vrot.slane %v805, 5
        %v1677 = vsel %vm1593, %v1675, %v1676
        %v1678 = vrot.slane %v1539, 5
        %v1679 = vrot.slane %v1678, 4
        %v1680 = vrot.slane %v807, 5
        %v1681 = vsel %vm1593, %v1679, %v1680
        %v1682 = vrot.slane %v1680, 4
        %v1683 = vrot.slane %v808, 5
        %v1684 = vsel %vm1593, %v1682, %v1683
        %v1685 = vrot.slane %v1540, 5
        %v1686 = vrot.slane %v1685, 4
        %v1687 = vrot.slane %v810, 5
        %v1688 = vsel %vm1593, %v1686, %v1687
        %v1689 = vrot.slane %v1687, 4
        %v1690 = vrot.slane %v811, 5
        %v1691 = vsel %vm1593, %v1689, %v1690
        %v1692 = vrot.slane %v1541, 5
        %v1693 = vrot.slane %v1692, 4
        %v1694 = vrot.slane %v813, 5
        %v1695 = vsel %vm1593, %v1693, %v1694
        %v1696 = vrot.slane %v1694, 4
        %v1697 = vrot.slane %v814, 5
        %v1698 = vsel %vm1593, %v1696, %v1697
        %v1699 = vrot.slane %v1542, 5
        %v1700 = vrot.slane %v1699, 4
        %v1701 = vrot.slane %v816, 5
        %v1702 = vsel %vm1593, %v1700, %v1701
        %v1703 = vrot.slane %v1701, 4
        %v1704 = vrot.slane %v817, 5
        %v1705 = vsel %vm1593, %v1703, %v1704
        %s1706 = scalar_lea.vmem %s2, 64
        %v1707 = vld [vmem:[%s1706] sm:$0xf]
        %v1708 = vld [vmem:[%s1706 + $0x4] sm:$0xf]
        %v1709 = vld [vmem:[%s1706 + $0x8] sm:$0xf]
        %v1710 = vld [vmem:[%s1706 + $0xc] sm:$0xf]
        %v1711 = vld [vmem:[%s1706 + $0x10] sm:$0xf]
        %v1712 = vld [vmem:[%s1706 + $0x14] sm:$0xf]
        %v1713 = vld [vmem:[%s1706 + $0x18] sm:$0xf]
        %v1714 = vld [vmem:[%s1706 + $0x1c] sm:$0xf]
        %v1715 = vunpack.c.l.b16 %v1597
        %v1716 = vunpack.c.l.b16 %v1600
        %v1717 = vunpack.c.l.b16 %v1604
        %v1718 = vunpack.c.l.b16 %v1607
        %v1719 = vunpack.c.l.b16 %v1611
        %v1720 = vunpack.c.l.b16 %v1614
        %v1721 = vunpack.c.l.b16 %v1618
        %v1722 = vunpack.c.l.b16 %v1621
        %v1723 = vunpack.c.l.b16 %v1625
        %v1724 = vunpack.c.l.b16 %v1628
        %v1725 = vunpack.c.l.b16 %v1632
        %v1726 = vunpack.c.l.b16 %v1635
        %v1727 = vunpack.c.l.b16 %v1639
        %v1728 = vunpack.c.l.b16 %v1642
        %v1729 = vunpack.c.l.b16 %v1646
        %v1730 = vunpack.c.l.b16 %v1649
        %v1731 = vunpack.c.l.b16 %v1653
        %v1732 = vunpack.c.l.b16 %v1656
        %v1733 = vunpack.c.l.b16 %v1660
        %v1734 = vunpack.c.l.b16 %v1663
        %v1735 = vunpack.c.l.b16 %v1667
        %v1736 = vunpack.c.l.b16 %v1670
        %v1737 = vunpack.c.l.b16 %v1674
        %v1738 = vunpack.c.l.b16 %v1677
        %v1739 = vunpack.c.l.b16 %v1681
        %v1740 = vunpack.c.l.b16 %v1684
        %v1741 = vunpack.c.l.b16 %v1688
        %v1742 = vunpack.c.l.b16 %v1691
        %v1743 = vunpack.c.l.b16 %v1695
        %v1744 = vunpack.c.l.b16 %v1698
        %v1745 = vunpack.c.l.b16 %v1702
        %v1746 = vunpack.c.l.b16 %v1705
        %v1747 = vpack.c.b16 %v1716, %v1715
        %v1748 = vpack.c.b16 %v1718, %v1717
        %v1749 = vpack.c.b16 %v1720, %v1719
        %v1750 = vpack.c.b16 %v1722, %v1721
        %v1751 = vpack.c.b16 %v1724, %v1723
        %v1752 = vpack.c.b16 %v1726, %v1725
        %v1753 = vpack.c.b16 %v1728, %v1727
        %v1754 = vpack.c.b16 %v1730, %v1729
        %v1755 = vpack.c.b16 %v1732, %v1731
        %v1756 = vpack.c.b16 %v1734, %v1733
        %v1757 = vpack.c.b16 %v1736, %v1735
        %v1758 = vpack.c.b16 %v1738, %v1737
        %v1759 = vpack.c.b16 %v1740, %v1739
        %v1760 = vpack.c.b16 %v1742, %v1741
        %v1761 = vpack.c.b16 %v1744, %v1743
        %v1762 = vpack.c.b16 %v1746, %v1745
        %v1771 = vunpack.c.l.b16 %v1707
        %v1772 = vunpack.c.l.b16 %v1708
        %v1773 = vunpack.c.l.b16 %v1709
        %v1774 = vunpack.c.l.b16 %v1710
        %v1775 = vunpack.c.l.b16 %v1711
        %v1776 = vunpack.c.l.b16 %v1712
        %v1777 = vunpack.c.l.b16 %v1713
        %v1778 = vunpack.c.l.b16 %v1714
        %v1779 = vpack.c.b16 %v1772, %v1771
        %v1780 = vpack.c.b16 %v1774, %v1773
        %v1781 = vpack.c.b16 %v1776, %v1775
        %v1782 = vpack.c.b16 %v1778, %v1777
        %v1788 = vsel %vm528, %v1747, 0
        %v1791 = vsel %vm528, %v1748, 0
        %v1794 = vsel %vm528, %v1749, 0
        %v1797 = vsel %vm528, %v1750, 0
        %v1800 = vsel %vm528, %v1751, 0
        %v1803 = vsel %vm528, %v1752, 0
        %v1806 = vsel %vm528, %v1753, 0
        %v1809 = vsel %vm528, %v1754, 0
        %v1812 = vsel %vm528, %v1755, 0
        %v1815 = vsel %vm528, %v1756, 0
        %v1818 = vsel %vm528, %v1757, 0
        %v1821 = vsel %vm528, %v1758, 0
        %v1824 = vsel %vm528, %v1759, 0
        %v1827 = vsel %vm528, %v1760, 0
        %v1830 = vsel %vm528, %v1761, 0
        %v1833 = vsel %vm528, %v1762, 0
        %1835 = vmatprep.subr.bf16.mxu0 0
        %1836 = vmatpush1.bf16.msra.mxu0 %v1779
        %1837 = vmatprep.subr.bf16.mxu0 0
        %1838 = vmatpush1.bf16.msra.mxu0 %v1780
        %1839 = vmatprep.subr.bf16.mxu0 0
        %1840 = vmatpush1.bf16.msra.mxu0 %v1781
        %1841 = vmatprep.subr.bf16.mxu0 0
        %1842 = vmatpush1.bf16.msra.mxu0 %v1782
        %1843 = vmatprep.subr.bf16.mxu0 0
        %1844 = vmatpush1.bf16.msra.mxu0 0
        %1845 = vmatprep.subr.bf16.mxu0 0
        %1846 = vmatpush1.bf16.msra.mxu0 0
        %1847 = vmatprep.subr.bf16.mxu0 0
        %1848 = vmatpush1.bf16.msra.mxu0 0
        %1849 = vmatprep.subr.bf16.mxu0 0
        %1850 = vmatpush1.bf16.msra.mxu0 0
        %1851 = vmatprep.subr.bf16.mxu0 0
        %1852 = vmatpush1.bf16.msra.mxu0 0
        %1853 = vmatprep.subr.bf16.mxu0 0
        %1854 = vmatpush1.bf16.msra.mxu0 0
        %1855 = vmatprep.subr.bf16.mxu0 0
        %1856 = vmatpush1.bf16.msra.mxu0 0
        %1857 = vmatprep.subr.bf16.mxu0 0
        %1858 = vmatpush1.bf16.msra.mxu0 0
        %1859 = vmatprep.subr.bf16.mxu0 0
        %1860 = vmatpush1.bf16.msra.mxu0 0
        %1861 = vmatprep.subr.bf16.mxu0 0
        %1862 = vmatpush1.bf16.msra.mxu0 0
        %1863 = vmatprep.subr.bf16.mxu0 0
        %1864 = vmatpush1.bf16.msra.mxu0 0
        %1865 = vmatprep.subr.bf16.mxu0 0
        %1866 = vmatpush1.bf16.msra.mxu0 0
        %1867 = vmatprep.mubr.bf16.mxu0 0
        %1868 = vmatmul.mubr.bf16.gmra.mrb[0].mxu0 %v1788
        %v1869 = vpop.f32.mrb[0].mxu0
        %v1870 = vadd.f32 0.0, %v1869
        %v1871 = vpop.f32.mrb[0].mxu0
        %v1872 = vpop.f32.mrb[0].mxu0
        %v1873 = vadd.f32 0.0, %v1872
        %v1874 = vpop.f32.mrb[0].mxu0
        %1875 = vmatprep.mubr.bf16.mxu0 0
        %1876 = vmatmul.mubr.bf16.gmra.mrb[0].mxu0 %v1791
        %v1877 = vpop.f32.mrb[0].mxu0
        %v1878 = vadd.f32 0.0, %v1877
        %v1879 = vpop.f32.mrb[0].mxu0
        %v1880 = vpop.f32.mrb[0].mxu0
        %v1881 = vadd.f32 0.0, %v1880
        %v1882 = vpop.f32.mrb[0].mxu0
        %1883 = vmatprep.mubr.bf16.mxu0 0
        %1884 = vmatmul.mubr.bf16.gmra.mrb[0].mxu0 %v1794
        %v1885 = vpop.f32.mrb[0].mxu0
        %v1886 = vadd.f32 0.0, %v1885
        %v1887 = vpop.f32.mrb[0].mxu0
        %v1888 = vpop.f32.mrb[0].mxu0
        %v1889 = vadd.f32 0.0, %v1888
        %v1890 = vpop.f32.mrb[0].mxu0
        %1891 = vmatprep.mubr.bf16.mxu0 0
        %1892 = vmatmul.mubr.bf16.gmra.mrb[0].mxu0 %v1797
        %v1893 = vpop.f32.mrb[0].mxu0
        %v1894 = vadd.f32 0.0, %v1893
        %v1895 = vpop.f32.mrb[0].mxu0
        %v1896 = vpop.f32.mrb[0].mxu0
        %v1897 = vadd.f32 0.0, %v1896
        %v1898 = vpop.f32.mrb[0].mxu0
        %1899 = vmatprep.mubr.bf16.mxu0 0
        %1900 = vmatmul.mubr.bf16.gmra.mrb[0].mxu0 %v1800
        %v1901 = vpop.f32.mrb[0].mxu0
        %v1902 = vadd.f32 0.0, %v1901
        %v1903 = vpop.f32.mrb[0].mxu0
        %v1904 = vpop.f32.mrb[0].mxu0
        %v1905 = vadd.f32 0.0, %v1904
        %v1906 = vpop.f32.mrb[0].mxu0
        %1907 = vmatprep.mubr.bf16.mxu0 0
        %1908 = vmatmul.mubr.bf16.gmra.mrb[0].mxu0 %v1803
        %v1909 = vpop.f32.mrb[0].mxu0
        %v1910 = vadd.f32 0.0, %v1909
        %v1911 = vpop.f32.mrb[0].mxu0
        %v1912 = vpop.f32.mrb[0].mxu0
        %v1913 = vadd.f32 0.0, %v1912
        %v1914 = vpop.f32.mrb[0].mxu0
        %1915 = vmatprep.mubr.bf16.mxu0 0
        %1916 = vmatmul.mubr.bf16.gmra.mrb[0].mxu0 %v1806
        %v1917 = vpop.f32.mrb[0].mxu0
        %v1918 = vadd.f32 0.0, %v1917
        %v1919 = vpop.f32.mrb[0].mxu0
        %v1920 = vpop.f32.mrb[0].mxu0
        %v1921 = vadd.f32 0.0, %v1920
        %v1922 = vpop.f32.mrb[0].mxu0
        %1923 = vmatprep.mubr.bf16.mxu0 0
        %1924 = vmatmul.mubr.bf16.gmra.mrb[0].mxu0 %v1809
        %v1925 = vpop.f32.mrb[0].mxu0
        %v1926 = vadd.f32 0.0, %v1925
        %v1927 = vpop.f32.mrb[0].mxu0
        %v1928 = vpop.f32.mrb[0].mxu0
        %v1929 = vadd.f32 0.0, %v1928
        %v1930 = vpop.f32.mrb[0].mxu0
        %1931 = vmatprep.mubr.bf16.mxu0 0
        %1932 = vmatmul.mubr.bf16.gmra.mrb[0].mxu0 %v1812
        %v1933 = vpop.f32.mrb[0].mxu0
        %v1934 = vadd.f32 0.0, %v1933
        %v1935 = vpop.f32.mrb[0].mxu0
        %v1936 = vpop.f32.mrb[0].mxu0
        %v1937 = vadd.f32 0.0, %v1936
        %v1938 = vpop.f32.mrb[0].mxu0
        %1939 = vmatprep.mubr.bf16.mxu0 0
        %1940 = vmatmul.mubr.bf16.gmra.mrb[0].mxu0 %v1815
        %v1941 = vpop.f32.mrb[0].mxu0
        %v1942 = vadd.f32 0.0, %v1941
        %v1943 = vpop.f32.mrb[0].mxu0
        %v1944 = vpop.f32.mrb[0].mxu0
        %v1945 = vadd.f32 0.0, %v1944
        %v1946 = vpop.f32.mrb[0].mxu0
        %1947 = vmatprep.mubr.bf16.mxu0 0
        %1948 = vmatmul.mubr.bf16.gmra.mrb[0].mxu0 %v1818
        %v1949 = vpop.f32.mrb[0].mxu0
        %v1950 = vadd.f32 0.0, %v1949
        %v1951 = vpop.f32.mrb[0].mxu0
        %v1952 = vpop.f32.mrb[0].mxu0
        %v1953 = vadd.f32 0.0, %v1952
        %v1954 = vpop.f32.mrb[0].mxu0
        %1955 = vmatprep.mubr.bf16.mxu0 0
        %1956 = vmatmul.mubr.bf16.gmra.mrb[0].mxu0 %v1821
        %v1957 = vpop.f32.mrb[0].mxu0
        %v1958 = vadd.f32 0.0, %v1957
        %v1959 = vpop.f32.mrb[0].mxu0
        %v1960 = vpop.f32.mrb[0].mxu0
        %v1961 = vadd.f32 0.0, %v1960
        %v1962 = vpop.f32.mrb[0].mxu0
        %1963 = vmatprep.mubr.bf16.mxu0 0
        %1964 = vmatmul.mubr.bf16.gmra.mrb[0].mxu0 %v1824
        %v1965 = vpop.f32.mrb[0].mxu0
        %v1966 = vadd.f32 0.0, %v1965
        %v1967 = vpop.f32.mrb[0].mxu0
        %v1968 = vpop.f32.mrb[0].mxu0
        %v1969 = vadd.f32 0.0, %v1968
        %v1970 = vpop.f32.mrb[0].mxu0
        %1971 = vmatprep.mubr.bf16.mxu0 0
        %1972 = vmatmul.mubr.bf16.gmra.mrb[0].mxu0 %v1827
        %v1973 = vpop.f32.mrb[0].mxu0
        %v1974 = vadd.f32 0.0, %v1973
        %v1975 = vpop.f32.mrb[0].mxu0
        %v1976 = vpop.f32.mrb[0].mxu0
        %v1977 = vadd.f32 0.0, %v1976
        %v1978 = vpop.f32.mrb[0].mxu0
        %1979 = vmatprep.mubr.bf16.mxu0 0
        %1980 = vmatmul.mubr.bf16.gmra.mrb[0].mxu0 %v1830
        %v1981 = vpop.f32.mrb[0].mxu0
        %v1982 = vadd.f32 0.0, %v1981
        %v1983 = vpop.f32.mrb[0].mxu0
        %v1984 = vpop.f32.mrb[0].mxu0
        %v1985 = vadd.f32 0.0, %v1984
        %v1986 = vpop.f32.mrb[0].mxu0
        %1987 = vmatprep.mubr.bf16.mxu0 0
        %1988 = vmatmul.mubr.bf16.gmra.mrb[0].mxu0 %v1833
        %v1989 = vpop.f32.mrb[0].mxu0
        %v1990 = vadd.f32 0.0, %v1989
        %v1991 = vpop.f32.mrb[0].mxu0
        %v1992 = vpop.f32.mrb[0].mxu0
        %v1993 = vadd.f32 0.0, %v1992
        %v1994 = vpop.f32.mrb[0].mxu0
        %1995 = vdwg.mxu0
        %v1996 = vadd.f32 %v1495, %v1870
        %v1997 = vadd.f32 %v1496, %v1873
        %v1998 = vadd.f32 %v1497, %v1878
        %v1999 = vadd.f32 %v1498, %v1881
        %v2000 = vadd.f32 %v1499, %v1886
        %v2001 = vadd.f32 %v1500, %v1889
        %v2002 = vadd.f32 %v1501, %v1894
        %v2003 = vadd.f32 %v1502, %v1897
        %v2004 = vadd.f32 %v1503, %v1902
        %v2005 = vadd.f32 %v1504, %v1905
        %v2006 = vadd.f32 %v1505, %v1910
        %v2007 = vadd.f32 %v1506, %v1913
        %v2008 = vadd.f32 %v1507, %v1918
        %v2009 = vadd.f32 %v1508, %v1921
        %v2010 = vadd.f32 %v1509, %v1926
        %v2011 = vadd.f32 %v1510, %v1929
        %v2012 = vadd.f32 %v1511, %v1934
        %v2013 = vadd.f32 %v1512, %v1937
        %v2014 = vadd.f32 %v1513, %v1942
        %v2015 = vadd.f32 %v1514, %v1945
        %v2016 = vadd.f32 %v1515, %v1950
        %v2017 = vadd.f32 %v1516, %v1953
        %v2018 = vadd.f32 %v1517, %v1958
        %v2019 = vadd.f32 %v1518, %v1961
        %v2020 = vadd.f32 %v1519, %v1966
        %v2021 = vadd.f32 %v1520, %v1969
        %v2022 = vadd.f32 %v1521, %v1974
        %v2023 = vadd.f32 %v1522, %v1977
        %v2024 = vadd.f32 %v1523, %v1982
        %v2025 = vadd.f32 %v1524, %v1985
        %v2026 = vadd.f32 %v1525, %v1990
        %v2027 = vadd.f32 %v1526, %v1993
        %s2028 = scalar_lea.vmem %s345, 12
        %v2029 = vld [vmem:[%s2028] sm:$0xf]
        %v2030 = vld [vmem:[%s2028 + $0x4] sm:$0xf]
        %v2031 = vld [vmem:[%s2028 + $0xc] sm:$0xf]
        %v2032 = vld [vmem:[%s2028 + $0x10] sm:$0xf]
        %v2033 = vld [vmem:[%s2028 + $0x18] sm:$0xf]
        %v2034 = vld [vmem:[%s2028 + $0x1c] sm:$0xf]
        %v2035 = vld [vmem:[%s2028 + $0x24] sm:$0xf]
        %v2036 = vld [vmem:[%s2028 + $0x28] sm:$0xf]
        %v2037 = vld [vmem:[%s2028 + $0x30] sm:$0xf]
        %v2038 = vld [vmem:[%s2028 + $0x34] sm:$0xf]
        %v2039 = vld [vmem:[%s2028 + $0x3c] sm:$0xf]
        %v2040 = vld [vmem:[%s2028 + $0x40] sm:$0xf]
        %v2041 = vld [vmem:[%s2028 + $0x48] sm:$0xf]
        %v2042 = vld [vmem:[%s2028 + $0x4c] sm:$0xf]
        %v2043 = vld [vmem:[%s2028 + $0x54] sm:$0xf]
        %v2044 = vld [vmem:[%s2028 + $0x58] sm:$0xf]
        %v2045 = vld [vmem:[%s2028 + $0x60] sm:$0xf]
        %v2046 = vld [vmem:[%s2028 + $0x64] sm:$0xf]
        %v2047 = vld [vmem:[%s2028 + $0x6c] sm:$0xf]
        %v2048 = vld [vmem:[%s2028 + $0x70] sm:$0xf]
        %v2049 = vld [vmem:[%s2028 + $0x78] sm:$0xf]
        %v2050 = vld [vmem:[%s2028 + $0x7c] sm:$0xf]
        %v2051 = vld [vmem:[%s2028 + $0x84] sm:$0xf]
        %v2052 = vld [vmem:[%s2028 + $0x88] sm:$0xf]
        %v2053 = vld [vmem:[%s2028 + $0x90] sm:$0xf]
        %v2054 = vld [vmem:[%s2028 + $0x94] sm:$0xf]
        %v2055 = vld [vmem:[%s2028 + $0x9c] sm:$0xf]
        %v2056 = vld [vmem:[%s2028 + $0xa0] sm:$0xf]
        %v2057 = vld [vmem:[%s2028 + $0xa8] sm:$0xf]
        %v2058 = vld [vmem:[%s2028 + $0xac] sm:$0xf]
        %v2059 = vld [vmem:[%s2028 + $0xb4] sm:$0xf]
        %v2060 = vld [vmem:[%s2028 + $0xb8] sm:$0xf]
        %s2061 = scalar_lea.vmem %s2, 96
        %v2062 = vld [vmem:[%s2061] sm:$0xf]
        %v2063 = vld [vmem:[%s2061 + $0x4] sm:$0xf]
        %v2064 = vld [vmem:[%s2061 + $0x8] sm:$0xf]
        %v2065 = vld [vmem:[%s2061 + $0xc] sm:$0xf]
        %v2066 = vld [vmem:[%s2061 + $0x10] sm:$0xf]
        %v2067 = vld [vmem:[%s2061 + $0x14] sm:$0xf]
        %v2068 = vld [vmem:[%s2061 + $0x18] sm:$0xf]
        %v2069 = vld [vmem:[%s2061 + $0x1c] sm:$0xf]
        %v2102 = vunpack.c.l.b16 %v2029
        %v2103 = vunpack.c.l.b16 %v2030
        %v2104 = vunpack.c.l.b16 %v2031
        %v2105 = vunpack.c.l.b16 %v2032
        %v2106 = vunpack.c.l.b16 %v2033
        %v2107 = vunpack.c.l.b16 %v2034
        %v2108 = vunpack.c.l.b16 %v2035
        %v2109 = vunpack.c.l.b16 %v2036
        %v2110 = vunpack.c.l.b16 %v2037
        %v2111 = vunpack.c.l.b16 %v2038
        %v2112 = vunpack.c.l.b16 %v2039
        %v2113 = vunpack.c.l.b16 %v2040
        %v2114 = vunpack.c.l.b16 %v2041
        %v2115 = vunpack.c.l.b16 %v2042
        %v2116 = vunpack.c.l.b16 %v2043
        %v2117 = vunpack.c.l.b16 %v2044
        %v2118 = vunpack.c.l.b16 %v2045
        %v2119 = vunpack.c.l.b16 %v2046
        %v2120 = vunpack.c.l.b16 %v2047
        %v2121 = vunpack.c.l.b16 %v2048
        %v2122 = vunpack.c.l.b16 %v2049
        %v2123 = vunpack.c.l.b16 %v2050
        %v2124 = vunpack.c.l.b16 %v2051
        %v2125 = vunpack.c.l.b16 %v2052
        %v2126 = vunpack.c.l.b16 %v2053
        %v2127 = vunpack.c.l.b16 %v2054
        %v2128 = vunpack.c.l.b16 %v2055
        %v2129 = vunpack.c.l.b16 %v2056
        %v2130 = vunpack.c.l.b16 %v2057
        %v2131 = vunpack.c.l.b16 %v2058
        %v2132 = vunpack.c.l.b16 %v2059
        %v2133 = vunpack.c.l.b16 %v2060
        %v2134 = vpack.c.b16 %v2103, %v2102
        %v2135 = vpack.c.b16 %v2105, %v2104
        %v2136 = vpack.c.b16 %v2107, %v2106
        %v2137 = vpack.c.b16 %v2109, %v2108
        %v2138 = vpack.c.b16 %v2111, %v2110
        %v2139 = vpack.c.b16 %v2113, %v2112
        %v2140 = vpack.c.b16 %v2115, %v2114
        %v2141 = vpack.c.b16 %v2117, %v2116
        %v2142 = vpack.c.b16 %v2119, %v2118
        %v2143 = vpack.c.b16 %v2121, %v2120
        %v2144 = vpack.c.b16 %v2123, %v2122
        %v2145 = vpack.c.b16 %v2125, %v2124
        %v2146 = vpack.c.b16 %v2127, %v2126
        %v2147 = vpack.c.b16 %v2129, %v2128
        %v2148 = vpack.c.b16 %v2131, %v2130
        %v2149 = vpack.c.b16 %v2133, %v2132
        %v2158 = vunpack.c.l.b16 %v2062
        %v2159 = vunpack.c.l.b16 %v2063
        %v2160 = vunpack.c.l.b16 %v2064
        %v2161 = vunpack.c.l.b16 %v2065
        %v2162 = vunpack.c.l.b16 %v2066
        %v2163 = vunpack.c.l.b16 %v2067
        %v2164 = vunpack.c.l.b16 %v2068
        %v2165 = vunpack.c.l.b16 %v2069
        %v2166 = vpack.c.b16 %v2159, %v2158
        %v2167 = vpack.c.b16 %v2161, %v2160
        %v2168 = vpack.c.b16 %v2163, %v2162
        %v2169 = vpack.c.b16 %v2165, %v2164
        %v2175 = vsel %vm528, %v2134, 0
        %v2178 = vsel %vm528, %v2135, 0
        %v2181 = vsel %vm528, %v2136, 0
        %v2184 = vsel %vm528, %v2137, 0
        %v2187 = vsel %vm528, %v2138, 0
        %v2190 = vsel %vm528, %v2139, 0
        %v2193 = vsel %vm528, %v2140, 0
        %v2196 = vsel %vm528, %v2141, 0
        %v2199 = vsel %vm528, %v2142, 0
        %v2202 = vsel %vm528, %v2143, 0
        %v2205 = vsel %vm528, %v2144, 0
        %v2208 = vsel %vm528, %v2145, 0
        %v2211 = vsel %vm528, %v2146, 0
        %v2214 = vsel %vm528, %v2147, 0
        %v2217 = vsel %vm528, %v2148, 0
        %v2220 = vsel %vm528, %v2149, 0
        %2222 = vmatprep.subr.bf16.mxu0 0
        %2223 = vmatpush1.bf16.msra.mxu0 %v2166
        %2224 = vmatprep.subr.bf16.mxu0 0
        %2225 = vmatpush1.bf16.msra.mxu0 %v2167
        %2226 = vmatprep.subr.bf16.mxu0 0
        %2227 = vmatpush1.bf16.msra.mxu0 %v2168
        %2228 = vmatprep.subr.bf16.mxu0 0
        %2229 = vmatpush1.bf16.msra.mxu0 %v2169
        %2230 = vmatprep.subr.bf16.mxu0 0
        %2231 = vmatpush1.bf16.msra.mxu0 0
        %2232 = vmatprep.subr.bf16.mxu0 0
        %2233 = vmatpush1.bf16.msra.mxu0 0
        %2234 = vmatprep.subr.bf16.mxu0 0
        %2235 = vmatpush1.bf16.msra.mxu0 0
        %2236 = vmatprep.subr.bf16.mxu0 0
        %2237 = vmatpush1.bf16.msra.mxu0 0
        %2238 = vmatprep.subr.bf16.mxu0 0
        %2239 = vmatpush1.bf16.msra.mxu0 0
        %2240 = vmatprep.subr.bf16.mxu0 0
        %2241 = vmatpush1.bf16.msra.mxu0 0
        %2242 = vmatprep.subr.bf16.mxu0 0
        %2243 = vmatpush1.bf16.msra.mxu0 0
        %2244 = vmatprep.subr.bf16.mxu0 0
        %2245 = vmatpush1.bf16.msra.mxu0 0
        %2246 = vmatprep.subr.bf16.mxu0 0
        %2247 = vmatpush1.bf16.msra.mxu0 0
        %2248 = vmatprep.subr.bf16.mxu0 0
        %2249 = vmatpush1.bf16.msra.mxu0 0
        %2250 = vmatprep.subr.bf16.mxu0 0
        %2251 = vmatpush1.bf16.msra.mxu0 0
        %2252 = vmatprep.subr.bf16.mxu0 0
        %2253 = vmatpush1.bf16.msra.mxu0 0
        %2254 = vmatprep.mubr.bf16.mxu0 0
        %2255 = vmatmul.mubr.bf16.gmra.mrb[0].mxu0 %v2175
        %v2256 = vpop.f32.mrb[0].mxu0
        %v2257 = vadd.f32 0.0, %v2256
        %v2258 = vpop.f32.mrb[0].mxu0
        %v2259 = vpop.f32.mrb[0].mxu0
        %v2260 = vadd.f32 0.0, %v2259
        %v2261 = vpop.f32.mrb[0].mxu0
        %2262 = vmatprep.mubr.bf16.mxu0 0
        %2263 = vmatmul.mubr.bf16.gmra.mrb[0].mxu0 %v2178
        %v2264 = vpop.f32.mrb[0].mxu0
        %v2265 = vadd.f32 0.0, %v2264
        %v2266 = vpop.f32.mrb[0].mxu0
        %v2267 = vpop.f32.mrb[0].mxu0
        %v2268 = vadd.f32 0.0, %v2267
        %v2269 = vpop.f32.mrb[0].mxu0
        %2270 = vmatprep.mubr.bf16.mxu0 0
        %2271 = vmatmul.mubr.bf16.gmra.mrb[0].mxu0 %v2181
        %v2272 = vpop.f32.mrb[0].mxu0
        %v2273 = vadd.f32 0.0, %v2272
        %v2274 = vpop.f32.mrb[0].mxu0
        %v2275 = vpop.f32.mrb[0].mxu0
        %v2276 = vadd.f32 0.0, %v2275
        %v2277 = vpop.f32.mrb[0].mxu0
        %2278 = vmatprep.mubr.bf16.mxu0 0
        %2279 = vmatmul.mubr.bf16.gmra.mrb[0].mxu0 %v2184
        %v2280 = vpop.f32.mrb[0].mxu0
        %v2281 = vadd.f32 0.0, %v2280
        %v2282 = vpop.f32.mrb[0].mxu0
        %v2283 = vpop.f32.mrb[0].mxu0
        %v2284 = vadd.f32 0.0, %v2283
        %v2285 = vpop.f32.mrb[0].mxu0
        %2286 = vmatprep.mubr.bf16.mxu0 0
        %2287 = vmatmul.mubr.bf16.gmra.mrb[0].mxu0 %v2187
        %v2288 = vpop.f32.mrb[0].mxu0
        %v2289 = vadd.f32 0.0, %v2288
        %v2290 = vpop.f32.mrb[0].mxu0
        %v2291 = vpop.f32.mrb[0].mxu0
        %v2292 = vadd.f32 0.0, %v2291
        %v2293 = vpop.f32.mrb[0].mxu0
        %2294 = vmatprep.mubr.bf16.mxu0 0
        %2295 = vmatmul.mubr.bf16.gmra.mrb[0].mxu0 %v2190
        %v2296 = vpop.f32.mrb[0].mxu0
        %v2297 = vadd.f32 0.0, %v2296
        %v2298 = vpop.f32.mrb[0].mxu0
        %v2299 = vpop.f32.mrb[0].mxu0
        %v2300 = vadd.f32 0.0, %v2299
        %v2301 = vpop.f32.mrb[0].mxu0
        %2302 = vmatprep.mubr.bf16.mxu0 0
        %2303 = vmatmul.mubr.bf16.gmra.mrb[0].mxu0 %v2193
        %v2304 = vpop.f32.mrb[0].mxu0
        %v2305 = vadd.f32 0.0, %v2304
        %v2306 = vpop.f32.mrb[0].mxu0
        %v2307 = vpop.f32.mrb[0].mxu0
        %v2308 = vadd.f32 0.0, %v2307
        %v2309 = vpop.f32.mrb[0].mxu0
        %2310 = vmatprep.mubr.bf16.mxu0 0
        %2311 = vmatmul.mubr.bf16.gmra.mrb[0].mxu0 %v2196
        %v2312 = vpop.f32.mrb[0].mxu0
        %v2313 = vadd.f32 0.0, %v2312
        %v2314 = vpop.f32.mrb[0].mxu0
        %v2315 = vpop.f32.mrb[0].mxu0
        %v2316 = vadd.f32 0.0, %v2315
        %v2317 = vpop.f32.mrb[0].mxu0
        %2318 = vmatprep.mubr.bf16.mxu0 0
        %2319 = vmatmul.mubr.bf16.gmra.mrb[0].mxu0 %v2199
        %v2320 = vpop.f32.mrb[0].mxu0
        %v2321 = vadd.f32 0.0, %v2320
        %v2322 = vpop.f32.mrb[0].mxu0
        %v2323 = vpop.f32.mrb[0].mxu0
        %v2324 = vadd.f32 0.0, %v2323
        %v2325 = vpop.f32.mrb[0].mxu0
        %2326 = vmatprep.mubr.bf16.mxu0 0
        %2327 = vmatmul.mubr.bf16.gmra.mrb[0].mxu0 %v2202
        %v2328 = vpop.f32.mrb[0].mxu0
        %v2329 = vadd.f32 0.0, %v2328
        %v2330 = vpop.f32.mrb[0].mxu0
        %v2331 = vpop.f32.mrb[0].mxu0
        %v2332 = vadd.f32 0.0, %v2331
        %v2333 = vpop.f32.mrb[0].mxu0
        %2334 = vmatprep.mubr.bf16.mxu0 0
        %2335 = vmatmul.mubr.bf16.gmra.mrb[0].mxu0 %v2205
        %v2336 = vpop.f32.mrb[0].mxu0
        %v2337 = vadd.f32 0.0, %v2336
        %v2338 = vpop.f32.mrb[0].mxu0
        %v2339 = vpop.f32.mrb[0].mxu0
        %v2340 = vadd.f32 0.0, %v2339
        %v2341 = vpop.f32.mrb[0].mxu0
        %2342 = vmatprep.mubr.bf16.mxu0 0
        %2343 = vmatmul.mubr.bf16.gmra.mrb[0].mxu0 %v2208
        %v2344 = vpop.f32.mrb[0].mxu0
        %v2345 = vadd.f32 0.0, %v2344
        %v2346 = vpop.f32.mrb[0].mxu0
        %v2347 = vpop.f32.mrb[0].mxu0
        %v2348 = vadd.f32 0.0, %v2347
        %v2349 = vpop.f32.mrb[0].mxu0
        %2350 = vmatprep.mubr.bf16.mxu0 0
        %2351 = vmatmul.mubr.bf16.gmra.mrb[0].mxu0 %v2211
        %v2352 = vpop.f32.mrb[0].mxu0
        %v2353 = vadd.f32 0.0, %v2352
        %v2354 = vpop.f32.mrb[0].mxu0
        %v2355 = vpop.f32.mrb[0].mxu0
        %v2356 = vadd.f32 0.0, %v2355
        %v2357 = vpop.f32.mrb[0].mxu0
        %2358 = vmatprep.mubr.bf16.mxu0 0
        %2359 = vmatmul.mubr.bf16.gmra.mrb[0].mxu0 %v2214
        %v2360 = vpop.f32.mrb[0].mxu0
        %v2361 = vadd.f32 0.0, %v2360
        %v2362 = vpop.f32.mrb[0].mxu0
        %v2363 = vpop.f32.mrb[0].mxu0
        %v2364 = vadd.f32 0.0, %v2363
        %v2365 = vpop.f32.mrb[0].mxu0
        %2366 = vmatprep.mubr.bf16.mxu0 0
        %2367 = vmatmul.mubr.bf16.gmra.mrb[0].mxu0 %v2217
        %v2368 = vpop.f32.mrb[0].mxu0
        %v2369 = vadd.f32 0.0, %v2368
        %v2370 = vpop.f32.mrb[0].mxu0
        %v2371 = vpop.f32.mrb[0].mxu0
        %v2372 = vadd.f32 0.0, %v2371
        %v2373 = vpop.f32.mrb[0].mxu0
        %2374 = vmatprep.mubr.bf16.mxu0 0
        %2375 = vmatmul.mubr.bf16.gmra.mrb[0].mxu0 %v2220
        %v2376 = vpop.f32.mrb[0].mxu0
        %v2377 = vadd.f32 0.0, %v2376
        %v2378 = vpop.f32.mrb[0].mxu0
        %v2379 = vpop.f32.mrb[0].mxu0
        %v2380 = vadd.f32 0.0, %v2379
        %v2381 = vpop.f32.mrb[0].mxu0
        %2382 = vdwg.mxu0
        %v2383 = vadd.f32 %v1996, %v2257
        %v2384 = vadd.f32 %v1997, %v2260
        %v2385 = vadd.f32 %v1998, %v2265
        %v2386 = vadd.f32 %v1999, %v2268
        %v2387 = vadd.f32 %v2000, %v2273
        %v2388 = vadd.f32 %v2001, %v2276
        %v2389 = vadd.f32 %v2002, %v2281
        %v2390 = vadd.f32 %v2003, %v2284
        %v2391 = vadd.f32 %v2004, %v2289
        %v2392 = vadd.f32 %v2005, %v2292
        %v2393 = vadd.f32 %v2006, %v2297
        %v2394 = vadd.f32 %v2007, %v2300
        %v2395 = vadd.f32 %v2008, %v2305
        %v2396 = vadd.f32 %v2009, %v2308
        %v2397 = vadd.f32 %v2010, %v2313
        %v2398 = vadd.f32 %v2011, %v2316
        %v2399 = vadd.f32 %v2012, %v2321
        %v2400 = vadd.f32 %v2013, %v2324
        %v2401 = vadd.f32 %v2014, %v2329
        %v2402 = vadd.f32 %v2015, %v2332
        %v2403 = vadd.f32 %v2016, %v2337
        %v2404 = vadd.f32 %v2017, %v2340
        %v2405 = vadd.f32 %v2018, %v2345
        %v2406 = vadd.f32 %v2019, %v2348
        %v2407 = vadd.f32 %v2020, %v2353
        %v2408 = vadd.f32 %v2021, %v2356
        %v2409 = vadd.f32 %v2022, %v2361
        %v2410 = vadd.f32 %v2023, %v2364
        %v2411 = vadd.f32 %v2024, %v2369
        %v2412 = vadd.f32 %v2025, %v2372
        %v2413 = vadd.f32 %v2026, %v2377
        %v2414 = vadd.f32 %v2027, %v2380
        %v2415 = vld [vmem:[%s2028] sm:$0xf]
        %v2416 = vld [vmem:[%s2028 + $0x4] sm:$0xf]
        %v2417 = vld [vmem:[%s2028 + $0x8] sm:$0x1]
        %v2418 = vld [vmem:[%s2028 + $0xc] sm:$0xf]
        %v2419 = vld [vmem:[%s2028 + $0x10] sm:$0xf]
        %v2420 = vld [vmem:[%s2028 + $0x14] sm:$0x1]
        %v2421 = vld [vmem:[%s2028 + $0x18] sm:$0xf]
        %v2422 = vld [vmem:[%s2028 + $0x1c] sm:$0xf]
        %v2423 = vld [vmem:[%s2028 + $0x20] sm:$0x1]
        %v2424 = vld [vmem:[%s2028 + $0x24] sm:$0xf]
        %v2425 = vld [vmem:[%s2028 + $0x28] sm:$0xf]
        %v2426 = vld [vmem:[%s2028 + $0x2c] sm:$0x1]
        %v2427 = vld [vmem:[%s2028 + $0x30] sm:$0xf]
        %v2428 = vld [vmem:[%s2028 + $0x34] sm:$0xf]
        %v2429 = vld [vmem:[%s2028 + $0x38] sm:$0x1]
        %v2430 = vld [vmem:[%s2028 + $0x3c] sm:$0xf]
        %v2431 = vld [vmem:[%s2028 + $0x40] sm:$0xf]
        %v2432 = vld [vmem:[%s2028 + $0x44] sm:$0x1]
        %v2433 = vld [vmem:[%s2028 + $0x48] sm:$0xf]
        %v2434 = vld [vmem:[%s2028 + $0x4c] sm:$0xf]
        %v2435 = vld [vmem:[%s2028 + $0x50] sm:$0x1]
        %v2436 = vld [vmem:[%s2028 + $0x54] sm:$0xf]
        %v2437 = vld [vmem:[%s2028 + $0x58] sm:$0xf]
        %v2438 = vld [vmem:[%s2028 + $0x5c] sm:$0x1]
        %v2439 = vld [vmem:[%s2028 + $0x60] sm:$0xf]
        %v2440 = vld [vmem:[%s2028 + $0x64] sm:$0xf]
        %v2441 = vld [vmem:[%s2028 + $0x68] sm:$0x1]
        %v2442 = vld [vmem:[%s2028 + $0x6c] sm:$0xf]
        %v2443 = vld [vmem:[%s2028 + $0x70] sm:$0xf]
        %v2444 = vld [vmem:[%s2028 + $0x74] sm:$0x1]
        %v2445 = vld [vmem:[%s2028 + $0x78] sm:$0xf]
        %v2446 = vld [vmem:[%s2028 + $0x7c] sm:$0xf]
        %v2447 = vld [vmem:[%s2028 + $0x80] sm:$0x1]
        %v2448 = vld [vmem:[%s2028 + $0x84] sm:$0xf]
        %v2449 = vld [vmem:[%s2028 + $0x88] sm:$0xf]
        %v2450 = vld [vmem:[%s2028 + $0x8c] sm:$0x1]
        %v2451 = vld [vmem:[%s2028 + $0x90] sm:$0xf]
        %v2452 = vld [vmem:[%s2028 + $0x94] sm:$0xf]
        %v2453 = vld [vmem:[%s2028 + $0x98] sm:$0x1]
        %v2454 = vld [vmem:[%s2028 + $0x9c] sm:$0xf]
        %v2455 = vld [vmem:[%s2028 + $0xa0] sm:$0xf]
        %v2456 = vld [vmem:[%s2028 + $0xa4] sm:$0x1]
        %v2457 = vld [vmem:[%s2028 + $0xa8] sm:$0xf]
        %v2458 = vld [vmem:[%s2028 + $0xac] sm:$0xf]
        %v2459 = vld [vmem:[%s2028 + $0xb0] sm:$0x1]
        %v2460 = vld [vmem:[%s2028 + $0xb4] sm:$0xf]
        %v2461 = vld [vmem:[%s2028 + $0xb8] sm:$0xf]
        %v2462 = vld [vmem:[%s2028 + $0xbc] sm:$0x1]
        %v2464 = vshrl.u32 %v2415, 16
        %v2466 = vrot.slane %v2464, 4
        %v2467 = vshll.u32 %v2415, 16
        %v2469 = vrot.slane %v2467, 5
        %v2470 = vor.u32 %v2466, %v2469
        %v2471 = vrot.slane %v2470, 4
        %v2473 = vshll.u32 %v2416, 16
        %v2475 = vrot.slane %v2473, 5
        %v2476 = vsel %vm820, %v2471, %v2475
        %v2477 = vshrl.u32 %v2416, 16
        %v2479 = vrot.slane %v2477, 4
        %v2480 = vor.u32 %v2479, %v2475
        %v2481 = vrot.slane %v2480, 4
        %v2483 = vshll.u32 %v2417, 16
        %v2485 = vrot.slane %v2483, 5
        %v2486 = vsel %vm820, %v2481, %v2485
        %v2488 = vshrl.u32 %v2418, 16
        %v2490 = vrot.slane %v2488, 4
        %v2491 = vshll.u32 %v2418, 16
        %v2493 = vrot.slane %v2491, 5
        %v2494 = vor.u32 %v2490, %v2493
        %v2495 = vrot.slane %v2494, 4
        %v2497 = vshll.u32 %v2419, 16
        %v2499 = vrot.slane %v2497, 5
        %v2500 = vsel %vm820, %v2495, %v2499
        %v2501 = vshrl.u32 %v2419, 16
        %v2503 = vrot.slane %v2501, 4
        %v2504 = vor.u32 %v2503, %v2499
        %v2505 = vrot.slane %v2504, 4
        %v2507 = vshll.u32 %v2420, 16
        %v2509 = vrot.slane %v2507, 5
        %v2510 = vsel %vm820, %v2505, %v2509
        %v2512 = vshrl.u32 %v2421, 16
        %v2514 = vrot.slane %v2512, 4
        %v2515 = vshll.u32 %v2421, 16
        %v2517 = vrot.slane %v2515, 5
        %v2518 = vor.u32 %v2514, %v2517
        %v2519 = vrot.slane %v2518, 4
        %v2521 = vshll.u32 %v2422, 16
        %v2523 = vrot.slane %v2521, 5
        %v2524 = vsel %vm820, %v2519, %v2523
        %v2525 = vshrl.u32 %v2422, 16
        %v2527 = vrot.slane %v2525, 4
        %v2528 = vor.u32 %v2527, %v2523
        %v2529 = vrot.slane %v2528, 4
        %v2531 = vshll.u32 %v2423, 16
        %v2533 = vrot.slane %v2531, 5
        %v2534 = vsel %vm820, %v2529, %v2533
        %v2536 = vshrl.u32 %v2424, 16
        %v2538 = vrot.slane %v2536, 4
        %v2539 = vshll.u32 %v2424, 16
        %v2541 = vrot.slane %v2539, 5
        %v2542 = vor.u32 %v2538, %v2541
        %v2543 = vrot.slane %v2542, 4
        %v2545 = vshll.u32 %v2425, 16
        %v2547 = vrot.slane %v2545, 5
        %v2548 = vsel %vm820, %v2543, %v2547
        %v2549 = vshrl.u32 %v2425, 16
        %v2551 = vrot.slane %v2549, 4
        %v2552 = vor.u32 %v2551, %v2547
        %v2553 = vrot.slane %v2552, 4
        %v2555 = vshll.u32 %v2426, 16
        %v2557 = vrot.slane %v2555, 5
        %v2558 = vsel %vm820, %v2553, %v2557
        %v2560 = vshrl.u32 %v2427, 16
        %v2562 = vrot.slane %v2560, 4
        %v2563 = vshll.u32 %v2427, 16
        %v2565 = vrot.slane %v2563, 5
        %v2566 = vor.u32 %v2562, %v2565
        %v2567 = vrot.slane %v2566, 4
        %v2569 = vshll.u32 %v2428, 16
        %v2571 = vrot.slane %v2569, 5
        %v2572 = vsel %vm820, %v2567, %v2571
        %v2573 = vshrl.u32 %v2428, 16
        %v2575 = vrot.slane %v2573, 4
        %v2576 = vor.u32 %v2575, %v2571
        %v2577 = vrot.slane %v2576, 4
        %v2579 = vshll.u32 %v2429, 16
        %v2581 = vrot.slane %v2579, 5
        %v2582 = vsel %vm820, %v2577, %v2581
        %v2584 = vshrl.u32 %v2430, 16
        %v2586 = vrot.slane %v2584, 4
        %v2587 = vshll.u32 %v2430, 16
        %v2589 = vrot.slane %v2587, 5
        %v2590 = vor.u32 %v2586, %v2589
        %v2591 = vrot.slane %v2590, 4
        %v2593 = vshll.u32 %v2431, 16
        %v2595 = vrot.slane %v2593, 5
        %v2596 = vsel %vm820, %v2591, %v2595
        %v2597 = vshrl.u32 %v2431, 16
        %v2599 = vrot.slane %v2597, 4
        %v2600 = vor.u32 %v2599, %v2595
        %v2601 = vrot.slane %v2600, 4
        %v2603 = vshll.u32 %v2432, 16
        %v2605 = vrot.slane %v2603, 5
        %v2606 = vsel %vm820, %v2601, %v2605
        %v2608 = vshrl.u32 %v2433, 16
        %v2610 = vrot.slane %v2608, 4
        %v2611 = vshll.u32 %v2433, 16
        %v2613 = vrot.slane %v2611, 5
        %v2614 = vor.u32 %v2610, %v2613
        %v2615 = vrot.slane %v2614, 4
        %v2617 = vshll.u32 %v2434, 16
        %v2619 = vrot.slane %v2617, 5
        %v2620 = vsel %vm820, %v2615, %v2619
        %v2621 = vshrl.u32 %v2434, 16
        %v2623 = vrot.slane %v2621, 4
        %v2624 = vor.u32 %v2623, %v2619
        %v2625 = vrot.slane %v2624, 4
        %v2627 = vshll.u32 %v2435, 16
        %v2629 = vrot.slane %v2627, 5
        %v2630 = vsel %vm820, %v2625, %v2629
        %v2632 = vshrl.u32 %v2436, 16
        %v2634 = vrot.slane %v2632, 4
        %v2635 = vshll.u32 %v2436, 16
        %v2637 = vrot.slane %v2635, 5
        %v2638 = vor.u32 %v2634, %v2637
        %v2639 = vrot.slane %v2638, 4
        %v2641 = vshll.u32 %v2437, 16
        %v2643 = vrot.slane %v2641, 5
        %v2644 = vsel %vm820, %v2639, %v2643
        %v2645 = vshrl.u32 %v2437, 16
        %v2647 = vrot.slane %v2645, 4
        %v2648 = vor.u32 %v2647, %v2643
        %v2649 = vrot.slane %v2648, 4
        %v2651 = vshll.u32 %v2438, 16
        %v2653 = vrot.slane %v2651, 5
        %v2654 = vsel %vm820, %v2649, %v2653
        %v2656 = vshrl.u32 %v2439, 16
        %v2658 = vrot.slane %v2656, 4
        %v2659 = vshll.u32 %v2439, 16
        %v2661 = vrot.slane %v2659, 5
        %v2662 = vor.u32 %v2658, %v2661
        %v2663 = vrot.slane %v2662, 4
        %v2665 = vshll.u32 %v2440, 16
        %v2667 = vrot.slane %v2665, 5
        %v2668 = vsel %vm820, %v2663, %v2667
        %v2669 = vshrl.u32 %v2440, 16
        %v2671 = vrot.slane %v2669, 4
        %v2672 = vor.u32 %v2671, %v2667
        %v2673 = vrot.slane %v2672, 4
        %v2675 = vshll.u32 %v2441, 16
        %v2677 = vrot.slane %v2675, 5
        %v2678 = vsel %vm820, %v2673, %v2677
        %v2680 = vshrl.u32 %v2442, 16
        %v2682 = vrot.slane %v2680, 4
        %v2683 = vshll.u32 %v2442, 16
        %v2685 = vrot.slane %v2683, 5
        %v2686 = vor.u32 %v2682, %v2685
        %v2687 = vrot.slane %v2686, 4
        %v2689 = vshll.u32 %v2443, 16
        %v2691 = vrot.slane %v2689, 5
        %v2692 = vsel %vm820, %v2687, %v2691
        %v2693 = vshrl.u32 %v2443, 16
        %v2695 = vrot.slane %v2693, 4
        %v2696 = vor.u32 %v2695, %v2691
        %v2697 = vrot.slane %v2696, 4
        %v2699 = vshll.u32 %v2444, 16
        %v2701 = vrot.slane %v2699, 5
        %v2702 = vsel %vm820, %v2697, %v2701
        %v2704 = vshrl.u32 %v2445, 16
        %v2706 = vrot.slane %v2704, 4
        %v2707 = vshll.u32 %v2445, 16
        %v2709 = vrot.slane %v2707, 5
        %v2710 = vor.u32 %v2706, %v2709
        %v2711 = vrot.slane %v2710, 4
        %v2713 = vshll.u32 %v2446, 16
        %v2715 = vrot.slane %v2713, 5
        %v2716 = vsel %vm820, %v2711, %v2715
        %v2717 = vshrl.u32 %v2446, 16
        %v2719 = vrot.slane %v2717, 4
        %v2720 = vor.u32 %v2719, %v2715
        %v2721 = vrot.slane %v2720, 4
        %v2723 = vshll.u32 %v2447, 16
        %v2725 = vrot.slane %v2723, 5
        %v2726 = vsel %vm820, %v2721, %v2725
        %v2728 = vshrl.u32 %v2448, 16
        %v2730 = vrot.slane %v2728, 4
        %v2731 = vshll.u32 %v2448, 16
        %v2733 = vrot.slane %v2731, 5
        %v2734 = vor.u32 %v2730, %v2733
        %v2735 = vrot.slane %v2734, 4
        %v2737 = vshll.u32 %v2449, 16
        %v2739 = vrot.slane %v2737, 5
        %v2740 = vsel %vm820, %v2735, %v2739
        %v2741 = vshrl.u32 %v2449, 16
        %v2743 = vrot.slane %v2741, 4
        %v2744 = vor.u32 %v2743, %v2739
        %v2745 = vrot.slane %v2744, 4
        %v2747 = vshll.u32 %v2450, 16
        %v2749 = vrot.slane %v2747, 5
        %v2750 = vsel %vm820, %v2745, %v2749
        %v2752 = vshrl.u32 %v2451, 16
        %v2754 = vrot.slane %v2752, 4
        %v2755 = vshll.u32 %v2451, 16
        %v2757 = vrot.slane %v2755, 5
        %v2758 = vor.u32 %v2754, %v2757
        %v2759 = vrot.slane %v2758, 4
        %v2761 = vshll.u32 %v2452, 16
        %v2763 = vrot.slane %v2761, 5
        %v2764 = vsel %vm820, %v2759, %v2763
        %v2765 = vshrl.u32 %v2452, 16
        %v2767 = vrot.slane %v2765, 4
        %v2768 = vor.u32 %v2767, %v2763
        %v2769 = vrot.slane %v2768, 4
        %v2771 = vshll.u32 %v2453, 16
        %v2773 = vrot.slane %v2771, 5
        %v2774 = vsel %vm820, %v2769, %v2773
        %v2776 = vshrl.u32 %v2454, 16
        %v2778 = vrot.slane %v2776, 4
        %v2779 = vshll.u32 %v2454, 16
        %v2781 = vrot.slane %v2779, 5
        %v2782 = vor.u32 %v2778, %v2781
        %v2783 = vrot.slane %v2782, 4
        %v2785 = vshll.u32 %v2455, 16
        %v2787 = vrot.slane %v2785, 5
        %v2788 = vsel %vm820, %v2783, %v2787
        %v2789 = vshrl.u32 %v2455, 16
        %v2791 = vrot.slane %v2789, 4
        %v2792 = vor.u32 %v2791, %v2787
        %v2793 = vrot.slane %v2792, 4
        %v2795 = vshll.u32 %v2456, 16
        %v2797 = vrot.slane %v2795, 5
        %v2798 = vsel %vm820, %v2793, %v2797
        %v2800 = vshrl.u32 %v2457, 16
        %v2802 = vrot.slane %v2800, 4
        %v2803 = vshll.u32 %v2457, 16
        %v2805 = vrot.slane %v2803, 5
        %v2806 = vor.u32 %v2802, %v2805
        %v2807 = vrot.slane %v2806, 4
        %v2809 = vshll.u32 %v2458, 16
        %v2811 = vrot.slane %v2809, 5
        %v2812 = vsel %vm820, %v2807, %v2811
        %v2813 = vshrl.u32 %v2458, 16
        %v2815 = vrot.slane %v2813, 4
        %v2816 = vor.u32 %v2815, %v2811
        %v2817 = vrot.slane %v2816, 4
        %v2819 = vshll.u32 %v2459, 16
        %v2821 = vrot.slane %v2819, 5
        %v2822 = vsel %vm820, %v2817, %v2821
        %v2824 = vshrl.u32 %v2460, 16
        %v2826 = vrot.slane %v2824, 4
        %v2827 = vshll.u32 %v2460, 16
        %v2829 = vrot.slane %v2827, 5
        %v2830 = vor.u32 %v2826, %v2829
        %v2831 = vrot.slane %v2830, 4
        %v2833 = vshll.u32 %v2461, 16
        %v2835 = vrot.slane %v2833, 5
        %v2836 = vsel %vm820, %v2831, %v2835
        %v2837 = vshrl.u32 %v2461, 16
        %v2839 = vrot.slane %v2837, 4
        %v2840 = vor.u32 %v2839, %v2835
        %v2841 = vrot.slane %v2840, 4
        %v2843 = vshll.u32 %v2462, 16
        %v2845 = vrot.slane %v2843, 5
        %v2846 = vsel %vm820, %v2841, %v2845
        %s2847 = scalar_lea.vmem %s2, 128
        %v2848 = vld [vmem:[%s2847] sm:$0xf]
        %v2849 = vld [vmem:[%s2847 + $0x4] sm:$0xf]
        %v2850 = vld [vmem:[%s2847 + $0x8] sm:$0xf]
        %v2851 = vld [vmem:[%s2847 + $0xc] sm:$0xf]
        %v2852 = vld [vmem:[%s2847 + $0x10] sm:$0xf]
        %v2853 = vld [vmem:[%s2847 + $0x14] sm:$0xf]
        %v2854 = vld [vmem:[%s2847 + $0x18] sm:$0xf]
        %v2855 = vld [vmem:[%s2847 + $0x1c] sm:$0xf]
        %v2856 = vunpack.c.l.b16 %v2476
        %v2857 = vunpack.c.l.b16 %v2486
        %v2858 = vunpack.c.l.b16 %v2500
        %v2859 = vunpack.c.l.b16 %v2510
        %v2860 = vunpack.c.l.b16 %v2524
        %v2861 = vunpack.c.l.b16 %v2534
        %v2862 = vunpack.c.l.b16 %v2548
        %v2863 = vunpack.c.l.b16 %v2558
        %v2864 = vunpack.c.l.b16 %v2572
        %v2865 = vunpack.c.l.b16 %v2582
        %v2866 = vunpack.c.l.b16 %v2596
        %v2867 = vunpack.c.l.b16 %v2606
        %v2868 = vunpack.c.l.b16 %v2620
        %v2869 = vunpack.c.l.b16 %v2630
        %v2870 = vunpack.c.l.b16 %v2644
        %v2871 = vunpack.c.l.b16 %v2654
        %v2872 = vunpack.c.l.b16 %v2668
        %v2873 = vunpack.c.l.b16 %v2678
        %v2874 = vunpack.c.l.b16 %v2692
        %v2875 = vunpack.c.l.b16 %v2702
        %v2876 = vunpack.c.l.b16 %v2716
        %v2877 = vunpack.c.l.b16 %v2726
        %v2878 = vunpack.c.l.b16 %v2740
        %v2879 = vunpack.c.l.b16 %v2750
        %v2880 = vunpack.c.l.b16 %v2764
        %v2881 = vunpack.c.l.b16 %v2774
        %v2882 = vunpack.c.l.b16 %v2788
        %v2883 = vunpack.c.l.b16 %v2798
        %v2884 = vunpack.c.l.b16 %v2812
        %v2885 = vunpack.c.l.b16 %v2822
        %v2886 = vunpack.c.l.b16 %v2836
        %v2887 = vunpack.c.l.b16 %v2846
        %v2888 = vpack.c.b16 %v2857, %v2856
        %v2889 = vpack.c.b16 %v2859, %v2858
        %v2890 = vpack.c.b16 %v2861, %v2860
        %v2891 = vpack.c.b16 %v2863, %v2862
        %v2892 = vpack.c.b16 %v2865, %v2864
        %v2893 = vpack.c.b16 %v2867, %v2866
        %v2894 = vpack.c.b16 %v2869, %v2868
        %v2895 = vpack.c.b16 %v2871, %v2870
        %v2896 = vpack.c.b16 %v2873, %v2872
        %v2897 = vpack.c.b16 %v2875, %v2874
        %v2898 = vpack.c.b16 %v2877, %v2876
        %v2899 = vpack.c.b16 %v2879, %v2878
        %v2900 = vpack.c.b16 %v2881, %v2880
        %v2901 = vpack.c.b16 %v2883, %v2882
        %v2902 = vpack.c.b16 %v2885, %v2884
        %v2903 = vpack.c.b16 %v2887, %v2886
        %v2912 = vunpack.c.l.b16 %v2848
        %v2913 = vunpack.c.l.b16 %v2849
        %v2914 = vunpack.c.l.b16 %v2850
        %v2915 = vunpack.c.l.b16 %v2851
        %v2916 = vunpack.c.l.b16 %v2852
        %v2917 = vunpack.c.l.b16 %v2853
        %v2918 = vunpack.c.l.b16 %v2854
        %v2919 = vunpack.c.l.b16 %v2855
        %v2920 = vpack.c.b16 %v2913, %v2912
        %v2921 = vpack.c.b16 %v2915, %v2914
        %v2922 = vpack.c.b16 %v2917, %v2916
        %v2923 = vpack.c.b16 %v2919, %v2918
        %v2929 = vsel %vm528, %v2888, 0
        %v2932 = vsel %vm528, %v2889, 0
        %v2935 = vsel %vm528, %v2890, 0
        %v2938 = vsel %vm528, %v2891, 0
        %v2941 = vsel %vm528, %v2892, 0
        %v2944 = vsel %vm528, %v2893, 0
        %v2947 = vsel %vm528, %v2894, 0
        %v2950 = vsel %vm528, %v2895, 0
        %v2953 = vsel %vm528, %v2896, 0
        %v2956 = vsel %vm528, %v2897, 0
        %v2959 = vsel %vm528, %v2898, 0
        %v2962 = vsel %vm528, %v2899, 0
        %v2965 = vsel %vm528, %v2900, 0
        %v2968 = vsel %vm528, %v2901, 0
        %v2971 = vsel %vm528, %v2902, 0
        %v2974 = vsel %vm528, %v2903, 0
        %2976 = vmatprep.subr.bf16.mxu0 0
        %2977 = vmatpush1.bf16.msra.mxu0 %v2920
        %2978 = vmatprep.subr.bf16.mxu0 0
        %2979 = vmatpush1.bf16.msra.mxu0 %v2921
        %2980 = vmatprep.subr.bf16.mxu0 0
        %2981 = vmatpush1.bf16.msra.mxu0 %v2922
        %2982 = vmatprep.subr.bf16.mxu0 0
        %2983 = vmatpush1.bf16.msra.mxu0 %v2923
        %2984 = vmatprep.subr.bf16.mxu0 0
        %2985 = vmatpush1.bf16.msra.mxu0 0
        %2986 = vmatprep.subr.bf16.mxu0 0
        %2987 = vmatpush1.bf16.msra.mxu0 0
        %2988 = vmatprep.subr.bf16.mxu0 0
        %2989 = vmatpush1.bf16.msra.mxu0 0
        %2990 = vmatprep.subr.bf16.mxu0 0
        %2991 = vmatpush1.bf16.msra.mxu0 0
        %2992 = vmatprep.subr.bf16.mxu0 0
        %2993 = vmatpush1.bf16.msra.mxu0 0
        %2994 = vmatprep.subr.bf16.mxu0 0
        %2995 = vmatpush1.bf16.msra.mxu0 0
        %2996 = vmatprep.subr.bf16.mxu0 0
        %2997 = vmatpush1.bf16.msra.mxu0 0
        %2998 = vmatprep.subr.bf16.mxu0 0
        %2999 = vmatpush1.bf16.msra.mxu0 0
        %3000 = vmatprep.subr.bf16.mxu0 0
        %3001 = vmatpush1.bf16.msra.mxu0 0
        %3002 = vmatprep.subr.bf16.mxu0 0
        %3003 = vmatpush1.bf16.msra.mxu0 0
        %3004 = vmatprep.subr.bf16.mxu0 0
        %3005 = vmatpush1.bf16.msra.mxu0 0
        %3006 = vmatprep.subr.bf16.mxu0 0
        %3007 = vmatpush1.bf16.msra.mxu0 0
        %3008 = vmatprep.mubr.bf16.mxu0 0
        %3009 = vmatmul.mubr.bf16.gmra.mrb[0].mxu0 %v2929
        %v3010 = vpop.f32.mrb[0].mxu0
        %v3011 = vadd.f32 0.0, %v3010
        %v3012 = vpop.f32.mrb[0].mxu0
        %v3013 = vpop.f32.mrb[0].mxu0
        %v3014 = vadd.f32 0.0, %v3013
        %v3015 = vpop.f32.mrb[0].mxu0
        %3016 = vmatprep.mubr.bf16.mxu0 0
        %3017 = vmatmul.mubr.bf16.gmra.mrb[0].mxu0 %v2932
        %v3018 = vpop.f32.mrb[0].mxu0
        %v3019 = vadd.f32 0.0, %v3018
        %v3020 = vpop.f32.mrb[0].mxu0
        %v3021 = vpop.f32.mrb[0].mxu0
        %v3022 = vadd.f32 0.0, %v3021
        %v3023 = vpop.f32.mrb[0].mxu0
        %3024 = vmatprep.mubr.bf16.mxu0 0
        %3025 = vmatmul.mubr.bf16.gmra.mrb[0].mxu0 %v2935
        %v3026 = vpop.f32.mrb[0].mxu0
        %v3027 = vadd.f32 0.0, %v3026
        %v3028 = vpop.f32.mrb[0].mxu0
        %v3029 = vpop.f32.mrb[0].mxu0
        %v3030 = vadd.f32 0.0, %v3029
        %v3031 = vpop.f32.mrb[0].mxu0
        %3032 = vmatprep.mubr.bf16.mxu0 0
        %3033 = vmatmul.mubr.bf16.gmra.mrb[0].mxu0 %v2938
        %v3034 = vpop.f32.mrb[0].mxu0
        %v3035 = vadd.f32 0.0, %v3034
        %v3036 = vpop.f32.mrb[0].mxu0
        %v3037 = vpop.f32.mrb[0].mxu0
        %v3038 = vadd.f32 0.0, %v3037
        %v3039 = vpop.f32.mrb[0].mxu0
        %3040 = vmatprep.mubr.bf16.mxu0 0
        %3041 = vmatmul.mubr.bf16.gmra.mrb[0].mxu0 %v2941
        %v3042 = vpop.f32.mrb[0].mxu0
        %v3043 = vadd.f32 0.0, %v3042
        %v3044 = vpop.f32.mrb[0].mxu0
        %v3045 = vpop.f32.mrb[0].mxu0
        %v3046 = vadd.f32 0.0, %v3045
        %v3047 = vpop.f32.mrb[0].mxu0
        %3048 = vmatprep.mubr.bf16.mxu0 0
        %3049 = vmatmul.mubr.bf16.gmra.mrb[0].mxu0 %v2944
        %v3050 = vpop.f32.mrb[0].mxu0
        %v3051 = vadd.f32 0.0, %v3050
        %v3052 = vpop.f32.mrb[0].mxu0
        %v3053 = vpop.f32.mrb[0].mxu0
        %v3054 = vadd.f32 0.0, %v3053
        %v3055 = vpop.f32.mrb[0].mxu0
        %3056 = vmatprep.mubr.bf16.mxu0 0
        %3057 = vmatmul.mubr.bf16.gmra.mrb[0].mxu0 %v2947
        %v3058 = vpop.f32.mrb[0].mxu0
        %v3059 = vadd.f32 0.0, %v3058
        %v3060 = vpop.f32.mrb[0].mxu0
        %v3061 = vpop.f32.mrb[0].mxu0
        %v3062 = vadd.f32 0.0, %v3061
        %v3063 = vpop.f32.mrb[0].mxu0
        %3064 = vmatprep.mubr.bf16.mxu0 0
        %3065 = vmatmul.mubr.bf16.gmra.mrb[0].mxu0 %v2950
        %v3066 = vpop.f32.mrb[0].mxu0
        %v3067 = vadd.f32 0.0, %v3066
        %v3068 = vpop.f32.mrb[0].mxu0
        %v3069 = vpop.f32.mrb[0].mxu0
        %v3070 = vadd.f32 0.0, %v3069
        %v3071 = vpop.f32.mrb[0].mxu0
        %3072 = vmatprep.mubr.bf16.mxu0 0
        %3073 = vmatmul.mubr.bf16.gmra.mrb[0].mxu0 %v2953
        %v3074 = vpop.f32.mrb[0].mxu0
        %v3075 = vadd.f32 0.0, %v3074
        %v3076 = vpop.f32.mrb[0].mxu0
        %v3077 = vpop.f32.mrb[0].mxu0
        %v3078 = vadd.f32 0.0, %v3077
        %v3079 = vpop.f32.mrb[0].mxu0
        %3080 = vmatprep.mubr.bf16.mxu0 0
        %3081 = vmatmul.mubr.bf16.gmra.mrb[0].mxu0 %v2956
        %v3082 = vpop.f32.mrb[0].mxu0
        %v3083 = vadd.f32 0.0, %v3082
        %v3084 = vpop.f32.mrb[0].mxu0
        %v3085 = vpop.f32.mrb[0].mxu0
        %v3086 = vadd.f32 0.0, %v3085
        %v3087 = vpop.f32.mrb[0].mxu0
        %3088 = vmatprep.mubr.bf16.mxu0 0
        %3089 = vmatmul.mubr.bf16.gmra.mrb[0].mxu0 %v2959
        %v3090 = vpop.f32.mrb[0].mxu0
        %v3091 = vadd.f32 0.0, %v3090
        %v3092 = vpop.f32.mrb[0].mxu0
        %v3093 = vpop.f32.mrb[0].mxu0
        %v3094 = vadd.f32 0.0, %v3093
        %v3095 = vpop.f32.mrb[0].mxu0
        %3096 = vmatprep.mubr.bf16.mxu0 0
        %3097 = vmatmul.mubr.bf16.gmra.mrb[0].mxu0 %v2962
        %v3098 = vpop.f32.mrb[0].mxu0
        %v3099 = vadd.f32 0.0, %v3098
        %v3100 = vpop.f32.mrb[0].mxu0
        %v3101 = vpop.f32.mrb[0].mxu0
        %v3102 = vadd.f32 0.0, %v3101
        %v3103 = vpop.f32.mrb[0].mxu0
        %3104 = vmatprep.mubr.bf16.mxu0 0
        %3105 = vmatmul.mubr.bf16.gmra.mrb[0].mxu0 %v2965
        %v3106 = vpop.f32.mrb[0].mxu0
        %v3107 = vadd.f32 0.0, %v3106
        %v3108 = vpop.f32.mrb[0].mxu0
        %v3109 = vpop.f32.mrb[0].mxu0
        %v3110 = vadd.f32 0.0, %v3109
        %v3111 = vpop.f32.mrb[0].mxu0
        %3112 = vmatprep.mubr.bf16.mxu0 0
        %3113 = vmatmul.mubr.bf16.gmra.mrb[0].mxu0 %v2968
        %v3114 = vpop.f32.mrb[0].mxu0
        %v3115 = vadd.f32 0.0, %v3114
        %v3116 = vpop.f32.mrb[0].mxu0
        %v3117 = vpop.f32.mrb[0].mxu0
        %v3118 = vadd.f32 0.0, %v3117
        %v3119 = vpop.f32.mrb[0].mxu0
        %3120 = vmatprep.mubr.bf16.mxu0 0
        %3121 = vmatmul.mubr.bf16.gmra.mrb[0].mxu0 %v2971
        %v3122 = vpop.f32.mrb[0].mxu0
        %v3123 = vadd.f32 0.0, %v3122
        %v3124 = vpop.f32.mrb[0].mxu0
        %v3125 = vpop.f32.mrb[0].mxu0
        %v3126 = vadd.f32 0.0, %v3125
        %v3127 = vpop.f32.mrb[0].mxu0
        %3128 = vmatprep.mubr.bf16.mxu0 0
        %3129 = vmatmul.mubr.bf16.gmra.mrb[0].mxu0 %v2974
        %v3130 = vpop.f32.mrb[0].mxu0
        %v3131 = vadd.f32 0.0, %v3130
        %v3132 = vpop.f32.mrb[0].mxu0
        %v3133 = vpop.f32.mrb[0].mxu0
        %v3134 = vadd.f32 0.0, %v3133
        %v3135 = vpop.f32.mrb[0].mxu0
        %3136 = vdwg.mxu0
        %v3137 = vadd.f32 %v2383, %v3011
        %v3138 = vadd.f32 %v2384, %v3014
        %v3139 = vadd.f32 %v2385, %v3019
        %v3140 = vadd.f32 %v2386, %v3022
        %v3141 = vadd.f32 %v2387, %v3027
        %v3142 = vadd.f32 %v2388, %v3030
        %v3143 = vadd.f32 %v2389, %v3035
        %v3144 = vadd.f32 %v2390, %v3038
        %v3145 = vadd.f32 %v2391, %v3043
        %v3146 = vadd.f32 %v2392, %v3046
        %v3147 = vadd.f32 %v2393, %v3051
        %v3148 = vadd.f32 %v2394, %v3054
        %v3149 = vadd.f32 %v2395, %v3059
        %v3150 = vadd.f32 %v2396, %v3062
        %v3151 = vadd.f32 %v2397, %v3067
        %v3152 = vadd.f32 %v2398, %v3070
        %v3153 = vadd.f32 %v2399, %v3075
        %v3154 = vadd.f32 %v2400, %v3078
        %v3155 = vadd.f32 %v2401, %v3083
        %v3156 = vadd.f32 %v2402, %v3086
        %v3157 = vadd.f32 %v2403, %v3091
        %v3158 = vadd.f32 %v2404, %v3094
        %v3159 = vadd.f32 %v2405, %v3099
        %v3160 = vadd.f32 %v2406, %v3102
        %v3161 = vadd.f32 %v2407, %v3107
        %v3162 = vadd.f32 %v2408, %v3110
        %v3163 = vadd.f32 %v2409, %v3115
        %v3164 = vadd.f32 %v2410, %v3118
        %v3165 = vadd.f32 %v2411, %v3123
        %v3166 = vadd.f32 %v2412, %v3126
        %v3167 = vadd.f32 %v2413, %v3131
        %v3168 = vadd.f32 %v2414, %v3134
        %v3169 = vld [vmem:[%s2028] sm:$0xe]
        %v3170 = vld [vmem:[%s2028 + $0xc] sm:$0xe]
        %v3171 = vld [vmem:[%s2028 + $0x18] sm:$0xe]
        %v3172 = vld [vmem:[%s2028 + $0x24] sm:$0xe]
        %v3173 = vld [vmem:[%s2028 + $0x30] sm:$0xe]
        %v3174 = vld [vmem:[%s2028 + $0x3c] sm:$0xe]
        %v3175 = vld [vmem:[%s2028 + $0x48] sm:$0xe]
        %v3176 = vld [vmem:[%s2028 + $0x54] sm:$0xe]
        %v3177 = vld [vmem:[%s2028 + $0x60] sm:$0xe]
        %v3178 = vld [vmem:[%s2028 + $0x6c] sm:$0xe]
        %v3179 = vld [vmem:[%s2028 + $0x78] sm:$0xe]
        %v3180 = vld [vmem:[%s2028 + $0x84] sm:$0xe]
        %v3181 = vld [vmem:[%s2028 + $0x90] sm:$0xe]
        %v3182 = vld [vmem:[%s2028 + $0x9c] sm:$0xe]
        %v3183 = vld [vmem:[%s2028 + $0xa8] sm:$0xe]
        %v3184 = vld [vmem:[%s2028 + $0xb4] sm:$0xe]
        %v3233 = vrot.slane %v3169, 5
        %v3234 = vrot.slane %v3233, 4
        %v3235 = vrot.slane %v2416, 5
        %v3236 = vsel %vm1593, %v3234, %v3235
        %v3237 = vrot.slane %v3235, 4
        %v3238 = vrot.slane %v2417, 5
        %v3239 = vsel %vm1593, %v3237, %v3238
        %v3240 = vrot.slane %v3170, 5
        %v3241 = vrot.slane %v3240, 4
        %v3242 = vrot.slane %v2419, 5
        %v3243 = vsel %vm1593, %v3241, %v3242
        %v3244 = vrot.slane %v3242, 4
        %v3245 = vrot.slane %v2420, 5
        %v3246 = vsel %vm1593, %v3244, %v3245
        %v3247 = vrot.slane %v3171, 5
        %v3248 = vrot.slane %v3247, 4
        %v3249 = vrot.slane %v2422, 5
        %v3250 = vsel %vm1593, %v3248, %v3249
        %v3251 = vrot.slane %v3249, 4
        %v3252 = vrot.slane %v2423, 5
        %v3253 = vsel %vm1593, %v3251, %v3252
        %v3254 = vrot.slane %v3172, 5
        %v3255 = vrot.slane %v3254, 4
        %v3256 = vrot.slane %v2425, 5
        %v3257 = vsel %vm1593, %v3255, %v3256
        %v3258 = vrot.slane %v3256, 4
        %v3259 = vrot.slane %v2426, 5
        %v3260 = vsel %vm1593, %v3258, %v3259
        %v3261 = vrot.slane %v3173, 5
        %v3262 = vrot.slane %v3261, 4
        %v3263 = vrot.slane %v2428, 5
        %v3264 = vsel %vm1593, %v3262, %v3263
        %v3265 = vrot.slane %v3263, 4
        %v3266 = vrot.slane %v2429, 5
        %v3267 = vsel %vm1593, %v3265, %v3266
        %v3268 = vrot.slane %v3174, 5
        %v3269 = vrot.slane %v3268, 4
        %v3270 = vrot.slane %v2431, 5
        %v3271 = vsel %vm1593, %v3269, %v3270
        %v3272 = vrot.slane %v3270, 4
        %v3273 = vrot.slane %v2432, 5
        %v3274 = vsel %vm1593, %v3272, %v3273
        %v3275 = vrot.slane %v3175, 5
        %v3276 = vrot.slane %v3275, 4
        %v3277 = vrot.slane %v2434, 5
        %v3278 = vsel %vm1593, %v3276, %v3277
        %v3279 = vrot.slane %v3277, 4
        %v3280 = vrot.slane %v2435, 5
        %v3281 = vsel %vm1593, %v3279, %v3280
        %v3282 = vrot.slane %v3176, 5
        %v3283 = vrot.slane %v3282, 4
        %v3284 = vrot.slane %v2437, 5
        %v3285 = vsel %vm1593, %v3283, %v3284
        %v3286 = vrot.slane %v3284, 4
        %v3287 = vrot.slane %v2438, 5
        %v3288 = vsel %vm1593, %v3286, %v3287
        %v3289 = vrot.slane %v3177, 5
        %v3290 = vrot.slane %v3289, 4
        %v3291 = vrot.slane %v2440, 5
        %v3292 = vsel %vm1593, %v3290, %v3291
        %v3293 = vrot.slane %v3291, 4
        %v3294 = vrot.slane %v2441, 5
        %v3295 = vsel %vm1593, %v3293, %v3294
        %v3296 = vrot.slane %v3178, 5
        %v3297 = vrot.slane %v3296, 4
        %v3298 = vrot.slane %v2443, 5
        %v3299 = vsel %vm1593, %v3297, %v3298
        %v3300 = vrot.slane %v3298, 4
        %v3301 = vrot.slane %v2444, 5
        %v3302 = vsel %vm1593, %v3300, %v3301
        %v3303 = vrot.slane %v3179, 5
        %v3304 = vrot.slane %v3303, 4
        %v3305 = vrot.slane %v2446, 5
        %v3306 = vsel %vm1593, %v3304, %v3305
        %v3307 = vrot.slane %v3305, 4
        %v3308 = vrot.slane %v2447, 5
        %v3309 = vsel %vm1593, %v3307, %v3308
        %v3310 = vrot.slane %v3180, 5
        %v3311 = vrot.slane %v3310, 4
        %v3312 = vrot.slane %v2449, 5
        %v3313 = vsel %vm1593, %v3311, %v3312
        %v3314 = vrot.slane %v3312, 4
        %v3315 = vrot.slane %v2450, 5
        %v3316 = vsel %vm1593, %v3314, %v3315
        %v3317 = vrot.slane %v3181, 5
        %v3318 = vrot.slane %v3317, 4
        %v3319 = vrot.slane %v2452, 5
        %v3320 = vsel %vm1593, %v3318, %v3319
        %v3321 = vrot.slane %v3319, 4
        %v3322 = vrot.slane %v2453, 5
        %v3323 = vsel %vm1593, %v3321, %v3322
        %v3324 = vrot.slane %v3182, 5
        %v3325 = vrot.slane %v3324, 4
        %v3326 = vrot.slane %v2455, 5
        %v3327 = vsel %vm1593, %v3325, %v3326
        %v3328 = vrot.slane %v3326, 4
        %v3329 = vrot.slane %v2456, 5
        %v3330 = vsel %vm1593, %v3328, %v3329
        %v3331 = vrot.slane %v3183, 5
        %v3332 = vrot.slane %v3331, 4
        %v3333 = vrot.slane %v2458, 5
        %v3334 = vsel %vm1593, %v3332, %v3333
        %v3335 = vrot.slane %v3333, 4
        %v3336 = vrot.slane %v2459, 5
        %v3337 = vsel %vm1593, %v3335, %v3336
        %v3338 = vrot.slane %v3184, 5
        %v3339 = vrot.slane %v3338, 4
        %v3340 = vrot.slane %v2461, 5
        %v3341 = vsel %vm1593, %v3339, %v3340
        %v3342 = vrot.slane %v3340, 4
        %v3343 = vrot.slane %v2462, 5
        %v3344 = vsel %vm1593, %v3342, %v3343
        %s3345 = scalar_lea.vmem %s2, 160
        %v3346 = vld [vmem:[%s3345] sm:$0xf]
        %v3347 = vld [vmem:[%s3345 + $0x4] sm:$0xf]
        %v3348 = vld [vmem:[%s3345 + $0x8] sm:$0xf]
        %v3349 = vld [vmem:[%s3345 + $0xc] sm:$0xf]
        %v3350 = vld [vmem:[%s3345 + $0x10] sm:$0xf]
        %v3351 = vld [vmem:[%s3345 + $0x14] sm:$0xf]
        %v3352 = vld [vmem:[%s3345 + $0x18] sm:$0xf]
        %v3353 = vld [vmem:[%s3345 + $0x1c] sm:$0xf]
        %v3354 = vunpack.c.l.b16 %v3236
        %v3355 = vunpack.c.l.b16 %v3239
        %v3356 = vunpack.c.l.b16 %v3243
        %v3357 = vunpack.c.l.b16 %v3246
        %v3358 = vunpack.c.l.b16 %v3250
        %v3359 = vunpack.c.l.b16 %v3253
        %v3360 = vunpack.c.l.b16 %v3257
        %v3361 = vunpack.c.l.b16 %v3260
        %v3362 = vunpack.c.l.b16 %v3264
        %v3363 = vunpack.c.l.b16 %v3267
        %v3364 = vunpack.c.l.b16 %v3271
        %v3365 = vunpack.c.l.b16 %v3274
        %v3366 = vunpack.c.l.b16 %v3278
        %v3367 = vunpack.c.l.b16 %v3281
        %v3368 = vunpack.c.l.b16 %v3285
        %v3369 = vunpack.c.l.b16 %v3288
        %v3370 = vunpack.c.l.b16 %v3292
        %v3371 = vunpack.c.l.b16 %v3295
        %v3372 = vunpack.c.l.b16 %v3299
        %v3373 = vunpack.c.l.b16 %v3302
        %v3374 = vunpack.c.l.b16 %v3306
        %v3375 = vunpack.c.l.b16 %v3309
        %v3376 = vunpack.c.l.b16 %v3313
        %v3377 = vunpack.c.l.b16 %v3316
        %v3378 = vunpack.c.l.b16 %v3320
        %v3379 = vunpack.c.l.b16 %v3323
        %v3380 = vunpack.c.l.b16 %v3327
        %v3381 = vunpack.c.l.b16 %v3330
        %v3382 = vunpack.c.l.b16 %v3334
        %v3383 = vunpack.c.l.b16 %v3337
        %v3384 = vunpack.c.l.b16 %v3341
        %v3385 = vunpack.c.l.b16 %v3344
        %v3386 = vpack.c.b16 %v3355, %v3354
        %v3387 = vpack.c.b16 %v3357, %v3356
        %v3388 = vpack.c.b16 %v3359, %v3358
        %v3389 = vpack.c.b16 %v3361, %v3360
        %v3390 = vpack.c.b16 %v3363, %v3362
        %v3391 = vpack.c.b16 %v3365, %v3364
        %v3392 = vpack.c.b16 %v3367, %v3366
        %v3393 = vpack.c.b16 %v3369, %v3368
        %v3394 = vpack.c.b16 %v3371, %v3370
        %v3395 = vpack.c.b16 %v3373, %v3372
        %v3396 = vpack.c.b16 %v3375, %v3374
        %v3397 = vpack.c.b16 %v3377, %v3376
        %v3398 = vpack.c.b16 %v3379, %v3378
        %v3399 = vpack.c.b16 %v3381, %v3380
        %v3400 = vpack.c.b16 %v3383, %v3382
        %v3401 = vpack.c.b16 %v3385, %v3384
        %v3410 = vunpack.c.l.b16 %v3346
        %v3411 = vunpack.c.l.b16 %v3347
        %v3412 = vunpack.c.l.b16 %v3348
        %v3413 = vunpack.c.l.b16 %v3349
        %v3414 = vunpack.c.l.b16 %v3350
        %v3415 = vunpack.c.l.b16 %v3351
        %v3416 = vunpack.c.l.b16 %v3352
        %v3417 = vunpack.c.l.b16 %v3353
        %v3418 = vpack.c.b16 %v3411, %v3410
        %v3419 = vpack.c.b16 %v3413, %v3412
        %v3420 = vpack.c.b16 %v3415, %v3414
        %v3421 = vpack.c.b16 %v3417, %v3416
        %v3427 = vsel %vm528, %v3386, 0
        %v3430 = vsel %vm528, %v3387, 0
        %v3433 = vsel %vm528, %v3388, 0
        %v3436 = vsel %vm528, %v3389, 0
        %v3439 = vsel %vm528, %v3390, 0
        %v3442 = vsel %vm528, %v3391, 0
        %v3445 = vsel %vm528, %v3392, 0
        %v3448 = vsel %vm528, %v3393, 0
        %v3451 = vsel %vm528, %v3394, 0
        %v3454 = vsel %vm528, %v3395, 0
        %v3457 = vsel %vm528, %v3396, 0
        %v3460 = vsel %vm528, %v3397, 0
        %v3463 = vsel %vm528, %v3398, 0
        %v3466 = vsel %vm528, %v3399, 0
        %v3469 = vsel %vm528, %v3400, 0
        %v3472 = vsel %vm528, %v3401, 0
        %3474 = vmatprep.subr.bf16.mxu0 0
        %3475 = vmatpush1.bf16.msra.mxu0 %v3418
        %3476 = vmatprep.subr.bf16.mxu0 0
        %3477 = vmatpush1.bf16.msra.mxu0 %v3419
        %3478 = vmatprep.subr.bf16.mxu0 0
        %3479 = vmatpush1.bf16.msra.mxu0 %v3420
        %3480 = vmatprep.subr.bf16.mxu0 0
        %3481 = vmatpush1.bf16.msra.mxu0 %v3421
        %3482 = vmatprep.subr.bf16.mxu0 0
        %3483 = vmatpush1.bf16.msra.mxu0 0
        %3484 = vmatprep.subr.bf16.mxu0 0
        %3485 = vmatpush1.bf16.msra.mxu0 0
        %3486 = vmatprep.subr.bf16.mxu0 0
        %3487 = vmatpush1.bf16.msra.mxu0 0
        %3488 = vmatprep.subr.bf16.mxu0 0
        %3489 = vmatpush1.bf16.msra.mxu0 0
        %3490 = vmatprep.subr.bf16.mxu0 0
        %3491 = vmatpush1.bf16.msra.mxu0 0
        %3492 = vmatprep.subr.bf16.mxu0 0
        %3493 = vmatpush1.bf16.msra.mxu0 0
        %3494 = vmatprep.subr.bf16.mxu0 0
        %3495 = vmatpush1.bf16.msra.mxu0 0
        %3496 = vmatprep.subr.bf16.mxu0 0
        %3497 = vmatpush1.bf16.msra.mxu0 0
        %3498 = vmatprep.subr.bf16.mxu0 0
        %3499 = vmatpush1.bf16.msra.mxu0 0
        %3500 = vmatprep.subr.bf16.mxu0 0
        %3501 = vmatpush1.bf16.msra.mxu0 0
        %3502 = vmatprep.subr.bf16.mxu0 0
        %3503 = vmatpush1.bf16.msra.mxu0 0
        %3504 = vmatprep.subr.bf16.mxu0 0
        %3505 = vmatpush1.bf16.msra.mxu0 0
        %3506 = vmatprep.mubr.bf16.mxu0 0
        %3507 = vmatmul.mubr.bf16.gmra.mrb[0].mxu0 %v3427
        %v3508 = vpop.f32.mrb[0].mxu0
        %v3509 = vadd.f32 0.0, %v3508
        %v3510 = vpop.f32.mrb[0].mxu0
        %v3511 = vpop.f32.mrb[0].mxu0
        %v3512 = vadd.f32 0.0, %v3511
        %v3513 = vpop.f32.mrb[0].mxu0
        %3514 = vmatprep.mubr.bf16.mxu0 0
        %3515 = vmatmul.mubr.bf16.gmra.mrb[0].mxu0 %v3430
        %v3516 = vpop.f32.mrb[0].mxu0
        %v3517 = vadd.f32 0.0, %v3516
        %v3518 = vpop.f32.mrb[0].mxu0
        %v3519 = vpop.f32.mrb[0].mxu0
        %v3520 = vadd.f32 0.0, %v3519
        %v3521 = vpop.f32.mrb[0].mxu0
        %3522 = vmatprep.mubr.bf16.mxu0 0
        %3523 = vmatmul.mubr.bf16.gmra.mrb[0].mxu0 %v3433
        %v3524 = vpop.f32.mrb[0].mxu0
        %v3525 = vadd.f32 0.0, %v3524
        %v3526 = vpop.f32.mrb[0].mxu0
        %v3527 = vpop.f32.mrb[0].mxu0
        %v3528 = vadd.f32 0.0, %v3527
        %v3529 = vpop.f32.mrb[0].mxu0
        %3530 = vmatprep.mubr.bf16.mxu0 0
        %3531 = vmatmul.mubr.bf16.gmra.mrb[0].mxu0 %v3436
        %v3532 = vpop.f32.mrb[0].mxu0
        %v3533 = vadd.f32 0.0, %v3532
        %v3534 = vpop.f32.mrb[0].mxu0
        %v3535 = vpop.f32.mrb[0].mxu0
        %v3536 = vadd.f32 0.0, %v3535
        %v3537 = vpop.f32.mrb[0].mxu0
        %3538 = vmatprep.mubr.bf16.mxu0 0
        %3539 = vmatmul.mubr.bf16.gmra.mrb[0].mxu0 %v3439
        %v3540 = vpop.f32.mrb[0].mxu0
        %v3541 = vadd.f32 0.0, %v3540
        %v3542 = vpop.f32.mrb[0].mxu0
        %v3543 = vpop.f32.mrb[0].mxu0
        %v3544 = vadd.f32 0.0, %v3543
        %v3545 = vpop.f32.mrb[0].mxu0
        %3546 = vmatprep.mubr.bf16.mxu0 0
        %3547 = vmatmul.mubr.bf16.gmra.mrb[0].mxu0 %v3442
        %v3548 = vpop.f32.mrb[0].mxu0
        %v3549 = vadd.f32 0.0, %v3548
        %v3550 = vpop.f32.mrb[0].mxu0
        %v3551 = vpop.f32.mrb[0].mxu0
        %v3552 = vadd.f32 0.0, %v3551
        %v3553 = vpop.f32.mrb[0].mxu0
        %3554 = vmatprep.mubr.bf16.mxu0 0
        %3555 = vmatmul.mubr.bf16.gmra.mrb[0].mxu0 %v3445
        %v3556 = vpop.f32.mrb[0].mxu0
        %v3557 = vadd.f32 0.0, %v3556
        %v3558 = vpop.f32.mrb[0].mxu0
        %v3559 = vpop.f32.mrb[0].mxu0
        %v3560 = vadd.f32 0.0, %v3559
        %v3561 = vpop.f32.mrb[0].mxu0
        %3562 = vmatprep.mubr.bf16.mxu0 0
        %3563 = vmatmul.mubr.bf16.gmra.mrb[0].mxu0 %v3448
        %v3564 = vpop.f32.mrb[0].mxu0
        %v3565 = vadd.f32 0.0, %v3564
        %v3566 = vpop.f32.mrb[0].mxu0
        %v3567 = vpop.f32.mrb[0].mxu0
        %v3568 = vadd.f32 0.0, %v3567
        %v3569 = vpop.f32.mrb[0].mxu0
        %3570 = vmatprep.mubr.bf16.mxu0 0
        %3571 = vmatmul.mubr.bf16.gmra.mrb[0].mxu0 %v3451
        %v3572 = vpop.f32.mrb[0].mxu0
        %v3573 = vadd.f32 0.0, %v3572
        %v3574 = vpop.f32.mrb[0].mxu0
        %v3575 = vpop.f32.mrb[0].mxu0
        %v3576 = vadd.f32 0.0, %v3575
        %v3577 = vpop.f32.mrb[0].mxu0
        %3578 = vmatprep.mubr.bf16.mxu0 0
        %3579 = vmatmul.mubr.bf16.gmra.mrb[0].mxu0 %v3454
        %v3580 = vpop.f32.mrb[0].mxu0
        %v3581 = vadd.f32 0.0, %v3580
        %v3582 = vpop.f32.mrb[0].mxu0
        %v3583 = vpop.f32.mrb[0].mxu0
        %v3584 = vadd.f32 0.0, %v3583
        %v3585 = vpop.f32.mrb[0].mxu0
        %3586 = vmatprep.mubr.bf16.mxu0 0
        %3587 = vmatmul.mubr.bf16.gmra.mrb[0].mxu0 %v3457
        %v3588 = vpop.f32.mrb[0].mxu0
        %v3589 = vadd.f32 0.0, %v3588
        %v3590 = vpop.f32.mrb[0].mxu0
        %v3591 = vpop.f32.mrb[0].mxu0
        %v3592 = vadd.f32 0.0, %v3591
        %v3593 = vpop.f32.mrb[0].mxu0
        %3594 = vmatprep.mubr.bf16.mxu0 0
        %3595 = vmatmul.mubr.bf16.gmra.mrb[0].mxu0 %v3460
        %v3596 = vpop.f32.mrb[0].mxu0
        %v3597 = vadd.f32 0.0, %v3596
        %v3598 = vpop.f32.mrb[0].mxu0
        %v3599 = vpop.f32.mrb[0].mxu0
        %v3600 = vadd.f32 0.0, %v3599
        %v3601 = vpop.f32.mrb[0].mxu0
        %3602 = vmatprep.mubr.bf16.mxu0 0
        %3603 = vmatmul.mubr.bf16.gmra.mrb[0].mxu0 %v3463
        %v3604 = vpop.f32.mrb[0].mxu0
        %v3605 = vadd.f32 0.0, %v3604
        %v3606 = vpop.f32.mrb[0].mxu0
        %v3607 = vpop.f32.mrb[0].mxu0
        %v3608 = vadd.f32 0.0, %v3607
        %v3609 = vpop.f32.mrb[0].mxu0
        %3610 = vmatprep.mubr.bf16.mxu0 0
        %3611 = vmatmul.mubr.bf16.gmra.mrb[0].mxu0 %v3466
        %v3612 = vpop.f32.mrb[0].mxu0
        %v3613 = vadd.f32 0.0, %v3612
        %v3614 = vpop.f32.mrb[0].mxu0
        %v3615 = vpop.f32.mrb[0].mxu0
        %v3616 = vadd.f32 0.0, %v3615
        %v3617 = vpop.f32.mrb[0].mxu0
        %3618 = vmatprep.mubr.bf16.mxu0 0
        %3619 = vmatmul.mubr.bf16.gmra.mrb[0].mxu0 %v3469
        %v3620 = vpop.f32.mrb[0].mxu0
        %v3621 = vadd.f32 0.0, %v3620
        %v3622 = vpop.f32.mrb[0].mxu0
        %v3623 = vpop.f32.mrb[0].mxu0
        %v3624 = vadd.f32 0.0, %v3623
        %v3625 = vpop.f32.mrb[0].mxu0
        %3626 = vmatprep.mubr.bf16.mxu0 0
        %3627 = vmatmul.mubr.bf16.gmra.mrb[0].mxu0 %v3472
        %v3628 = vpop.f32.mrb[0].mxu0
        %v3629 = vadd.f32 0.0, %v3628
        %v3630 = vpop.f32.mrb[0].mxu0
        %v3631 = vpop.f32.mrb[0].mxu0
        %v3632 = vadd.f32 0.0, %v3631
        %v3633 = vpop.f32.mrb[0].mxu0
        %3634 = vdwg.mxu0
        %v3635 = vadd.f32 %v3137, %v3509
        %v3636 = vadd.f32 %v3138, %v3512
        %v3637 = vadd.f32 %v3139, %v3517
        %v3638 = vadd.f32 %v3140, %v3520
        %v3639 = vadd.f32 %v3141, %v3525
        %v3640 = vadd.f32 %v3142, %v3528
        %v3641 = vadd.f32 %v3143, %v3533
        %v3642 = vadd.f32 %v3144, %v3536
        %v3643 = vadd.f32 %v3145, %v3541
        %v3644 = vadd.f32 %v3146, %v3544
        %v3645 = vadd.f32 %v3147, %v3549
        %v3646 = vadd.f32 %v3148, %v3552
        %v3647 = vadd.f32 %v3149, %v3557
        %v3648 = vadd.f32 %v3150, %v3560
        %v3649 = vadd.f32 %v3151, %v3565
        %v3650 = vadd.f32 %v3152, %v3568
        %v3651 = vadd.f32 %v3153, %v3573
        %v3652 = vadd.f32 %v3154, %v3576
        %v3653 = vadd.f32 %v3155, %v3581
        %v3654 = vadd.f32 %v3156, %v3584
        %v3655 = vadd.f32 %v3157, %v3589
        %v3656 = vadd.f32 %v3158, %v3592
        %v3657 = vadd.f32 %v3159, %v3597
        %v3658 = vadd.f32 %v3160, %v3600
        %v3659 = vadd.f32 %v3161, %v3605
        %v3660 = vadd.f32 %v3162, %v3608
        %v3661 = vadd.f32 %v3163, %v3613
        %v3662 = vadd.f32 %v3164, %v3616
        %v3663 = vadd.f32 %v3165, %v3621
        %v3664 = vadd.f32 %v3166, %v3624
        %v3665 = vadd.f32 %v3167, %v3629
        %v3666 = vadd.f32 %v3168, %v3632
        %s3667 = scalar_lea.vmem %s345, 24
        %v3668 = vld [vmem:[%s3667] sm:$0xf]
        %v3669 = vld [vmem:[%s3667 + $0x4] sm:$0xf]
        %v3670 = vld [vmem:[%s3667 + $0xc] sm:$0xf]
        %v3671 = vld [vmem:[%s3667 + $0x10] sm:$0xf]
        %v3672 = vld [vmem:[%s3667 + $0x18] sm:$0xf]
        %v3673 = vld [vmem:[%s3667 + $0x1c] sm:$0xf]
        %v3674 = vld [vmem:[%s3667 + $0x24] sm:$0xf]
        %v3675 = vld [vmem:[%s3667 + $0x28] sm:$0xf]
        %v3676 = vld [vmem:[%s3667 + $0x30] sm:$0xf]
        %v3677 = vld [vmem:[%s3667 + $0x34] sm:$0xf]
        %v3678 = vld [vmem:[%s3667 + $0x3c] sm:$0xf]
        %v3679 = vld [vmem:[%s3667 + $0x40] sm:$0xf]
        %v3680 = vld [vmem:[%s3667 + $0x48] sm:$0xf]
        %v3681 = vld [vmem:[%s3667 + $0x4c] sm:$0xf]
        %v3682 = vld [vmem:[%s3667 + $0x54] sm:$0xf]
        %v3683 = vld [vmem:[%s3667 + $0x58] sm:$0xf]
        %v3684 = vld [vmem:[%s3667 + $0x60] sm:$0xf]
        %v3685 = vld [vmem:[%s3667 + $0x64] sm:$0xf]
        %v3686 = vld [vmem:[%s3667 + $0x6c] sm:$0xf]
        %v3687 = vld [vmem:[%s3667 + $0x70] sm:$0xf]
        %v3688 = vld [vmem:[%s3667 + $0x78] sm:$0xf]
        %v3689 = vld [vmem:[%s3667 + $0x7c] sm:$0xf]
        %v3690 = vld [vmem:[%s3667 + $0x84] sm:$0xf]
        %v3691 = vld [vmem:[%s3667 + $0x88] sm:$0xf]
        %v3692 = vld [vmem:[%s3667 + $0x90] sm:$0xf]
        %v3693 = vld [vmem:[%s3667 + $0x94] sm:$0xf]
        %v3694 = vld [vmem:[%s3667 + $0x9c] sm:$0xf]
        %v3695 = vld [vmem:[%s3667 + $0xa0] sm:$0xf]
        %v3696 = vld [vmem:[%s3667 + $0xa8] sm:$0xf]
        %v3697 = vld [vmem:[%s3667 + $0xac] sm:$0xf]
        %v3698 = vld [vmem:[%s3667 + $0xb4] sm:$0xf]
        %v3699 = vld [vmem:[%s3667 + $0xb8] sm:$0xf]
        %s3700 = scalar_lea.vmem %s2, 192
        %v3701 = vld [vmem:[%s3700] sm:$0xf]
        %v3702 = vld [vmem:[%s3700 + $0x4] sm:$0xf]
        %v3703 = vld [vmem:[%s3700 + $0x8] sm:$0xf]
        %v3704 = vld [vmem:[%s3700 + $0xc] sm:$0xf]
        %v3705 = vld [vmem:[%s3700 + $0x10] sm:$0xf]
        %v3706 = vld [vmem:[%s3700 + $0x14] sm:$0xf]
        %v3707 = vld [vmem:[%s3700 + $0x18] sm:$0xf]
        %v3708 = vld [vmem:[%s3700 + $0x1c] sm:$0xf]
        %v3741 = vunpack.c.l.b16 %v3668
        %v3742 = vunpack.c.l.b16 %v3669
        %v3743 = vunpack.c.l.b16 %v3670
        %v3744 = vunpack.c.l.b16 %v3671
        %v3745 = vunpack.c.l.b16 %v3672
        %v3746 = vunpack.c.l.b16 %v3673
        %v3747 = vunpack.c.l.b16 %v3674
        %v3748 = vunpack.c.l.b16 %v3675
        %v3749 = vunpack.c.l.b16 %v3676
        %v3750 = vunpack.c.l.b16 %v3677
        %v3751 = vunpack.c.l.b16 %v3678
        %v3752 = vunpack.c.l.b16 %v3679
        %v3753 = vunpack.c.l.b16 %v3680
        %v3754 = vunpack.c.l.b16 %v3681
        %v3755 = vunpack.c.l.b16 %v3682
        %v3756 = vunpack.c.l.b16 %v3683
        %v3757 = vunpack.c.l.b16 %v3684
        %v3758 = vunpack.c.l.b16 %v3685
        %v3759 = vunpack.c.l.b16 %v3686
        %v3760 = vunpack.c.l.b16 %v3687
        %v3761 = vunpack.c.l.b16 %v3688
        %v3762 = vunpack.c.l.b16 %v3689
        %v3763 = vunpack.c.l.b16 %v3690
        %v3764 = vunpack.c.l.b16 %v3691
        %v3765 = vunpack.c.l.b16 %v3692
        %v3766 = vunpack.c.l.b16 %v3693
        %v3767 = vunpack.c.l.b16 %v3694
        %v3768 = vunpack.c.l.b16 %v3695
        %v3769 = vunpack.c.l.b16 %v3696
        %v3770 = vunpack.c.l.b16 %v3697
        %v3771 = vunpack.c.l.b16 %v3698
        %v3772 = vunpack.c.l.b16 %v3699
        %v3773 = vpack.c.b16 %v3742, %v3741
        %v3774 = vpack.c.b16 %v3744, %v3743
        %v3775 = vpack.c.b16 %v3746, %v3745
        %v3776 = vpack.c.b16 %v3748, %v3747
        %v3777 = vpack.c.b16 %v3750, %v3749
        %v3778 = vpack.c.b16 %v3752, %v3751
        %v3779 = vpack.c.b16 %v3754, %v3753
        %v3780 = vpack.c.b16 %v3756, %v3755
        %v3781 = vpack.c.b16 %v3758, %v3757
        %v3782 = vpack.c.b16 %v3760, %v3759
        %v3783 = vpack.c.b16 %v3762, %v3761
        %v3784 = vpack.c.b16 %v3764, %v3763
        %v3785 = vpack.c.b16 %v3766, %v3765
        %v3786 = vpack.c.b16 %v3768, %v3767
        %v3787 = vpack.c.b16 %v3770, %v3769
        %v3788 = vpack.c.b16 %v3772, %v3771
        %v3797 = vunpack.c.l.b16 %v3701
        %v3798 = vunpack.c.l.b16 %v3702
        %v3799 = vunpack.c.l.b16 %v3703
        %v3800 = vunpack.c.l.b16 %v3704
        %v3801 = vunpack.c.l.b16 %v3705
        %v3802 = vunpack.c.l.b16 %v3706
        %v3803 = vunpack.c.l.b16 %v3707
        %v3804 = vunpack.c.l.b16 %v3708
        %v3805 = vpack.c.b16 %v3798, %v3797
        %v3806 = vpack.c.b16 %v3800, %v3799
        %v3807 = vpack.c.b16 %v3802, %v3801
        %v3808 = vpack.c.b16 %v3804, %v3803
        %v3814 = vsel %vm528, %v3773, 0
        %v3817 = vsel %vm528, %v3774, 0
        %v3820 = vsel %vm528, %v3775, 0
        %v3823 = vsel %vm528, %v3776, 0
        %v3826 = vsel %vm528, %v3777, 0
        %v3829 = vsel %vm528, %v3778, 0
        %v3832 = vsel %vm528, %v3779, 0
        %v3835 = vsel %vm528, %v3780, 0
        %v3838 = vsel %vm528, %v3781, 0
        %v3841 = vsel %vm528, %v3782, 0
        %v3844 = vsel %vm528, %v3783, 0
        %v3847 = vsel %vm528, %v3784, 0
        %v3850 = vsel %vm528, %v3785, 0
        %v3853 = vsel %vm528, %v3786, 0
        %v3856 = vsel %vm528, %v3787, 0
        %v3859 = vsel %vm528, %v3788, 0
        %3861 = vmatprep.subr.bf16.mxu0 0
        %3862 = vmatpush1.bf16.msra.mxu0 %v3805
        %3863 = vmatprep.subr.bf16.mxu0 0
        %3864 = vmatpush1.bf16.msra.mxu0 %v3806
        %3865 = vmatprep.subr.bf16.mxu0 0
        %3866 = vmatpush1.bf16.msra.mxu0 %v3807
        %3867 = vmatprep.subr.bf16.mxu0 0
        %3868 = vmatpush1.bf16.msra.mxu0 %v3808
        %3869 = vmatprep.subr.bf16.mxu0 0
        %3870 = vmatpush1.bf16.msra.mxu0 0
        %3871 = vmatprep.subr.bf16.mxu0 0
        %3872 = vmatpush1.bf16.msra.mxu0 0
        %3873 = vmatprep.subr.bf16.mxu0 0
        %3874 = vmatpush1.bf16.msra.mxu0 0
        %3875 = vmatprep.subr.bf16.mxu0 0
        %3876 = vmatpush1.bf16.msra.mxu0 0
        %3877 = vmatprep.subr.bf16.mxu0 0
        %3878 = vmatpush1.bf16.msra.mxu0 0
        %3879 = vmatprep.subr.bf16.mxu0 0
        %3880 = vmatpush1.bf16.msra.mxu0 0
        %3881 = vmatprep.subr.bf16.mxu0 0
        %3882 = vmatpush1.bf16.msra.mxu0 0
        %3883 = vmatprep.subr.bf16.mxu0 0
        %3884 = vmatpush1.bf16.msra.mxu0 0
        %3885 = vmatprep.subr.bf16.mxu0 0
        %3886 = vmatpush1.bf16.msra.mxu0 0
        %3887 = vmatprep.subr.bf16.mxu0 0
        %3888 = vmatpush1.bf16.msra.mxu0 0
        %3889 = vmatprep.subr.bf16.mxu0 0
        %3890 = vmatpush1.bf16.msra.mxu0 0
        %3891 = vmatprep.subr.bf16.mxu0 0
        %3892 = vmatpush1.bf16.msra.mxu0 0
        %3893 = vmatprep.mubr.bf16.mxu0 0
        %3894 = vmatmul.mubr.bf16.gmra.mrb[0].mxu0 %v3814
        %v3895 = vpop.f32.mrb[0].mxu0
        %v3896 = vadd.f32 0.0, %v3895
        %v3897 = vpop.f32.mrb[0].mxu0
        %v3898 = vpop.f32.mrb[0].mxu0
        %v3899 = vadd.f32 0.0, %v3898
        %v3900 = vpop.f32.mrb[0].mxu0
        %3901 = vmatprep.mubr.bf16.mxu0 0
        %3902 = vmatmul.mubr.bf16.gmra.mrb[0].mxu0 %v3817
        %v3903 = vpop.f32.mrb[0].mxu0
        %v3904 = vadd.f32 0.0, %v3903
        %v3905 = vpop.f32.mrb[0].mxu0
        %v3906 = vpop.f32.mrb[0].mxu0
        %v3907 = vadd.f32 0.0, %v3906
        %v3908 = vpop.f32.mrb[0].mxu0
        %3909 = vmatprep.mubr.bf16.mxu0 0
        %3910 = vmatmul.mubr.bf16.gmra.mrb[0].mxu0 %v3820
        %v3911 = vpop.f32.mrb[0].mxu0
        %v3912 = vadd.f32 0.0, %v3911
        %v3913 = vpop.f32.mrb[0].mxu0
        %v3914 = vpop.f32.mrb[0].mxu0
        %v3915 = vadd.f32 0.0, %v3914
        %v3916 = vpop.f32.mrb[0].mxu0
        %3917 = vmatprep.mubr.bf16.mxu0 0
        %3918 = vmatmul.mubr.bf16.gmra.mrb[0].mxu0 %v3823
        %v3919 = vpop.f32.mrb[0].mxu0
        %v3920 = vadd.f32 0.0, %v3919
        %v3921 = vpop.f32.mrb[0].mxu0
        %v3922 = vpop.f32.mrb[0].mxu0
        %v3923 = vadd.f32 0.0, %v3922
        %v3924 = vpop.f32.mrb[0].mxu0
        %3925 = vmatprep.mubr.bf16.mxu0 0
        %3926 = vmatmul.mubr.bf16.gmra.mrb[0].mxu0 %v3826
        %v3927 = vpop.f32.mrb[0].mxu0
        %v3928 = vadd.f32 0.0, %v3927
        %v3929 = vpop.f32.mrb[0].mxu0
        %v3930 = vpop.f32.mrb[0].mxu0
        %v3931 = vadd.f32 0.0, %v3930
        %v3932 = vpop.f32.mrb[0].mxu0
        %3933 = vmatprep.mubr.bf16.mxu0 0
        %3934 = vmatmul.mubr.bf16.gmra.mrb[0].mxu0 %v3829
        %v3935 = vpop.f32.mrb[0].mxu0
        %v3936 = vadd.f32 0.0, %v3935
        %v3937 = vpop.f32.mrb[0].mxu0
        %v3938 = vpop.f32.mrb[0].mxu0
        %v3939 = vadd.f32 0.0, %v3938
        %v3940 = vpop.f32.mrb[0].mxu0
        %3941 = vmatprep.mubr.bf16.mxu0 0
        %3942 = vmatmul.mubr.bf16.gmra.mrb[0].mxu0 %v3832
        %v3943 = vpop.f32.mrb[0].mxu0
        %v3944 = vadd.f32 0.0, %v3943
        %v3945 = vpop.f32.mrb[0].mxu0
        %v3946 = vpop.f32.mrb[0].mxu0
        %v3947 = vadd.f32 0.0, %v3946
        %v3948 = vpop.f32.mrb[0].mxu0
        %3949 = vmatprep.mubr.bf16.mxu0 0
        %3950 = vmatmul.mubr.bf16.gmra.mrb[0].mxu0 %v3835
        %v3951 = vpop.f32.mrb[0].mxu0
        %v3952 = vadd.f32 0.0, %v3951
        %v3953 = vpop.f32.mrb[0].mxu0
        %v3954 = vpop.f32.mrb[0].mxu0
        %v3955 = vadd.f32 0.0, %v3954
        %v3956 = vpop.f32.mrb[0].mxu0
        %3957 = vmatprep.mubr.bf16.mxu0 0
        %3958 = vmatmul.mubr.bf16.gmra.mrb[0].mxu0 %v3838
        %v3959 = vpop.f32.mrb[0].mxu0
        %v3960 = vadd.f32 0.0, %v3959
        %v3961 = vpop.f32.mrb[0].mxu0
        %v3962 = vpop.f32.mrb[0].mxu0
        %v3963 = vadd.f32 0.0, %v3962
        %v3964 = vpop.f32.mrb[0].mxu0
        %3965 = vmatprep.mubr.bf16.mxu0 0
        %3966 = vmatmul.mubr.bf16.gmra.mrb[0].mxu0 %v3841
        %v3967 = vpop.f32.mrb[0].mxu0
        %v3968 = vadd.f32 0.0, %v3967
        %v3969 = vpop.f32.mrb[0].mxu0
        %v3970 = vpop.f32.mrb[0].mxu0
        %v3971 = vadd.f32 0.0, %v3970
        %v3972 = vpop.f32.mrb[0].mxu0
        %3973 = vmatprep.mubr.bf16.mxu0 0
        %3974 = vmatmul.mubr.bf16.gmra.mrb[0].mxu0 %v3844
        %v3975 = vpop.f32.mrb[0].mxu0
        %v3976 = vadd.f32 0.0, %v3975
        %v3977 = vpop.f32.mrb[0].mxu0
        %v3978 = vpop.f32.mrb[0].mxu0
        %v3979 = vadd.f32 0.0, %v3978
        %v3980 = vpop.f32.mrb[0].mxu0
        %3981 = vmatprep.mubr.bf16.mxu0 0
        %3982 = vmatmul.mubr.bf16.gmra.mrb[0].mxu0 %v3847
        %v3983 = vpop.f32.mrb[0].mxu0
        %v3984 = vadd.f32 0.0, %v3983
        %v3985 = vpop.f32.mrb[0].mxu0
        %v3986 = vpop.f32.mrb[0].mxu0
        %v3987 = vadd.f32 0.0, %v3986
        %v3988 = vpop.f32.mrb[0].mxu0
        %3989 = vmatprep.mubr.bf16.mxu0 0
        %3990 = vmatmul.mubr.bf16.gmra.mrb[0].mxu0 %v3850
        %v3991 = vpop.f32.mrb[0].mxu0
        %v3992 = vadd.f32 0.0, %v3991
        %v3993 = vpop.f32.mrb[0].mxu0
        %v3994 = vpop.f32.mrb[0].mxu0
        %v3995 = vadd.f32 0.0, %v3994
        %v3996 = vpop.f32.mrb[0].mxu0
        %3997 = vmatprep.mubr.bf16.mxu0 0
        %3998 = vmatmul.mubr.bf16.gmra.mrb[0].mxu0 %v3853
        %v3999 = vpop.f32.mrb[0].mxu0
        %v4000 = vadd.f32 0.0, %v3999
        %v4001 = vpop.f32.mrb[0].mxu0
        %v4002 = vpop.f32.mrb[0].mxu0
        %v4003 = vadd.f32 0.0, %v4002
        %v4004 = vpop.f32.mrb[0].mxu0
        %4005 = vmatprep.mubr.bf16.mxu0 0
        %4006 = vmatmul.mubr.bf16.gmra.mrb[0].mxu0 %v3856
        %v4007 = vpop.f32.mrb[0].mxu0
        %v4008 = vadd.f32 0.0, %v4007
        %v4009 = vpop.f32.mrb[0].mxu0
        %v4010 = vpop.f32.mrb[0].mxu0
        %v4011 = vadd.f32 0.0, %v4010
        %v4012 = vpop.f32.mrb[0].mxu0
        %4013 = vmatprep.mubr.bf16.mxu0 0
        %4014 = vmatmul.mubr.bf16.gmra.mrb[0].mxu0 %v3859
        %v4015 = vpop.f32.mrb[0].mxu0
        %v4016 = vadd.f32 0.0, %v4015
        %v4017 = vpop.f32.mrb[0].mxu0
        %v4018 = vpop.f32.mrb[0].mxu0
        %v4019 = vadd.f32 0.0, %v4018
        %v4020 = vpop.f32.mrb[0].mxu0
        %4021 = vdwg.mxu0
        %v4022 = vadd.f32 %v3635, %v3896
        %v4023 = vadd.f32 %v3636, %v3899
        %v4024 = vadd.f32 %v3637, %v3904
        %v4025 = vadd.f32 %v3638, %v3907
        %v4026 = vadd.f32 %v3639, %v3912
        %v4027 = vadd.f32 %v3640, %v3915
        %v4028 = vadd.f32 %v3641, %v3920
        %v4029 = vadd.f32 %v3642, %v3923
        %v4030 = vadd.f32 %v3643, %v3928
        %v4031 = vadd.f32 %v3644, %v3931
        %v4032 = vadd.f32 %v3645, %v3936
        %v4033 = vadd.f32 %v3646, %v3939
        %v4034 = vadd.f32 %v3647, %v3944
        %v4035 = vadd.f32 %v3648, %v3947
        %v4036 = vadd.f32 %v3649, %v3952
        %v4037 = vadd.f32 %v3650, %v3955
        %v4038 = vadd.f32 %v3651, %v3960
        %v4039 = vadd.f32 %v3652, %v3963
        %v4040 = vadd.f32 %v3653, %v3968
        %v4041 = vadd.f32 %v3654, %v3971
        %v4042 = vadd.f32 %v3655, %v3976
        %v4043 = vadd.f32 %v3656, %v3979
        %v4044 = vadd.f32 %v3657, %v3984
        %v4045 = vadd.f32 %v3658, %v3987
        %v4046 = vadd.f32 %v3659, %v3992
        %v4047 = vadd.f32 %v3660, %v3995
        %v4048 = vadd.f32 %v3661, %v4000
        %v4049 = vadd.f32 %v3662, %v4003
        %v4050 = vadd.f32 %v3663, %v4008
        %v4051 = vadd.f32 %v3664, %v4011
        %v4052 = vadd.f32 %v3665, %v4016
        %v4053 = vadd.f32 %v3666, %v4019
        %v4054 = vld [vmem:[%s3667] sm:$0xf]
        %v4055 = vld [vmem:[%s3667 + $0x4] sm:$0xf]
        %v4056 = vld [vmem:[%s3667 + $0x8] sm:$0x1]
        %v4057 = vld [vmem:[%s3667 + $0xc] sm:$0xf]
        %v4058 = vld [vmem:[%s3667 + $0x10] sm:$0xf]
        %v4059 = vld [vmem:[%s3667 + $0x14] sm:$0x1]
        %v4060 = vld [vmem:[%s3667 + $0x18] sm:$0xf]
        %v4061 = vld [vmem:[%s3667 + $0x1c] sm:$0xf]
        %v4062 = vld [vmem:[%s3667 + $0x20] sm:$0x1]
        %v4063 = vld [vmem:[%s3667 + $0x24] sm:$0xf]
        %v4064 = vld [vmem:[%s3667 + $0x28] sm:$0xf]
        %v4065 = vld [vmem:[%s3667 + $0x2c] sm:$0x1]
        %v4066 = vld [vmem:[%s3667 + $0x30] sm:$0xf]
        %v4067 = vld [vmem:[%s3667 + $0x34] sm:$0xf]
        %v4068 = vld [vmem:[%s3667 + $0x38] sm:$0x1]
        %v4069 = vld [vmem:[%s3667 + $0x3c] sm:$0xf]
        %v4070 = vld [vmem:[%s3667 + $0x40] sm:$0xf]
        %v4071 = vld [vmem:[%s3667 + $0x44] sm:$0x1]
        %v4072 = vld [vmem:[%s3667 + $0x48] sm:$0xf]
        %v4073 = vld [vmem:[%s3667 + $0x4c] sm:$0xf]
        %v4074 = vld [vmem:[%s3667 + $0x50] sm:$0x1]
        %v4075 = vld [vmem:[%s3667 + $0x54] sm:$0xf]
        %v4076 = vld [vmem:[%s3667 + $0x58] sm:$0xf]
        %v4077 = vld [vmem:[%s3667 + $0x5c] sm:$0x1]
        %v4078 = vld [vmem:[%s3667 + $0x60] sm:$0xf]
        %v4079 = vld [vmem:[%s3667 + $0x64] sm:$0xf]
        %v4080 = vld [vmem:[%s3667 + $0x68] sm:$0x1]
        %v4081 = vld [vmem:[%s3667 + $0x6c] sm:$0xf]
        %v4082 = vld [vmem:[%s3667 + $0x70] sm:$0xf]
        %v4083 = vld [vmem:[%s3667 + $0x74] sm:$0x1]
        %v4084 = vld [vmem:[%s3667 + $0x78] sm:$0xf]
        %v4085 = vld [vmem:[%s3667 + $0x7c] sm:$0xf]
        %v4086 = vld [vmem:[%s3667 + $0x80] sm:$0x1]
        %v4087 = vld [vmem:[%s3667 + $0x84] sm:$0xf]
        %v4088 = vld [vmem:[%s3667 + $0x88] sm:$0xf]
        %v4089 = vld [vmem:[%s3667 + $0x8c] sm:$0x1]
        %v4090 = vld [vmem:[%s3667 + $0x90] sm:$0xf]
        %v4091 = vld [vmem:[%s3667 + $0x94] sm:$0xf]
        %v4092 = vld [vmem:[%s3667 + $0x98] sm:$0x1]
        %v4093 = vld [vmem:[%s3667 + $0x9c] sm:$0xf]
        %v4094 = vld [vmem:[%s3667 + $0xa0] sm:$0xf]
        %v4095 = vld [vmem:[%s3667 + $0xa4] sm:$0x1]
        %v4096 = vld [vmem:[%s3667 + $0xa8] sm:$0xf]
        %v4097 = vld [vmem:[%s3667 + $0xac] sm:$0xf]
        %v4098 = vld [vmem:[%s3667 + $0xb0] sm:$0x1]
        %v4099 = vld [vmem:[%s3667 + $0xb4] sm:$0xf]
        %v4100 = vld [vmem:[%s3667 + $0xb8] sm:$0xf]
        %v4101 = vld [vmem:[%s3667 + $0xbc] sm:$0x1]
        %v4103 = vshrl.u32 %v4054, 16
        %v4105 = vrot.slane %v4103, 4
        %v4106 = vshll.u32 %v4054, 16
        %v4108 = vrot.slane %v4106, 5
        %v4109 = vor.u32 %v4105, %v4108
        %v4110 = vrot.slane %v4109, 4
        %v4112 = vshll.u32 %v4055, 16
        %v4114 = vrot.slane %v4112, 5
        %v4115 = vsel %vm820, %v4110, %v4114
        %v4116 = vshrl.u32 %v4055, 16
        %v4118 = vrot.slane %v4116, 4
        %v4119 = vor.u32 %v4118, %v4114
        %v4120 = vrot.slane %v4119, 4
        %v4122 = vshll.u32 %v4056, 16
        %v4124 = vrot.slane %v4122, 5
        %v4125 = vsel %vm820, %v4120, %v4124
        %v4127 = vshrl.u32 %v4057, 16
        %v4129 = vrot.slane %v4127, 4
        %v4130 = vshll.u32 %v4057, 16
        %v4132 = vrot.slane %v4130, 5
        %v4133 = vor.u32 %v4129, %v4132
        %v4134 = vrot.slane %v4133, 4
        %v4136 = vshll.u32 %v4058, 16
        %v4138 = vrot.slane %v4136, 5
        %v4139 = vsel %vm820, %v4134, %v4138
        %v4140 = vshrl.u32 %v4058, 16
        %v4142 = vrot.slane %v4140, 4
        %v4143 = vor.u32 %v4142, %v4138
        %v4144 = vrot.slane %v4143, 4
        %v4146 = vshll.u32 %v4059, 16
        %v4148 = vrot.slane %v4146, 5
        %v4149 = vsel %vm820, %v4144, %v4148
        %v4151 = vshrl.u32 %v4060, 16
        %v4153 = vrot.slane %v4151, 4
        %v4154 = vshll.u32 %v4060, 16
        %v4156 = vrot.slane %v4154, 5
        %v4157 = vor.u32 %v4153, %v4156
        %v4158 = vrot.slane %v4157, 4
        %v4160 = vshll.u32 %v4061, 16
        %v4162 = vrot.slane %v4160, 5
        %v4163 = vsel %vm820, %v4158, %v4162
        %v4164 = vshrl.u32 %v4061, 16
        %v4166 = vrot.slane %v4164, 4
        %v4167 = vor.u32 %v4166, %v4162
        %v4168 = vrot.slane %v4167, 4
        %v4170 = vshll.u32 %v4062, 16
        %v4172 = vrot.slane %v4170, 5
        %v4173 = vsel %vm820, %v4168, %v4172
        %v4175 = vshrl.u32 %v4063, 16
        %v4177 = vrot.slane %v4175, 4
        %v4178 = vshll.u32 %v4063, 16
        %v4180 = vrot.slane %v4178, 5
        %v4181 = vor.u32 %v4177, %v4180
        %v4182 = vrot.slane %v4181, 4
        %v4184 = vshll.u32 %v4064, 16
        %v4186 = vrot.slane %v4184, 5
        %v4187 = vsel %vm820, %v4182, %v4186
        %v4188 = vshrl.u32 %v4064, 16
        %v4190 = vrot.slane %v4188, 4
        %v4191 = vor.u32 %v4190, %v4186
        %v4192 = vrot.slane %v4191, 4
        %v4194 = vshll.u32 %v4065, 16
        %v4196 = vrot.slane %v4194, 5
        %v4197 = vsel %vm820, %v4192, %v4196
        %v4199 = vshrl.u32 %v4066, 16
        %v4201 = vrot.slane %v4199, 4
        %v4202 = vshll.u32 %v4066, 16
        %v4204 = vrot.slane %v4202, 5
        %v4205 = vor.u32 %v4201, %v4204
        %v4206 = vrot.slane %v4205, 4
        %v4208 = vshll.u32 %v4067, 16
        %v4210 = vrot.slane %v4208, 5
        %v4211 = vsel %vm820, %v4206, %v4210
        %v4212 = vshrl.u32 %v4067, 16
        %v4214 = vrot.slane %v4212, 4
        %v4215 = vor.u32 %v4214, %v4210
        %v4216 = vrot.slane %v4215, 4
        %v4218 = vshll.u32 %v4068, 16
        %v4220 = vrot.slane %v4218, 5
        %v4221 = vsel %vm820, %v4216, %v4220
        %v4223 = vshrl.u32 %v4069, 16
        %v4225 = vrot.slane %v4223, 4
        %v4226 = vshll.u32 %v4069, 16
        %v4228 = vrot.slane %v4226, 5
        %v4229 = vor.u32 %v4225, %v4228
        %v4230 = vrot.slane %v4229, 4
        %v4232 = vshll.u32 %v4070, 16
        %v4234 = vrot.slane %v4232, 5
        %v4235 = vsel %vm820, %v4230, %v4234
        %v4236 = vshrl.u32 %v4070, 16
        %v4238 = vrot.slane %v4236, 4
        %v4239 = vor.u32 %v4238, %v4234
        %v4240 = vrot.slane %v4239, 4
        %v4242 = vshll.u32 %v4071, 16
        %v4244 = vrot.slane %v4242, 5
        %v4245 = vsel %vm820, %v4240, %v4244
        %v4247 = vshrl.u32 %v4072, 16
        %v4249 = vrot.slane %v4247, 4
        %v4250 = vshll.u32 %v4072, 16
        %v4252 = vrot.slane %v4250, 5
        %v4253 = vor.u32 %v4249, %v4252
        %v4254 = vrot.slane %v4253, 4
        %v4256 = vshll.u32 %v4073, 16
        %v4258 = vrot.slane %v4256, 5
        %v4259 = vsel %vm820, %v4254, %v4258
        %v4260 = vshrl.u32 %v4073, 16
        %v4262 = vrot.slane %v4260, 4
        %v4263 = vor.u32 %v4262, %v4258
        %v4264 = vrot.slane %v4263, 4
        %v4266 = vshll.u32 %v4074, 16
        %v4268 = vrot.slane %v4266, 5
        %v4269 = vsel %vm820, %v4264, %v4268
        %v4271 = vshrl.u32 %v4075, 16
        %v4273 = vrot.slane %v4271, 4
        %v4274 = vshll.u32 %v4075, 16
        %v4276 = vrot.slane %v4274, 5
        %v4277 = vor.u32 %v4273, %v4276
        %v4278 = vrot.slane %v4277, 4
        %v4280 = vshll.u32 %v4076, 16
        %v4282 = vrot.slane %v4280, 5
        %v4283 = vsel %vm820, %v4278, %v4282
        %v4284 = vshrl.u32 %v4076, 16
        %v4286 = vrot.slane %v4284, 4
        %v4287 = vor.u32 %v4286, %v4282
        %v4288 = vrot.slane %v4287, 4
        %v4290 = vshll.u32 %v4077, 16
        %v4292 = vrot.slane %v4290, 5
        %v4293 = vsel %vm820, %v4288, %v4292
        %v4295 = vshrl.u32 %v4078, 16
        %v4297 = vrot.slane %v4295, 4
        %v4298 = vshll.u32 %v4078, 16
        %v4300 = vrot.slane %v4298, 5
        %v4301 = vor.u32 %v4297, %v4300
        %v4302 = vrot.slane %v4301, 4
        %v4304 = vshll.u32 %v4079, 16
        %v4306 = vrot.slane %v4304, 5
        %v4307 = vsel %vm820, %v4302, %v4306
        %v4308 = vshrl.u32 %v4079, 16
        %v4310 = vrot.slane %v4308, 4
        %v4311 = vor.u32 %v4310, %v4306
        %v4312 = vrot.slane %v4311, 4
        %v4314 = vshll.u32 %v4080, 16
        %v4316 = vrot.slane %v4314, 5
        %v4317 = vsel %vm820, %v4312, %v4316
        %v4319 = vshrl.u32 %v4081, 16
        %v4321 = vrot.slane %v4319, 4
        %v4322 = vshll.u32 %v4081, 16
        %v4324 = vrot.slane %v4322, 5
        %v4325 = vor.u32 %v4321, %v4324
        %v4326 = vrot.slane %v4325, 4
        %v4328 = vshll.u32 %v4082, 16
        %v4330 = vrot.slane %v4328, 5
        %v4331 = vsel %vm820, %v4326, %v4330
        %v4332 = vshrl.u32 %v4082, 16
        %v4334 = vrot.slane %v4332, 4
        %v4335 = vor.u32 %v4334, %v4330
        %v4336 = vrot.slane %v4335, 4
        %v4338 = vshll.u32 %v4083, 16
        %v4340 = vrot.slane %v4338, 5
        %v4341 = vsel %vm820, %v4336, %v4340
        %v4343 = vshrl.u32 %v4084, 16
        %v4345 = vrot.slane %v4343, 4
        %v4346 = vshll.u32 %v4084, 16
        %v4348 = vrot.slane %v4346, 5
        %v4349 = vor.u32 %v4345, %v4348
        %v4350 = vrot.slane %v4349, 4
        %v4352 = vshll.u32 %v4085, 16
        %v4354 = vrot.slane %v4352, 5
        %v4355 = vsel %vm820, %v4350, %v4354
        %v4356 = vshrl.u32 %v4085, 16
        %v4358 = vrot.slane %v4356, 4
        %v4359 = vor.u32 %v4358, %v4354
        %v4360 = vrot.slane %v4359, 4
        %v4362 = vshll.u32 %v4086, 16
        %v4364 = vrot.slane %v4362, 5
        %v4365 = vsel %vm820, %v4360, %v4364
        %v4367 = vshrl.u32 %v4087, 16
        %v4369 = vrot.slane %v4367, 4
        %v4370 = vshll.u32 %v4087, 16
        %v4372 = vrot.slane %v4370, 5
        %v4373 = vor.u32 %v4369, %v4372
        %v4374 = vrot.slane %v4373, 4
        %v4376 = vshll.u32 %v4088, 16
        %v4378 = vrot.slane %v4376, 5
        %v4379 = vsel %vm820, %v4374, %v4378
        %v4380 = vshrl.u32 %v4088, 16
        %v4382 = vrot.slane %v4380, 4
        %v4383 = vor.u32 %v4382, %v4378
        %v4384 = vrot.slane %v4383, 4
        %v4386 = vshll.u32 %v4089, 16
        %v4388 = vrot.slane %v4386, 5
        %v4389 = vsel %vm820, %v4384, %v4388
        %v4391 = vshrl.u32 %v4090, 16
        %v4393 = vrot.slane %v4391, 4
        %v4394 = vshll.u32 %v4090, 16
        %v4396 = vrot.slane %v4394, 5
        %v4397 = vor.u32 %v4393, %v4396
        %v4398 = vrot.slane %v4397, 4
        %v4400 = vshll.u32 %v4091, 16
        %v4402 = vrot.slane %v4400, 5
        %v4403 = vsel %vm820, %v4398, %v4402
        %v4404 = vshrl.u32 %v4091, 16
        %v4406 = vrot.slane %v4404, 4
        %v4407 = vor.u32 %v4406, %v4402
        %v4408 = vrot.slane %v4407, 4
        %v4410 = vshll.u32 %v4092, 16
        %v4412 = vrot.slane %v4410, 5
        %v4413 = vsel %vm820, %v4408, %v4412
        %v4415 = vshrl.u32 %v4093, 16
        %v4417 = vrot.slane %v4415, 4
        %v4418 = vshll.u32 %v4093, 16
        %v4420 = vrot.slane %v4418, 5
        %v4421 = vor.u32 %v4417, %v4420
        %v4422 = vrot.slane %v4421, 4
        %v4424 = vshll.u32 %v4094, 16
        %v4426 = vrot.slane %v4424, 5
        %v4427 = vsel %vm820, %v4422, %v4426
        %v4428 = vshrl.u32 %v4094, 16
        %v4430 = vrot.slane %v4428, 4
        %v4431 = vor.u32 %v4430, %v4426
        %v4432 = vrot.slane %v4431, 4
        %v4434 = vshll.u32 %v4095, 16
        %v4436 = vrot.slane %v4434, 5
        %v4437 = vsel %vm820, %v4432, %v4436
        %v4439 = vshrl.u32 %v4096, 16
        %v4441 = vrot.slane %v4439, 4
        %v4442 = vshll.u32 %v4096, 16
        %v4444 = vrot.slane %v4442, 5
        %v4445 = vor.u32 %v4441, %v4444
        %v4446 = vrot.slane %v4445, 4
        %v4448 = vshll.u32 %v4097, 16
        %v4450 = vrot.slane %v4448, 5
        %v4451 = vsel %vm820, %v4446, %v4450
        %v4452 = vshrl.u32 %v4097, 16
        %v4454 = vrot.slane %v4452, 4
        %v4455 = vor.u32 %v4454, %v4450
        %v4456 = vrot.slane %v4455, 4
        %v4458 = vshll.u32 %v4098, 16
        %v4460 = vrot.slane %v4458, 5
        %v4461 = vsel %vm820, %v4456, %v4460
        %v4463 = vshrl.u32 %v4099, 16
        %v4465 = vrot.slane %v4463, 4
        %v4466 = vshll.u32 %v4099, 16
        %v4468 = vrot.slane %v4466, 5
        %v4469 = vor.u32 %v4465, %v4468
        %v4470 = vrot.slane %v4469, 4
        %v4472 = vshll.u32 %v4100, 16
        %v4474 = vrot.slane %v4472, 5
        %v4475 = vsel %vm820, %v4470, %v4474
        %v4476 = vshrl.u32 %v4100, 16
        %v4478 = vrot.slane %v4476, 4
        %v4479 = vor.u32 %v4478, %v4474
        %v4480 = vrot.slane %v4479, 4
        %v4482 = vshll.u32 %v4101, 16
        %v4484 = vrot.slane %v4482, 5
        %v4485 = vsel %vm820, %v4480, %v4484
        %s4486 = scalar_lea.vmem %s2, 224
        %v4487 = vld [vmem:[%s4486] sm:$0xf]
        %v4488 = vld [vmem:[%s4486 + $0x4] sm:$0xf]
        %v4489 = vld [vmem:[%s4486 + $0x8] sm:$0xf]
        %v4490 = vld [vmem:[%s4486 + $0xc] sm:$0xf]
        %v4491 = vld [vmem:[%s4486 + $0x10] sm:$0xf]
        %v4492 = vld [vmem:[%s4486 + $0x14] sm:$0xf]
        %v4493 = vld [vmem:[%s4486 + $0x18] sm:$0xf]
        %v4494 = vld [vmem:[%s4486 + $0x1c] sm:$0xf]
        %v4495 = vunpack.c.l.b16 %v4115
        %v4496 = vunpack.c.l.b16 %v4125
        %v4497 = vunpack.c.l.b16 %v4139
        %v4498 = vunpack.c.l.b16 %v4149
        %v4499 = vunpack.c.l.b16 %v4163
        %v4500 = vunpack.c.l.b16 %v4173
        %v4501 = vunpack.c.l.b16 %v4187
        %v4502 = vunpack.c.l.b16 %v4197
        %v4503 = vunpack.c.l.b16 %v4211
        %v4504 = vunpack.c.l.b16 %v4221
        %v4505 = vunpack.c.l.b16 %v4235
        %v4506 = vunpack.c.l.b16 %v4245
        %v4507 = vunpack.c.l.b16 %v4259
        %v4508 = vunpack.c.l.b16 %v4269
        %v4509 = vunpack.c.l.b16 %v4283
        %v4510 = vunpack.c.l.b16 %v4293
        %v4511 = vunpack.c.l.b16 %v4307
        %v4512 = vunpack.c.l.b16 %v4317
        %v4513 = vunpack.c.l.b16 %v4331
        %v4514 = vunpack.c.l.b16 %v4341
        %v4515 = vunpack.c.l.b16 %v4355
        %v4516 = vunpack.c.l.b16 %v4365
        %v4517 = vunpack.c.l.b16 %v4379
        %v4518 = vunpack.c.l.b16 %v4389
        %v4519 = vunpack.c.l.b16 %v4403
        %v4520 = vunpack.c.l.b16 %v4413
        %v4521 = vunpack.c.l.b16 %v4427
        %v4522 = vunpack.c.l.b16 %v4437
        %v4523 = vunpack.c.l.b16 %v4451
        %v4524 = vunpack.c.l.b16 %v4461
        %v4525 = vunpack.c.l.b16 %v4475
        %v4526 = vunpack.c.l.b16 %v4485
        %v4527 = vpack.c.b16 %v4496, %v4495
        %v4528 = vpack.c.b16 %v4498, %v4497
        %v4529 = vpack.c.b16 %v4500, %v4499
        %v4530 = vpack.c.b16 %v4502, %v4501
        %v4531 = vpack.c.b16 %v4504, %v4503
        %v4532 = vpack.c.b16 %v4506, %v4505
        %v4533 = vpack.c.b16 %v4508, %v4507
        %v4534 = vpack.c.b16 %v4510, %v4509
        %v4535 = vpack.c.b16 %v4512, %v4511
        %v4536 = vpack.c.b16 %v4514, %v4513
        %v4537 = vpack.c.b16 %v4516, %v4515
        %v4538 = vpack.c.b16 %v4518, %v4517
        %v4539 = vpack.c.b16 %v4520, %v4519
        %v4540 = vpack.c.b16 %v4522, %v4521
        %v4541 = vpack.c.b16 %v4524, %v4523
        %v4542 = vpack.c.b16 %v4526, %v4525
        %v4551 = vunpack.c.l.b16 %v4487
        %v4552 = vunpack.c.l.b16 %v4488
        %v4553 = vunpack.c.l.b16 %v4489
        %v4554 = vunpack.c.l.b16 %v4490
        %v4555 = vunpack.c.l.b16 %v4491
        %v4556 = vunpack.c.l.b16 %v4492
        %v4557 = vunpack.c.l.b16 %v4493
        %v4558 = vunpack.c.l.b16 %v4494
        %v4559 = vpack.c.b16 %v4552, %v4551
        %v4560 = vpack.c.b16 %v4554, %v4553
        %v4561 = vpack.c.b16 %v4556, %v4555
        %v4562 = vpack.c.b16 %v4558, %v4557
        %v4568 = vsel %vm528, %v4527, 0
        %v4571 = vsel %vm528, %v4528, 0
        %v4574 = vsel %vm528, %v4529, 0
        %v4577 = vsel %vm528, %v4530, 0
        %v4580 = vsel %vm528, %v4531, 0
        %v4583 = vsel %vm528, %v4532, 0
        %v4586 = vsel %vm528, %v4533, 0
        %v4589 = vsel %vm528, %v4534, 0
        %v4592 = vsel %vm528, %v4535, 0
        %v4595 = vsel %vm528, %v4536, 0
        %v4598 = vsel %vm528, %v4537, 0
        %v4601 = vsel %vm528, %v4538, 0
        %v4604 = vsel %vm528, %v4539, 0
        %v4607 = vsel %vm528, %v4540, 0
        %v4610 = vsel %vm528, %v4541, 0
        %v4613 = vsel %vm528, %v4542, 0
        %4615 = vmatprep.subr.bf16.mxu0 0
        %4616 = vmatpush1.bf16.msra.mxu0 %v4559
        %4617 = vmatprep.subr.bf16.mxu0 0
        %4618 = vmatpush1.bf16.msra.mxu0 %v4560
        %4619 = vmatprep.subr.bf16.mxu0 0
        %4620 = vmatpush1.bf16.msra.mxu0 %v4561
        %4621 = vmatprep.subr.bf16.mxu0 0
        %4622 = vmatpush1.bf16.msra.mxu0 %v4562
        %4623 = vmatprep.subr.bf16.mxu0 0
        %4624 = vmatpush1.bf16.msra.mxu0 0
        %4625 = vmatprep.subr.bf16.mxu0 0
        %4626 = vmatpush1.bf16.msra.mxu0 0
        %4627 = vmatprep.subr.bf16.mxu0 0
        %4628 = vmatpush1.bf16.msra.mxu0 0
        %4629 = vmatprep.subr.bf16.mxu0 0
        %4630 = vmatpush1.bf16.msra.mxu0 0
        %4631 = vmatprep.subr.bf16.mxu0 0
        %4632 = vmatpush1.bf16.msra.mxu0 0
        %4633 = vmatprep.subr.bf16.mxu0 0
        %4634 = vmatpush1.bf16.msra.mxu0 0
        %4635 = vmatprep.subr.bf16.mxu0 0
        %4636 = vmatpush1.bf16.msra.mxu0 0
        %4637 = vmatprep.subr.bf16.mxu0 0
        %4638 = vmatpush1.bf16.msra.mxu0 0
        %4639 = vmatprep.subr.bf16.mxu0 0
        %4640 = vmatpush1.bf16.msra.mxu0 0
        %4641 = vmatprep.subr.bf16.mxu0 0
        %4642 = vmatpush1.bf16.msra.mxu0 0
        %4643 = vmatprep.subr.bf16.mxu0 0
        %4644 = vmatpush1.bf16.msra.mxu0 0
        %4645 = vmatprep.subr.bf16.mxu0 0
        %4646 = vmatpush1.bf16.msra.mxu0 0
        %4647 = vmatprep.mubr.bf16.mxu0 0
        %4648 = vmatmul.mubr.bf16.gmra.mrb[0].mxu0 %v4568
        %v4649 = vpop.f32.mrb[0].mxu0
        %v4650 = vadd.f32 0.0, %v4649
        %v4651 = vpop.f32.mrb[0].mxu0
        %v4652 = vpop.f32.mrb[0].mxu0
        %v4653 = vadd.f32 0.0, %v4652
        %v4654 = vpop.f32.mrb[0].mxu0
        %4655 = vmatprep.mubr.bf16.mxu0 0
        %4656 = vmatmul.mubr.bf16.gmra.mrb[0].mxu0 %v4571
        %v4657 = vpop.f32.mrb[0].mxu0
        %v4658 = vadd.f32 0.0, %v4657
        %v4659 = vpop.f32.mrb[0].mxu0
        %v4660 = vpop.f32.mrb[0].mxu0
        %v4661 = vadd.f32 0.0, %v4660
        %v4662 = vpop.f32.mrb[0].mxu0
        %4663 = vmatprep.mubr.bf16.mxu0 0
        %4664 = vmatmul.mubr.bf16.gmra.mrb[0].mxu0 %v4574
        %v4665 = vpop.f32.mrb[0].mxu0
        %v4666 = vadd.f32 0.0, %v4665
        %v4667 = vpop.f32.mrb[0].mxu0
        %v4668 = vpop.f32.mrb[0].mxu0
        %v4669 = vadd.f32 0.0, %v4668
        %v4670 = vpop.f32.mrb[0].mxu0
        %4671 = vmatprep.mubr.bf16.mxu0 0
        %4672 = vmatmul.mubr.bf16.gmra.mrb[0].mxu0 %v4577
        %v4673 = vpop.f32.mrb[0].mxu0
        %v4674 = vadd.f32 0.0, %v4673
        %v4675 = vpop.f32.mrb[0].mxu0
        %v4676 = vpop.f32.mrb[0].mxu0
        %v4677 = vadd.f32 0.0, %v4676
        %v4678 = vpop.f32.mrb[0].mxu0
        %4679 = vmatprep.mubr.bf16.mxu0 0
        %4680 = vmatmul.mubr.bf16.gmra.mrb[0].mxu0 %v4580
        %v4681 = vpop.f32.mrb[0].mxu0
        %v4682 = vadd.f32 0.0, %v4681
        %v4683 = vpop.f32.mrb[0].mxu0
        %v4684 = vpop.f32.mrb[0].mxu0
        %v4685 = vadd.f32 0.0, %v4684
        %v4686 = vpop.f32.mrb[0].mxu0
        %4687 = vmatprep.mubr.bf16.mxu0 0
        %4688 = vmatmul.mubr.bf16.gmra.mrb[0].mxu0 %v4583
        %v4689 = vpop.f32.mrb[0].mxu0
        %v4690 = vadd.f32 0.0, %v4689
        %v4691 = vpop.f32.mrb[0].mxu0
        %v4692 = vpop.f32.mrb[0].mxu0
        %v4693 = vadd.f32 0.0, %v4692
        %v4694 = vpop.f32.mrb[0].mxu0
        %4695 = vmatprep.mubr.bf16.mxu0 0
        %4696 = vmatmul.mubr.bf16.gmra.mrb[0].mxu0 %v4586
        %v4697 = vpop.f32.mrb[0].mxu0
        %v4698 = vadd.f32 0.0, %v4697
        %v4699 = vpop.f32.mrb[0].mxu0
        %v4700 = vpop.f32.mrb[0].mxu0
        %v4701 = vadd.f32 0.0, %v4700
        %v4702 = vpop.f32.mrb[0].mxu0
        %4703 = vmatprep.mubr.bf16.mxu0 0
        %4704 = vmatmul.mubr.bf16.gmra.mrb[0].mxu0 %v4589
        %v4705 = vpop.f32.mrb[0].mxu0
        %v4706 = vadd.f32 0.0, %v4705
        %v4707 = vpop.f32.mrb[0].mxu0
        %v4708 = vpop.f32.mrb[0].mxu0
        %v4709 = vadd.f32 0.0, %v4708
        %v4710 = vpop.f32.mrb[0].mxu0
        %4711 = vmatprep.mubr.bf16.mxu0 0
        %4712 = vmatmul.mubr.bf16.gmra.mrb[0].mxu0 %v4592
        %v4713 = vpop.f32.mrb[0].mxu0
        %v4714 = vadd.f32 0.0, %v4713
        %v4715 = vpop.f32.mrb[0].mxu0
        %v4716 = vpop.f32.mrb[0].mxu0
        %v4717 = vadd.f32 0.0, %v4716
        %v4718 = vpop.f32.mrb[0].mxu0
        %4719 = vmatprep.mubr.bf16.mxu0 0
        %4720 = vmatmul.mubr.bf16.gmra.mrb[0].mxu0 %v4595
        %v4721 = vpop.f32.mrb[0].mxu0
        %v4722 = vadd.f32 0.0, %v4721
        %v4723 = vpop.f32.mrb[0].mxu0
        %v4724 = vpop.f32.mrb[0].mxu0
        %v4725 = vadd.f32 0.0, %v4724
        %v4726 = vpop.f32.mrb[0].mxu0
        %4727 = vmatprep.mubr.bf16.mxu0 0
        %4728 = vmatmul.mubr.bf16.gmra.mrb[0].mxu0 %v4598
        %v4729 = vpop.f32.mrb[0].mxu0
        %v4730 = vadd.f32 0.0, %v4729
        %v4731 = vpop.f32.mrb[0].mxu0
        %v4732 = vpop.f32.mrb[0].mxu0
        %v4733 = vadd.f32 0.0, %v4732
        %v4734 = vpop.f32.mrb[0].mxu0
        %4735 = vmatprep.mubr.bf16.mxu0 0
        %4736 = vmatmul.mubr.bf16.gmra.mrb[0].mxu0 %v4601
        %v4737 = vpop.f32.mrb[0].mxu0
        %v4738 = vadd.f32 0.0, %v4737
        %v4739 = vpop.f32.mrb[0].mxu0
        %v4740 = vpop.f32.mrb[0].mxu0
        %v4741 = vadd.f32 0.0, %v4740
        %v4742 = vpop.f32.mrb[0].mxu0
        %4743 = vmatprep.mubr.bf16.mxu0 0
        %4744 = vmatmul.mubr.bf16.gmra.mrb[0].mxu0 %v4604
        %v4745 = vpop.f32.mrb[0].mxu0
        %v4746 = vadd.f32 0.0, %v4745
        %v4747 = vpop.f32.mrb[0].mxu0
        %v4748 = vpop.f32.mrb[0].mxu0
        %v4749 = vadd.f32 0.0, %v4748
        %v4750 = vpop.f32.mrb[0].mxu0
        %4751 = vmatprep.mubr.bf16.mxu0 0
        %4752 = vmatmul.mubr.bf16.gmra.mrb[0].mxu0 %v4607
        %v4753 = vpop.f32.mrb[0].mxu0
        %v4754 = vadd.f32 0.0, %v4753
        %v4755 = vpop.f32.mrb[0].mxu0
        %v4756 = vpop.f32.mrb[0].mxu0
        %v4757 = vadd.f32 0.0, %v4756
        %v4758 = vpop.f32.mrb[0].mxu0
        %4759 = vmatprep.mubr.bf16.mxu0 0
        %4760 = vmatmul.mubr.bf16.gmra.mrb[0].mxu0 %v4610
        %v4761 = vpop.f32.mrb[0].mxu0
        %v4762 = vadd.f32 0.0, %v4761
        %v4763 = vpop.f32.mrb[0].mxu0
        %v4764 = vpop.f32.mrb[0].mxu0
        %v4765 = vadd.f32 0.0, %v4764
        %v4766 = vpop.f32.mrb[0].mxu0
        %4767 = vmatprep.mubr.bf16.mxu0 0
        %4768 = vmatmul.mubr.bf16.gmra.mrb[0].mxu0 %v4613
        %v4769 = vpop.f32.mrb[0].mxu0
        %v4770 = vadd.f32 0.0, %v4769
        %v4771 = vpop.f32.mrb[0].mxu0
        %v4772 = vpop.f32.mrb[0].mxu0
        %v4773 = vadd.f32 0.0, %v4772
        %v4774 = vpop.f32.mrb[0].mxu0
        %4775 = vdwg.mxu0
        %v4776 = vadd.f32 %v4022, %v4650
        %v4777 = vadd.f32 %v4023, %v4653
        %v4778 = vadd.f32 %v4024, %v4658
        %v4779 = vadd.f32 %v4025, %v4661
        %v4780 = vadd.f32 %v4026, %v4666
        %v4781 = vadd.f32 %v4027, %v4669
        %v4782 = vadd.f32 %v4028, %v4674
        %v4783 = vadd.f32 %v4029, %v4677
        %v4784 = vadd.f32 %v4030, %v4682
        %v4785 = vadd.f32 %v4031, %v4685
        %v4786 = vadd.f32 %v4032, %v4690
        %v4787 = vadd.f32 %v4033, %v4693
        %v4788 = vadd.f32 %v4034, %v4698
        %v4789 = vadd.f32 %v4035, %v4701
        %v4790 = vadd.f32 %v4036, %v4706
        %v4791 = vadd.f32 %v4037, %v4709
        %v4792 = vadd.f32 %v4038, %v4714
        %v4793 = vadd.f32 %v4039, %v4717
        %v4794 = vadd.f32 %v4040, %v4722
        %v4795 = vadd.f32 %v4041, %v4725
        %v4796 = vadd.f32 %v4042, %v4730
        %v4797 = vadd.f32 %v4043, %v4733
        %v4798 = vadd.f32 %v4044, %v4738
        %v4799 = vadd.f32 %v4045, %v4741
        %v4800 = vadd.f32 %v4046, %v4746
        %v4801 = vadd.f32 %v4047, %v4749
        %v4802 = vadd.f32 %v4048, %v4754
        %v4803 = vadd.f32 %v4049, %v4757
        %v4804 = vadd.f32 %v4050, %v4762
        %v4805 = vadd.f32 %v4051, %v4765
        %v4806 = vadd.f32 %v4052, %v4770
        %v4807 = vadd.f32 %v4053, %v4773
        %v4808 = vld [vmem:[%s3667] sm:$0xe]
        %v4809 = vld [vmem:[%s3667 + $0xc] sm:$0xe]
        %v4810 = vld [vmem:[%s3667 + $0x18] sm:$0xe]
        %v4811 = vld [vmem:[%s3667 + $0x24] sm:$0xe]
        %v4812 = vld [vmem:[%s3667 + $0x30] sm:$0xe]
        %v4813 = vld [vmem:[%s3667 + $0x3c] sm:$0xe]
        %v4814 = vld [vmem:[%s3667 + $0x48] sm:$0xe]
        %v4815 = vld [vmem:[%s3667 + $0x54] sm:$0xe]
        %v4816 = vld [vmem:[%s3667 + $0x60] sm:$0xe]
        %v4817 = vld [vmem:[%s3667 + $0x6c] sm:$0xe]
        %v4818 = vld [vmem:[%s3667 + $0x78] sm:$0xe]
        %v4819 = vld [vmem:[%s3667 + $0x84] sm:$0xe]
        %v4820 = vld [vmem:[%s3667 + $0x90] sm:$0xe]
        %v4821 = vld [vmem:[%s3667 + $0x9c] sm:$0xe]
        %v4822 = vld [vmem:[%s3667 + $0xa8] sm:$0xe]
        %v4823 = vld [vmem:[%s3667 + $0xb4] sm:$0xe]
        %v4872 = vrot.slane %v4808, 5
        %v4873 = vrot.slane %v4872, 4
        %v4874 = vrot.slane %v4055, 5
        %v4875 = vsel %vm1593, %v4873, %v4874
        %v4876 = vrot.slane %v4874, 4
        %v4877 = vrot.slane %v4056, 5
        %v4878 = vsel %vm1593, %v4876, %v4877
        %v4879 = vrot.slane %v4809, 5
        %v4880 = vrot.slane %v4879, 4
        %v4881 = vrot.slane %v4058, 5
        %v4882 = vsel %vm1593, %v4880, %v4881
        %v4883 = vrot.slane %v4881, 4
        %v4884 = vrot.slane %v4059, 5
        %v4885 = vsel %vm1593, %v4883, %v4884
        %v4886 = vrot.slane %v4810, 5
        %v4887 = vrot.slane %v4886, 4
        %v4888 = vrot.slane %v4061, 5
        %v4889 = vsel %vm1593, %v4887, %v4888
        %v4890 = vrot.slane %v4888, 4
        %v4891 = vrot.slane %v4062, 5
        %v4892 = vsel %vm1593, %v4890, %v4891
        %v4893 = vrot.slane %v4811, 5
        %v4894 = vrot.slane %v4893, 4
        %v4895 = vrot.slane %v4064, 5
        %v4896 = vsel %vm1593, %v4894, %v4895
        %v4897 = vrot.slane %v4895, 4
        %v4898 = vrot.slane %v4065, 5
        %v4899 = vsel %vm1593, %v4897, %v4898
        %v4900 = vrot.slane %v4812, 5
        %v4901 = vrot.slane %v4900, 4
        %v4902 = vrot.slane %v4067, 5
        %v4903 = vsel %vm1593, %v4901, %v4902
        %v4904 = vrot.slane %v4902, 4
        %v4905 = vrot.slane %v4068, 5
        %v4906 = vsel %vm1593, %v4904, %v4905
        %v4907 = vrot.slane %v4813, 5
        %v4908 = vrot.slane %v4907, 4
        %v4909 = vrot.slane %v4070, 5
        %v4910 = vsel %vm1593, %v4908, %v4909
        %v4911 = vrot.slane %v4909, 4
        %v4912 = vrot.slane %v4071, 5
        %v4913 = vsel %vm1593, %v4911, %v4912
        %v4914 = vrot.slane %v4814, 5
        %v4915 = vrot.slane %v4914, 4
        %v4916 = vrot.slane %v4073, 5
        %v4917 = vsel %vm1593, %v4915, %v4916
        %v4918 = vrot.slane %v4916, 4
        %v4919 = vrot.slane %v4074, 5
        %v4920 = vsel %vm1593, %v4918, %v4919
        %v4921 = vrot.slane %v4815, 5
        %v4922 = vrot.slane %v4921, 4
        %v4923 = vrot.slane %v4076, 5
        %v4924 = vsel %vm1593, %v4922, %v4923
        %v4925 = vrot.slane %v4923, 4
        %v4926 = vrot.slane %v4077, 5
        %v4927 = vsel %vm1593, %v4925, %v4926
        %v4928 = vrot.slane %v4816, 5
        %v4929 = vrot.slane %v4928, 4
        %v4930 = vrot.slane %v4079, 5
        %v4931 = vsel %vm1593, %v4929, %v4930
        %v4932 = vrot.slane %v4930, 4
        %v4933 = vrot.slane %v4080, 5
        %v4934 = vsel %vm1593, %v4932, %v4933
        %v4935 = vrot.slane %v4817, 5
        %v4936 = vrot.slane %v4935, 4
        %v4937 = vrot.slane %v4082, 5
        %v4938 = vsel %vm1593, %v4936, %v4937
        %v4939 = vrot.slane %v4937, 4
        %v4940 = vrot.slane %v4083, 5
        %v4941 = vsel %vm1593, %v4939, %v4940
        %v4942 = vrot.slane %v4818, 5
        %v4943 = vrot.slane %v4942, 4
        %v4944 = vrot.slane %v4085, 5
        %v4945 = vsel %vm1593, %v4943, %v4944
        %v4946 = vrot.slane %v4944, 4
        %v4947 = vrot.slane %v4086, 5
        %v4948 = vsel %vm1593, %v4946, %v4947
        %v4949 = vrot.slane %v4819, 5
        %v4950 = vrot.slane %v4949, 4
        %v4951 = vrot.slane %v4088, 5
        %v4952 = vsel %vm1593, %v4950, %v4951
        %v4953 = vrot.slane %v4951, 4
        %v4954 = vrot.slane %v4089, 5
        %v4955 = vsel %vm1593, %v4953, %v4954
        %v4956 = vrot.slane %v4820, 5
        %v4957 = vrot.slane %v4956, 4
        %v4958 = vrot.slane %v4091, 5
        %v4959 = vsel %vm1593, %v4957, %v4958
        %v4960 = vrot.slane %v4958, 4
        %v4961 = vrot.slane %v4092, 5
        %v4962 = vsel %vm1593, %v4960, %v4961
        %v4963 = vrot.slane %v4821, 5
        %v4964 = vrot.slane %v4963, 4
        %v4965 = vrot.slane %v4094, 5
        %v4966 = vsel %vm1593, %v4964, %v4965
        %v4967 = vrot.slane %v4965, 4
        %v4968 = vrot.slane %v4095, 5
        %v4969 = vsel %vm1593, %v4967, %v4968
        %v4970 = vrot.slane %v4822, 5
        %v4971 = vrot.slane %v4970, 4
        %v4972 = vrot.slane %v4097, 5
        %v4973 = vsel %vm1593, %v4971, %v4972
        %v4974 = vrot.slane %v4972, 4
        %v4975 = vrot.slane %v4098, 5
        %v4976 = vsel %vm1593, %v4974, %v4975
        %v4977 = vrot.slane %v4823, 5
        %v4978 = vrot.slane %v4977, 4
        %v4979 = vrot.slane %v4100, 5
        %v4980 = vsel %vm1593, %v4978, %v4979
        %v4981 = vrot.slane %v4979, 4
        %v4982 = vrot.slane %v4101, 5
        %v4983 = vsel %vm1593, %v4981, %v4982
        %s4984 = scalar_lea.vmem %s2, 256
        %v4985 = vld [vmem:[%s4984] sm:$0xf]
        %v4986 = vld [vmem:[%s4984 + $0x4] sm:$0xf]
        %v4987 = vld [vmem:[%s4984 + $0x8] sm:$0xf]
        %v4988 = vld [vmem:[%s4984 + $0xc] sm:$0xf]
        %v4989 = vld [vmem:[%s4984 + $0x10] sm:$0xf]
        %v4990 = vld [vmem:[%s4984 + $0x14] sm:$0xf]
        %v4991 = vld [vmem:[%s4984 + $0x18] sm:$0xf]
        %v4992 = vld [vmem:[%s4984 + $0x1c] sm:$0xf]
        %v4993 = vunpack.c.l.b16 %v4875
        %v4994 = vunpack.c.l.b16 %v4878
        %v4995 = vunpack.c.l.b16 %v4882
        %v4996 = vunpack.c.l.b16 %v4885
        %v4997 = vunpack.c.l.b16 %v4889
        %v4998 = vunpack.c.l.b16 %v4892
        %v4999 = vunpack.c.l.b16 %v4896
        %v5000 = vunpack.c.l.b16 %v4899
        %v5001 = vunpack.c.l.b16 %v4903
        %v5002 = vunpack.c.l.b16 %v4906
        %v5003 = vunpack.c.l.b16 %v4910
        %v5004 = vunpack.c.l.b16 %v4913
        %v5005 = vunpack.c.l.b16 %v4917
        %v5006 = vunpack.c.l.b16 %v4920
        %v5007 = vunpack.c.l.b16 %v4924
        %v5008 = vunpack.c.l.b16 %v4927
        %v5009 = vunpack.c.l.b16 %v4931
        %v5010 = vunpack.c.l.b16 %v4934
        %v5011 = vunpack.c.l.b16 %v4938
        %v5012 = vunpack.c.l.b16 %v4941
        %v5013 = vunpack.c.l.b16 %v4945
        %v5014 = vunpack.c.l.b16 %v4948
        %v5015 = vunpack.c.l.b16 %v4952
        %v5016 = vunpack.c.l.b16 %v4955
        %v5017 = vunpack.c.l.b16 %v4959
        %v5018 = vunpack.c.l.b16 %v4962
        %v5019 = vunpack.c.l.b16 %v4966
        %v5020 = vunpack.c.l.b16 %v4969
        %v5021 = vunpack.c.l.b16 %v4973
        %v5022 = vunpack.c.l.b16 %v4976
        %v5023 = vunpack.c.l.b16 %v4980
        %v5024 = vunpack.c.l.b16 %v4983
        %v5025 = vpack.c.b16 %v4994, %v4993
        %v5026 = vpack.c.b16 %v4996, %v4995
        %v5027 = vpack.c.b16 %v4998, %v4997
        %v5028 = vpack.c.b16 %v5000, %v4999
        %v5029 = vpack.c.b16 %v5002, %v5001
        %v5030 = vpack.c.b16 %v5004, %v5003
        %v5031 = vpack.c.b16 %v5006, %v5005
        %v5032 = vpack.c.b16 %v5008, %v5007
        %v5033 = vpack.c.b16 %v5010, %v5009
        %v5034 = vpack.c.b16 %v5012, %v5011
        %v5035 = vpack.c.b16 %v5014, %v5013
        %v5036 = vpack.c.b16 %v5016, %v5015
        %v5037 = vpack.c.b16 %v5018, %v5017
        %v5038 = vpack.c.b16 %v5020, %v5019
        %v5039 = vpack.c.b16 %v5022, %v5021
        %v5040 = vpack.c.b16 %v5024, %v5023
        %v5049 = vunpack.c.l.b16 %v4985
        %v5050 = vunpack.c.l.b16 %v4986
        %v5051 = vunpack.c.l.b16 %v4987
        %v5052 = vunpack.c.l.b16 %v4988
        %v5053 = vunpack.c.l.b16 %v4989
        %v5054 = vunpack.c.l.b16 %v4990
        %v5055 = vunpack.c.l.b16 %v4991
        %v5056 = vunpack.c.l.b16 %v4992
        %v5057 = vpack.c.b16 %v5050, %v5049
        %v5058 = vpack.c.b16 %v5052, %v5051
        %v5059 = vpack.c.b16 %v5054, %v5053
        %v5060 = vpack.c.b16 %v5056, %v5055
        %v5066 = vsel %vm528, %v5025, 0
        %v5069 = vsel %vm528, %v5026, 0
        %v5072 = vsel %vm528, %v5027, 0
        %v5075 = vsel %vm528, %v5028, 0
        %v5078 = vsel %vm528, %v5029, 0
        %v5081 = vsel %vm528, %v5030, 0
        %v5084 = vsel %vm528, %v5031, 0
        %v5087 = vsel %vm528, %v5032, 0
        %v5090 = vsel %vm528, %v5033, 0
        %v5093 = vsel %vm528, %v5034, 0
        %v5096 = vsel %vm528, %v5035, 0
        %v5099 = vsel %vm528, %v5036, 0
        %v5102 = vsel %vm528, %v5037, 0
        %v5105 = vsel %vm528, %v5038, 0
        %v5108 = vsel %vm528, %v5039, 0
        %v5111 = vsel %vm528, %v5040, 0
        %5113 = vmatprep.subr.bf16.mxu0 0
        %5114 = vmatpush1.bf16.msra.mxu0 %v5057
        %5115 = vmatprep.subr.bf16.mxu0 0
        %5116 = vmatpush1.bf16.msra.mxu0 %v5058
        %5117 = vmatprep.subr.bf16.mxu0 0
        %5118 = vmatpush1.bf16.msra.mxu0 %v5059
        %5119 = vmatprep.subr.bf16.mxu0 0
        %5120 = vmatpush1.bf16.msra.mxu0 %v5060
        %5121 = vmatprep.subr.bf16.mxu0 0
        %5122 = vmatpush1.bf16.msra.mxu0 0
        %5123 = vmatprep.subr.bf16.mxu0 0
        %5124 = vmatpush1.bf16.msra.mxu0 0
        %5125 = vmatprep.subr.bf16.mxu0 0
        %5126 = vmatpush1.bf16.msra.mxu0 0
        %5127 = vmatprep.subr.bf16.mxu0 0
        %5128 = vmatpush1.bf16.msra.mxu0 0
        %5129 = vmatprep.subr.bf16.mxu0 0
        %5130 = vmatpush1.bf16.msra.mxu0 0
        %5131 = vmatprep.subr.bf16.mxu0 0
        %5132 = vmatpush1.bf16.msra.mxu0 0
        %5133 = vmatprep.subr.bf16.mxu0 0
        %5134 = vmatpush1.bf16.msra.mxu0 0
        %5135 = vmatprep.subr.bf16.mxu0 0
        %5136 = vmatpush1.bf16.msra.mxu0 0
        %5137 = vmatprep.subr.bf16.mxu0 0
        %5138 = vmatpush1.bf16.msra.mxu0 0
        %5139 = vmatprep.subr.bf16.mxu0 0
        %5140 = vmatpush1.bf16.msra.mxu0 0
        %5141 = vmatprep.subr.bf16.mxu0 0
        %5142 = vmatpush1.bf16.msra.mxu0 0
        %5143 = vmatprep.subr.bf16.mxu0 0
        %5144 = vmatpush1.bf16.msra.mxu0 0
        %5145 = vmatprep.mubr.bf16.mxu0 0
        %5146 = vmatmul.mubr.bf16.gmra.mrb[0].mxu0 %v5066
        %v5147 = vpop.f32.mrb[0].mxu0
        %v5148 = vadd.f32 0.0, %v5147
        %v5149 = vpop.f32.mrb[0].mxu0
        %v5150 = vpop.f32.mrb[0].mxu0
        %v5151 = vadd.f32 0.0, %v5150
        %v5152 = vpop.f32.mrb[0].mxu0
        %5153 = vmatprep.mubr.bf16.mxu0 0
        %5154 = vmatmul.mubr.bf16.gmra.mrb[0].mxu0 %v5069
        %v5155 = vpop.f32.mrb[0].mxu0
        %v5156 = vadd.f32 0.0, %v5155
        %v5157 = vpop.f32.mrb[0].mxu0
        %v5158 = vpop.f32.mrb[0].mxu0
        %v5159 = vadd.f32 0.0, %v5158
        %v5160 = vpop.f32.mrb[0].mxu0
        %5161 = vmatprep.mubr.bf16.mxu0 0
        %5162 = vmatmul.mubr.bf16.gmra.mrb[0].mxu0 %v5072
        %v5163 = vpop.f32.mrb[0].mxu0
        %v5164 = vadd.f32 0.0, %v5163
        %v5165 = vpop.f32.mrb[0].mxu0
        %v5166 = vpop.f32.mrb[0].mxu0
        %v5167 = vadd.f32 0.0, %v5166
        %v5168 = vpop.f32.mrb[0].mxu0
        %5169 = vmatprep.mubr.bf16.mxu0 0
        %5170 = vmatmul.mubr.bf16.gmra.mrb[0].mxu0 %v5075
        %v5171 = vpop.f32.mrb[0].mxu0
        %v5172 = vadd.f32 0.0, %v5171
        %v5173 = vpop.f32.mrb[0].mxu0
        %v5174 = vpop.f32.mrb[0].mxu0
        %v5175 = vadd.f32 0.0, %v5174
        %v5176 = vpop.f32.mrb[0].mxu0
        %5177 = vmatprep.mubr.bf16.mxu0 0
        %5178 = vmatmul.mubr.bf16.gmra.mrb[0].mxu0 %v5078
        %v5179 = vpop.f32.mrb[0].mxu0
        %v5180 = vadd.f32 0.0, %v5179
        %v5181 = vpop.f32.mrb[0].mxu0
        %v5182 = vpop.f32.mrb[0].mxu0
        %v5183 = vadd.f32 0.0, %v5182
        %v5184 = vpop.f32.mrb[0].mxu0
        %5185 = vmatprep.mubr.bf16.mxu0 0
        %5186 = vmatmul.mubr.bf16.gmra.mrb[0].mxu0 %v5081
        %v5187 = vpop.f32.mrb[0].mxu0
        %v5188 = vadd.f32 0.0, %v5187
        %v5189 = vpop.f32.mrb[0].mxu0
        %v5190 = vpop.f32.mrb[0].mxu0
        %v5191 = vadd.f32 0.0, %v5190
        %v5192 = vpop.f32.mrb[0].mxu0
        %5193 = vmatprep.mubr.bf16.mxu0 0
        %5194 = vmatmul.mubr.bf16.gmra.mrb[0].mxu0 %v5084
        %v5195 = vpop.f32.mrb[0].mxu0
        %v5196 = vadd.f32 0.0, %v5195
        %v5197 = vpop.f32.mrb[0].mxu0
        %v5198 = vpop.f32.mrb[0].mxu0
        %v5199 = vadd.f32 0.0, %v5198
        %v5200 = vpop.f32.mrb[0].mxu0
        %5201 = vmatprep.mubr.bf16.mxu0 0
        %5202 = vmatmul.mubr.bf16.gmra.mrb[0].mxu0 %v5087
        %v5203 = vpop.f32.mrb[0].mxu0
        %v5204 = vadd.f32 0.0, %v5203
        %v5205 = vpop.f32.mrb[0].mxu0
        %v5206 = vpop.f32.mrb[0].mxu0
        %v5207 = vadd.f32 0.0, %v5206
        %v5208 = vpop.f32.mrb[0].mxu0
        %5209 = vmatprep.mubr.bf16.mxu0 0
        %5210 = vmatmul.mubr.bf16.gmra.mrb[0].mxu0 %v5090
        %v5211 = vpop.f32.mrb[0].mxu0
        %v5212 = vadd.f32 0.0, %v5211
        %v5213 = vpop.f32.mrb[0].mxu0
        %v5214 = vpop.f32.mrb[0].mxu0
        %v5215 = vadd.f32 0.0, %v5214
        %v5216 = vpop.f32.mrb[0].mxu0
        %5217 = vmatprep.mubr.bf16.mxu0 0
        %5218 = vmatmul.mubr.bf16.gmra.mrb[0].mxu0 %v5093
        %v5219 = vpop.f32.mrb[0].mxu0
        %v5220 = vadd.f32 0.0, %v5219
        %v5221 = vpop.f32.mrb[0].mxu0
        %v5222 = vpop.f32.mrb[0].mxu0
        %v5223 = vadd.f32 0.0, %v5222
        %v5224 = vpop.f32.mrb[0].mxu0
        %5225 = vmatprep.mubr.bf16.mxu0 0
        %5226 = vmatmul.mubr.bf16.gmra.mrb[0].mxu0 %v5096
        %v5227 = vpop.f32.mrb[0].mxu0
        %v5228 = vadd.f32 0.0, %v5227
        %v5229 = vpop.f32.mrb[0].mxu0
        %v5230 = vpop.f32.mrb[0].mxu0
        %v5231 = vadd.f32 0.0, %v5230
        %v5232 = vpop.f32.mrb[0].mxu0
        %5233 = vmatprep.mubr.bf16.mxu0 0
        %5234 = vmatmul.mubr.bf16.gmra.mrb[0].mxu0 %v5099
        %v5235 = vpop.f32.mrb[0].mxu0
        %v5236 = vadd.f32 0.0, %v5235
        %v5237 = vpop.f32.mrb[0].mxu0
        %v5238 = vpop.f32.mrb[0].mxu0
        %v5239 = vadd.f32 0.0, %v5238
        %v5240 = vpop.f32.mrb[0].mxu0
        %5241 = vmatprep.mubr.bf16.mxu0 0
        %5242 = vmatmul.mubr.bf16.gmra.mrb[0].mxu0 %v5102
        %v5243 = vpop.f32.mrb[0].mxu0
        %v5244 = vadd.f32 0.0, %v5243
        %v5245 = vpop.f32.mrb[0].mxu0
        %v5246 = vpop.f32.mrb[0].mxu0
        %v5247 = vadd.f32 0.0, %v5246
        %v5248 = vpop.f32.mrb[0].mxu0
        %5249 = vmatprep.mubr.bf16.mxu0 0
        %5250 = vmatmul.mubr.bf16.gmra.mrb[0].mxu0 %v5105
        %v5251 = vpop.f32.mrb[0].mxu0
        %v5252 = vadd.f32 0.0, %v5251
        %v5253 = vpop.f32.mrb[0].mxu0
        %v5254 = vpop.f32.mrb[0].mxu0
        %v5255 = vadd.f32 0.0, %v5254
        %v5256 = vpop.f32.mrb[0].mxu0
        %5257 = vmatprep.mubr.bf16.mxu0 0
        %5258 = vmatmul.mubr.bf16.gmra.mrb[0].mxu0 %v5108
        %v5259 = vpop.f32.mrb[0].mxu0
        %v5260 = vadd.f32 0.0, %v5259
        %v5261 = vpop.f32.mrb[0].mxu0
        %v5262 = vpop.f32.mrb[0].mxu0
        %v5263 = vadd.f32 0.0, %v5262
        %v5264 = vpop.f32.mrb[0].mxu0
        %5265 = vmatprep.mubr.bf16.mxu0 0
        %5266 = vmatmul.mubr.bf16.gmra.mrb[0].mxu0 %v5111
        %v5267 = vpop.f32.mrb[0].mxu0
        %v5268 = vadd.f32 0.0, %v5267
        %v5269 = vpop.f32.mrb[0].mxu0
        %v5270 = vpop.f32.mrb[0].mxu0
        %v5271 = vadd.f32 0.0, %v5270
        %v5272 = vpop.f32.mrb[0].mxu0
        %5273 = vdwg.mxu0
        %v5274 = vadd.f32 %v4776, %v5148
        %v5275 = vadd.f32 %v4777, %v5151
        %v5276 = vadd.f32 %v4778, %v5156
        %v5277 = vadd.f32 %v4779, %v5159
        %v5278 = vadd.f32 %v4780, %v5164
        %v5279 = vadd.f32 %v4781, %v5167
        %v5280 = vadd.f32 %v4782, %v5172
        %v5281 = vadd.f32 %v4783, %v5175
        %v5282 = vadd.f32 %v4784, %v5180
        %v5283 = vadd.f32 %v4785, %v5183
        %v5284 = vadd.f32 %v4786, %v5188
        %v5285 = vadd.f32 %v4787, %v5191
        %v5286 = vadd.f32 %v4788, %v5196
        %v5287 = vadd.f32 %v4789, %v5199
        %v5288 = vadd.f32 %v4790, %v5204
        %v5289 = vadd.f32 %v4791, %v5207
        %v5290 = vadd.f32 %v4792, %v5212
        %v5291 = vadd.f32 %v4793, %v5215
        %v5292 = vadd.f32 %v4794, %v5220
        %v5293 = vadd.f32 %v4795, %v5223
        %v5294 = vadd.f32 %v4796, %v5228
        %v5295 = vadd.f32 %v4797, %v5231
        %v5296 = vadd.f32 %v4798, %v5236
        %v5297 = vadd.f32 %v4799, %v5239
        %v5298 = vadd.f32 %v4800, %v5244
        %v5299 = vadd.f32 %v4801, %v5247
        %v5300 = vadd.f32 %v4802, %v5252
        %v5301 = vadd.f32 %v4803, %v5255
        %v5302 = vadd.f32 %v4804, %v5260
        %v5303 = vadd.f32 %v4805, %v5263
        %v5304 = vadd.f32 %v4806, %v5268
        %v5305 = vadd.f32 %v4807, %v5271
        %vm5306 = vcmp.ge.f32.partialorder %v5274, 0.0
        %vm5307 = vcmp.ge.f32.partialorder %v5275, 0.0
        %vm5308 = vcmp.ge.f32.partialorder %v5276, 0.0
        %vm5309 = vcmp.ge.f32.partialorder %v5277, 0.0
        %vm5310 = vcmp.ge.f32.partialorder %v5278, 0.0
        %vm5311 = vcmp.ge.f32.partialorder %v5279, 0.0
        %vm5312 = vcmp.ge.f32.partialorder %v5280, 0.0
        %vm5313 = vcmp.ge.f32.partialorder %v5281, 0.0
        %vm5314 = vcmp.ge.f32.partialorder %v5282, 0.0
        %vm5315 = vcmp.ge.f32.partialorder %v5283, 0.0
        %vm5316 = vcmp.ge.f32.partialorder %v5284, 0.0
        %vm5317 = vcmp.ge.f32.partialorder %v5285, 0.0
        %vm5318 = vcmp.ge.f32.partialorder %v5286, 0.0
        %vm5319 = vcmp.ge.f32.partialorder %v5287, 0.0
        %vm5320 = vcmp.ge.f32.partialorder %v5288, 0.0
        %vm5321 = vcmp.ge.f32.partialorder %v5289, 0.0
        %vm5322 = vcmp.ge.f32.partialorder %v5290, 0.0
        %vm5323 = vcmp.ge.f32.partialorder %v5291, 0.0
        %vm5324 = vcmp.ge.f32.partialorder %v5292, 0.0
        %vm5325 = vcmp.ge.f32.partialorder %v5293, 0.0
        %vm5326 = vcmp.ge.f32.partialorder %v5294, 0.0
        %vm5327 = vcmp.ge.f32.partialorder %v5295, 0.0
        %vm5328 = vcmp.ge.f32.partialorder %v5296, 0.0
        %vm5329 = vcmp.ge.f32.partialorder %v5297, 0.0
        %vm5330 = vcmp.ge.f32.partialorder %v5298, 0.0
        %vm5331 = vcmp.ge.f32.partialorder %v5299, 0.0
        %vm5332 = vcmp.ge.f32.partialorder %v5300, 0.0
        %vm5333 = vcmp.ge.f32.partialorder %v5301, 0.0
        %vm5334 = vcmp.ge.f32.partialorder %v5302, 0.0
        %vm5335 = vcmp.ge.f32.partialorder %v5303, 0.0
        %vm5336 = vcmp.ge.f32.partialorder %v5304, 0.0
        %vm5337 = vcmp.ge.f32.partialorder %v5305, 0.0
        %v5338 = vmul.f32 %v5274, 0.2
        %v5339 = vmul.f32 %v5275, 0.2
        %v5340 = vmul.f32 %v5276, 0.2
        %v5341 = vmul.f32 %v5277, 0.2
        %v5342 = vmul.f32 %v5278, 0.2
        %v5343 = vmul.f32 %v5279, 0.2
        %v5344 = vmul.f32 %v5280, 0.2
        %v5345 = vmul.f32 %v5281, 0.2
        %v5346 = vmul.f32 %v5282, 0.2
        %v5347 = vmul.f32 %v5283, 0.2
        %v5348 = vmul.f32 %v5284, 0.2
        %v5349 = vmul.f32 %v5285, 0.2
        %v5350 = vmul.f32 %v5286, 0.2
        %v5351 = vmul.f32 %v5287, 0.2
        %v5352 = vmul.f32 %v5288, 0.2
        %v5353 = vmul.f32 %v5289, 0.2
        %v5354 = vmul.f32 %v5290, 0.2
        %v5355 = vmul.f32 %v5291, 0.2
        %v5356 = vmul.f32 %v5292, 0.2
        %v5357 = vmul.f32 %v5293, 0.2
        %v5358 = vmul.f32 %v5294, 0.2
        %v5359 = vmul.f32 %v5295, 0.2
        %v5360 = vmul.f32 %v5296, 0.2
        %v5361 = vmul.f32 %v5297, 0.2
        %v5362 = vmul.f32 %v5298, 0.2
        %v5363 = vmul.f32 %v5299, 0.2
        %v5364 = vmul.f32 %v5300, 0.2
        %v5365 = vmul.f32 %v5301, 0.2
        %v5366 = vmul.f32 %v5302, 0.2
        %v5367 = vmul.f32 %v5303, 0.2
        %v5368 = vmul.f32 %v5304, 0.2
        %v5369 = vmul.f32 %v5305, 0.2
        %v5370 = vsel %vm5306, %v5274, %v5338
        %v5371 = vsel %vm5307, %v5275, %v5339
        %v5372 = vsel %vm5308, %v5276, %v5340
        %v5373 = vsel %vm5309, %v5277, %v5341
        %v5374 = vsel %vm5310, %v5278, %v5342
        %v5375 = vsel %vm5311, %v5279, %v5343
        %v5376 = vsel %vm5312, %v5280, %v5344
        %v5377 = vsel %vm5313, %v5281, %v5345
        %v5378 = vsel %vm5314, %v5282, %v5346
        %v5379 = vsel %vm5315, %v5283, %v5347
        %v5380 = vsel %vm5316, %v5284, %v5348
        %v5381 = vsel %vm5317, %v5285, %v5349
        %v5382 = vsel %vm5318, %v5286, %v5350
        %v5383 = vsel %vm5319, %v5287, %v5351
        %v5384 = vsel %vm5320, %v5288, %v5352
        %v5385 = vsel %vm5321, %v5289, %v5353
        %v5386 = vsel %vm5322, %v5290, %v5354
        %v5387 = vsel %vm5323, %v5291, %v5355
        %v5388 = vsel %vm5324, %v5292, %v5356
        %v5389 = vsel %vm5325, %v5293, %v5357
        %v5390 = vsel %vm5326, %v5294, %v5358
        %v5391 = vsel %vm5327, %v5295, %v5359
        %v5392 = vsel %vm5328, %v5296, %v5360
        %v5393 = vsel %vm5329, %v5297, %v5361
        %v5394 = vsel %vm5330, %v5298, %v5362
        %v5395 = vsel %vm5331, %v5299, %v5363
        %v5396 = vsel %vm5332, %v5300, %v5364
        %v5397 = vsel %vm5333, %v5301, %v5365
        %v5398 = vsel %vm5334, %v5302, %v5366
        %v5399 = vsel %vm5335, %v5303, %v5367
        %v5400 = vsel %vm5336, %v5304, %v5368
        %v5401 = vsel %vm5337, %v5305, %v5369
        %5402 = vst [vmem:[#allocation2] sm:$0xf] 0
        %5403 = vst [vmem:[#allocation2 + $0x4] sm:$0xf] 0
        %5404 = vst [vmem:[#allocation2 + $0x8] sm:$0xf] 0
        %5405 = vst [vmem:[#allocation2 + $0xc] sm:$0xf] 0
        %5406 = vst [vmem:[#allocation2 + $0x10] sm:$0x1] 0
        %5407 = vst [vmem:[#allocation2 + $0x14] sm:$0xf] 0
        %5408 = vst [vmem:[#allocation2 + $0x18] sm:$0xf] 0
        %5409 = vst [vmem:[#allocation2 + $0x1c] sm:$0xf] 0
        %5410 = vst [vmem:[#allocation2 + $0x20] sm:$0xf] 0
        %5411 = vst [vmem:[#allocation2 + $0x24] sm:$0x1] 0
        %5412 = vst [vmem:[#allocation2 + $0x28] sm:$0xf] 0
        %5413 = vst [vmem:[#allocation2 + $0x2c] sm:$0xf] 0
        %5414 = vst [vmem:[#allocation2 + $0x30] sm:$0xf] 0
        %5415 = vst [vmem:[#allocation2 + $0x34] sm:$0xf] 0
        %5416 = vst [vmem:[#allocation2 + $0x38] sm:$0x1] 0
        %5417 = vst [vmem:[#allocation2 + $0x3c] sm:$0xf] 0
        %5418 = vst [vmem:[#allocation2 + $0x40] sm:$0xf] 0
        %5419 = vst [vmem:[#allocation2 + $0x44] sm:$0xf] 0
        %5420 = vst [vmem:[#allocation2 + $0x48] sm:$0xf] 0
        %5421 = vst [vmem:[#allocation2 + $0x4c] sm:$0x1] 0
        %5422 = vst [vmem:[#allocation2 + $0x50] sm:$0xf] 0
        %5423 = vst [vmem:[#allocation2 + $0x54] sm:$0xf] 0
        %5424 = vst [vmem:[#allocation2 + $0x58] sm:$0xf] 0
        %5425 = vst [vmem:[#allocation2 + $0x5c] sm:$0xf] 0
        %5426 = vst [vmem:[#allocation2 + $0x60] sm:$0x1] 0
        %5427 = vst [vmem:[#allocation2 + $0x64] sm:$0xf] 0
        %5428 = vst [vmem:[#allocation2 + $0x68] sm:$0xf] 0
        %5429 = vst [vmem:[#allocation2 + $0x6c] sm:$0xf] 0
        %5430 = vst [vmem:[#allocation2 + $0x70] sm:$0xf] 0
        %5431 = vst [vmem:[#allocation2 + $0x74] sm:$0x1] 0
        %5432 = vst [vmem:[#allocation2 + $0x78] sm:$0xf] 0
        %5433 = vst [vmem:[#allocation2 + $0x7c] sm:$0xf] 0
        %5434 = vst [vmem:[#allocation2 + $0x80] sm:$0xf] 0
        %5435 = vst [vmem:[#allocation2 + $0x84] sm:$0xf] 0
        %5436 = vst [vmem:[#allocation2 + $0x88] sm:$0x1] 0
        %5437 = vst [vmem:[#allocation2 + $0x8c] sm:$0xf] 0
        %5438 = vst [vmem:[#allocation2 + $0x90] sm:$0xf] 0
        %5439 = vst [vmem:[#allocation2 + $0x94] sm:$0xf] 0
        %5440 = vst [vmem:[#allocation2 + $0x98] sm:$0xf] 0
        %5441 = vst [vmem:[#allocation2 + $0x9c] sm:$0x1] 0
        %5442 = vst [vmem:[#allocation2 + $0xa0] sm:$0xf] 0
        %5443 = vst [vmem:[#allocation2 + $0xa4] sm:$0xf] 0
        %5444 = vst [vmem:[#allocation2 + $0xa8] sm:$0xf] 0
        %5445 = vst [vmem:[#allocation2 + $0xac] sm:$0xf] 0
        %5446 = vst [vmem:[#allocation2 + $0xb0] sm:$0x1] 0
        %5447 = vst [vmem:[#allocation2 + $0xb4] sm:$0xf] 0
        %5448 = vst [vmem:[#allocation2 + $0xb8] sm:$0xf] 0
        %5449 = vst [vmem:[#allocation2 + $0xbc] sm:$0xf] 0
        %5450 = vst [vmem:[#allocation2 + $0xc0] sm:$0xf] 0
        %5451 = vst [vmem:[#allocation2 + $0xc4] sm:$0x1] 0
        %5452 = vst [vmem:[#allocation2 + $0xc8] sm:$0xf] 0
        %5453 = vst [vmem:[#allocation2 + $0xcc] sm:$0xf] 0
        %5454 = vst [vmem:[#allocation2 + $0xd0] sm:$0xf] 0
        %5455 = vst [vmem:[#allocation2 + $0xd4] sm:$0xf] 0
        %5456 = vst [vmem:[#allocation2 + $0xd8] sm:$0x1] 0
        %5457 = vst [vmem:[#allocation2 + $0xdc] sm:$0xf] 0
        %5458 = vst [vmem:[#allocation2 + $0xe0] sm:$0xf] 0
        %5459 = vst [vmem:[#allocation2 + $0xe4] sm:$0xf] 0
        %5460 = vst [vmem:[#allocation2 + $0xe8] sm:$0xf] 0
        %5461 = vst [vmem:[#allocation2 + $0xec] sm:$0x1] 0
        %5462 = vst [vmem:[#allocation2 + $0xf0] sm:$0xf] 0
        %5463 = vst [vmem:[#allocation2 + $0xf4] sm:$0xf] 0
        %5464 = vst [vmem:[#allocation2 + $0xf8] sm:$0xf] 0
        %5465 = vst [vmem:[#allocation2 + $0xfc] sm:$0xf] 0
        %5466 = vst [vmem:[#allocation2 + $0x100] sm:$0x1] 0
        %5467 = vst [vmem:[#allocation2 + $0x104] sm:$0xf] 0
        %5468 = vst [vmem:[#allocation2 + $0x108] sm:$0xf] 0
        %5469 = vst [vmem:[#allocation2 + $0x10c] sm:$0xf] 0
        %5470 = vst [vmem:[#allocation2 + $0x110] sm:$0xf] 0
        %5471 = vst [vmem:[#allocation2 + $0x114] sm:$0x1] 0
        %5472 = vst [vmem:[#allocation2 + $0x118] sm:$0xf] 0
        %5473 = vst [vmem:[#allocation2 + $0x11c] sm:$0xf] 0
        %5474 = vst [vmem:[#allocation2 + $0x120] sm:$0xf] 0
        %5475 = vst [vmem:[#allocation2 + $0x124] sm:$0xf] 0
        %5476 = vst [vmem:[#allocation2 + $0x128] sm:$0x1] 0
        %5477 = vst [vmem:[#allocation2 + $0x12c] sm:$0xf] 0
        %5478 = vst [vmem:[#allocation2 + $0x130] sm:$0xf] 0
        %5479 = vst [vmem:[#allocation2 + $0x134] sm:$0xf] 0
        %5480 = vst [vmem:[#allocation2 + $0x138] sm:$0xf] 0
        %5481 = vst [vmem:[#allocation2 + $0x13c] sm:$0x1] 0
        %5482 = vst [vmem:[#allocation2 + $0x140] sm:$0xf] 0
        %5483 = vst [vmem:[#allocation2 + $0x144] sm:$0xf] 0
        %5484 = vst [vmem:[#allocation2 + $0x148] sm:$0xf] 0
        %5485 = vst [vmem:[#allocation2 + $0x14c] sm:$0xf] 0
        %5486 = vst [vmem:[#allocation2 + $0x150] sm:$0x1] 0
        %5487 = vst [vmem:[#allocation2 + $0x154] sm:$0xf] 0
        %5488 = vst [vmem:[#allocation2 + $0x158] sm:$0xf] 0
        %5489 = vst [vmem:[#allocation2 + $0x15c] sm:$0xf] 0
        %5490 = vst [vmem:[#allocation2 + $0x160] sm:$0xf] 0
        %5491 = vst [vmem:[#allocation2 + $0x164] sm:$0x1] 0
        %v5492 = vpack.c.bf16 %v5371, %v5370
        %v5493 = vpack.c.bf16 %v5373, %v5372
        %v5494 = vpack.c.bf16 %v5375, %v5374
        %v5495 = vpack.c.bf16 %v5377, %v5376
        %v5496 = vpack.c.bf16 %v5379, %v5378
        %v5497 = vpack.c.bf16 %v5381, %v5380
        %v5498 = vpack.c.bf16 %v5383, %v5382
        %v5499 = vpack.c.bf16 %v5385, %v5384
        %v5500 = vpack.c.bf16 %v5387, %v5386
        %v5501 = vpack.c.bf16 %v5389, %v5388
        %v5502 = vpack.c.bf16 %v5391, %v5390
        %v5503 = vpack.c.bf16 %v5393, %v5392
        %v5504 = vpack.c.bf16 %v5395, %v5394
        %v5505 = vpack.c.bf16 %v5397, %v5396
        %v5506 = vpack.c.bf16 %v5399, %v5398
        %v5507 = vpack.c.bf16 %v5401, %v5400
        %v5524 = vunpack.c.l.b16 %v5492
        %v5525 = vunpack.c.h.b16 %v5492
        %v5526 = vunpack.c.l.b16 %v5493
        %v5527 = vunpack.c.h.b16 %v5493
        %v5528 = vunpack.c.l.b16 %v5494
        %v5529 = vunpack.c.h.b16 %v5494
        %v5530 = vunpack.c.l.b16 %v5495
        %v5531 = vunpack.c.h.b16 %v5495
        %v5532 = vunpack.c.l.b16 %v5496
        %v5533 = vunpack.c.h.b16 %v5496
        %v5534 = vunpack.c.l.b16 %v5497
        %v5535 = vunpack.c.h.b16 %v5497
        %v5536 = vunpack.c.l.b16 %v5498
        %v5537 = vunpack.c.h.b16 %v5498
        %v5538 = vunpack.c.l.b16 %v5499
        %v5539 = vunpack.c.h.b16 %v5499
        %v5540 = vunpack.c.l.b16 %v5500
        %v5541 = vunpack.c.h.b16 %v5500
        %v5542 = vunpack.c.l.b16 %v5501
        %v5543 = vunpack.c.h.b16 %v5501
        %v5544 = vunpack.c.l.b16 %v5502
        %v5545 = vunpack.c.h.b16 %v5502
        %v5546 = vunpack.c.l.b16 %v5503
        %v5547 = vunpack.c.h.b16 %v5503
        %v5548 = vunpack.c.l.b16 %v5504
        %v5549 = vunpack.c.h.b16 %v5504
        %v5550 = vunpack.c.l.b16 %v5505
        %v5551 = vunpack.c.h.b16 %v5505
        %v5552 = vunpack.c.l.b16 %v5506
        %v5553 = vunpack.c.h.b16 %v5506
        %v5554 = vunpack.c.l.b16 %v5507
        %v5555 = vunpack.c.h.b16 %v5507
        %v5556 = vpack.c.b16 %v5524, %v5524
        %v5557 = vpack.c.b16 %v5525, %v5525
        %v5558 = vpack.c.b16 %v5526, %v5526
        %v5559 = vpack.c.b16 %v5527, %v5527
        %v5560 = vpack.c.b16 %v5528, %v5528
        %v5561 = vpack.c.b16 %v5529, %v5529
        %v5562 = vpack.c.b16 %v5530, %v5530
        %v5563 = vpack.c.b16 %v5531, %v5531
        %v5564 = vpack.c.b16 %v5532, %v5532
        %v5565 = vpack.c.b16 %v5533, %v5533
        %v5566 = vpack.c.b16 %v5534, %v5534
        %v5567 = vpack.c.b16 %v5535, %v5535
        %v5568 = vpack.c.b16 %v5536, %v5536
        %v5569 = vpack.c.b16 %v5537, %v5537
        %v5570 = vpack.c.b16 %v5538, %v5538
        %v5571 = vpack.c.b16 %v5539, %v5539
        %v5572 = vpack.c.b16 %v5540, %v5540
        %v5573 = vpack.c.b16 %v5541, %v5541
        %v5574 = vpack.c.b16 %v5542, %v5542
        %v5575 = vpack.c.b16 %v5543, %v5543
        %v5576 = vpack.c.b16 %v5544, %v5544
        %v5577 = vpack.c.b16 %v5545, %v5545
        %v5578 = vpack.c.b16 %v5546, %v5546
        %v5579 = vpack.c.b16 %v5547, %v5547
        %v5580 = vpack.c.b16 %v5548, %v5548
        %v5581 = vpack.c.b16 %v5549, %v5549
        %v5582 = vpack.c.b16 %v5550, %v5550
        %v5583 = vpack.c.b16 %v5551, %v5551
        %v5584 = vpack.c.b16 %v5552, %v5552
        %v5585 = vpack.c.b16 %v5553, %v5553
        %v5586 = vpack.c.b16 %v5554, %v5554
        %v5587 = vpack.c.b16 %v5555, %v5555
        %s5620 = scalar_lea.vmem [#allocation2], 20
        %5621 = vst [vmem:[%s5620 + $0x8] sm:$0xf] %v5556
        %5622 = vst [vmem:[%s5620 + $0xc] sm:$0xf] %v5557
        %5623 = vst [vmem:[%s5620 + $0x1c] sm:$0xf] %v5558
        %5624 = vst [vmem:[%s5620 + $0x20] sm:$0xf] %v5559
        %5625 = vst [vmem:[%s5620 + $0x30] sm:$0xf] %v5560
        %5626 = vst [vmem:[%s5620 + $0x34] sm:$0xf] %v5561
        %5627 = vst [vmem:[%s5620 + $0x44] sm:$0xf] %v5562
        %5628 = vst [vmem:[%s5620 + $0x48] sm:$0xf] %v5563
        %5629 = vst [vmem:[%s5620 + $0x58] sm:$0xf] %v5564
        %5630 = vst [vmem:[%s5620 + $0x5c] sm:$0xf] %v5565
        %5631 = vst [vmem:[%s5620 + $0x6c] sm:$0xf] %v5566
        %5632 = vst [vmem:[%s5620 + $0x70] sm:$0xf] %v5567
        %5633 = vst [vmem:[%s5620 + $0x80] sm:$0xf] %v5568
        %5634 = vst [vmem:[%s5620 + $0x84] sm:$0xf] %v5569
        %5635 = vst [vmem:[%s5620 + $0x94] sm:$0xf] %v5570
        %5636 = vst [vmem:[%s5620 + $0x98] sm:$0xf] %v5571
        %5637 = vst [vmem:[%s5620 + $0xa8] sm:$0xf] %v5572
        %5638 = vst [vmem:[%s5620 + $0xac] sm:$0xf] %v5573
        %5639 = vst [vmem:[%s5620 + $0xbc] sm:$0xf] %v5574
        %5640 = vst [vmem:[%s5620 + $0xc0] sm:$0xf] %v5575
        %5641 = vst [vmem:[%s5620 + $0xd0] sm:$0xf] %v5576
        %5642 = vst [vmem:[%s5620 + $0xd4] sm:$0xf] %v5577
        %5643 = vst [vmem:[%s5620 + $0xe4] sm:$0xf] %v5578
        %5644 = vst [vmem:[%s5620 + $0xe8] sm:$0xf] %v5579
        %5645 = vst [vmem:[%s5620 + $0xf8] sm:$0xf] %v5580
        %5646 = vst [vmem:[%s5620 + $0xfc] sm:$0xf] %v5581
        %5647 = vst [vmem:[%s5620 + $0x10c] sm:$0xf] %v5582
        %5648 = vst [vmem:[%s5620 + $0x110] sm:$0xf] %v5583
        %5649 = vst [vmem:[%s5620 + $0x120] sm:$0xf] %v5584
        %5650 = vst [vmem:[%s5620 + $0x124] sm:$0xf] %v5585
        %5651 = vst [vmem:[%s5620 + $0x134] sm:$0xf] %v5586
        %5652 = vst [vmem:[%s5620 + $0x138] sm:$0xf] %v5587
        %v5653 = vld [vmem:[%s7] sm:$0xff]
        %v5654 = vld [vmem:[%s7 + $0x8] sm:$0xff]
        %v5655 = vld [vmem:[%s7 + $0x10] sm:$0xff]
        %v5656 = vld [vmem:[%s7 + $0x18] sm:$0xff]
        %v5657 = vld [vmem:[%s7 + $0x20] sm:$0xff]
        %v5658 = vld [vmem:[%s7 + $0x28] sm:$0xff]
        %v5659 = vld [vmem:[%s7 + $0x30] sm:$0xff]
        %v5660 = vld [vmem:[%s7 + $0x38] sm:$0xff]
        %v5661 = vld [vmem:[%s7 + $0x40] sm:$0xff]
        %v5662 = vld [vmem:[%s7 + $0x48] sm:$0xff]
        %v5663 = vld [vmem:[%s7 + $0x50] sm:$0xff]
        %v5664 = vld [vmem:[%s7 + $0x58] sm:$0xff]
        %v5665 = vld [vmem:[%s7 + $0x60] sm:$0xff]
        %v5666 = vld [vmem:[%s7 + $0x68] sm:$0xff]
        %v5667 = vld [vmem:[%s7 + $0x70] sm:$0xff]
        %v5668 = vld [vmem:[%s7 + $0x78] sm:$0xff]
        %v5669 = vld [vmem:[%s7 + $0x80] sm:$0xff]
        %v5670 = vld [vmem:[%s7 + $0x88] sm:$0xff]
        %v5671 = vld [vmem:[%s7 + $0x90] sm:$0xff]
        %v5672 = vld [vmem:[%s7 + $0x98] sm:$0xff]
        %v5673 = vld [vmem:[%s7 + $0xa0] sm:$0xff]
        %v5674 = vld [vmem:[%s7 + $0xa8] sm:$0xff]
        %v5675 = vld [vmem:[%s7 + $0xb0] sm:$0xff]
        %v5676 = vld [vmem:[%s7 + $0xb8] sm:$0xff]
        %v5677 = vld [vmem:[%s7 + $0xc0] sm:$0xff]
        %v5678 = vld [vmem:[%s7 + $0xc8] sm:$0xff]
        %v5679 = vld [vmem:[%s7 + $0xd0] sm:$0xff]
        %v5680 = vld [vmem:[%s7 + $0xd8] sm:$0xff]
        %v5681 = vld [vmem:[%s7 + $0xe0] sm:$0xff]
        %v5682 = vld [vmem:[%s7 + $0xe8] sm:$0xff]
        %v5683 = vld [vmem:[%s7 + $0xf0] sm:$0xff]
        %v5684 = vld [vmem:[%s7 + $0xf8] sm:$0xff]
        %v5685 = vld [vmem:[#allocation2 + $0x4] sm:$0x8]
        %v5686 = vld [vmem:[#allocation2 + $0x8] sm:$0xf]
        %v5687 = vld [vmem:[#allocation2 + $0xc] sm:$0xf]
        %v5688 = vld [vmem:[#allocation2 + $0x18] sm:$0x8]
        %v5689 = vld [vmem:[#allocation2 + $0x1c] sm:$0xf]
        %v5690 = vld [vmem:[#allocation2 + $0x20] sm:$0xf]
        %v5691 = vld [vmem:[#allocation2 + $0x2c] sm:$0x8]
        %v5692 = vld [vmem:[#allocation2 + $0x30] sm:$0xf]
        %v5693 = vld [vmem:[#allocation2 + $0x34] sm:$0xf]
        %v5694 = vld [vmem:[#allocation2 + $0x40] sm:$0x8]
        %v5695 = vld [vmem:[#allocation2 + $0x44] sm:$0xf]
        %v5696 = vld [vmem:[#allocation2 + $0x48] sm:$0xf]
        %v5697 = vld [vmem:[#allocation2 + $0x54] sm:$0x8]
        %v5698 = vld [vmem:[#allocation2 + $0x58] sm:$0xf]
        %v5699 = vld [vmem:[#allocation2 + $0x5c] sm:$0xf]
        %v5700 = vld [vmem:[#allocation2 + $0x68] sm:$0x8]
        %v5701 = vld [vmem:[#allocation2 + $0x6c] sm:$0xf]
        %v5702 = vld [vmem:[#allocation2 + $0x70] sm:$0xf]
        %v5703 = vld [vmem:[#allocation2 + $0x7c] sm:$0x8]
        %v5704 = vld [vmem:[#allocation2 + $0x80] sm:$0xf]
        %v5705 = vld [vmem:[#allocation2 + $0x84] sm:$0xf]
        %v5706 = vld [vmem:[#allocation2 + $0x90] sm:$0x8]
        %v5707 = vld [vmem:[#allocation2 + $0x94] sm:$0xf]
        %v5708 = vld [vmem:[#allocation2 + $0x98] sm:$0xf]
        %v5709 = vld [vmem:[#allocation2 + $0xa4] sm:$0x8]
        %v5710 = vld [vmem:[#allocation2 + $0xa8] sm:$0xf]
        %v5711 = vld [vmem:[#allocation2 + $0xac] sm:$0xf]
        %v5712 = vld [vmem:[#allocation2 + $0xb8] sm:$0x8]
        %v5713 = vld [vmem:[#allocation2 + $0xbc] sm:$0xf]
        %v5714 = vld [vmem:[#allocation2 + $0xc0] sm:$0xf]
        %v5715 = vld [vmem:[#allocation2 + $0xcc] sm:$0x8]
        %v5716 = vld [vmem:[#allocation2 + $0xd0] sm:$0xf]
        %v5717 = vld [vmem:[#allocation2 + $0xd4] sm:$0xf]
        %v5718 = vld [vmem:[#allocation2 + $0xe0] sm:$0x8]
        %v5719 = vld [vmem:[#allocation2 + $0xe4] sm:$0xf]
        %v5720 = vld [vmem:[#allocation2 + $0xe8] sm:$0xf]
        %v5721 = vld [vmem:[#allocation2 + $0xf4] sm:$0x8]
        %v5722 = vld [vmem:[#allocation2 + $0xf8] sm:$0xf]
        %v5723 = vld [vmem:[#allocation2 + $0xfc] sm:$0xf]
        %v5724 = vld [vmem:[#allocation2 + $0x108] sm:$0x8]
        %v5725 = vld [vmem:[#allocation2 + $0x10c] sm:$0xf]
        %v5726 = vld [vmem:[#allocation2 + $0x110] sm:$0xf]
        %v5727 = vld [vmem:[#allocation2 + $0x11c] sm:$0x8]
        %v5728 = vld [vmem:[#allocation2 + $0x120] sm:$0xf]
        %v5729 = vld [vmem:[#allocation2 + $0x124] sm:$0xf]
        %v5730 = vld [vmem:[#allocation2 + $0x130] sm:$0x8]
        %v5731 = vld [vmem:[#allocation2 + $0x134] sm:$0xf]
        %v5732 = vld [vmem:[#allocation2 + $0x138] sm:$0xf]
        %vm5733 = vsmask.f32 256
        %vm5734 = vsmask.f32 4368
        %vm5735 = vmor %vm5733, %vm5734
        %v5737 = vshrl.u32 %v5685, 16
        %v5739 = vrot.slane %v5737, 7
        %v5740 = vrot.slane %v5739, 4
        %v5742 = vshrl.u32 %v5686, 16
        %v5744 = vrot.slane %v5742, 7
        %v5745 = vshll.u32 %v5686, 16
        %v5747 = vor.u32 %v5744, %v5745
        %v5748 = vsel %vm5735, %v5740, %v5747
        %v5749 = vrot.slane %v5744, 4
        %v5751 = vshrl.u32 %v5687, 16
        %v5753 = vrot.slane %v5751, 7
        %v5754 = vshll.u32 %v5687, 16
        %v5756 = vor.u32 %v5753, %v5754
        %v5757 = vsel %vm5735, %v5749, %v5756
        %v5759 = vshrl.u32 %v5688, 16
        %v5761 = vrot.slane %v5759, 7
        %v5762 = vrot.slane %v5761, 4
        %v5764 = vshrl.u32 %v5689, 16
        %v5766 = vrot.slane %v5764, 7
        %v5767 = vshll.u32 %v5689, 16
        %v5769 = vor.u32 %v5766, %v5767
        %v5770 = vsel %vm5735, %v5762, %v5769
        %v5771 = vrot.slane %v5766, 4
        %v5773 = vshrl.u32 %v5690, 16
        %v5775 = vrot.slane %v5773, 7
        %v5776 = vshll.u32 %v5690, 16
        %v5778 = vor.u32 %v5775, %v5776
        %v5779 = vsel %vm5735, %v5771, %v5778
        %v5781 = vshrl.u32 %v5691, 16
        %v5783 = vrot.slane %v5781, 7
        %v5784 = vrot.slane %v5783, 4
        %v5786 = vshrl.u32 %v5692, 16
        %v5788 = vrot.slane %v5786, 7
        %v5789 = vshll.u32 %v5692, 16
        %v5791 = vor.u32 %v5788, %v5789
        %v5792 = vsel %vm5735, %v5784, %v5791
        %v5793 = vrot.slane %v5788, 4
        %v5795 = vshrl.u32 %v5693, 16
        %v5797 = vrot.slane %v5795, 7
        %v5798 = vshll.u32 %v5693, 16
        %v5800 = vor.u32 %v5797, %v5798
        %v5801 = vsel %vm5735, %v5793, %v5800
        %v5803 = vshrl.u32 %v5694, 16
        %v5805 = vrot.slane %v5803, 7
        %v5806 = vrot.slane %v5805, 4
        %v5808 = vshrl.u32 %v5695, 16
        %v5810 = vrot.slane %v5808, 7
        %v5811 = vshll.u32 %v5695, 16
        %v5813 = vor.u32 %v5810, %v5811
        %v5814 = vsel %vm5735, %v5806, %v5813
        %v5815 = vrot.slane %v5810, 4
        %v5817 = vshrl.u32 %v5696, 16
        %v5819 = vrot.slane %v5817, 7
        %v5820 = vshll.u32 %v5696, 16
        %v5822 = vor.u32 %v5819, %v5820
        %v5823 = vsel %vm5735, %v5815, %v5822
        %v5825 = vshrl.u32 %v5697, 16
        %v5827 = vrot.slane %v5825, 7
        %v5828 = vrot.slane %v5827, 4
        %v5830 = vshrl.u32 %v5698, 16
        %v5832 = vrot.slane %v5830, 7
        %v5833 = vshll.u32 %v5698, 16
        %v5835 = vor.u32 %v5832, %v5833
        %v5836 = vsel %vm5735, %v5828, %v5835
        %v5837 = vrot.slane %v5832, 4
        %v5839 = vshrl.u32 %v5699, 16
        %v5841 = vrot.slane %v5839, 7
        %v5842 = vshll.u32 %v5699, 16
        %v5844 = vor.u32 %v5841, %v5842
        %v5845 = vsel %vm5735, %v5837, %v5844
        %v5847 = vshrl.u32 %v5700, 16
        %v5849 = vrot.slane %v5847, 7
        %v5850 = vrot.slane %v5849, 4
        %v5852 = vshrl.u32 %v5701, 16
        %v5854 = vrot.slane %v5852, 7
        %v5855 = vshll.u32 %v5701, 16
        %v5857 = vor.u32 %v5854, %v5855
        %v5858 = vsel %vm5735, %v5850, %v5857
        %v5859 = vrot.slane %v5854, 4
        %v5861 = vshrl.u32 %v5702, 16
        %v5863 = vrot.slane %v5861, 7
        %v5864 = vshll.u32 %v5702, 16
        %v5866 = vor.u32 %v5863, %v5864
        %v5867 = vsel %vm5735, %v5859, %v5866
        %v5869 = vshrl.u32 %v5703, 16
        %v5871 = vrot.slane %v5869, 7
        %v5872 = vrot.slane %v5871, 4
        %v5874 = vshrl.u32 %v5704, 16
        %v5876 = vrot.slane %v5874, 7
        %v5877 = vshll.u32 %v5704, 16
        %v5879 = vor.u32 %v5876, %v5877
        %v5880 = vsel %vm5735, %v5872, %v5879
        %v5881 = vrot.slane %v5876, 4
        %v5883 = vshrl.u32 %v5705, 16
        %v5885 = vrot.slane %v5883, 7
        %v5886 = vshll.u32 %v5705, 16
        %v5888 = vor.u32 %v5885, %v5886
        %v5889 = vsel %vm5735, %v5881, %v5888
        %v5891 = vshrl.u32 %v5706, 16
        %v5893 = vrot.slane %v5891, 7
        %v5894 = vrot.slane %v5893, 4
        %v5896 = vshrl.u32 %v5707, 16
        %v5898 = vrot.slane %v5896, 7
        %v5899 = vshll.u32 %v5707, 16
        %v5901 = vor.u32 %v5898, %v5899
        %v5902 = vsel %vm5735, %v5894, %v5901
        %v5903 = vrot.slane %v5898, 4
        %v5905 = vshrl.u32 %v5708, 16
        %v5907 = vrot.slane %v5905, 7
        %v5908 = vshll.u32 %v5708, 16
        %v5910 = vor.u32 %v5907, %v5908
        %v5911 = vsel %vm5735, %v5903, %v5910
        %v5913 = vshrl.u32 %v5709, 16
        %v5915 = vrot.slane %v5913, 7
        %v5916 = vrot.slane %v5915, 4
        %v5918 = vshrl.u32 %v5710, 16
        %v5920 = vrot.slane %v5918, 7
        %v5921 = vshll.u32 %v5710, 16
        %v5923 = vor.u32 %v5920, %v5921
        %v5924 = vsel %vm5735, %v5916, %v5923
        %v5925 = vrot.slane %v5920, 4
        %v5927 = vshrl.u32 %v5711, 16
        %v5929 = vrot.slane %v5927, 7
        %v5930 = vshll.u32 %v5711, 16
        %v5932 = vor.u32 %v5929, %v5930
        %v5933 = vsel %vm5735, %v5925, %v5932
        %v5935 = vshrl.u32 %v5712, 16
        %v5937 = vrot.slane %v5935, 7
        %v5938 = vrot.slane %v5937, 4
        %v5940 = vshrl.u32 %v5713, 16
        %v5942 = vrot.slane %v5940, 7
        %v5943 = vshll.u32 %v5713, 16
        %v5945 = vor.u32 %v5942, %v5943
        %v5946 = vsel %vm5735, %v5938, %v5945
        %v5947 = vrot.slane %v5942, 4
        %v5949 = vshrl.u32 %v5714, 16
        %v5951 = vrot.slane %v5949, 7
        %v5952 = vshll.u32 %v5714, 16
        %v5954 = vor.u32 %v5951, %v5952
        %v5955 = vsel %vm5735, %v5947, %v5954
        %v5957 = vshrl.u32 %v5715, 16
        %v5959 = vrot.slane %v5957, 7
        %v5960 = vrot.slane %v5959, 4
        %v5962 = vshrl.u32 %v5716, 16
        %v5964 = vrot.slane %v5962, 7
        %v5965 = vshll.u32 %v5716, 16
        %v5967 = vor.u32 %v5964, %v5965
        %v5968 = vsel %vm5735, %v5960, %v5967
        %v5969 = vrot.slane %v5964, 4
        %v5971 = vshrl.u32 %v5717, 16
        %v5973 = vrot.slane %v5971, 7
        %v5974 = vshll.u32 %v5717, 16
        %v5976 = vor.u32 %v5973, %v5974
        %v5977 = vsel %vm5735, %v5969, %v5976
        %v5979 = vshrl.u32 %v5718, 16
        %v5981 = vrot.slane %v5979, 7
        %v5982 = vrot.slane %v5981, 4
        %v5984 = vshrl.u32 %v5719, 16
        %v5986 = vrot.slane %v5984, 7
        %v5987 = vshll.u32 %v5719, 16
        %v5989 = vor.u32 %v5986, %v5987
        %v5990 = vsel %vm5735, %v5982, %v5989
        %v5991 = vrot.slane %v5986, 4
        %v5993 = vshrl.u32 %v5720, 16
        %v5995 = vrot.slane %v5993, 7
        %v5996 = vshll.u32 %v5720, 16
        %v5998 = vor.u32 %v5995, %v5996
        %v5999 = vsel %vm5735, %v5991, %v5998
        %v6001 = vshrl.u32 %v5721, 16
        %v6003 = vrot.slane %v6001, 7
        %v6004 = vrot.slane %v6003, 4
        %v6006 = vshrl.u32 %v5722, 16
        %v6008 = vrot.slane %v6006, 7
        %v6009 = vshll.u32 %v5722, 16
        %v6011 = vor.u32 %v6008, %v6009
        %v6012 = vsel %vm5735, %v6004, %v6011
        %v6013 = vrot.slane %v6008, 4
        %v6015 = vshrl.u32 %v5723, 16
        %v6017 = vrot.slane %v6015, 7
        %v6018 = vshll.u32 %v5723, 16
        %v6020 = vor.u32 %v6017, %v6018
        %v6021 = vsel %vm5735, %v6013, %v6020
        %v6023 = vshrl.u32 %v5724, 16
        %v6025 = vrot.slane %v6023, 7
        %v6026 = vrot.slane %v6025, 4
        %v6028 = vshrl.u32 %v5725, 16
        %v6030 = vrot.slane %v6028, 7
        %v6031 = vshll.u32 %v5725, 16
        %v6033 = vor.u32 %v6030, %v6031
        %v6034 = vsel %vm5735, %v6026, %v6033
        %v6035 = vrot.slane %v6030, 4
        %v6037 = vshrl.u32 %v5726, 16
        %v6039 = vrot.slane %v6037, 7
        %v6040 = vshll.u32 %v5726, 16
        %v6042 = vor.u32 %v6039, %v6040
        %v6043 = vsel %vm5735, %v6035, %v6042
        %v6045 = vshrl.u32 %v5727, 16
        %v6047 = vrot.slane %v6045, 7
        %v6048 = vrot.slane %v6047, 4
        %v6050 = vshrl.u32 %v5728, 16
        %v6052 = vrot.slane %v6050, 7
        %v6053 = vshll.u32 %v5728, 16
        %v6055 = vor.u32 %v6052, %v6053
        %v6056 = vsel %vm5735, %v6048, %v6055
        %v6057 = vrot.slane %v6052, 4
        %v6059 = vshrl.u32 %v5729, 16
        %v6061 = vrot.slane %v6059, 7
        %v6062 = vshll.u32 %v5729, 16
        %v6064 = vor.u32 %v6061, %v6062
        %v6065 = vsel %vm5735, %v6057, %v6064
        %v6067 = vshrl.u32 %v5730, 16
        %v6069 = vrot.slane %v6067, 7
        %v6070 = vrot.slane %v6069, 4
        %v6072 = vshrl.u32 %v5731, 16
        %v6074 = vrot.slane %v6072, 7
        %v6075 = vshll.u32 %v5731, 16
        %v6077 = vor.u32 %v6074, %v6075
        %v6078 = vsel %vm5735, %v6070, %v6077
        %v6079 = vrot.slane %v6074, 4
        %v6081 = vshrl.u32 %v5732, 16
        %v6083 = vrot.slane %v6081, 7
        %v6084 = vshll.u32 %v5732, 16
        %v6086 = vor.u32 %v6083, %v6084
        %v6087 = vsel %vm5735, %v6079, %v6086
        %v6088 = vld [vmem:[%s3] sm:$0xf]
        %v6089 = vld [vmem:[%s3 + $0x4] sm:$0xf]
        %v6090 = vld [vmem:[%s3 + $0x8] sm:$0xf]
        %v6091 = vld [vmem:[%s3 + $0xc] sm:$0xf]
        %v6092 = vld [vmem:[%s3 + $0x10] sm:$0xf]
        %v6093 = vld [vmem:[%s3 + $0x14] sm:$0xf]
        %v6094 = vld [vmem:[%s3 + $0x18] sm:$0xf]
        %v6095 = vld [vmem:[%s3 + $0x1c] sm:$0xf]
        %v6096 = vld [vmem:[%s3 + $0x20] sm:$0xf]
        %v6097 = vld [vmem:[%s3 + $0x24] sm:$0xf]
        %v6098 = vld [vmem:[%s3 + $0x28] sm:$0xf]
        %v6099 = vld [vmem:[%s3 + $0x2c] sm:$0xf]
        %v6100 = vld [vmem:[%s3 + $0x30] sm:$0xf]
        %v6101 = vld [vmem:[%s3 + $0x34] sm:$0xf]
        %v6102 = vld [vmem:[%s3 + $0x38] sm:$0xf]
        %v6103 = vld [vmem:[%s3 + $0x3c] sm:$0xf]
        %v6104 = vunpack.c.l.b16 %v5748
        %v6105 = vunpack.c.l.b16 %v5757
        %v6106 = vunpack.c.l.b16 %v5770
        %v6107 = vunpack.c.l.b16 %v5779
        %v6108 = vunpack.c.l.b16 %v5792
        %v6109 = vunpack.c.l.b16 %v5801
        %v6110 = vunpack.c.l.b16 %v5814
        %v6111 = vunpack.c.l.b16 %v5823
        %v6112 = vunpack.c.l.b16 %v5836
        %v6113 = vunpack.c.l.b16 %v5845
        %v6114 = vunpack.c.l.b16 %v5858
        %v6115 = vunpack.c.l.b16 %v5867
        %v6116 = vunpack.c.l.b16 %v5880
        %v6117 = vunpack.c.l.b16 %v5889
        %v6118 = vunpack.c.l.b16 %v5902
        %v6119 = vunpack.c.l.b16 %v5911
        %v6120 = vunpack.c.l.b16 %v5924
        %v6121 = vunpack.c.l.b16 %v5933
        %v6122 = vunpack.c.l.b16 %v5946
        %v6123 = vunpack.c.l.b16 %v5955
        %v6124 = vunpack.c.l.b16 %v5968
        %v6125 = vunpack.c.l.b16 %v5977
        %v6126 = vunpack.c.l.b16 %v5990
        %v6127 = vunpack.c.l.b16 %v5999
        %v6128 = vunpack.c.l.b16 %v6012
        %v6129 = vunpack.c.l.b16 %v6021
        %v6130 = vunpack.c.l.b16 %v6034
        %v6131 = vunpack.c.l.b16 %v6043
        %v6132 = vunpack.c.l.b16 %v6056
        %v6133 = vunpack.c.l.b16 %v6065
        %v6134 = vunpack.c.l.b16 %v6078
        %v6135 = vunpack.c.l.b16 %v6087
        %v6136 = vpack.c.b16 %v6105, %v6104
        %v6137 = vpack.c.b16 %v6107, %v6106
        %v6138 = vpack.c.b16 %v6109, %v6108
        %v6139 = vpack.c.b16 %v6111, %v6110
        %v6140 = vpack.c.b16 %v6113, %v6112
        %v6141 = vpack.c.b16 %v6115, %v6114
        %v6142 = vpack.c.b16 %v6117, %v6116
        %v6143 = vpack.c.b16 %v6119, %v6118
        %v6144 = vpack.c.b16 %v6121, %v6120
        %v6145 = vpack.c.b16 %v6123, %v6122
        %v6146 = vpack.c.b16 %v6125, %v6124
        %v6147 = vpack.c.b16 %v6127, %v6126
        %v6148 = vpack.c.b16 %v6129, %v6128
        %v6149 = vpack.c.b16 %v6131, %v6130
        %v6150 = vpack.c.b16 %v6133, %v6132
        %v6151 = vpack.c.b16 %v6135, %v6134
        %v6184 = vunpack.c.l.b16 %v6088
        %v6185 = vunpack.c.l.b16 %v6089
        %v6186 = vunpack.c.l.b16 %v6090
        %v6187 = vunpack.c.l.b16 %v6091
        %v6188 = vunpack.c.l.b16 %v6092
        %v6189 = vunpack.c.l.b16 %v6093
        %v6190 = vunpack.c.l.b16 %v6094
        %v6191 = vunpack.c.l.b16 %v6095
        %v6192 = vunpack.c.l.b16 %v6096
        %v6193 = vunpack.c.l.b16 %v6097
        %v6194 = vunpack.c.l.b16 %v6098
        %v6195 = vunpack.c.l.b16 %v6099
        %v6196 = vunpack.c.l.b16 %v6100
        %v6197 = vunpack.c.l.b16 %v6101
        %v6198 = vunpack.c.l.b16 %v6102
        %v6199 = vunpack.c.l.b16 %v6103
        %v6200 = vpack.c.b16 %v6185, %v6184
        %v6201 = vpack.c.b16 %v6187, %v6186
        %v6202 = vpack.c.b16 %v6189, %v6188
        %v6203 = vpack.c.b16 %v6191, %v6190
        %v6204 = vpack.c.b16 %v6193, %v6192
        %v6205 = vpack.c.b16 %v6195, %v6194
        %v6206 = vpack.c.b16 %v6197, %v6196
        %v6207 = vpack.c.b16 %v6199, %v6198
        %6216 = vmatprep.subr.bf16.mxu0 0
        %6217 = vmatpush1.bf16.msra.mxu0 %v6200
        %6218 = vmatprep.subr.bf16.mxu0 0
        %6219 = vmatpush1.bf16.msra.mxu0 %v6201
        %6220 = vmatprep.subr.bf16.mxu0 0
        %6221 = vmatpush1.bf16.msra.mxu0 %v6202
        %6222 = vmatprep.subr.bf16.mxu0 0
        %6223 = vmatpush1.bf16.msra.mxu0 %v6203
        %6224 = vmatprep.subr.bf16.mxu0 0
        %6225 = vmatpush1.bf16.msra.mxu0 %v6204
        %6226 = vmatprep.subr.bf16.mxu0 0
        %6227 = vmatpush1.bf16.msra.mxu0 %v6205
        %6228 = vmatprep.subr.bf16.mxu0 0
        %6229 = vmatpush1.bf16.msra.mxu0 %v6206
        %6230 = vmatprep.subr.bf16.mxu0 0
        %6231 = vmatpush1.bf16.msra.mxu0 %v6207
        %6232 = vmatprep.subr.bf16.mxu0 0
        %6233 = vmatpush1.bf16.msra.mxu0 0
        %6234 = vmatprep.subr.bf16.mxu0 0
        %6235 = vmatpush1.bf16.msra.mxu0 0
        %6236 = vmatprep.subr.bf16.mxu0 0
        %6237 = vmatpush1.bf16.msra.mxu0 0
        %6238 = vmatprep.subr.bf16.mxu0 0
        %6239 = vmatpush1.bf16.msra.mxu0 0
        %6240 = vmatprep.subr.bf16.mxu0 0
        %6241 = vmatpush1.bf16.msra.mxu0 0
        %6242 = vmatprep.subr.bf16.mxu0 0
        %6243 = vmatpush1.bf16.msra.mxu0 0
        %6244 = vmatprep.subr.bf16.mxu0 0
        %6245 = vmatpush1.bf16.msra.mxu0 0
        %6246 = vmatprep.subr.bf16.mxu0 0
        %6247 = vmatpush1.bf16.msra.mxu0 0
        %6248 = vmatprep.mubr.bf16.mxu0 0
        %6249 = vmatmul.mubr.bf16.gmra.mrb[0].mxu0 %v6136
        %v6250 = vpop.f32.mrb[0].mxu0
        %v6251 = vadd.f32 0.0, %v6250
        %v6252 = vpop.f32.mrb[0].mxu0
        %v6253 = vpop.f32.mrb[0].mxu0
        %v6254 = vadd.f32 0.0, %v6253
        %v6255 = vpop.f32.mrb[0].mxu0
        %6256 = vmatprep.mubr.bf16.mxu0 0
        %6257 = vmatmul.mubr.bf16.gmra.mrb[0].mxu0 %v6137
        %v6258 = vpop.f32.mrb[0].mxu0
        %v6259 = vadd.f32 0.0, %v6258
        %v6260 = vpop.f32.mrb[0].mxu0
        %v6261 = vpop.f32.mrb[0].mxu0
        %v6262 = vadd.f32 0.0, %v6261
        %v6263 = vpop.f32.mrb[0].mxu0
        %6264 = vmatprep.mubr.bf16.mxu0 0
        %6265 = vmatmul.mubr.bf16.gmra.mrb[0].mxu0 %v6138
        %v6266 = vpop.f32.mrb[0].mxu0
        %v6267 = vadd.f32 0.0, %v6266
        %v6268 = vpop.f32.mrb[0].mxu0
        %v6269 = vpop.f32.mrb[0].mxu0
        %v6270 = vadd.f32 0.0, %v6269
        %v6271 = vpop.f32.mrb[0].mxu0
        %6272 = vmatprep.mubr.bf16.mxu0 0
        %6273 = vmatmul.mubr.bf16.gmra.mrb[0].mxu0 %v6139
        %v6274 = vpop.f32.mrb[0].mxu0
        %v6275 = vadd.f32 0.0, %v6274
        %v6276 = vpop.f32.mrb[0].mxu0
        %v6277 = vpop.f32.mrb[0].mxu0
        %v6278 = vadd.f32 0.0, %v6277
        %v6279 = vpop.f32.mrb[0].mxu0
        %6280 = vmatprep.mubr.bf16.mxu0 0
        %6281 = vmatmul.mubr.bf16.gmra.mrb[0].mxu0 %v6140
        %v6282 = vpop.f32.mrb[0].mxu0
        %v6283 = vadd.f32 0.0, %v6282
        %v6284 = vpop.f32.mrb[0].mxu0
        %v6285 = vpop.f32.mrb[0].mxu0
        %v6286 = vadd.f32 0.0, %v6285
        %v6287 = vpop.f32.mrb[0].mxu0
        %6288 = vmatprep.mubr.bf16.mxu0 0
        %6289 = vmatmul.mubr.bf16.gmra.mrb[0].mxu0 %v6141
        %v6290 = vpop.f32.mrb[0].mxu0
        %v6291 = vadd.f32 0.0, %v6290
        %v6292 = vpop.f32.mrb[0].mxu0
        %v6293 = vpop.f32.mrb[0].mxu0
        %v6294 = vadd.f32 0.0, %v6293
        %v6295 = vpop.f32.mrb[0].mxu0
        %6296 = vmatprep.mubr.bf16.mxu0 0
        %6297 = vmatmul.mubr.bf16.gmra.mrb[0].mxu0 %v6142
        %v6298 = vpop.f32.mrb[0].mxu0
        %v6299 = vadd.f32 0.0, %v6298
        %v6300 = vpop.f32.mrb[0].mxu0
        %v6301 = vpop.f32.mrb[0].mxu0
        %v6302 = vadd.f32 0.0, %v6301
        %v6303 = vpop.f32.mrb[0].mxu0
        %6304 = vmatprep.mubr.bf16.mxu0 0
        %6305 = vmatmul.mubr.bf16.gmra.mrb[0].mxu0 %v6143
        %v6306 = vpop.f32.mrb[0].mxu0
        %v6307 = vadd.f32 0.0, %v6306
        %v6308 = vpop.f32.mrb[0].mxu0
        %v6309 = vpop.f32.mrb[0].mxu0
        %v6310 = vadd.f32 0.0, %v6309
        %v6311 = vpop.f32.mrb[0].mxu0
        %6312 = vmatprep.mubr.bf16.mxu0 0
        %6313 = vmatmul.mubr.bf16.gmra.mrb[0].mxu0 %v6144
        %v6314 = vpop.f32.mrb[0].mxu0
        %v6315 = vadd.f32 0.0, %v6314
        %v6316 = vpop.f32.mrb[0].mxu0
        %v6317 = vpop.f32.mrb[0].mxu0
        %v6318 = vadd.f32 0.0, %v6317
        %v6319 = vpop.f32.mrb[0].mxu0
        %6320 = vmatprep.mubr.bf16.mxu0 0
        %6321 = vmatmul.mubr.bf16.gmra.mrb[0].mxu0 %v6145
        %v6322 = vpop.f32.mrb[0].mxu0
        %v6323 = vadd.f32 0.0, %v6322
        %v6324 = vpop.f32.mrb[0].mxu0
        %v6325 = vpop.f32.mrb[0].mxu0
        %v6326 = vadd.f32 0.0, %v6325
        %v6327 = vpop.f32.mrb[0].mxu0
        %6328 = vmatprep.mubr.bf16.mxu0 0
        %6329 = vmatmul.mubr.bf16.gmra.mrb[0].mxu0 %v6146
        %v6330 = vpop.f32.mrb[0].mxu0
        %v6331 = vadd.f32 0.0, %v6330
        %v6332 = vpop.f32.mrb[0].mxu0
        %v6333 = vpop.f32.mrb[0].mxu0
        %v6334 = vadd.f32 0.0, %v6333
        %v6335 = vpop.f32.mrb[0].mxu0
        %6336 = vmatprep.mubr.bf16.mxu0 0
        %6337 = vmatmul.mubr.bf16.gmra.mrb[0].mxu0 %v6147
        %v6338 = vpop.f32.mrb[0].mxu0
        %v6339 = vadd.f32 0.0, %v6338
        %v6340 = vpop.f32.mrb[0].mxu0
        %v6341 = vpop.f32.mrb[0].mxu0
        %v6342 = vadd.f32 0.0, %v6341
        %v6343 = vpop.f32.mrb[0].mxu0
        %6344 = vmatprep.mubr.bf16.mxu0 0
        %6345 = vmatmul.mubr.bf16.gmra.mrb[0].mxu0 %v6148
        %v6346 = vpop.f32.mrb[0].mxu0
        %v6347 = vadd.f32 0.0, %v6346
        %v6348 = vpop.f32.mrb[0].mxu0
        %v6349 = vpop.f32.mrb[0].mxu0
        %v6350 = vadd.f32 0.0, %v6349
        %v6351 = vpop.f32.mrb[0].mxu0
        %6352 = vmatprep.mubr.bf16.mxu0 0
        %6353 = vmatmul.mubr.bf16.gmra.mrb[0].mxu0 %v6149
        %v6354 = vpop.f32.mrb[0].mxu0
        %v6355 = vadd.f32 0.0, %v6354
        %v6356 = vpop.f32.mrb[0].mxu0
        %v6357 = vpop.f32.mrb[0].mxu0
        %v6358 = vadd.f32 0.0, %v6357
        %v6359 = vpop.f32.mrb[0].mxu0
        %6360 = vmatprep.mubr.bf16.mxu0 0
        %6361 = vmatmul.mubr.bf16.gmra.mrb[0].mxu0 %v6150
        %v6362 = vpop.f32.mrb[0].mxu0
        %v6363 = vadd.f32 0.0, %v6362
        %v6364 = vpop.f32.mrb[0].mxu0
        %v6365 = vpop.f32.mrb[0].mxu0
        %v6366 = vadd.f32 0.0, %v6365
        %v6367 = vpop.f32.mrb[0].mxu0
        %6368 = vmatprep.mubr.bf16.mxu0 0
        %6369 = vmatmul.mubr.bf16.gmra.mrb[0].mxu0 %v6151
        %v6370 = vpop.f32.mrb[0].mxu0
        %v6371 = vadd.f32 0.0, %v6370
        %v6372 = vpop.f32.mrb[0].mxu0
        %v6373 = vpop.f32.mrb[0].mxu0
        %v6374 = vadd.f32 0.0, %v6373
        %v6375 = vpop.f32.mrb[0].mxu0
        %6376 = vdwg.mxu0
        %v6377 = vadd.f32 %v5653, %v6251
        %v6378 = vadd.f32 %v5654, %v6254
        %v6379 = vadd.f32 %v5655, %v6259
        %v6380 = vadd.f32 %v5656, %v6262
        %v6381 = vadd.f32 %v5657, %v6267
        %v6382 = vadd.f32 %v5658, %v6270
        %v6383 = vadd.f32 %v5659, %v6275
        %v6384 = vadd.f32 %v5660, %v6278
        %v6385 = vadd.f32 %v5661, %v6283
        %v6386 = vadd.f32 %v5662, %v6286
        %v6387 = vadd.f32 %v5663, %v6291
        %v6388 = vadd.f32 %v5664, %v6294
        %v6389 = vadd.f32 %v5665, %v6299
        %v6390 = vadd.f32 %v5666, %v6302
        %v6391 = vadd.f32 %v5667, %v6307
        %v6392 = vadd.f32 %v5668, %v6310
        %v6393 = vadd.f32 %v5669, %v6315
        %v6394 = vadd.f32 %v5670, %v6318
        %v6395 = vadd.f32 %v5671, %v6323
        %v6396 = vadd.f32 %v5672, %v6326
        %v6397 = vadd.f32 %v5673, %v6331
        %v6398 = vadd.f32 %v5674, %v6334
        %v6399 = vadd.f32 %v5675, %v6339
        %v6400 = vadd.f32 %v5676, %v6342
        %v6401 = vadd.f32 %v5677, %v6347
        %v6402 = vadd.f32 %v5678, %v6350
        %v6403 = vadd.f32 %v5679, %v6355
        %v6404 = vadd.f32 %v5680, %v6358
        %v6405 = vadd.f32 %v5681, %v6363
        %v6406 = vadd.f32 %v5682, %v6366
        %v6407 = vadd.f32 %v5683, %v6371
        %v6408 = vadd.f32 %v5684, %v6374
        %s6409 = scalar_lea.vmem %s3, 64
        %v6410 = vld [vmem:[%s6409] sm:$0xf]
        %v6411 = vld [vmem:[%s6409 + $0x4] sm:$0xf]
        %v6412 = vld [vmem:[%s6409 + $0x8] sm:$0xf]
        %v6413 = vld [vmem:[%s6409 + $0xc] sm:$0xf]
        %v6414 = vld [vmem:[%s6409 + $0x10] sm:$0xf]
        %v6415 = vld [vmem:[%s6409 + $0x14] sm:$0xf]
        %v6416 = vld [vmem:[%s6409 + $0x18] sm:$0xf]
        %v6417 = vld [vmem:[%s6409 + $0x1c] sm:$0xf]
        %v6418 = vld [vmem:[%s6409 + $0x20] sm:$0xf]
        %v6419 = vld [vmem:[%s6409 + $0x24] sm:$0xf]
        %v6420 = vld [vmem:[%s6409 + $0x28] sm:$0xf]
        %v6421 = vld [vmem:[%s6409 + $0x2c] sm:$0xf]
        %v6422 = vld [vmem:[%s6409 + $0x30] sm:$0xf]
        %v6423 = vld [vmem:[%s6409 + $0x34] sm:$0xf]
        %v6424 = vld [vmem:[%s6409 + $0x38] sm:$0xf]
        %v6425 = vld [vmem:[%s6409 + $0x3c] sm:$0xf]
        %v6458 = vunpack.c.l.b16 %v5686
        %v6459 = vunpack.c.l.b16 %v5687
        %v6460 = vunpack.c.l.b16 %v5689
        %v6461 = vunpack.c.l.b16 %v5690
        %v6462 = vunpack.c.l.b16 %v5692
        %v6463 = vunpack.c.l.b16 %v5693
        %v6464 = vunpack.c.l.b16 %v5695
        %v6465 = vunpack.c.l.b16 %v5696
        %v6466 = vunpack.c.l.b16 %v5698
        %v6467 = vunpack.c.l.b16 %v5699
        %v6468 = vunpack.c.l.b16 %v5701
        %v6469 = vunpack.c.l.b16 %v5702
        %v6470 = vunpack.c.l.b16 %v5704
        %v6471 = vunpack.c.l.b16 %v5705
        %v6472 = vunpack.c.l.b16 %v5707
        %v6473 = vunpack.c.l.b16 %v5708
        %v6474 = vunpack.c.l.b16 %v5710
        %v6475 = vunpack.c.l.b16 %v5711
        %v6476 = vunpack.c.l.b16 %v5713
        %v6477 = vunpack.c.l.b16 %v5714
        %v6478 = vunpack.c.l.b16 %v5716
        %v6479 = vunpack.c.l.b16 %v5717
        %v6480 = vunpack.c.l.b16 %v5719
        %v6481 = vunpack.c.l.b16 %v5720
        %v6482 = vunpack.c.l.b16 %v5722
        %v6483 = vunpack.c.l.b16 %v5723
        %v6484 = vunpack.c.l.b16 %v5725
        %v6485 = vunpack.c.l.b16 %v5726
        %v6486 = vunpack.c.l.b16 %v5728
        %v6487 = vunpack.c.l.b16 %v5729
        %v6488 = vunpack.c.l.b16 %v5731
        %v6489 = vunpack.c.l.b16 %v5732
        %v6490 = vpack.c.b16 %v6459, %v6458
        %v6491 = vpack.c.b16 %v6461, %v6460
        %v6492 = vpack.c.b16 %v6463, %v6462
        %v6493 = vpack.c.b16 %v6465, %v6464
        %v6494 = vpack.c.b16 %v6467, %v6466
        %v6495 = vpack.c.b16 %v6469, %v6468
        %v6496 = vpack.c.b16 %v6471, %v6470
        %v6497 = vpack.c.b16 %v6473, %v6472
        %v6498 = vpack.c.b16 %v6475, %v6474
        %v6499 = vpack.c.b16 %v6477, %v6476
        %v6500 = vpack.c.b16 %v6479, %v6478
        %v6501 = vpack.c.b16 %v6481, %v6480
        %v6502 = vpack.c.b16 %v6483, %v6482
        %v6503 = vpack.c.b16 %v6485, %v6484
        %v6504 = vpack.c.b16 %v6487, %v6486
        %v6505 = vpack.c.b16 %v6489, %v6488
        %v6538 = vunpack.c.l.b16 %v6410
        %v6539 = vunpack.c.l.b16 %v6411
        %v6540 = vunpack.c.l.b16 %v6412
        %v6541 = vunpack.c.l.b16 %v6413
        %v6542 = vunpack.c.l.b16 %v6414
        %v6543 = vunpack.c.l.b16 %v6415
        %v6544 = vunpack.c.l.b16 %v6416
        %v6545 = vunpack.c.l.b16 %v6417
        %v6546 = vunpack.c.l.b16 %v6418
        %v6547 = vunpack.c.l.b16 %v6419
        %v6548 = vunpack.c.l.b16 %v6420
        %v6549 = vunpack.c.l.b16 %v6421
        %v6550 = vunpack.c.l.b16 %v6422
        %v6551 = vunpack.c.l.b16 %v6423
        %v6552 = vunpack.c.l.b16 %v6424
        %v6553 = vunpack.c.l.b16 %v6425
        %v6554 = vpack.c.b16 %v6539, %v6538
        %v6555 = vpack.c.b16 %v6541, %v6540
        %v6556 = vpack.c.b16 %v6543, %v6542
        %v6557 = vpack.c.b16 %v6545, %v6544
        %v6558 = vpack.c.b16 %v6547, %v6546
        %v6559 = vpack.c.b16 %v6549, %v6548
        %v6560 = vpack.c.b16 %v6551, %v6550
        %v6561 = vpack.c.b16 %v6553, %v6552
        %6570 = vmatprep.subr.bf16.mxu0 0
        %6571 = vmatpush1.bf16.msra.mxu0 %v6554
        %6572 = vmatprep.subr.bf16.mxu0 0
        %6573 = vmatpush1.bf16.msra.mxu0 %v6555
        %6574 = vmatprep.subr.bf16.mxu0 0
        %6575 = vmatpush1.bf16.msra.mxu0 %v6556
        %6576 = vmatprep.subr.bf16.mxu0 0
        %6577 = vmatpush1.bf16.msra.mxu0 %v6557
        %6578 = vmatprep.subr.bf16.mxu0 0
        %6579 = vmatpush1.bf16.msra.mxu0 %v6558
        %6580 = vmatprep.subr.bf16.mxu0 0
        %6581 = vmatpush1.bf16.msra.mxu0 %v6559
        %6582 = vmatprep.subr.bf16.mxu0 0
        %6583 = vmatpush1.bf16.msra.mxu0 %v6560
        %6584 = vmatprep.subr.bf16.mxu0 0
        %6585 = vmatpush1.bf16.msra.mxu0 %v6561
        %6586 = vmatprep.subr.bf16.mxu0 0
        %6587 = vmatpush1.bf16.msra.mxu0 0
        %6588 = vmatprep.subr.bf16.mxu0 0
        %6589 = vmatpush1.bf16.msra.mxu0 0
        %6590 = vmatprep.subr.bf16.mxu0 0
        %6591 = vmatpush1.bf16.msra.mxu0 0
        %6592 = vmatprep.subr.bf16.mxu0 0
        %6593 = vmatpush1.bf16.msra.mxu0 0
        %6594 = vmatprep.subr.bf16.mxu0 0
        %6595 = vmatpush1.bf16.msra.mxu0 0
        %6596 = vmatprep.subr.bf16.mxu0 0
        %6597 = vmatpush1.bf16.msra.mxu0 0
        %6598 = vmatprep.subr.bf16.mxu0 0
        %6599 = vmatpush1.bf16.msra.mxu0 0
        %6600 = vmatprep.subr.bf16.mxu0 0
        %6601 = vmatpush1.bf16.msra.mxu0 0
        %6602 = vmatprep.mubr.bf16.mxu0 0
        %6603 = vmatmul.mubr.bf16.gmra.mrb[0].mxu0 %v6490
        %v6604 = vpop.f32.mrb[0].mxu0
        %v6605 = vadd.f32 0.0, %v6604
        %v6606 = vpop.f32.mrb[0].mxu0
        %v6607 = vpop.f32.mrb[0].mxu0
        %v6608 = vadd.f32 0.0, %v6607
        %v6609 = vpop.f32.mrb[0].mxu0
        %6610 = vmatprep.mubr.bf16.mxu0 0
        %6611 = vmatmul.mubr.bf16.gmra.mrb[0].mxu0 %v6491
        %v6612 = vpop.f32.mrb[0].mxu0
        %v6613 = vadd.f32 0.0, %v6612
        %v6614 = vpop.f32.mrb[0].mxu0
        %v6615 = vpop.f32.mrb[0].mxu0
        %v6616 = vadd.f32 0.0, %v6615
        %v6617 = vpop.f32.mrb[0].mxu0
        %6618 = vmatprep.mubr.bf16.mxu0 0
        %6619 = vmatmul.mubr.bf16.gmra.mrb[0].mxu0 %v6492
        %v6620 = vpop.f32.mrb[0].mxu0
        %v6621 = vadd.f32 0.0, %v6620
        %v6622 = vpop.f32.mrb[0].mxu0
        %v6623 = vpop.f32.mrb[0].mxu0
        %v6624 = vadd.f32 0.0, %v6623
        %v6625 = vpop.f32.mrb[0].mxu0
        %6626 = vmatprep.mubr.bf16.mxu0 0
        %6627 = vmatmul.mubr.bf16.gmra.mrb[0].mxu0 %v6493
        %v6628 = vpop.f32.mrb[0].mxu0
        %v6629 = vadd.f32 0.0, %v6628
        %v6630 = vpop.f32.mrb[0].mxu0
        %v6631 = vpop.f32.mrb[0].mxu0
        %v6632 = vadd.f32 0.0, %v6631
        %v6633 = vpop.f32.mrb[0].mxu0
        %6634 = vmatprep.mubr.bf16.mxu0 0
        %6635 = vmatmul.mubr.bf16.gmra.mrb[0].mxu0 %v6494
        %v6636 = vpop.f32.mrb[0].mxu0
        %v6637 = vadd.f32 0.0, %v6636
        %v6638 = vpop.f32.mrb[0].mxu0
        %v6639 = vpop.f32.mrb[0].mxu0
        %v6640 = vadd.f32 0.0, %v6639
        %v6641 = vpop.f32.mrb[0].mxu0
        %6642 = vmatprep.mubr.bf16.mxu0 0
        %6643 = vmatmul.mubr.bf16.gmra.mrb[0].mxu0 %v6495
        %v6644 = vpop.f32.mrb[0].mxu0
        %v6645 = vadd.f32 0.0, %v6644
        %v6646 = vpop.f32.mrb[0].mxu0
        %v6647 = vpop.f32.mrb[0].mxu0
        %v6648 = vadd.f32 0.0, %v6647
        %v6649 = vpop.f32.mrb[0].mxu0
        %6650 = vmatprep.mubr.bf16.mxu0 0
        %6651 = vmatmul.mubr.bf16.gmra.mrb[0].mxu0 %v6496
        %v6652 = vpop.f32.mrb[0].mxu0
        %v6653 = vadd.f32 0.0, %v6652
        %v6654 = vpop.f32.mrb[0].mxu0
        %v6655 = vpop.f32.mrb[0].mxu0
        %v6656 = vadd.f32 0.0, %v6655
        %v6657 = vpop.f32.mrb[0].mxu0
        %6658 = vmatprep.mubr.bf16.mxu0 0
        %6659 = vmatmul.mubr.bf16.gmra.mrb[0].mxu0 %v6497
        %v6660 = vpop.f32.mrb[0].mxu0
        %v6661 = vadd.f32 0.0, %v6660
        %v6662 = vpop.f32.mrb[0].mxu0
        %v6663 = vpop.f32.mrb[0].mxu0
        %v6664 = vadd.f32 0.0, %v6663
        %v6665 = vpop.f32.mrb[0].mxu0
        %6666 = vmatprep.mubr.bf16.mxu0 0
        %6667 = vmatmul.mubr.bf16.gmra.mrb[0].mxu0 %v6498
        %v6668 = vpop.f32.mrb[0].mxu0
        %v6669 = vadd.f32 0.0, %v6668
        %v6670 = vpop.f32.mrb[0].mxu0
        %v6671 = vpop.f32.mrb[0].mxu0
        %v6672 = vadd.f32 0.0, %v6671
        %v6673 = vpop.f32.mrb[0].mxu0
        %6674 = vmatprep.mubr.bf16.mxu0 0
        %6675 = vmatmul.mubr.bf16.gmra.mrb[0].mxu0 %v6499
        %v6676 = vpop.f32.mrb[0].mxu0
        %v6677 = vadd.f32 0.0, %v6676
        %v6678 = vpop.f32.mrb[0].mxu0
        %v6679 = vpop.f32.mrb[0].mxu0
        %v6680 = vadd.f32 0.0, %v6679
        %v6681 = vpop.f32.mrb[0].mxu0
        %6682 = vmatprep.mubr.bf16.mxu0 0
        %6683 = vmatmul.mubr.bf16.gmra.mrb[0].mxu0 %v6500
        %v6684 = vpop.f32.mrb[0].mxu0
        %v6685 = vadd.f32 0.0, %v6684
        %v6686 = vpop.f32.mrb[0].mxu0
        %v6687 = vpop.f32.mrb[0].mxu0
        %v6688 = vadd.f32 0.0, %v6687
        %v6689 = vpop.f32.mrb[0].mxu0
        %6690 = vmatprep.mubr.bf16.mxu0 0
        %6691 = vmatmul.mubr.bf16.gmra.mrb[0].mxu0 %v6501
        %v6692 = vpop.f32.mrb[0].mxu0
        %v6693 = vadd.f32 0.0, %v6692
        %v6694 = vpop.f32.mrb[0].mxu0
        %v6695 = vpop.f32.mrb[0].mxu0
        %v6696 = vadd.f32 0.0, %v6695
        %v6697 = vpop.f32.mrb[0].mxu0
        %6698 = vmatprep.mubr.bf16.mxu0 0
        %6699 = vmatmul.mubr.bf16.gmra.mrb[0].mxu0 %v6502
        %v6700 = vpop.f32.mrb[0].mxu0
        %v6701 = vadd.f32 0.0, %v6700
        %v6702 = vpop.f32.mrb[0].mxu0
        %v6703 = vpop.f32.mrb[0].mxu0
        %v6704 = vadd.f32 0.0, %v6703
        %v6705 = vpop.f32.mrb[0].mxu0
        %6706 = vmatprep.mubr.bf16.mxu0 0
        %6707 = vmatmul.mubr.bf16.gmra.mrb[0].mxu0 %v6503
        %v6708 = vpop.f32.mrb[0].mxu0
        %v6709 = vadd.f32 0.0, %v6708
        %v6710 = vpop.f32.mrb[0].mxu0
        %v6711 = vpop.f32.mrb[0].mxu0
        %v6712 = vadd.f32 0.0, %v6711
        %v6713 = vpop.f32.mrb[0].mxu0
        %6714 = vmatprep.mubr.bf16.mxu0 0
        %6715 = vmatmul.mubr.bf16.gmra.mrb[0].mxu0 %v6504
        %v6716 = vpop.f32.mrb[0].mxu0
        %v6717 = vadd.f32 0.0, %v6716
        %v6718 = vpop.f32.mrb[0].mxu0
        %v6719 = vpop.f32.mrb[0].mxu0
        %v6720 = vadd.f32 0.0, %v6719
        %v6721 = vpop.f32.mrb[0].mxu0
        %6722 = vmatprep.mubr.bf16.mxu0 0
        %6723 = vmatmul.mubr.bf16.gmra.mrb[0].mxu0 %v6505
        %v6724 = vpop.f32.mrb[0].mxu0
        %v6725 = vadd.f32 0.0, %v6724
        %v6726 = vpop.f32.mrb[0].mxu0
        %v6727 = vpop.f32.mrb[0].mxu0
        %v6728 = vadd.f32 0.0, %v6727
        %v6729 = vpop.f32.mrb[0].mxu0
        %6730 = vdwg.mxu0
        %v6731 = vadd.f32 %v6377, %v6605
        %v6732 = vadd.f32 %v6378, %v6608
        %v6733 = vadd.f32 %v6379, %v6613
        %v6734 = vadd.f32 %v6380, %v6616
        %v6735 = vadd.f32 %v6381, %v6621
        %v6736 = vadd.f32 %v6382, %v6624
        %v6737 = vadd.f32 %v6383, %v6629
        %v6738 = vadd.f32 %v6384, %v6632
        %v6739 = vadd.f32 %v6385, %v6637
        %v6740 = vadd.f32 %v6386, %v6640
        %v6741 = vadd.f32 %v6387, %v6645
        %v6742 = vadd.f32 %v6388, %v6648
        %v6743 = vadd.f32 %v6389, %v6653
        %v6744 = vadd.f32 %v6390, %v6656
        %v6745 = vadd.f32 %v6391, %v6661
        %v6746 = vadd.f32 %v6392, %v6664
        %v6747 = vadd.f32 %v6393, %v6669
        %v6748 = vadd.f32 %v6394, %v6672
        %v6749 = vadd.f32 %v6395, %v6677
        %v6750 = vadd.f32 %v6396, %v6680
        %v6751 = vadd.f32 %v6397, %v6685
        %v6752 = vadd.f32 %v6398, %v6688
        %v6753 = vadd.f32 %v6399, %v6693
        %v6754 = vadd.f32 %v6400, %v6696
        %v6755 = vadd.f32 %v6401, %v6701
        %v6756 = vadd.f32 %v6402, %v6704
        %v6757 = vadd.f32 %v6403, %v6709
        %v6758 = vadd.f32 %v6404, %v6712
        %v6759 = vadd.f32 %v6405, %v6717
        %v6760 = vadd.f32 %v6406, %v6720
        %v6761 = vadd.f32 %v6407, %v6725
        %v6762 = vadd.f32 %v6408, %v6728
        %v6763 = vld [vmem:[#allocation2 + $0x8] sm:$0xf]
        %v6764 = vld [vmem:[#allocation2 + $0xc] sm:$0xf]
        %v6765 = vld [vmem:[#allocation2 + $0x10] sm:$0x1]
        %v6766 = vld [vmem:[#allocation2 + $0x1c] sm:$0xf]
        %v6767 = vld [vmem:[#allocation2 + $0x20] sm:$0xf]
        %v6768 = vld [vmem:[#allocation2 + $0x24] sm:$0x1]
        %v6769 = vld [vmem:[#allocation2 + $0x30] sm:$0xf]
        %v6770 = vld [vmem:[#allocation2 + $0x34] sm:$0xf]
        %v6771 = vld [vmem:[#allocation2 + $0x38] sm:$0x1]
        %v6772 = vld [vmem:[#allocation2 + $0x44] sm:$0xf]
        %v6773 = vld [vmem:[#allocation2 + $0x48] sm:$0xf]
        %v6774 = vld [vmem:[#allocation2 + $0x4c] sm:$0x1]
        %v6775 = vld [vmem:[#allocation2 + $0x58] sm:$0xf]
        %v6776 = vld [vmem:[#allocation2 + $0x5c] sm:$0xf]
        %v6777 = vld [vmem:[#allocation2 + $0x60] sm:$0x1]
        %v6778 = vld [vmem:[#allocation2 + $0x6c] sm:$0xf]
        %v6779 = vld [vmem:[#allocation2 + $0x70] sm:$0xf]
        %v6780 = vld [vmem:[#allocation2 + $0x74] sm:$0x1]
        %v6781 = vld [vmem:[#allocation2 + $0x80] sm:$0xf]
        %v6782 = vld [vmem:[#allocation2 + $0x84] sm:$0xf]
        %v6783 = vld [vmem:[#allocation2 + $0x88] sm:$0x1]
        %v6784 = vld [vmem:[#allocation2 + $0x94] sm:$0xf]
        %v6785 = vld [vmem:[#allocation2 + $0x98] sm:$0xf]
        %v6786 = vld [vmem:[#allocation2 + $0x9c] sm:$0x1]
        %v6787 = vld [vmem:[#allocation2 + $0xa8] sm:$0xf]
        %v6788 = vld [vmem:[#allocation2 + $0xac] sm:$0xf]
        %v6789 = vld [vmem:[#allocation2 + $0xb0] sm:$0x1]
        %v6790 = vld [vmem:[#allocation2 + $0xbc] sm:$0xf]
        %v6791 = vld [vmem:[#allocation2 + $0xc0] sm:$0xf]
        %v6792 = vld [vmem:[#allocation2 + $0xc4] sm:$0x1]
        %v6793 = vld [vmem:[#allocation2 + $0xd0] sm:$0xf]
        %v6794 = vld [vmem:[#allocation2 + $0xd4] sm:$0xf]
        %v6795 = vld [vmem:[#allocation2 + $0xd8] sm:$0x1]
        %v6796 = vld [vmem:[#allocation2 + $0xe4] sm:$0xf]
        %v6797 = vld [vmem:[#allocation2 + $0xe8] sm:$0xf]
        %v6798 = vld [vmem:[#allocation2 + $0xec] sm:$0x1]
        %v6799 = vld [vmem:[#allocation2 + $0xf8] sm:$0xf]
        %v6800 = vld [vmem:[#allocation2 + $0xfc] sm:$0xf]
        %v6801 = vld [vmem:[#allocation2 + $0x100] sm:$0x1]
        %v6802 = vld [vmem:[#allocation2 + $0x10c] sm:$0xf]
        %v6803 = vld [vmem:[#allocation2 + $0x110] sm:$0xf]
        %v6804 = vld [vmem:[#allocation2 + $0x114] sm:$0x1]
        %v6805 = vld [vmem:[#allocation2 + $0x120] sm:$0xf]
        %v6806 = vld [vmem:[#allocation2 + $0x124] sm:$0xf]
        %v6807 = vld [vmem:[#allocation2 + $0x128] sm:$0x1]
        %v6808 = vld [vmem:[#allocation2 + $0x134] sm:$0xf]
        %v6809 = vld [vmem:[#allocation2 + $0x138] sm:$0xf]
        %v6810 = vld [vmem:[#allocation2 + $0x13c] sm:$0x1]
        %v6812 = vshrl.u32 %v6763, 16
        %v6814 = vrot.slane %v6812, 4
        %v6815 = vshll.u32 %v6763, 16
        %v6817 = vrot.slane %v6815, 5
        %v6818 = vor.u32 %v6814, %v6817
        %v6819 = vrot.slane %v6818, 4
        %v6821 = vshll.u32 %v6764, 16
        %v6823 = vrot.slane %v6821, 5
        %v6824 = vsel %vm820, %v6819, %v6823
        %v6825 = vshrl.u32 %v6764, 16
        %v6827 = vrot.slane %v6825, 4
        %v6828 = vor.u32 %v6827, %v6823
        %v6829 = vrot.slane %v6828, 4
        %v6831 = vshll.u32 %v6765, 16
        %v6833 = vrot.slane %v6831, 5
        %v6834 = vsel %vm820, %v6829, %v6833
        %v6836 = vshrl.u32 %v6766, 16
        %v6838 = vrot.slane %v6836, 4
        %v6839 = vshll.u32 %v6766, 16
        %v6841 = vrot.slane %v6839, 5
        %v6842 = vor.u32 %v6838, %v6841
        %v6843 = vrot.slane %v6842, 4
        %v6845 = vshll.u32 %v6767, 16
        %v6847 = vrot.slane %v6845, 5
        %v6848 = vsel %vm820, %v6843, %v6847
        %v6849 = vshrl.u32 %v6767, 16
        %v6851 = vrot.slane %v6849, 4
        %v6852 = vor.u32 %v6851, %v6847
        %v6853 = vrot.slane %v6852, 4
        %v6855 = vshll.u32 %v6768, 16
        %v6857 = vrot.slane %v6855, 5
        %v6858 = vsel %vm820, %v6853, %v6857
        %v6860 = vshrl.u32 %v6769, 16
        %v6862 = vrot.slane %v6860, 4
        %v6863 = vshll.u32 %v6769, 16
        %v6865 = vrot.slane %v6863, 5
        %v6866 = vor.u32 %v6862, %v6865
        %v6867 = vrot.slane %v6866, 4
        %v6869 = vshll.u32 %v6770, 16
        %v6871 = vrot.slane %v6869, 5
        %v6872 = vsel %vm820, %v6867, %v6871
        %v6873 = vshrl.u32 %v6770, 16
        %v6875 = vrot.slane %v6873, 4
        %v6876 = vor.u32 %v6875, %v6871
        %v6877 = vrot.slane %v6876, 4
        %v6879 = vshll.u32 %v6771, 16
        %v6881 = vrot.slane %v6879, 5
        %v6882 = vsel %vm820, %v6877, %v6881
        %v6884 = vshrl.u32 %v6772, 16
        %v6886 = vrot.slane %v6884, 4
        %v6887 = vshll.u32 %v6772, 16
        %v6889 = vrot.slane %v6887, 5
        %v6890 = vor.u32 %v6886, %v6889
        %v6891 = vrot.slane %v6890, 4
        %v6893 = vshll.u32 %v6773, 16
        %v6895 = vrot.slane %v6893, 5
        %v6896 = vsel %vm820, %v6891, %v6895
        %v6897 = vshrl.u32 %v6773, 16
        %v6899 = vrot.slane %v6897, 4
        %v6900 = vor.u32 %v6899, %v6895
        %v6901 = vrot.slane %v6900, 4
        %v6903 = vshll.u32 %v6774, 16
        %v6905 = vrot.slane %v6903, 5
        %v6906 = vsel %vm820, %v6901, %v6905
        %v6908 = vshrl.u32 %v6775, 16
        %v6910 = vrot.slane %v6908, 4
        %v6911 = vshll.u32 %v6775, 16
        %v6913 = vrot.slane %v6911, 5
        %v6914 = vor.u32 %v6910, %v6913
        %v6915 = vrot.slane %v6914, 4
        %v6917 = vshll.u32 %v6776, 16
        %v6919 = vrot.slane %v6917, 5
        %v6920 = vsel %vm820, %v6915, %v6919
        %v6921 = vshrl.u32 %v6776, 16
        %v6923 = vrot.slane %v6921, 4
        %v6924 = vor.u32 %v6923, %v6919
        %v6925 = vrot.slane %v6924, 4
        %v6927 = vshll.u32 %v6777, 16
        %v6929 = vrot.slane %v6927, 5
        %v6930 = vsel %vm820, %v6925, %v6929
        %v6932 = vshrl.u32 %v6778, 16
        %v6934 = vrot.slane %v6932, 4
        %v6935 = vshll.u32 %v6778, 16
        %v6937 = vrot.slane %v6935, 5
        %v6938 = vor.u32 %v6934, %v6937
        %v6939 = vrot.slane %v6938, 4
        %v6941 = vshll.u32 %v6779, 16
        %v6943 = vrot.slane %v6941, 5
        %v6944 = vsel %vm820, %v6939, %v6943
        %v6945 = vshrl.u32 %v6779, 16
        %v6947 = vrot.slane %v6945, 4
        %v6948 = vor.u32 %v6947, %v6943
        %v6949 = vrot.slane %v6948, 4
        %v6951 = vshll.u32 %v6780, 16
        %v6953 = vrot.slane %v6951, 5
        %v6954 = vsel %vm820, %v6949, %v6953
        %v6956 = vshrl.u32 %v6781, 16
        %v6958 = vrot.slane %v6956, 4
        %v6959 = vshll.u32 %v6781, 16
        %v6961 = vrot.slane %v6959, 5
        %v6962 = vor.u32 %v6958, %v6961
        %v6963 = vrot.slane %v6962, 4
        %v6965 = vshll.u32 %v6782, 16
        %v6967 = vrot.slane %v6965, 5
        %v6968 = vsel %vm820, %v6963, %v6967
        %v6969 = vshrl.u32 %v6782, 16
        %v6971 = vrot.slane %v6969, 4
        %v6972 = vor.u32 %v6971, %v6967
        %v6973 = vrot.slane %v6972, 4
        %v6975 = vshll.u32 %v6783, 16
        %v6977 = vrot.slane %v6975, 5
        %v6978 = vsel %vm820, %v6973, %v6977
        %v6980 = vshrl.u32 %v6784, 16
        %v6982 = vrot.slane %v6980, 4
        %v6983 = vshll.u32 %v6784, 16
        %v6985 = vrot.slane %v6983, 5
        %v6986 = vor.u32 %v6982, %v6985
        %v6987 = vrot.slane %v6986, 4
        %v6989 = vshll.u32 %v6785, 16
        %v6991 = vrot.slane %v6989, 5
        %v6992 = vsel %vm820, %v6987, %v6991
        %v6993 = vshrl.u32 %v6785, 16
        %v6995 = vrot.slane %v6993, 4
        %v6996 = vor.u32 %v6995, %v6991
        %v6997 = vrot.slane %v6996, 4
        %v6999 = vshll.u32 %v6786, 16
        %v7001 = vrot.slane %v6999, 5
        %v7002 = vsel %vm820, %v6997, %v7001
        %v7004 = vshrl.u32 %v6787, 16
        %v7006 = vrot.slane %v7004, 4
        %v7007 = vshll.u32 %v6787, 16
        %v7009 = vrot.slane %v7007, 5
        %v7010 = vor.u32 %v7006, %v7009
        %v7011 = vrot.slane %v7010, 4
        %v7013 = vshll.u32 %v6788, 16
        %v7015 = vrot.slane %v7013, 5
        %v7016 = vsel %vm820, %v7011, %v7015
        %v7017 = vshrl.u32 %v6788, 16
        %v7019 = vrot.slane %v7017, 4
        %v7020 = vor.u32 %v7019, %v7015
        %v7021 = vrot.slane %v7020, 4
        %v7023 = vshll.u32 %v6789, 16
        %v7025 = vrot.slane %v7023, 5
        %v7026 = vsel %vm820, %v7021, %v7025
        %v7028 = vshrl.u32 %v6790, 16
        %v7030 = vrot.slane %v7028, 4
        %v7031 = vshll.u32 %v6790, 16
        %v7033 = vrot.slane %v7031, 5
        %v7034 = vor.u32 %v7030, %v7033
        %v7035 = vrot.slane %v7034, 4
        %v7037 = vshll.u32 %v6791, 16
        %v7039 = vrot.slane %v7037, 5
        %v7040 = vsel %vm820, %v7035, %v7039
        %v7041 = vshrl.u32 %v6791, 16
        %v7043 = vrot.slane %v7041, 4
        %v7044 = vor.u32 %v7043, %v7039
        %v7045 = vrot.slane %v7044, 4
        %v7047 = vshll.u32 %v6792, 16
        %v7049 = vrot.slane %v7047, 5
        %v7050 = vsel %vm820, %v7045, %v7049
        %v7052 = vshrl.u32 %v6793, 16
        %v7054 = vrot.slane %v7052, 4
        %v7055 = vshll.u32 %v6793, 16
        %v7057 = vrot.slane %v7055, 5
        %v7058 = vor.u32 %v7054, %v7057
        %v7059 = vrot.slane %v7058, 4
        %v7061 = vshll.u32 %v6794, 16
        %v7063 = vrot.slane %v7061, 5
        %v7064 = vsel %vm820, %v7059, %v7063
        %v7065 = vshrl.u32 %v6794, 16
        %v7067 = vrot.slane %v7065, 4
        %v7068 = vor.u32 %v7067, %v7063
        %v7069 = vrot.slane %v7068, 4
        %v7071 = vshll.u32 %v6795, 16
        %v7073 = vrot.slane %v7071, 5
        %v7074 = vsel %vm820, %v7069, %v7073
        %v7076 = vshrl.u32 %v6796, 16
        %v7078 = vrot.slane %v7076, 4
        %v7079 = vshll.u32 %v6796, 16
        %v7081 = vrot.slane %v7079, 5
        %v7082 = vor.u32 %v7078, %v7081
        %v7083 = vrot.slane %v7082, 4
        %v7085 = vshll.u32 %v6797, 16
        %v7087 = vrot.slane %v7085, 5
        %v7088 = vsel %vm820, %v7083, %v7087
        %v7089 = vshrl.u32 %v6797, 16
        %v7091 = vrot.slane %v7089, 4
        %v7092 = vor.u32 %v7091, %v7087
        %v7093 = vrot.slane %v7092, 4
        %v7095 = vshll.u32 %v6798, 16
        %v7097 = vrot.slane %v7095, 5
        %v7098 = vsel %vm820, %v7093, %v7097
        %v7100 = vshrl.u32 %v6799, 16
        %v7102 = vrot.slane %v7100, 4
        %v7103 = vshll.u32 %v6799, 16
        %v7105 = vrot.slane %v7103, 5
        %v7106 = vor.u32 %v7102, %v7105
        %v7107 = vrot.slane %v7106, 4
        %v7109 = vshll.u32 %v6800, 16
        %v7111 = vrot.slane %v7109, 5
        %v7112 = vsel %vm820, %v7107, %v7111
        %v7113 = vshrl.u32 %v6800, 16
        %v7115 = vrot.slane %v7113, 4
        %v7116 = vor.u32 %v7115, %v7111
        %v7117 = vrot.slane %v7116, 4
        %v7119 = vshll.u32 %v6801, 16
        %v7121 = vrot.slane %v7119, 5
        %v7122 = vsel %vm820, %v7117, %v7121
        %v7124 = vshrl.u32 %v6802, 16
        %v7126 = vrot.slane %v7124, 4
        %v7127 = vshll.u32 %v6802, 16
        %v7129 = vrot.slane %v7127, 5
        %v7130 = vor.u32 %v7126, %v7129
        %v7131 = vrot.slane %v7130, 4
        %v7133 = vshll.u32 %v6803, 16
        %v7135 = vrot.slane %v7133, 5
        %v7136 = vsel %vm820, %v7131, %v7135
        %v7137 = vshrl.u32 %v6803, 16
        %v7139 = vrot.slane %v7137, 4
        %v7140 = vor.u32 %v7139, %v7135
        %v7141 = vrot.slane %v7140, 4
        %v7143 = vshll.u32 %v6804, 16
        %v7145 = vrot.slane %v7143, 5
        %v7146 = vsel %vm820, %v7141, %v7145
        %v7148 = vshrl.u32 %v6805, 16
        %v7150 = vrot.slane %v7148, 4
        %v7151 = vshll.u32 %v6805, 16
        %v7153 = vrot.slane %v7151, 5
        %v7154 = vor.u32 %v7150, %v7153
        %v7155 = vrot.slane %v7154, 4
        %v7157 = vshll.u32 %v6806, 16
        %v7159 = vrot.slane %v7157, 5
        %v7160 = vsel %vm820, %v7155, %v7159
        %v7161 = vshrl.u32 %v6806, 16
        %v7163 = vrot.slane %v7161, 4
        %v7164 = vor.u32 %v7163, %v7159
        %v7165 = vrot.slane %v7164, 4
        %v7167 = vshll.u32 %v6807, 16
        %v7169 = vrot.slane %v7167, 5
        %v7170 = vsel %vm820, %v7165, %v7169
        %v7172 = vshrl.u32 %v6808, 16
        %v7174 = vrot.slane %v7172, 4
        %v7175 = vshll.u32 %v6808, 16
        %v7177 = vrot.slane %v7175, 5
        %v7178 = vor.u32 %v7174, %v7177
        %v7179 = vrot.slane %v7178, 4
        %v7181 = vshll.u32 %v6809, 16
        %v7183 = vrot.slane %v7181, 5
        %v7184 = vsel %vm820, %v7179, %v7183
        %v7185 = vshrl.u32 %v6809, 16
        %v7187 = vrot.slane %v7185, 4
        %v7188 = vor.u32 %v7187, %v7183
        %v7189 = vrot.slane %v7188, 4
        %v7191 = vshll.u32 %v6810, 16
        %v7193 = vrot.slane %v7191, 5
        %v7194 = vsel %vm820, %v7189, %v7193
        %s7195 = scalar_lea.vmem %s3, 128
        %v7196 = vld [vmem:[%s7195] sm:$0xf]
        %v7197 = vld [vmem:[%s7195 + $0x4] sm:$0xf]
        %v7198 = vld [vmem:[%s7195 + $0x8] sm:$0xf]
        %v7199 = vld [vmem:[%s7195 + $0xc] sm:$0xf]
        %v7200 = vld [vmem:[%s7195 + $0x10] sm:$0xf]
        %v7201 = vld [vmem:[%s7195 + $0x14] sm:$0xf]
        %v7202 = vld [vmem:[%s7195 + $0x18] sm:$0xf]
        %v7203 = vld [vmem:[%s7195 + $0x1c] sm:$0xf]
        %v7204 = vld [vmem:[%s7195 + $0x20] sm:$0xf]
        %v7205 = vld [vmem:[%s7195 + $0x24] sm:$0xf]
        %v7206 = vld [vmem:[%s7195 + $0x28] sm:$0xf]
        %v7207 = vld [vmem:[%s7195 + $0x2c] sm:$0xf]
        %v7208 = vld [vmem:[%s7195 + $0x30] sm:$0xf]
        %v7209 = vld [vmem:[%s7195 + $0x34] sm:$0xf]
        %v7210 = vld [vmem:[%s7195 + $0x38] sm:$0xf]
        %v7211 = vld [vmem:[%s7195 + $0x3c] sm:$0xf]
        %v7212 = vunpack.c.l.b16 %v6824
        %v7213 = vunpack.c.l.b16 %v6834
        %v7214 = vunpack.c.l.b16 %v6848
        %v7215 = vunpack.c.l.b16 %v6858
        %v7216 = vunpack.c.l.b16 %v6872
        %v7217 = vunpack.c.l.b16 %v6882
        %v7218 = vunpack.c.l.b16 %v6896
        %v7219 = vunpack.c.l.b16 %v6906
        %v7220 = vunpack.c.l.b16 %v6920
        %v7221 = vunpack.c.l.b16 %v6930
        %v7222 = vunpack.c.l.b16 %v6944
        %v7223 = vunpack.c.l.b16 %v6954
        %v7224 = vunpack.c.l.b16 %v6968
        %v7225 = vunpack.c.l.b16 %v6978
        %v7226 = vunpack.c.l.b16 %v6992
        %v7227 = vunpack.c.l.b16 %v7002
        %v7228 = vunpack.c.l.b16 %v7016
        %v7229 = vunpack.c.l.b16 %v7026
        %v7230 = vunpack.c.l.b16 %v7040
        %v7231 = vunpack.c.l.b16 %v7050
        %v7232 = vunpack.c.l.b16 %v7064
        %v7233 = vunpack.c.l.b16 %v7074
        %v7234 = vunpack.c.l.b16 %v7088
        %v7235 = vunpack.c.l.b16 %v7098
        %v7236 = vunpack.c.l.b16 %v7112
        %v7237 = vunpack.c.l.b16 %v7122
        %v7238 = vunpack.c.l.b16 %v7136
        %v7239 = vunpack.c.l.b16 %v7146
        %v7240 = vunpack.c.l.b16 %v7160
        %v7241 = vunpack.c.l.b16 %v7170
        %v7242 = vunpack.c.l.b16 %v7184
        %v7243 = vunpack.c.l.b16 %v7194
        %v7244 = vpack.c.b16 %v7213, %v7212
        %v7245 = vpack.c.b16 %v7215, %v7214
        %v7246 = vpack.c.b16 %v7217, %v7216
        %v7247 = vpack.c.b16 %v7219, %v7218
        %v7248 = vpack.c.b16 %v7221, %v7220
        %v7249 = vpack.c.b16 %v7223, %v7222
        %v7250 = vpack.c.b16 %v7225, %v7224
        %v7251 = vpack.c.b16 %v7227, %v7226
        %v7252 = vpack.c.b16 %v7229, %v7228
        %v7253 = vpack.c.b16 %v7231, %v7230
        %v7254 = vpack.c.b16 %v7233, %v7232
        %v7255 = vpack.c.b16 %v7235, %v7234
        %v7256 = vpack.c.b16 %v7237, %v7236
        %v7257 = vpack.c.b16 %v7239, %v7238
        %v7258 = vpack.c.b16 %v7241, %v7240
        %v7259 = vpack.c.b16 %v7243, %v7242
        %v7292 = vunpack.c.l.b16 %v7196
        %v7293 = vunpack.c.l.b16 %v7197
        %v7294 = vunpack.c.l.b16 %v7198
        %v7295 = vunpack.c.l.b16 %v7199
        %v7296 = vunpack.c.l.b16 %v7200
        %v7297 = vunpack.c.l.b16 %v7201
        %v7298 = vunpack.c.l.b16 %v7202
        %v7299 = vunpack.c.l.b16 %v7203
        %v7300 = vunpack.c.l.b16 %v7204
        %v7301 = vunpack.c.l.b16 %v7205
        %v7302 = vunpack.c.l.b16 %v7206
        %v7303 = vunpack.c.l.b16 %v7207
        %v7304 = vunpack.c.l.b16 %v7208
        %v7305 = vunpack.c.l.b16 %v7209
        %v7306 = vunpack.c.l.b16 %v7210
        %v7307 = vunpack.c.l.b16 %v7211
        %v7308 = vpack.c.b16 %v7293, %v7292
        %v7309 = vpack.c.b16 %v7295, %v7294
        %v7310 = vpack.c.b16 %v7297, %v7296
        %v7311 = vpack.c.b16 %v7299, %v7298
        %v7312 = vpack.c.b16 %v7301, %v7300
        %v7313 = vpack.c.b16 %v7303, %v7302
        %v7314 = vpack.c.b16 %v7305, %v7304
        %v7315 = vpack.c.b16 %v7307, %v7306
        %7324 = vmatprep.subr.bf16.mxu0 0
        %7325 = vmatpush1.bf16.msra.mxu0 %v7308
        %7326 = vmatprep.subr.bf16.mxu0 0
        %7327 = vmatpush1.bf16.msra.mxu0 %v7309
        %7328 = vmatprep.subr.bf16.mxu0 0
        %7329 = vmatpush1.bf16.msra.mxu0 %v7310
        %7330 = vmatprep.subr.bf16.mxu0 0
        %7331 = vmatpush1.bf16.msra.mxu0 %v7311
        %7332 = vmatprep.subr.bf16.mxu0 0
        %7333 = vmatpush1.bf16.msra.mxu0 %v7312
        %7334 = vmatprep.subr.bf16.mxu0 0
        %7335 = vmatpush1.bf16.msra.mxu0 %v7313
        %7336 = vmatprep.subr.bf16.mxu0 0
        %7337 = vmatpush1.bf16.msra.mxu0 %v7314
        %7338 = vmatprep.subr.bf16.mxu0 0
        %7339 = vmatpush1.bf16.msra.mxu0 %v7315
        %7340 = vmatprep.subr.bf16.mxu0 0
        %7341 = vmatpush1.bf16.msra.mxu0 0
        %7342 = vmatprep.subr.bf16.mxu0 0
        %7343 = vmatpush1.bf16.msra.mxu0 0
        %7344 = vmatprep.subr.bf16.mxu0 0
        %7345 = vmatpush1.bf16.msra.mxu0 0
        %7346 = vmatprep.subr.bf16.mxu0 0
        %7347 = vmatpush1.bf16.msra.mxu0 0
        %7348 = vmatprep.subr.bf16.mxu0 0
        %7349 = vmatpush1.bf16.msra.mxu0 0
        %7350 = vmatprep.subr.bf16.mxu0 0
        %7351 = vmatpush1.bf16.msra.mxu0 0
        %7352 = vmatprep.subr.bf16.mxu0 0
        %7353 = vmatpush1.bf16.msra.mxu0 0
        %7354 = vmatprep.subr.bf16.mxu0 0
        %7355 = vmatpush1.bf16.msra.mxu0 0
        %7356 = vmatprep.mubr.bf16.mxu0 0
        %7357 = vmatmul.mubr.bf16.gmra.mrb[0].mxu0 %v7244
        %v7358 = vpop.f32.mrb[0].mxu0
        %v7359 = vadd.f32 0.0, %v7358
        %v7360 = vpop.f32.mrb[0].mxu0
        %v7361 = vpop.f32.mrb[0].mxu0
        %v7362 = vadd.f32 0.0, %v7361
        %v7363 = vpop.f32.mrb[0].mxu0
        %7364 = vmatprep.mubr.bf16.mxu0 0
        %7365 = vmatmul.mubr.bf16.gmra.mrb[0].mxu0 %v7245
        %v7366 = vpop.f32.mrb[0].mxu0
        %v7367 = vadd.f32 0.0, %v7366
        %v7368 = vpop.f32.mrb[0].mxu0
        %v7369 = vpop.f32.mrb[0].mxu0
        %v7370 = vadd.f32 0.0, %v7369
        %v7371 = vpop.f32.mrb[0].mxu0
        %7372 = vmatprep.mubr.bf16.mxu0 0
        %7373 = vmatmul.mubr.bf16.gmra.mrb[0].mxu0 %v7246
        %v7374 = vpop.f32.mrb[0].mxu0
        %v7375 = vadd.f32 0.0, %v7374
        %v7376 = vpop.f32.mrb[0].mxu0
        %v7377 = vpop.f32.mrb[0].mxu0
        %v7378 = vadd.f32 0.0, %v7377
        %v7379 = vpop.f32.mrb[0].mxu0
        %7380 = vmatprep.mubr.bf16.mxu0 0
        %7381 = vmatmul.mubr.bf16.gmra.mrb[0].mxu0 %v7247
        %v7382 = vpop.f32.mrb[0].mxu0
        %v7383 = vadd.f32 0.0, %v7382
        %v7384 = vpop.f32.mrb[0].mxu0
        %v7385 = vpop.f32.mrb[0].mxu0
        %v7386 = vadd.f32 0.0, %v7385
        %v7387 = vpop.f32.mrb[0].mxu0
        %7388 = vmatprep.mubr.bf16.mxu0 0
        %7389 = vmatmul.mubr.bf16.gmra.mrb[0].mxu0 %v7248
        %v7390 = vpop.f32.mrb[0].mxu0
        %v7391 = vadd.f32 0.0, %v7390
        %v7392 = vpop.f32.mrb[0].mxu0
        %v7393 = vpop.f32.mrb[0].mxu0
        %v7394 = vadd.f32 0.0, %v7393
        %v7395 = vpop.f32.mrb[0].mxu0
        %7396 = vmatprep.mubr.bf16.mxu0 0
        %7397 = vmatmul.mubr.bf16.gmra.mrb[0].mxu0 %v7249
        %v7398 = vpop.f32.mrb[0].mxu0
        %v7399 = vadd.f32 0.0, %v7398
        %v7400 = vpop.f32.mrb[0].mxu0
        %v7401 = vpop.f32.mrb[0].mxu0
        %v7402 = vadd.f32 0.0, %v7401
        %v7403 = vpop.f32.mrb[0].mxu0
        %7404 = vmatprep.mubr.bf16.mxu0 0
        %7405 = vmatmul.mubr.bf16.gmra.mrb[0].mxu0 %v7250
        %v7406 = vpop.f32.mrb[0].mxu0
        %v7407 = vadd.f32 0.0, %v7406
        %v7408 = vpop.f32.mrb[0].mxu0
        %v7409 = vpop.f32.mrb[0].mxu0
        %v7410 = vadd.f32 0.0, %v7409
        %v7411 = vpop.f32.mrb[0].mxu0
        %7412 = vmatprep.mubr.bf16.mxu0 0
        %7413 = vmatmul.mubr.bf16.gmra.mrb[0].mxu0 %v7251
        %v7414 = vpop.f32.mrb[0].mxu0
        %v7415 = vadd.f32 0.0, %v7414
        %v7416 = vpop.f32.mrb[0].mxu0
        %v7417 = vpop.f32.mrb[0].mxu0
        %v7418 = vadd.f32 0.0, %v7417
        %v7419 = vpop.f32.mrb[0].mxu0
        %7420 = vmatprep.mubr.bf16.mxu0 0
        %7421 = vmatmul.mubr.bf16.gmra.mrb[0].mxu0 %v7252
        %v7422 = vpop.f32.mrb[0].mxu0
        %v7423 = vadd.f32 0.0, %v7422
        %v7424 = vpop.f32.mrb[0].mxu0
        %v7425 = vpop.f32.mrb[0].mxu0
        %v7426 = vadd.f32 0.0, %v7425
        %v7427 = vpop.f32.mrb[0].mxu0
        %7428 = vmatprep.mubr.bf16.mxu0 0
        %7429 = vmatmul.mubr.bf16.gmra.mrb[0].mxu0 %v7253
        %v7430 = vpop.f32.mrb[0].mxu0
        %v7431 = vadd.f32 0.0, %v7430
        %v7432 = vpop.f32.mrb[0].mxu0
        %v7433 = vpop.f32.mrb[0].mxu0
        %v7434 = vadd.f32 0.0, %v7433
        %v7435 = vpop.f32.mrb[0].mxu0
        %7436 = vmatprep.mubr.bf16.mxu0 0
        %7437 = vmatmul.mubr.bf16.gmra.mrb[0].mxu0 %v7254
        %v7438 = vpop.f32.mrb[0].mxu0
        %v7439 = vadd.f32 0.0, %v7438
        %v7440 = vpop.f32.mrb[0].mxu0
        %v7441 = vpop.f32.mrb[0].mxu0
        %v7442 = vadd.f32 0.0, %v7441
        %v7443 = vpop.f32.mrb[0].mxu0
        %7444 = vmatprep.mubr.bf16.mxu0 0
        %7445 = vmatmul.mubr.bf16.gmra.mrb[0].mxu0 %v7255
        %v7446 = vpop.f32.mrb[0].mxu0
        %v7447 = vadd.f32 0.0, %v7446
        %v7448 = vpop.f32.mrb[0].mxu0
        %v7449 = vpop.f32.mrb[0].mxu0
        %v7450 = vadd.f32 0.0, %v7449
        %v7451 = vpop.f32.mrb[0].mxu0
        %7452 = vmatprep.mubr.bf16.mxu0 0
        %7453 = vmatmul.mubr.bf16.gmra.mrb[0].mxu0 %v7256
        %v7454 = vpop.f32.mrb[0].mxu0
        %v7455 = vadd.f32 0.0, %v7454
        %v7456 = vpop.f32.mrb[0].mxu0
        %v7457 = vpop.f32.mrb[0].mxu0
        %v7458 = vadd.f32 0.0, %v7457
        %v7459 = vpop.f32.mrb[0].mxu0
        %7460 = vmatprep.mubr.bf16.mxu0 0
        %7461 = vmatmul.mubr.bf16.gmra.mrb[0].mxu0 %v7257
        %v7462 = vpop.f32.mrb[0].mxu0
        %v7463 = vadd.f32 0.0, %v7462
        %v7464 = vpop.f32.mrb[0].mxu0
        %v7465 = vpop.f32.mrb[0].mxu0
        %v7466 = vadd.f32 0.0, %v7465
        %v7467 = vpop.f32.mrb[0].mxu0
        %7468 = vmatprep.mubr.bf16.mxu0 0
        %7469 = vmatmul.mubr.bf16.gmra.mrb[0].mxu0 %v7258
        %v7470 = vpop.f32.mrb[0].mxu0
        %v7471 = vadd.f32 0.0, %v7470
        %v7472 = vpop.f32.mrb[0].mxu0
        %v7473 = vpop.f32.mrb[0].mxu0
        %v7474 = vadd.f32 0.0, %v7473
        %v7475 = vpop.f32.mrb[0].mxu0
        %7476 = vmatprep.mubr.bf16.mxu0 0
        %7477 = vmatmul.mubr.bf16.gmra.mrb[0].mxu0 %v7259
        %v7478 = vpop.f32.mrb[0].mxu0
        %v7479 = vadd.f32 0.0, %v7478
        %v7480 = vpop.f32.mrb[0].mxu0
        %v7481 = vpop.f32.mrb[0].mxu0
        %v7482 = vadd.f32 0.0, %v7481
        %v7483 = vpop.f32.mrb[0].mxu0
        %7484 = vdwg.mxu0
        %v7485 = vadd.f32 %v6731, %v7359
        %v7486 = vadd.f32 %v6732, %v7362
        %v7487 = vadd.f32 %v6733, %v7367
        %v7488 = vadd.f32 %v6734, %v7370
        %v7489 = vadd.f32 %v6735, %v7375
        %v7490 = vadd.f32 %v6736, %v7378
        %v7491 = vadd.f32 %v6737, %v7383
        %v7492 = vadd.f32 %v6738, %v7386
        %v7493 = vadd.f32 %v6739, %v7391
        %v7494 = vadd.f32 %v6740, %v7394
        %v7495 = vadd.f32 %v6741, %v7399
        %v7496 = vadd.f32 %v6742, %v7402
        %v7497 = vadd.f32 %v6743, %v7407
        %v7498 = vadd.f32 %v6744, %v7410
        %v7499 = vadd.f32 %v6745, %v7415
        %v7500 = vadd.f32 %v6746, %v7418
        %v7501 = vadd.f32 %v6747, %v7423
        %v7502 = vadd.f32 %v6748, %v7426
        %v7503 = vadd.f32 %v6749, %v7431
        %v7504 = vadd.f32 %v6750, %v7434
        %v7505 = vadd.f32 %v6751, %v7439
        %v7506 = vadd.f32 %v6752, %v7442
        %v7507 = vadd.f32 %v6753, %v7447
        %v7508 = vadd.f32 %v6754, %v7450
        %v7509 = vadd.f32 %v6755, %v7455
        %v7510 = vadd.f32 %v6756, %v7458
        %v7511 = vadd.f32 %v6757, %v7463
        %v7512 = vadd.f32 %v6758, %v7466
        %v7513 = vadd.f32 %v6759, %v7471
        %v7514 = vadd.f32 %v6760, %v7474
        %v7515 = vadd.f32 %v6761, %v7479
        %v7516 = vadd.f32 %v6762, %v7482
        %v7517 = vld [vmem:[%s5620 + $0x4] sm:$0x8]
        %v7518 = vld [vmem:[%s5620 + $0x8] sm:$0xf]
        %v7519 = vld [vmem:[%s5620 + $0xc] sm:$0xf]
        %v7520 = vld [vmem:[%s5620 + $0x18] sm:$0x8]
        %v7521 = vld [vmem:[%s5620 + $0x1c] sm:$0xf]
        %v7522 = vld [vmem:[%s5620 + $0x20] sm:$0xf]
        %v7523 = vld [vmem:[%s5620 + $0x2c] sm:$0x8]
        %v7524 = vld [vmem:[%s5620 + $0x30] sm:$0xf]
        %v7525 = vld [vmem:[%s5620 + $0x34] sm:$0xf]
        %v7526 = vld [vmem:[%s5620 + $0x40] sm:$0x8]
        %v7527 = vld [vmem:[%s5620 + $0x44] sm:$0xf]
        %v7528 = vld [vmem:[%s5620 + $0x48] sm:$0xf]
        %v7529 = vld [vmem:[%s5620 + $0x54] sm:$0x8]
        %v7530 = vld [vmem:[%s5620 + $0x58] sm:$0xf]
        %v7531 = vld [vmem:[%s5620 + $0x5c] sm:$0xf]
        %v7532 = vld [vmem:[%s5620 + $0x68] sm:$0x8]
        %v7533 = vld [vmem:[%s5620 + $0x6c] sm:$0xf]
        %v7534 = vld [vmem:[%s5620 + $0x70] sm:$0xf]
        %v7535 = vld [vmem:[%s5620 + $0x7c] sm:$0x8]
        %v7536 = vld [vmem:[%s5620 + $0x80] sm:$0xf]
        %v7537 = vld [vmem:[%s5620 + $0x84] sm:$0xf]
        %v7538 = vld [vmem:[%s5620 + $0x90] sm:$0x8]
        %v7539 = vld [vmem:[%s5620 + $0x94] sm:$0xf]
        %v7540 = vld [vmem:[%s5620 + $0x98] sm:$0xf]
        %v7541 = vld [vmem:[%s5620 + $0xa4] sm:$0x8]
        %v7542 = vld [vmem:[%s5620 + $0xa8] sm:$0xf]
        %v7543 = vld [vmem:[%s5620 + $0xac] sm:$0xf]
        %v7544 = vld [vmem:[%s5620 + $0xb8] sm:$0x8]
        %v7545 = vld [vmem:[%s5620 + $0xbc] sm:$0xf]
        %v7546 = vld [vmem:[%s5620 + $0xc0] sm:$0xf]
        %v7547 = vld [vmem:[%s5620 + $0xcc] sm:$0x8]
        %v7548 = vld [vmem:[%s5620 + $0xd0] sm:$0xf]
        %v7549 = vld [vmem:[%s5620 + $0xd4] sm:$0xf]
        %v7550 = vld [vmem:[%s5620 + $0xe0] sm:$0x8]
        %v7551 = vld [vmem:[%s5620 + $0xe4] sm:$0xf]
        %v7552 = vld [vmem:[%s5620 + $0xe8] sm:$0xf]
        %v7553 = vld [vmem:[%s5620 + $0xf4] sm:$0x8]
        %v7554 = vld [vmem:[%s5620 + $0xf8] sm:$0xf]
        %v7555 = vld [vmem:[%s5620 + $0xfc] sm:$0xf]
        %v7556 = vld [vmem:[%s5620 + $0x108] sm:$0x8]
        %v7557 = vld [vmem:[%s5620 + $0x10c] sm:$0xf]
        %v7558 = vld [vmem:[%s5620 + $0x110] sm:$0xf]
        %v7559 = vld [vmem:[%s5620 + $0x11c] sm:$0x8]
        %v7560 = vld [vmem:[%s5620 + $0x120] sm:$0xf]
        %v7561 = vld [vmem:[%s5620 + $0x124] sm:$0xf]
        %v7562 = vld [vmem:[%s5620 + $0x130] sm:$0x8]
        %v7563 = vld [vmem:[%s5620 + $0x134] sm:$0xf]
        %v7564 = vld [vmem:[%s5620 + $0x138] sm:$0xf]
        %v7566 = vshrl.u32 %v7517, 16
        %v7568 = vrot.slane %v7566, 7
        %v7569 = vrot.slane %v7568, 4
        %v7571 = vshrl.u32 %v7518, 16
        %v7573 = vrot.slane %v7571, 7
        %v7574 = vshll.u32 %v7518, 16
        %v7576 = vor.u32 %v7573, %v7574
        %v7577 = vsel %vm5735, %v7569, %v7576
        %v7578 = vrot.slane %v7573, 4
        %v7580 = vshrl.u32 %v7519, 16
        %v7582 = vrot.slane %v7580, 7
        %v7583 = vshll.u32 %v7519, 16
        %v7585 = vor.u32 %v7582, %v7583
        %v7586 = vsel %vm5735, %v7578, %v7585
        %v7588 = vshrl.u32 %v7520, 16
        %v7590 = vrot.slane %v7588, 7
        %v7591 = vrot.slane %v7590, 4
        %v7593 = vshrl.u32 %v7521, 16
        %v7595 = vrot.slane %v7593, 7
        %v7596 = vshll.u32 %v7521, 16
        %v7598 = vor.u32 %v7595, %v7596
        %v7599 = vsel %vm5735, %v7591, %v7598
        %v7600 = vrot.slane %v7595, 4
        %v7602 = vshrl.u32 %v7522, 16
        %v7604 = vrot.slane %v7602, 7
        %v7605 = vshll.u32 %v7522, 16
        %v7607 = vor.u32 %v7604, %v7605
        %v7608 = vsel %vm5735, %v7600, %v7607
        %v7610 = vshrl.u32 %v7523, 16
        %v7612 = vrot.slane %v7610, 7
        %v7613 = vrot.slane %v7612, 4
        %v7615 = vshrl.u32 %v7524, 16
        %v7617 = vrot.slane %v7615, 7
        %v7618 = vshll.u32 %v7524, 16
        %v7620 = vor.u32 %v7617, %v7618
        %v7621 = vsel %vm5735, %v7613, %v7620
        %v7622 = vrot.slane %v7617, 4
        %v7624 = vshrl.u32 %v7525, 16
        %v7626 = vrot.slane %v7624, 7
        %v7627 = vshll.u32 %v7525, 16
        %v7629 = vor.u32 %v7626, %v7627
        %v7630 = vsel %vm5735, %v7622, %v7629
        %v7632 = vshrl.u32 %v7526, 16
        %v7634 = vrot.slane %v7632, 7
        %v7635 = vrot.slane %v7634, 4
        %v7637 = vshrl.u32 %v7527, 16
        %v7639 = vrot.slane %v7637, 7
        %v7640 = vshll.u32 %v7527, 16
        %v7642 = vor.u32 %v7639, %v7640
        %v7643 = vsel %vm5735, %v7635, %v7642
        %v7644 = vrot.slane %v7639, 4
        %v7646 = vshrl.u32 %v7528, 16
        %v7648 = vrot.slane %v7646, 7
        %v7649 = vshll.u32 %v7528, 16
        %v7651 = vor.u32 %v7648, %v7649
        %v7652 = vsel %vm5735, %v7644, %v7651
        %v7654 = vshrl.u32 %v7529, 16
        %v7656 = vrot.slane %v7654, 7
        %v7657 = vrot.slane %v7656, 4
        %v7659 = vshrl.u32 %v7530, 16
        %v7661 = vrot.slane %v7659, 7
        %v7662 = vshll.u32 %v7530, 16
        %v7664 = vor.u32 %v7661, %v7662
        %v7665 = vsel %vm5735, %v7657, %v7664
        %v7666 = vrot.slane %v7661, 4
        %v7668 = vshrl.u32 %v7531, 16
        %v7670 = vrot.slane %v7668, 7
        %v7671 = vshll.u32 %v7531, 16
        %v7673 = vor.u32 %v7670, %v7671
        %v7674 = vsel %vm5735, %v7666, %v7673
        %v7676 = vshrl.u32 %v7532, 16
        %v7678 = vrot.slane %v7676, 7
        %v7679 = vrot.slane %v7678, 4
        %v7681 = vshrl.u32 %v7533, 16
        %v7683 = vrot.slane %v7681, 7
        %v7684 = vshll.u32 %v7533, 16
        %v7686 = vor.u32 %v7683, %v7684
        %v7687 = vsel %vm5735, %v7679, %v7686
        %v7688 = vrot.slane %v7683, 4
        %v7690 = vshrl.u32 %v7534, 16
        %v7692 = vrot.slane %v7690, 7
        %v7693 = vshll.u32 %v7534, 16
        %v7695 = vor.u32 %v7692, %v7693
        %v7696 = vsel %vm5735, %v7688, %v7695
        %v7698 = vshrl.u32 %v7535, 16
        %v7700 = vrot.slane %v7698, 7
        %v7701 = vrot.slane %v7700, 4
        %v7703 = vshrl.u32 %v7536, 16
        %v7705 = vrot.slane %v7703, 7
        %v7706 = vshll.u32 %v7536, 16
        %v7708 = vor.u32 %v7705, %v7706
        %v7709 = vsel %vm5735, %v7701, %v7708
        %v7710 = vrot.slane %v7705, 4
        %v7712 = vshrl.u32 %v7537, 16
        %v7714 = vrot.slane %v7712, 7
        %v7715 = vshll.u32 %v7537, 16
        %v7717 = vor.u32 %v7714, %v7715
        %v7718 = vsel %vm5735, %v7710, %v7717
        %v7720 = vshrl.u32 %v7538, 16
        %v7722 = vrot.slane %v7720, 7
        %v7723 = vrot.slane %v7722, 4
        %v7725 = vshrl.u32 %v7539, 16
        %v7727 = vrot.slane %v7725, 7
        %v7728 = vshll.u32 %v7539, 16
        %v7730 = vor.u32 %v7727, %v7728
        %v7731 = vsel %vm5735, %v7723, %v7730
        %v7732 = vrot.slane %v7727, 4
        %v7734 = vshrl.u32 %v7540, 16
        %v7736 = vrot.slane %v7734, 7
        %v7737 = vshll.u32 %v7540, 16
        %v7739 = vor.u32 %v7736, %v7737
        %v7740 = vsel %vm5735, %v7732, %v7739
        %v7742 = vshrl.u32 %v7541, 16
        %v7744 = vrot.slane %v7742, 7
        %v7745 = vrot.slane %v7744, 4
        %v7747 = vshrl.u32 %v7542, 16
        %v7749 = vrot.slane %v7747, 7
        %v7750 = vshll.u32 %v7542, 16
        %v7752 = vor.u32 %v7749, %v7750
        %v7753 = vsel %vm5735, %v7745, %v7752
        %v7754 = vrot.slane %v7749, 4
        %v7756 = vshrl.u32 %v7543, 16
        %v7758 = vrot.slane %v7756, 7
        %v7759 = vshll.u32 %v7543, 16
        %v7761 = vor.u32 %v7758, %v7759
        %v7762 = vsel %vm5735, %v7754, %v7761
        %v7764 = vshrl.u32 %v7544, 16
        %v7766 = vrot.slane %v7764, 7
        %v7767 = vrot.slane %v7766, 4
        %v7769 = vshrl.u32 %v7545, 16
        %v7771 = vrot.slane %v7769, 7
        %v7772 = vshll.u32 %v7545, 16
        %v7774 = vor.u32 %v7771, %v7772
        %v7775 = vsel %vm5735, %v7767, %v7774
        %v7776 = vrot.slane %v7771, 4
        %v7778 = vshrl.u32 %v7546, 16
        %v7780 = vrot.slane %v7778, 7
        %v7781 = vshll.u32 %v7546, 16
        %v7783 = vor.u32 %v7780, %v7781
        %v7784 = vsel %vm5735, %v7776, %v7783
        %v7786 = vshrl.u32 %v7547, 16
        %v7788 = vrot.slane %v7786, 7
        %v7789 = vrot.slane %v7788, 4
        %v7791 = vshrl.u32 %v7548, 16
        %v7793 = vrot.slane %v7791, 7
        %v7794 = vshll.u32 %v7548, 16
        %v7796 = vor.u32 %v7793, %v7794
        %v7797 = vsel %vm5735, %v7789, %v7796
        %v7798 = vrot.slane %v7793, 4
        %v7800 = vshrl.u32 %v7549, 16
        %v7802 = vrot.slane %v7800, 7
        %v7803 = vshll.u32 %v7549, 16
        %v7805 = vor.u32 %v7802, %v7803
        %v7806 = vsel %vm5735, %v7798, %v7805
        %v7808 = vshrl.u32 %v7550, 16
        %v7810 = vrot.slane %v7808, 7
        %v7811 = vrot.slane %v7810, 4
        %v7813 = vshrl.u32 %v7551, 16
        %v7815 = vrot.slane %v7813, 7
        %v7816 = vshll.u32 %v7551, 16
        %v7818 = vor.u32 %v7815, %v7816
        %v7819 = vsel %vm5735, %v7811, %v7818
        %v7820 = vrot.slane %v7815, 4
        %v7822 = vshrl.u32 %v7552, 16
        %v7824 = vrot.slane %v7822, 7
        %v7825 = vshll.u32 %v7552, 16
        %v7827 = vor.u32 %v7824, %v7825
        %v7828 = vsel %vm5735, %v7820, %v7827
        %v7830 = vshrl.u32 %v7553, 16
        %v7832 = vrot.slane %v7830, 7
        %v7833 = vrot.slane %v7832, 4
        %v7835 = vshrl.u32 %v7554, 16
        %v7837 = vrot.slane %v7835, 7
        %v7838 = vshll.u32 %v7554, 16
        %v7840 = vor.u32 %v7837, %v7838
        %v7841 = vsel %vm5735, %v7833, %v7840
        %v7842 = vrot.slane %v7837, 4
        %v7844 = vshrl.u32 %v7555, 16
        %v7846 = vrot.slane %v7844, 7
        %v7847 = vshll.u32 %v7555, 16
        %v7849 = vor.u32 %v7846, %v7847
        %v7850 = vsel %vm5735, %v7842, %v7849
        %v7852 = vshrl.u32 %v7556, 16
        %v7854 = vrot.slane %v7852, 7
        %v7855 = vrot.slane %v7854, 4
        %v7857 = vshrl.u32 %v7557, 16
        %v7859 = vrot.slane %v7857, 7
        %v7860 = vshll.u32 %v7557, 16
        %v7862 = vor.u32 %v7859, %v7860
        %v7863 = vsel %vm5735, %v7855, %v7862
        %v7864 = vrot.slane %v7859, 4
        %v7866 = vshrl.u32 %v7558, 16
        %v7868 = vrot.slane %v7866, 7
        %v7869 = vshll.u32 %v7558, 16
        %v7871 = vor.u32 %v7868, %v7869
        %v7872 = vsel %vm5735, %v7864, %v7871
        %v7874 = vshrl.u32 %v7559, 16
        %v7876 = vrot.slane %v7874, 7
        %v7877 = vrot.slane %v7876, 4
        %v7879 = vshrl.u32 %v7560, 16
        %v7881 = vrot.slane %v7879, 7
        %v7882 = vshll.u32 %v7560, 16
        %v7884 = vor.u32 %v7881, %v7882
        %v7885 = vsel %vm5735, %v7877, %v7884
        %v7886 = vrot.slane %v7881, 4
        %v7888 = vshrl.u32 %v7561, 16
        %v7890 = vrot.slane %v7888, 7
        %v7891 = vshll.u32 %v7561, 16
        %v7893 = vor.u32 %v7890, %v7891
        %v7894 = vsel %vm5735, %v7886, %v7893
        %v7896 = vshrl.u32 %v7562, 16
        %v7898 = vrot.slane %v7896, 7
        %v7899 = vrot.slane %v7898, 4
        %v7901 = vshrl.u32 %v7563, 16
        %v7903 = vrot.slane %v7901, 7
        %v7904 = vshll.u32 %v7563, 16
        %v7906 = vor.u32 %v7903, %v7904
        %v7907 = vsel %vm5735, %v7899, %v7906
        %v7908 = vrot.slane %v7903, 4
        %v7910 = vshrl.u32 %v7564, 16
        %v7912 = vrot.slane %v7910, 7
        %v7913 = vshll.u32 %v7564, 16
        %v7915 = vor.u32 %v7912, %v7913
        %v7916 = vsel %vm5735, %v7908, %v7915
        %s7917 = scalar_lea.vmem %s3, 192
        %v7918 = vld [vmem:[%s7917] sm:$0xf]
        %v7919 = vld [vmem:[%s7917 + $0x4] sm:$0xf]
        %v7920 = vld [vmem:[%s7917 + $0x8] sm:$0xf]
        %v7921 = vld [vmem:[%s7917 + $0xc] sm:$0xf]
        %v7922 = vld [vmem:[%s7917 + $0x10] sm:$0xf]
        %v7923 = vld [vmem:[%s7917 + $0x14] sm:$0xf]
        %v7924 = vld [vmem:[%s7917 + $0x18] sm:$0xf]
        %v7925 = vld [vmem:[%s7917 + $0x1c] sm:$0xf]
        %v7926 = vld [vmem:[%s7917 + $0x20] sm:$0xf]
        %v7927 = vld [vmem:[%s7917 + $0x24] sm:$0xf]
        %v7928 = vld [vmem:[%s7917 + $0x28] sm:$0xf]
        %v7929 = vld [vmem:[%s7917 + $0x2c] sm:$0xf]
        %v7930 = vld [vmem:[%s7917 + $0x30] sm:$0xf]
        %v7931 = vld [vmem:[%s7917 + $0x34] sm:$0xf]
        %v7932 = vld [vmem:[%s7917 + $0x38] sm:$0xf]
        %v7933 = vld [vmem:[%s7917 + $0x3c] sm:$0xf]
        %v7934 = vunpack.c.l.b16 %v7577
        %v7935 = vunpack.c.l.b16 %v7586
        %v7936 = vunpack.c.l.b16 %v7599
        %v7937 = vunpack.c.l.b16 %v7608
        %v7938 = vunpack.c.l.b16 %v7621
        %v7939 = vunpack.c.l.b16 %v7630
        %v7940 = vunpack.c.l.b16 %v7643
        %v7941 = vunpack.c.l.b16 %v7652
        %v7942 = vunpack.c.l.b16 %v7665
        %v7943 = vunpack.c.l.b16 %v7674
        %v7944 = vunpack.c.l.b16 %v7687
        %v7945 = vunpack.c.l.b16 %v7696
        %v7946 = vunpack.c.l.b16 %v7709
        %v7947 = vunpack.c.l.b16 %v7718
        %v7948 = vunpack.c.l.b16 %v7731
        %v7949 = vunpack.c.l.b16 %v7740
        %v7950 = vunpack.c.l.b16 %v7753
        %v7951 = vunpack.c.l.b16 %v7762
        %v7952 = vunpack.c.l.b16 %v7775
        %v7953 = vunpack.c.l.b16 %v7784
        %v7954 = vunpack.c.l.b16 %v7797
        %v7955 = vunpack.c.l.b16 %v7806
        %v7956 = vunpack.c.l.b16 %v7819
        %v7957 = vunpack.c.l.b16 %v7828
        %v7958 = vunpack.c.l.b16 %v7841
        %v7959 = vunpack.c.l.b16 %v7850
        %v7960 = vunpack.c.l.b16 %v7863
        %v7961 = vunpack.c.l.b16 %v7872
        %v7962 = vunpack.c.l.b16 %v7885
        %v7963 = vunpack.c.l.b16 %v7894
        %v7964 = vunpack.c.l.b16 %v7907
        %v7965 = vunpack.c.l.b16 %v7916
        %v7966 = vpack.c.b16 %v7935, %v7934
        %v7967 = vpack.c.b16 %v7937, %v7936
        %v7968 = vpack.c.b16 %v7939, %v7938
        %v7969 = vpack.c.b16 %v7941, %v7940
        %v7970 = vpack.c.b16 %v7943, %v7942
        %v7971 = vpack.c.b16 %v7945, %v7944
        %v7972 = vpack.c.b16 %v7947, %v7946
        %v7973 = vpack.c.b16 %v7949, %v7948
        %v7974 = vpack.c.b16 %v7951, %v7950
        %v7975 = vpack.c.b16 %v7953, %v7952
        %v7976 = vpack.c.b16 %v7955, %v7954
        %v7977 = vpack.c.b16 %v7957, %v7956
        %v7978 = vpack.c.b16 %v7959, %v7958
        %v7979 = vpack.c.b16 %v7961, %v7960
        %v7980 = vpack.c.b16 %v7963, %v7962
        %v7981 = vpack.c.b16 %v7965, %v7964
        %v8014 = vunpack.c.l.b16 %v7918
        %v8015 = vunpack.c.l.b16 %v7919
        %v8016 = vunpack.c.l.b16 %v7920
        %v8017 = vunpack.c.l.b16 %v7921
        %v8018 = vunpack.c.l.b16 %v7922
        %v8019 = vunpack.c.l.b16 %v7923
        %v8020 = vunpack.c.l.b16 %v7924
        %v8021 = vunpack.c.l.b16 %v7925
        %v8022 = vunpack.c.l.b16 %v7926
        %v8023 = vunpack.c.l.b16 %v7927
        %v8024 = vunpack.c.l.b16 %v7928
        %v8025 = vunpack.c.l.b16 %v7929
        %v8026 = vunpack.c.l.b16 %v7930
        %v8027 = vunpack.c.l.b16 %v7931
        %v8028 = vunpack.c.l.b16 %v7932
        %v8029 = vunpack.c.l.b16 %v7933
        %v8030 = vpack.c.b16 %v8015, %v8014
        %v8031 = vpack.c.b16 %v8017, %v8016
        %v8032 = vpack.c.b16 %v8019, %v8018
        %v8033 = vpack.c.b16 %v8021, %v8020
        %v8034 = vpack.c.b16 %v8023, %v8022
        %v8035 = vpack.c.b16 %v8025, %v8024
        %v8036 = vpack.c.b16 %v8027, %v8026
        %v8037 = vpack.c.b16 %v8029, %v8028
        %8046 = vmatprep.subr.bf16.mxu0 0
        %8047 = vmatpush1.bf16.msra.mxu0 %v8030
        %8048 = vmatprep.subr.bf16.mxu0 0
        %8049 = vmatpush1.bf16.msra.mxu0 %v8031
        %8050 = vmatprep.subr.bf16.mxu0 0
        %8051 = vmatpush1.bf16.msra.mxu0 %v8032
        %8052 = vmatprep.subr.bf16.mxu0 0
        %8053 = vmatpush1.bf16.msra.mxu0 %v8033
        %8054 = vmatprep.subr.bf16.mxu0 0
        %8055 = vmatpush1.bf16.msra.mxu0 %v8034
        %8056 = vmatprep.subr.bf16.mxu0 0
        %8057 = vmatpush1.bf16.msra.mxu0 %v8035
        %8058 = vmatprep.subr.bf16.mxu0 0
        %8059 = vmatpush1.bf16.msra.mxu0 %v8036
        %8060 = vmatprep.subr.bf16.mxu0 0
        %8061 = vmatpush1.bf16.msra.mxu0 %v8037
        %8062 = vmatprep.subr.bf16.mxu0 0
        %8063 = vmatpush1.bf16.msra.mxu0 0
        %8064 = vmatprep.subr.bf16.mxu0 0
        %8065 = vmatpush1.bf16.msra.mxu0 0
        %8066 = vmatprep.subr.bf16.mxu0 0
        %8067 = vmatpush1.bf16.msra.mxu0 0
        %8068 = vmatprep.subr.bf16.mxu0 0
        %8069 = vmatpush1.bf16.msra.mxu0 0
        %8070 = vmatprep.subr.bf16.mxu0 0
        %8071 = vmatpush1.bf16.msra.mxu0 0
        %8072 = vmatprep.subr.bf16.mxu0 0
        %8073 = vmatpush1.bf16.msra.mxu0 0
        %8074 = vmatprep.subr.bf16.mxu0 0
        %8075 = vmatpush1.bf16.msra.mxu0 0
        %8076 = vmatprep.subr.bf16.mxu0 0
        %8077 = vmatpush1.bf16.msra.mxu0 0
        %8078 = vmatprep.mubr.bf16.mxu0 0
        %8079 = vmatmul.mubr.bf16.gmra.mrb[0].mxu0 %v7966
        %v8080 = vpop.f32.mrb[0].mxu0
        %v8081 = vadd.f32 0.0, %v8080
        %v8082 = vpop.f32.mrb[0].mxu0
        %v8083 = vpop.f32.mrb[0].mxu0
        %v8084 = vadd.f32 0.0, %v8083
        %v8085 = vpop.f32.mrb[0].mxu0
        %8086 = vmatprep.mubr.bf16.mxu0 0
        %8087 = vmatmul.mubr.bf16.gmra.mrb[0].mxu0 %v7967
        %v8088 = vpop.f32.mrb[0].mxu0
        %v8089 = vadd.f32 0.0, %v8088
        %v8090 = vpop.f32.mrb[0].mxu0
        %v8091 = vpop.f32.mrb[0].mxu0
        %v8092 = vadd.f32 0.0, %v8091
        %v8093 = vpop.f32.mrb[0].mxu0
        %8094 = vmatprep.mubr.bf16.mxu0 0
        %8095 = vmatmul.mubr.bf16.gmra.mrb[0].mxu0 %v7968
        %v8096 = vpop.f32.mrb[0].mxu0
        %v8097 = vadd.f32 0.0, %v8096
        %v8098 = vpop.f32.mrb[0].mxu0
        %v8099 = vpop.f32.mrb[0].mxu0
        %v8100 = vadd.f32 0.0, %v8099
        %v8101 = vpop.f32.mrb[0].mxu0
        %8102 = vmatprep.mubr.bf16.mxu0 0
        %8103 = vmatmul.mubr.bf16.gmra.mrb[0].mxu0 %v7969
        %v8104 = vpop.f32.mrb[0].mxu0
        %v8105 = vadd.f32 0.0, %v8104
        %v8106 = vpop.f32.mrb[0].mxu0
        %v8107 = vpop.f32.mrb[0].mxu0
        %v8108 = vadd.f32 0.0, %v8107
        %v8109 = vpop.f32.mrb[0].mxu0
        %8110 = vmatprep.mubr.bf16.mxu0 0
        %8111 = vmatmul.mubr.bf16.gmra.mrb[0].mxu0 %v7970
        %v8112 = vpop.f32.mrb[0].mxu0
        %v8113 = vadd.f32 0.0, %v8112
        %v8114 = vpop.f32.mrb[0].mxu0
        %v8115 = vpop.f32.mrb[0].mxu0
        %v8116 = vadd.f32 0.0, %v8115
        %v8117 = vpop.f32.mrb[0].mxu0
        %8118 = vmatprep.mubr.bf16.mxu0 0
        %8119 = vmatmul.mubr.bf16.gmra.mrb[0].mxu0 %v7971
        %v8120 = vpop.f32.mrb[0].mxu0
        %v8121 = vadd.f32 0.0, %v8120
        %v8122 = vpop.f32.mrb[0].mxu0
        %v8123 = vpop.f32.mrb[0].mxu0
        %v8124 = vadd.f32 0.0, %v8123
        %v8125 = vpop.f32.mrb[0].mxu0
        %8126 = vmatprep.mubr.bf16.mxu0 0
        %8127 = vmatmul.mubr.bf16.gmra.mrb[0].mxu0 %v7972
        %v8128 = vpop.f32.mrb[0].mxu0
        %v8129 = vadd.f32 0.0, %v8128
        %v8130 = vpop.f32.mrb[0].mxu0
        %v8131 = vpop.f32.mrb[0].mxu0
        %v8132 = vadd.f32 0.0, %v8131
        %v8133 = vpop.f32.mrb[0].mxu0
        %8134 = vmatprep.mubr.bf16.mxu0 0
        %8135 = vmatmul.mubr.bf16.gmra.mrb[0].mxu0 %v7973
        %v8136 = vpop.f32.mrb[0].mxu0
        %v8137 = vadd.f32 0.0, %v8136
        %v8138 = vpop.f32.mrb[0].mxu0
        %v8139 = vpop.f32.mrb[0].mxu0
        %v8140 = vadd.f32 0.0, %v8139
        %v8141 = vpop.f32.mrb[0].mxu0
        %8142 = vmatprep.mubr.bf16.mxu0 0
        %8143 = vmatmul.mubr.bf16.gmra.mrb[0].mxu0 %v7974
        %v8144 = vpop.f32.mrb[0].mxu0
        %v8145 = vadd.f32 0.0, %v8144
        %v8146 = vpop.f32.mrb[0].mxu0
        %v8147 = vpop.f32.mrb[0].mxu0
        %v8148 = vadd.f32 0.0, %v8147
        %v8149 = vpop.f32.mrb[0].mxu0
        %8150 = vmatprep.mubr.bf16.mxu0 0
        %8151 = vmatmul.mubr.bf16.gmra.mrb[0].mxu0 %v7975
        %v8152 = vpop.f32.mrb[0].mxu0
        %v8153 = vadd.f32 0.0, %v8152
        %v8154 = vpop.f32.mrb[0].mxu0
        %v8155 = vpop.f32.mrb[0].mxu0
        %v8156 = vadd.f32 0.0, %v8155
        %v8157 = vpop.f32.mrb[0].mxu0
        %8158 = vmatprep.mubr.bf16.mxu0 0
        %8159 = vmatmul.mubr.bf16.gmra.mrb[0].mxu0 %v7976
        %v8160 = vpop.f32.mrb[0].mxu0
        %v8161 = vadd.f32 0.0, %v8160
        %v8162 = vpop.f32.mrb[0].mxu0
        %v8163 = vpop.f32.mrb[0].mxu0
        %v8164 = vadd.f32 0.0, %v8163
        %v8165 = vpop.f32.mrb[0].mxu0
        %8166 = vmatprep.mubr.bf16.mxu0 0
        %8167 = vmatmul.mubr.bf16.gmra.mrb[0].mxu0 %v7977
        %v8168 = vpop.f32.mrb[0].mxu0
        %v8169 = vadd.f32 0.0, %v8168
        %v8170 = vpop.f32.mrb[0].mxu0
        %v8171 = vpop.f32.mrb[0].mxu0
        %v8172 = vadd.f32 0.0, %v8171
        %v8173 = vpop.f32.mrb[0].mxu0
        %8174 = vmatprep.mubr.bf16.mxu0 0
        %8175 = vmatmul.mubr.bf16.gmra.mrb[0].mxu0 %v7978
        %v8176 = vpop.f32.mrb[0].mxu0
        %v8177 = vadd.f32 0.0, %v8176
        %v8178 = vpop.f32.mrb[0].mxu0
        %v8179 = vpop.f32.mrb[0].mxu0
        %v8180 = vadd.f32 0.0, %v8179
        %v8181 = vpop.f32.mrb[0].mxu0
        %8182 = vmatprep.mubr.bf16.mxu0 0
        %8183 = vmatmul.mubr.bf16.gmra.mrb[0].mxu0 %v7979
        %v8184 = vpop.f32.mrb[0].mxu0
        %v8185 = vadd.f32 0.0, %v8184
        %v8186 = vpop.f32.mrb[0].mxu0
        %v8187 = vpop.f32.mrb[0].mxu0
        %v8188 = vadd.f32 0.0, %v8187
        %v8189 = vpop.f32.mrb[0].mxu0
        %8190 = vmatprep.mubr.bf16.mxu0 0
        %8191 = vmatmul.mubr.bf16.gmra.mrb[0].mxu0 %v7980
        %v8192 = vpop.f32.mrb[0].mxu0
        %v8193 = vadd.f32 0.0, %v8192
        %v8194 = vpop.f32.mrb[0].mxu0
        %v8195 = vpop.f32.mrb[0].mxu0
        %v8196 = vadd.f32 0.0, %v8195
        %v8197 = vpop.f32.mrb[0].mxu0
        %8198 = vmatprep.mubr.bf16.mxu0 0
        %8199 = vmatmul.mubr.bf16.gmra.mrb[0].mxu0 %v7981
        %v8200 = vpop.f32.mrb[0].mxu0
        %v8201 = vadd.f32 0.0, %v8200
        %v8202 = vpop.f32.mrb[0].mxu0
        %v8203 = vpop.f32.mrb[0].mxu0
        %v8204 = vadd.f32 0.0, %v8203
        %v8205 = vpop.f32.mrb[0].mxu0
        %8206 = vdwg.mxu0
        %v8207 = vadd.f32 %v7485, %v8081
        %v8208 = vadd.f32 %v7486, %v8084
        %v8209 = vadd.f32 %v7487, %v8089
        %v8210 = vadd.f32 %v7488, %v8092
        %v8211 = vadd.f32 %v7489, %v8097
        %v8212 = vadd.f32 %v7490, %v8100
        %v8213 = vadd.f32 %v7491, %v8105
        %v8214 = vadd.f32 %v7492, %v8108
        %v8215 = vadd.f32 %v7493, %v8113
        %v8216 = vadd.f32 %v7494, %v8116
        %v8217 = vadd.f32 %v7495, %v8121
        %v8218 = vadd.f32 %v7496, %v8124
        %v8219 = vadd.f32 %v7497, %v8129
        %v8220 = vadd.f32 %v7498, %v8132
        %v8221 = vadd.f32 %v7499, %v8137
        %v8222 = vadd.f32 %v7500, %v8140
        %v8223 = vadd.f32 %v7501, %v8145
        %v8224 = vadd.f32 %v7502, %v8148
        %v8225 = vadd.f32 %v7503, %v8153
        %v8226 = vadd.f32 %v7504, %v8156
        %v8227 = vadd.f32 %v7505, %v8161
        %v8228 = vadd.f32 %v7506, %v8164
        %v8229 = vadd.f32 %v7507, %v8169
        %v8230 = vadd.f32 %v7508, %v8172
        %v8231 = vadd.f32 %v7509, %v8177
        %v8232 = vadd.f32 %v7510, %v8180
        %v8233 = vadd.f32 %v7511, %v8185
        %v8234 = vadd.f32 %v7512, %v8188
        %v8235 = vadd.f32 %v7513, %v8193
        %v8236 = vadd.f32 %v7514, %v8196
        %v8237 = vadd.f32 %v7515, %v8201
        %v8238 = vadd.f32 %v7516, %v8204
        %s8239 = scalar_lea.vmem %s3, 256
        %v8240 = vld [vmem:[%s8239] sm:$0xf]
        %v8241 = vld [vmem:[%s8239 + $0x4] sm:$0xf]
        %v8242 = vld [vmem:[%s8239 + $0x8] sm:$0xf]
        %v8243 = vld [vmem:[%s8239 + $0xc] sm:$0xf]
        %v8244 = vld [vmem:[%s8239 + $0x10] sm:$0xf]
        %v8245 = vld [vmem:[%s8239 + $0x14] sm:$0xf]
        %v8246 = vld [vmem:[%s8239 + $0x18] sm:$0xf]
        %v8247 = vld [vmem:[%s8239 + $0x1c] sm:$0xf]
        %v8248 = vld [vmem:[%s8239 + $0x20] sm:$0xf]
        %v8249 = vld [vmem:[%s8239 + $0x24] sm:$0xf]
        %v8250 = vld [vmem:[%s8239 + $0x28] sm:$0xf]
        %v8251 = vld [vmem:[%s8239 + $0x2c] sm:$0xf]
        %v8252 = vld [vmem:[%s8239 + $0x30] sm:$0xf]
        %v8253 = vld [vmem:[%s8239 + $0x34] sm:$0xf]
        %v8254 = vld [vmem:[%s8239 + $0x38] sm:$0xf]
        %v8255 = vld [vmem:[%s8239 + $0x3c] sm:$0xf]
        %v8288 = vunpack.c.l.b16 %v7518
        %v8289 = vunpack.c.l.b16 %v7519
        %v8290 = vunpack.c.l.b16 %v7521
        %v8291 = vunpack.c.l.b16 %v7522
        %v8292 = vunpack.c.l.b16 %v7524
        %v8293 = vunpack.c.l.b16 %v7525
        %v8294 = vunpack.c.l.b16 %v7527
        %v8295 = vunpack.c.l.b16 %v7528
        %v8296 = vunpack.c.l.b16 %v7530
        %v8297 = vunpack.c.l.b16 %v7531
        %v8298 = vunpack.c.l.b16 %v7533
        %v8299 = vunpack.c.l.b16 %v7534
        %v8300 = vunpack.c.l.b16 %v7536
        %v8301 = vunpack.c.l.b16 %v7537
        %v8302 = vunpack.c.l.b16 %v7539
        %v8303 = vunpack.c.l.b16 %v7540
        %v8304 = vunpack.c.l.b16 %v7542
        %v8305 = vunpack.c.l.b16 %v7543
        %v8306 = vunpack.c.l.b16 %v7545
        %v8307 = vunpack.c.l.b16 %v7546
        %v8308 = vunpack.c.l.b16 %v7548
        %v8309 = vunpack.c.l.b16 %v7549
        %v8310 = vunpack.c.l.b16 %v7551
        %v8311 = vunpack.c.l.b16 %v7552
        %v8312 = vunpack.c.l.b16 %v7554
        %v8313 = vunpack.c.l.b16 %v7555
        %v8314 = vunpack.c.l.b16 %v7557
        %v8315 = vunpack.c.l.b16 %v7558
        %v8316 = vunpack.c.l.b16 %v7560
        %v8317 = vunpack.c.l.b16 %v7561
        %v8318 = vunpack.c.l.b16 %v7563
        %v8319 = vunpack.c.l.b16 %v7564
        %v8320 = vpack.c.b16 %v8289, %v8288
        %v8321 = vpack.c.b16 %v8291, %v8290
        %v8322 = vpack.c.b16 %v8293, %v8292
        %v8323 = vpack.c.b16 %v8295, %v8294
        %v8324 = vpack.c.b16 %v8297, %v8296
        %v8325 = vpack.c.b16 %v8299, %v8298
        %v8326 = vpack.c.b16 %v8301, %v8300
        %v8327 = vpack.c.b16 %v8303, %v8302
        %v8328 = vpack.c.b16 %v8305, %v8304
        %v8329 = vpack.c.b16 %v8307, %v8306
        %v8330 = vpack.c.b16 %v8309, %v8308
        %v8331 = vpack.c.b16 %v8311, %v8310
        %v8332 = vpack.c.b16 %v8313, %v8312
        %v8333 = vpack.c.b16 %v8315, %v8314
        %v8334 = vpack.c.b16 %v8317, %v8316
        %v8335 = vpack.c.b16 %v8319, %v8318
        %v8368 = vunpack.c.l.b16 %v8240
        %v8369 = vunpack.c.l.b16 %v8241
        %v8370 = vunpack.c.l.b16 %v8242
        %v8371 = vunpack.c.l.b16 %v8243
        %v8372 = vunpack.c.l.b16 %v8244
        %v8373 = vunpack.c.l.b16 %v8245
        %v8374 = vunpack.c.l.b16 %v8246
        %v8375 = vunpack.c.l.b16 %v8247
        %v8376 = vunpack.c.l.b16 %v8248
        %v8377 = vunpack.c.l.b16 %v8249
        %v8378 = vunpack.c.l.b16 %v8250
        %v8379 = vunpack.c.l.b16 %v8251
        %v8380 = vunpack.c.l.b16 %v8252
        %v8381 = vunpack.c.l.b16 %v8253
        %v8382 = vunpack.c.l.b16 %v8254
        %v8383 = vunpack.c.l.b16 %v8255
        %v8384 = vpack.c.b16 %v8369, %v8368
        %v8385 = vpack.c.b16 %v8371, %v8370
        %v8386 = vpack.c.b16 %v8373, %v8372
        %v8387 = vpack.c.b16 %v8375, %v8374
        %v8388 = vpack.c.b16 %v8377, %v8376
        %v8389 = vpack.c.b16 %v8379, %v8378
        %v8390 = vpack.c.b16 %v8381, %v8380
        %v8391 = vpack.c.b16 %v8383, %v8382
        %8400 = vmatprep.subr.bf16.mxu0 0
        %8401 = vmatpush1.bf16.msra.mxu0 %v8384
        %8402 = vmatprep.subr.bf16.mxu0 0
        %8403 = vmatpush1.bf16.msra.mxu0 %v8385
        %8404 = vmatprep.subr.bf16.mxu0 0
        %8405 = vmatpush1.bf16.msra.mxu0 %v8386
        %8406 = vmatprep.subr.bf16.mxu0 0
        %8407 = vmatpush1.bf16.msra.mxu0 %v8387
        %8408 = vmatprep.subr.bf16.mxu0 0
        %8409 = vmatpush1.bf16.msra.mxu0 %v8388
        %8410 = vmatprep.subr.bf16.mxu0 0
        %8411 = vmatpush1.bf16.msra.mxu0 %v8389
        %8412 = vmatprep.subr.bf16.mxu0 0
        %8413 = vmatpush1.bf16.msra.mxu0 %v8390
        %8414 = vmatprep.subr.bf16.mxu0 0
        %8415 = vmatpush1.bf16.msra.mxu0 %v8391
        %8416 = vmatprep.subr.bf16.mxu0 0
        %8417 = vmatpush1.bf16.msra.mxu0 0
        %8418 = vmatprep.subr.bf16.mxu0 0
        %8419 = vmatpush1.bf16.msra.mxu0 0
        %8420 = vmatprep.subr.bf16.mxu0 0
        %8421 = vmatpush1.bf16.msra.mxu0 0
        %8422 = vmatprep.subr.bf16.mxu0 0
        %8423 = vmatpush1.bf16.msra.mxu0 0
        %8424 = vmatprep.subr.bf16.mxu0 0
        %8425 = vmatpush1.bf16.msra.mxu0 0
        %8426 = vmatprep.subr.bf16.mxu0 0
        %8427 = vmatpush1.bf16.msra.mxu0 0
        %8428 = vmatprep.subr.bf16.mxu0 0
        %8429 = vmatpush1.bf16.msra.mxu0 0
        %8430 = vmatprep.subr.bf16.mxu0 0
        %8431 = vmatpush1.bf16.msra.mxu0 0
        %8432 = vmatprep.mubr.bf16.mxu0 0
        %8433 = vmatmul.mubr.bf16.gmra.mrb[0].mxu0 %v8320
        %v8434 = vpop.f32.mrb[0].mxu0
        %v8435 = vadd.f32 0.0, %v8434
        %v8436 = vpop.f32.mrb[0].mxu0
        %v8437 = vpop.f32.mrb[0].mxu0
        %v8438 = vadd.f32 0.0, %v8437
        %v8439 = vpop.f32.mrb[0].mxu0
        %8440 = vmatprep.mubr.bf16.mxu0 0
        %8441 = vmatmul.mubr.bf16.gmra.mrb[0].mxu0 %v8321
        %v8442 = vpop.f32.mrb[0].mxu0
        %v8443 = vadd.f32 0.0, %v8442
        %v8444 = vpop.f32.mrb[0].mxu0
        %v8445 = vpop.f32.mrb[0].mxu0
        %v8446 = vadd.f32 0.0, %v8445
        %v8447 = vpop.f32.mrb[0].mxu0
        %8448 = vmatprep.mubr.bf16.mxu0 0
        %8449 = vmatmul.mubr.bf16.gmra.mrb[0].mxu0 %v8322
        %v8450 = vpop.f32.mrb[0].mxu0
        %v8451 = vadd.f32 0.0, %v8450
        %v8452 = vpop.f32.mrb[0].mxu0
        %v8453 = vpop.f32.mrb[0].mxu0
        %v8454 = vadd.f32 0.0, %v8453
        %v8455 = vpop.f32.mrb[0].mxu0
        %8456 = vmatprep.mubr.bf16.mxu0 0
        %8457 = vmatmul.mubr.bf16.gmra.mrb[0].mxu0 %v8323
        %v8458 = vpop.f32.mrb[0].mxu0
        %v8459 = vadd.f32 0.0, %v8458
        %v8460 = vpop.f32.mrb[0].mxu0
        %v8461 = vpop.f32.mrb[0].mxu0
        %v8462 = vadd.f32 0.0, %v8461
        %v8463 = vpop.f32.mrb[0].mxu0
        %8464 = vmatprep.mubr.bf16.mxu0 0
        %8465 = vmatmul.mubr.bf16.gmra.mrb[0].mxu0 %v8324
        %v8466 = vpop.f32.mrb[0].mxu0
        %v8467 = vadd.f32 0.0, %v8466
        %v8468 = vpop.f32.mrb[0].mxu0
        %v8469 = vpop.f32.mrb[0].mxu0
        %v8470 = vadd.f32 0.0, %v8469
        %v8471 = vpop.f32.mrb[0].mxu0
        %8472 = vmatprep.mubr.bf16.mxu0 0
        %8473 = vmatmul.mubr.bf16.gmra.mrb[0].mxu0 %v8325
        %v8474 = vpop.f32.mrb[0].mxu0
        %v8475 = vadd.f32 0.0, %v8474
        %v8476 = vpop.f32.mrb[0].mxu0
        %v8477 = vpop.f32.mrb[0].mxu0
        %v8478 = vadd.f32 0.0, %v8477
        %v8479 = vpop.f32.mrb[0].mxu0
        %8480 = vmatprep.mubr.bf16.mxu0 0
        %8481 = vmatmul.mubr.bf16.gmra.mrb[0].mxu0 %v8326
        %v8482 = vpop.f32.mrb[0].mxu0
        %v8483 = vadd.f32 0.0, %v8482
        %v8484 = vpop.f32.mrb[0].mxu0
        %v8485 = vpop.f32.mrb[0].mxu0
        %v8486 = vadd.f32 0.0, %v8485
        %v8487 = vpop.f32.mrb[0].mxu0
        %8488 = vmatprep.mubr.bf16.mxu0 0
        %8489 = vmatmul.mubr.bf16.gmra.mrb[0].mxu0 %v8327
        %v8490 = vpop.f32.mrb[0].mxu0
        %v8491 = vadd.f32 0.0, %v8490
        %v8492 = vpop.f32.mrb[0].mxu0
        %v8493 = vpop.f32.mrb[0].mxu0
        %v8494 = vadd.f32 0.0, %v8493
        %v8495 = vpop.f32.mrb[0].mxu0
        %8496 = vmatprep.mubr.bf16.mxu0 0
        %8497 = vmatmul.mubr.bf16.gmra.mrb[0].mxu0 %v8328
        %v8498 = vpop.f32.mrb[0].mxu0
        %v8499 = vadd.f32 0.0, %v8498
        %v8500 = vpop.f32.mrb[0].mxu0
        %v8501 = vpop.f32.mrb[0].mxu0
        %v8502 = vadd.f32 0.0, %v8501
        %v8503 = vpop.f32.mrb[0].mxu0
        %8504 = vmatprep.mubr.bf16.mxu0 0
        %8505 = vmatmul.mubr.bf16.gmra.mrb[0].mxu0 %v8329
        %v8506 = vpop.f32.mrb[0].mxu0
        %v8507 = vadd.f32 0.0, %v8506
        %v8508 = vpop.f32.mrb[0].mxu0
        %v8509 = vpop.f32.mrb[0].mxu0
        %v8510 = vadd.f32 0.0, %v8509
        %v8511 = vpop.f32.mrb[0].mxu0
        %8512 = vmatprep.mubr.bf16.mxu0 0
        %8513 = vmatmul.mubr.bf16.gmra.mrb[0].mxu0 %v8330
        %v8514 = vpop.f32.mrb[0].mxu0
        %v8515 = vadd.f32 0.0, %v8514
        %v8516 = vpop.f32.mrb[0].mxu0
        %v8517 = vpop.f32.mrb[0].mxu0
        %v8518 = vadd.f32 0.0, %v8517
        %v8519 = vpop.f32.mrb[0].mxu0
        %8520 = vmatprep.mubr.bf16.mxu0 0
        %8521 = vmatmul.mubr.bf16.gmra.mrb[0].mxu0 %v8331
        %v8522 = vpop.f32.mrb[0].mxu0
        %v8523 = vadd.f32 0.0, %v8522
        %v8524 = vpop.f32.mrb[0].mxu0
        %v8525 = vpop.f32.mrb[0].mxu0
        %v8526 = vadd.f32 0.0, %v8525
        %v8527 = vpop.f32.mrb[0].mxu0
        %8528 = vmatprep.mubr.bf16.mxu0 0
        %8529 = vmatmul.mubr.bf16.gmra.mrb[0].mxu0 %v8332
        %v8530 = vpop.f32.mrb[0].mxu0
        %v8531 = vadd.f32 0.0, %v8530
        %v8532 = vpop.f32.mrb[0].mxu0
        %v8533 = vpop.f32.mrb[0].mxu0
        %v8534 = vadd.f32 0.0, %v8533
        %v8535 = vpop.f32.mrb[0].mxu0
        %8536 = vmatprep.mubr.bf16.mxu0 0
        %8537 = vmatmul.mubr.bf16.gmra.mrb[0].mxu0 %v8333
        %v8538 = vpop.f32.mrb[0].mxu0
        %v8539 = vadd.f32 0.0, %v8538
        %v8540 = vpop.f32.mrb[0].mxu0
        %v8541 = vpop.f32.mrb[0].mxu0
        %v8542 = vadd.f32 0.0, %v8541
        %v8543 = vpop.f32.mrb[0].mxu0
        %8544 = vmatprep.mubr.bf16.mxu0 0
        %8545 = vmatmul.mubr.bf16.gmra.mrb[0].mxu0 %v8334
        %v8546 = vpop.f32.mrb[0].mxu0
        %v8547 = vadd.f32 0.0, %v8546
        %v8548 = vpop.f32.mrb[0].mxu0
        %v8549 = vpop.f32.mrb[0].mxu0
        %v8550 = vadd.f32 0.0, %v8549
        %v8551 = vpop.f32.mrb[0].mxu0
        %8552 = vmatprep.mubr.bf16.mxu0 0
        %8553 = vmatmul.mubr.bf16.gmra.mrb[0].mxu0 %v8335
        %v8554 = vpop.f32.mrb[0].mxu0
        %v8555 = vadd.f32 0.0, %v8554
        %v8556 = vpop.f32.mrb[0].mxu0
        %v8557 = vpop.f32.mrb[0].mxu0
        %v8558 = vadd.f32 0.0, %v8557
        %v8559 = vpop.f32.mrb[0].mxu0
        %8560 = vdwg.mxu0
        %v8561 = vadd.f32 %v8207, %v8435
        %v8562 = vadd.f32 %v8208, %v8438
        %v8563 = vadd.f32 %v8209, %v8443
        %v8564 = vadd.f32 %v8210, %v8446
        %v8565 = vadd.f32 %v8211, %v8451
        %v8566 = vadd.f32 %v8212, %v8454
        %v8567 = vadd.f32 %v8213, %v8459
        %v8568 = vadd.f32 %v8214, %v8462
        %v8569 = vadd.f32 %v8215, %v8467
        %v8570 = vadd.f32 %v8216, %v8470
        %v8571 = vadd.f32 %v8217, %v8475
        %v8572 = vadd.f32 %v8218, %v8478
        %v8573 = vadd.f32 %v8219, %v8483
        %v8574 = vadd.f32 %v8220, %v8486
        %v8575 = vadd.f32 %v8221, %v8491
        %v8576 = vadd.f32 %v8222, %v8494
        %v8577 = vadd.f32 %v8223, %v8499
        %v8578 = vadd.f32 %v8224, %v8502
        %v8579 = vadd.f32 %v8225, %v8507
        %v8580 = vadd.f32 %v8226, %v8510
        %v8581 = vadd.f32 %v8227, %v8515
        %v8582 = vadd.f32 %v8228, %v8518
        %v8583 = vadd.f32 %v8229, %v8523
        %v8584 = vadd.f32 %v8230, %v8526
        %v8585 = vadd.f32 %v8231, %v8531
        %v8586 = vadd.f32 %v8232, %v8534
        %v8587 = vadd.f32 %v8233, %v8539
        %v8588 = vadd.f32 %v8234, %v8542
        %v8589 = vadd.f32 %v8235, %v8547
        %v8590 = vadd.f32 %v8236, %v8550
        %v8591 = vadd.f32 %v8237, %v8555
        %v8592 = vadd.f32 %v8238, %v8558
        %v8593 = vld [vmem:[%s5620 + $0x8] sm:$0xf]
        %v8594 = vld [vmem:[%s5620 + $0xc] sm:$0xf]
        %v8595 = vld [vmem:[%s5620 + $0x10] sm:$0x1]
        %v8596 = vld [vmem:[%s5620 + $0x1c] sm:$0xf]
        %v8597 = vld [vmem:[%s5620 + $0x20] sm:$0xf]
        %v8598 = vld [vmem:[%s5620 + $0x24] sm:$0x1]
        %v8599 = vld [vmem:[%s5620 + $0x30] sm:$0xf]
        %v8600 = vld [vmem:[%s5620 + $0x34] sm:$0xf]
        %v8601 = vld [vmem:[%s5620 + $0x38] sm:$0x1]
        %v8602 = vld [vmem:[%s5620 + $0x44] sm:$0xf]
        %v8603 = vld [vmem:[%s5620 + $0x48] sm:$0xf]
        %v8604 = vld [vmem:[%s5620 + $0x4c] sm:$0x1]
        %v8605 = vld [vmem:[%s5620 + $0x58] sm:$0xf]
        %v8606 = vld [vmem:[%s5620 + $0x5c] sm:$0xf]
        %v8607 = vld [vmem:[%s5620 + $0x60] sm:$0x1]
        %v8608 = vld [vmem:[%s5620 + $0x6c] sm:$0xf]
        %v8609 = vld [vmem:[%s5620 + $0x70] sm:$0xf]
        %v8610 = vld [vmem:[%s5620 + $0x74] sm:$0x1]
        %v8611 = vld [vmem:[%s5620 + $0x80] sm:$0xf]
        %v8612 = vld [vmem:[%s5620 + $0x84] sm:$0xf]
        %v8613 = vld [vmem:[%s5620 + $0x88] sm:$0x1]
        %v8614 = vld [vmem:[%s5620 + $0x94] sm:$0xf]
        %v8615 = vld [vmem:[%s5620 + $0x98] sm:$0xf]
        %v8616 = vld [vmem:[%s5620 + $0x9c] sm:$0x1]
        %v8617 = vld [vmem:[%s5620 + $0xa8] sm:$0xf]
        %v8618 = vld [vmem:[%s5620 + $0xac] sm:$0xf]
        %v8619 = vld [vmem:[%s5620 + $0xb0] sm:$0x1]
        %v8620 = vld [vmem:[%s5620 + $0xbc] sm:$0xf]
        %v8621 = vld [vmem:[%s5620 + $0xc0] sm:$0xf]
        %v8622 = vld [vmem:[%s5620 + $0xc4] sm:$0x1]
        %v8623 = vld [vmem:[%s5620 + $0xd0] sm:$0xf]
        %v8624 = vld [vmem:[%s5620 + $0xd4] sm:$0xf]
        %v8625 = vld [vmem:[%s5620 + $0xd8] sm:$0x1]
        %v8626 = vld [vmem:[%s5620 + $0xe4] sm:$0xf]
        %v8627 = vld [vmem:[%s5620 + $0xe8] sm:$0xf]
        %v8628 = vld [vmem:[%s5620 + $0xec] sm:$0x1]
        %v8629 = vld [vmem:[%s5620 + $0xf8] sm:$0xf]
        %v8630 = vld [vmem:[%s5620 + $0xfc] sm:$0xf]
        %v8631 = vld [vmem:[%s5620 + $0x100] sm:$0x1]
        %v8632 = vld [vmem:[%s5620 + $0x10c] sm:$0xf]
        %v8633 = vld [vmem:[%s5620 + $0x110] sm:$0xf]
        %v8634 = vld [vmem:[%s5620 + $0x114] sm:$0x1]
        %v8635 = vld [vmem:[%s5620 + $0x120] sm:$0xf]
        %v8636 = vld [vmem:[%s5620 + $0x124] sm:$0xf]
        %v8637 = vld [vmem:[%s5620 + $0x128] sm:$0x1]
        %v8638 = vld [vmem:[%s5620 + $0x134] sm:$0xf]
        %v8639 = vld [vmem:[%s5620 + $0x138] sm:$0xf]
        %v8640 = vld [vmem:[%s5620 + $0x13c] sm:$0x1]
        %v8642 = vshrl.u32 %v8593, 16
        %v8644 = vrot.slane %v8642, 4
        %v8645 = vshll.u32 %v8593, 16
        %v8647 = vrot.slane %v8645, 5
        %v8648 = vor.u32 %v8644, %v8647
        %v8649 = vrot.slane %v8648, 4
        %v8651 = vshll.u32 %v8594, 16
        %v8653 = vrot.slane %v8651, 5
        %v8654 = vsel %vm820, %v8649, %v8653
        %v8655 = vshrl.u32 %v8594, 16
        %v8657 = vrot.slane %v8655, 4
        %v8658 = vor.u32 %v8657, %v8653
        %v8659 = vrot.slane %v8658, 4
        %v8661 = vshll.u32 %v8595, 16
        %v8663 = vrot.slane %v8661, 5
        %v8664 = vsel %vm820, %v8659, %v8663
        %v8666 = vshrl.u32 %v8596, 16
        %v8668 = vrot.slane %v8666, 4
        %v8669 = vshll.u32 %v8596, 16
        %v8671 = vrot.slane %v8669, 5
        %v8672 = vor.u32 %v8668, %v8671
        %v8673 = vrot.slane %v8672, 4
        %v8675 = vshll.u32 %v8597, 16
        %v8677 = vrot.slane %v8675, 5
        %v8678 = vsel %vm820, %v8673, %v8677
        %v8679 = vshrl.u32 %v8597, 16
        %v8681 = vrot.slane %v8679, 4
        %v8682 = vor.u32 %v8681, %v8677
        %v8683 = vrot.slane %v8682, 4
        %v8685 = vshll.u32 %v8598, 16
        %v8687 = vrot.slane %v8685, 5
        %v8688 = vsel %vm820, %v8683, %v8687
        %v8690 = vshrl.u32 %v8599, 16
        %v8692 = vrot.slane %v8690, 4
        %v8693 = vshll.u32 %v8599, 16
        %v8695 = vrot.slane %v8693, 5
        %v8696 = vor.u32 %v8692, %v8695
        %v8697 = vrot.slane %v8696, 4
        %v8699 = vshll.u32 %v8600, 16
        %v8701 = vrot.slane %v8699, 5
        %v8702 = vsel %vm820, %v8697, %v8701
        %v8703 = vshrl.u32 %v8600, 16
        %v8705 = vrot.slane %v8703, 4
        %v8706 = vor.u32 %v8705, %v8701
        %v8707 = vrot.slane %v8706, 4
        %v8709 = vshll.u32 %v8601, 16
        %v8711 = vrot.slane %v8709, 5
        %v8712 = vsel %vm820, %v8707, %v8711
        %v8714 = vshrl.u32 %v8602, 16
        %v8716 = vrot.slane %v8714, 4
        %v8717 = vshll.u32 %v8602, 16
        %v8719 = vrot.slane %v8717, 5
        %v8720 = vor.u32 %v8716, %v8719
        %v8721 = vrot.slane %v8720, 4
        %v8723 = vshll.u32 %v8603, 16
        %v8725 = vrot.slane %v8723, 5
        %v8726 = vsel %vm820, %v8721, %v8725
        %v8727 = vshrl.u32 %v8603, 16
        %v8729 = vrot.slane %v8727, 4
        %v8730 = vor.u32 %v8729, %v8725
        %v8731 = vrot.slane %v8730, 4
        %v8733 = vshll.u32 %v8604, 16
        %v8735 = vrot.slane %v8733, 5
        %v8736 = vsel %vm820, %v8731, %v8735
        %v8738 = vshrl.u32 %v8605, 16
        %v8740 = vrot.slane %v8738, 4
        %v8741 = vshll.u32 %v8605, 16
        %v8743 = vrot.slane %v8741, 5
        %v8744 = vor.u32 %v8740, %v8743
        %v8745 = vrot.slane %v8744, 4
        %v8747 = vshll.u32 %v8606, 16
        %v8749 = vrot.slane %v8747, 5
        %v8750 = vsel %vm820, %v8745, %v8749
        %v8751 = vshrl.u32 %v8606, 16
        %v8753 = vrot.slane %v8751, 4
        %v8754 = vor.u32 %v8753, %v8749
        %v8755 = vrot.slane %v8754, 4
        %v8757 = vshll.u32 %v8607, 16
        %v8759 = vrot.slane %v8757, 5
        %v8760 = vsel %vm820, %v8755, %v8759
        %v8762 = vshrl.u32 %v8608, 16
        %v8764 = vrot.slane %v8762, 4
        %v8765 = vshll.u32 %v8608, 16
        %v8767 = vrot.slane %v8765, 5
        %v8768 = vor.u32 %v8764, %v8767
        %v8769 = vrot.slane %v8768, 4
        %v8771 = vshll.u32 %v8609, 16
        %v8773 = vrot.slane %v8771, 5
        %v8774 = vsel %vm820, %v8769, %v8773
        %v8775 = vshrl.u32 %v8609, 16
        %v8777 = vrot.slane %v8775, 4
        %v8778 = vor.u32 %v8777, %v8773
        %v8779 = vrot.slane %v8778, 4
        %v8781 = vshll.u32 %v8610, 16
        %v8783 = vrot.slane %v8781, 5
        %v8784 = vsel %vm820, %v8779, %v8783
        %v8786 = vshrl.u32 %v8611, 16
        %v8788 = vrot.slane %v8786, 4
        %v8789 = vshll.u32 %v8611, 16
        %v8791 = vrot.slane %v8789, 5
        %v8792 = vor.u32 %v8788, %v8791
        %v8793 = vrot.slane %v8792, 4
        %v8795 = vshll.u32 %v8612, 16
        %v8797 = vrot.slane %v8795, 5
        %v8798 = vsel %vm820, %v8793, %v8797
        %v8799 = vshrl.u32 %v8612, 16
        %v8801 = vrot.slane %v8799, 4
        %v8802 = vor.u32 %v8801, %v8797
        %v8803 = vrot.slane %v8802, 4
        %v8805 = vshll.u32 %v8613, 16
        %v8807 = vrot.slane %v8805, 5
        %v8808 = vsel %vm820, %v8803, %v8807
        %v8810 = vshrl.u32 %v8614, 16
        %v8812 = vrot.slane %v8810, 4
        %v8813 = vshll.u32 %v8614, 16
        %v8815 = vrot.slane %v8813, 5
        %v8816 = vor.u32 %v8812, %v8815
        %v8817 = vrot.slane %v8816, 4
        %v8819 = vshll.u32 %v8615, 16
        %v8821 = vrot.slane %v8819, 5
        %v8822 = vsel %vm820, %v8817, %v8821
        %v8823 = vshrl.u32 %v8615, 16
        %v8825 = vrot.slane %v8823, 4
        %v8826 = vor.u32 %v8825, %v8821
        %v8827 = vrot.slane %v8826, 4
        %v8829 = vshll.u32 %v8616, 16
        %v8831 = vrot.slane %v8829, 5
        %v8832 = vsel %vm820, %v8827, %v8831
        %v8834 = vshrl.u32 %v8617, 16
        %v8836 = vrot.slane %v8834, 4
        %v8837 = vshll.u32 %v8617, 16
        %v8839 = vrot.slane %v8837, 5
        %v8840 = vor.u32 %v8836, %v8839
        %v8841 = vrot.slane %v8840, 4
        %v8843 = vshll.u32 %v8618, 16
        %v8845 = vrot.slane %v8843, 5
        %v8846 = vsel %vm820, %v8841, %v8845
        %v8847 = vshrl.u32 %v8618, 16
        %v8849 = vrot.slane %v8847, 4
        %v8850 = vor.u32 %v8849, %v8845
        %v8851 = vrot.slane %v8850, 4
        %v8853 = vshll.u32 %v8619, 16
        %v8855 = vrot.slane %v8853, 5
        %v8856 = vsel %vm820, %v8851, %v8855
        %v8858 = vshrl.u32 %v8620, 16
        %v8860 = vrot.slane %v8858, 4
        %v8861 = vshll.u32 %v8620, 16
        %v8863 = vrot.slane %v8861, 5
        %v8864 = vor.u32 %v8860, %v8863
        %v8865 = vrot.slane %v8864, 4
        %v8867 = vshll.u32 %v8621, 16
        %v8869 = vrot.slane %v8867, 5
        %v8870 = vsel %vm820, %v8865, %v8869
        %v8871 = vshrl.u32 %v8621, 16
        %v8873 = vrot.slane %v8871, 4
        %v8874 = vor.u32 %v8873, %v8869
        %v8875 = vrot.slane %v8874, 4
        %v8877 = vshll.u32 %v8622, 16
        %v8879 = vrot.slane %v8877, 5
        %v8880 = vsel %vm820, %v8875, %v8879
        %v8882 = vshrl.u32 %v8623, 16
        %v8884 = vrot.slane %v8882, 4
        %v8885 = vshll.u32 %v8623, 16
        %v8887 = vrot.slane %v8885, 5
        %v8888 = vor.u32 %v8884, %v8887
        %v8889 = vrot.slane %v8888, 4
        %v8891 = vshll.u32 %v8624, 16
        %v8893 = vrot.slane %v8891, 5
        %v8894 = vsel %vm820, %v8889, %v8893
        %v8895 = vshrl.u32 %v8624, 16
        %v8897 = vrot.slane %v8895, 4
        %v8898 = vor.u32 %v8897, %v8893
        %v8899 = vrot.slane %v8898, 4
        %v8901 = vshll.u32 %v8625, 16
        %v8903 = vrot.slane %v8901, 5
        %v8904 = vsel %vm820, %v8899, %v8903
        %v8906 = vshrl.u32 %v8626, 16
        %v8908 = vrot.slane %v8906, 4
        %v8909 = vshll.u32 %v8626, 16
        %v8911 = vrot.slane %v8909, 5
        %v8912 = vor.u32 %v8908, %v8911
        %v8913 = vrot.slane %v8912, 4
        %v8915 = vshll.u32 %v8627, 16
        %v8917 = vrot.slane %v8915, 5
        %v8918 = vsel %vm820, %v8913, %v8917
        %v8919 = vshrl.u32 %v8627, 16
        %v8921 = vrot.slane %v8919, 4
        %v8922 = vor.u32 %v8921, %v8917
        %v8923 = vrot.slane %v8922, 4
        %v8925 = vshll.u32 %v8628, 16
        %v8927 = vrot.slane %v8925, 5
        %v8928 = vsel %vm820, %v8923, %v8927
        %v8930 = vshrl.u32 %v8629, 16
        %v8932 = vrot.slane %v8930, 4
        %v8933 = vshll.u32 %v8629, 16
        %v8935 = vrot.slane %v8933, 5
        %v8936 = vor.u32 %v8932, %v8935
        %v8937 = vrot.slane %v8936, 4
        %v8939 = vshll.u32 %v8630, 16
        %v8941 = vrot.slane %v8939, 5
        %v8942 = vsel %vm820, %v8937, %v8941
        %v8943 = vshrl.u32 %v8630, 16
        %v8945 = vrot.slane %v8943, 4
        %v8946 = vor.u32 %v8945, %v8941
        %v8947 = vrot.slane %v8946, 4
        %v8949 = vshll.u32 %v8631, 16
        %v8951 = vrot.slane %v8949, 5
        %v8952 = vsel %vm820, %v8947, %v8951
        %v8954 = vshrl.u32 %v8632, 16
        %v8956 = vrot.slane %v8954, 4
        %v8957 = vshll.u32 %v8632, 16
        %v8959 = vrot.slane %v8957, 5
        %v8960 = vor.u32 %v8956, %v8959
        %v8961 = vrot.slane %v8960, 4
        %v8963 = vshll.u32 %v8633, 16
        %v8965 = vrot.slane %v8963, 5
        %v8966 = vsel %vm820, %v8961, %v8965
        %v8967 = vshrl.u32 %v8633, 16
        %v8969 = vrot.slane %v8967, 4
        %v8970 = vor.u32 %v8969, %v8965
        %v8971 = vrot.slane %v8970, 4
        %v8973 = vshll.u32 %v8634, 16
        %v8975 = vrot.slane %v8973, 5
        %v8976 = vsel %vm820, %v8971, %v8975
        %v8978 = vshrl.u32 %v8635, 16
        %v8980 = vrot.slane %v8978, 4
        %v8981 = vshll.u32 %v8635, 16
        %v8983 = vrot.slane %v8981, 5
        %v8984 = vor.u32 %v8980, %v8983
        %v8985 = vrot.slane %v8984, 4
        %v8987 = vshll.u32 %v8636, 16
        %v8989 = vrot.slane %v8987, 5
        %v8990 = vsel %vm820, %v8985, %v8989
        %v8991 = vshrl.u32 %v8636, 16
        %v8993 = vrot.slane %v8991, 4
        %v8994 = vor.u32 %v8993, %v8989
        %v8995 = vrot.slane %v8994, 4
        %v8997 = vshll.u32 %v8637, 16
        %v8999 = vrot.slane %v8997, 5
        %v9000 = vsel %vm820, %v8995, %v8999
        %v9002 = vshrl.u32 %v8638, 16
        %v9004 = vrot.slane %v9002, 4
        %v9005 = vshll.u32 %v8638, 16
        %v9007 = vrot.slane %v9005, 5
        %v9008 = vor.u32 %v9004, %v9007
        %v9009 = vrot.slane %v9008, 4
        %v9011 = vshll.u32 %v8639, 16
        %v9013 = vrot.slane %v9011, 5
        %v9014 = vsel %vm820, %v9009, %v9013
        %v9015 = vshrl.u32 %v8639, 16
        %v9017 = vrot.slane %v9015, 4
        %v9018 = vor.u32 %v9017, %v9013
        %v9019 = vrot.slane %v9018, 4
        %v9021 = vshll.u32 %v8640, 16
        %v9023 = vrot.slane %v9021, 5
        %v9024 = vsel %vm820, %v9019, %v9023
        %s9025 = scalar_lea.vmem %s3, 320
        %v9026 = vld [vmem:[%s9025] sm:$0xf]
        %v9027 = vld [vmem:[%s9025 + $0x4] sm:$0xf]
        %v9028 = vld [vmem:[%s9025 + $0x8] sm:$0xf]
        %v9029 = vld [vmem:[%s9025 + $0xc] sm:$0xf]
        %v9030 = vld [vmem:[%s9025 + $0x10] sm:$0xf]
        %v9031 = vld [vmem:[%s9025 + $0x14] sm:$0xf]
        %v9032 = vld [vmem:[%s9025 + $0x18] sm:$0xf]
        %v9033 = vld [vmem:[%s9025 + $0x1c] sm:$0xf]
        %v9034 = vld [vmem:[%s9025 + $0x20] sm:$0xf]
        %v9035 = vld [vmem:[%s9025 + $0x24] sm:$0xf]
        %v9036 = vld [vmem:[%s9025 + $0x28] sm:$0xf]
        %v9037 = vld [vmem:[%s9025 + $0x2c] sm:$0xf]
        %v9038 = vld [vmem:[%s9025 + $0x30] sm:$0xf]
        %v9039 = vld [vmem:[%s9025 + $0x34] sm:$0xf]
        %v9040 = vld [vmem:[%s9025 + $0x38] sm:$0xf]
        %v9041 = vld [vmem:[%s9025 + $0x3c] sm:$0xf]
        %v9042 = vunpack.c.l.b16 %v8654
        %v9043 = vunpack.c.l.b16 %v8664
        %v9044 = vunpack.c.l.b16 %v8678
        %v9045 = vunpack.c.l.b16 %v8688
        %v9046 = vunpack.c.l.b16 %v8702
        %v9047 = vunpack.c.l.b16 %v8712
        %v9048 = vunpack.c.l.b16 %v8726
        %v9049 = vunpack.c.l.b16 %v8736
        %v9050 = vunpack.c.l.b16 %v8750
        %v9051 = vunpack.c.l.b16 %v8760
        %v9052 = vunpack.c.l.b16 %v8774
        %v9053 = vunpack.c.l.b16 %v8784
        %v9054 = vunpack.c.l.b16 %v8798
        %v9055 = vunpack.c.l.b16 %v8808
        %v9056 = vunpack.c.l.b16 %v8822
        %v9057 = vunpack.c.l.b16 %v8832
        %v9058 = vunpack.c.l.b16 %v8846
        %v9059 = vunpack.c.l.b16 %v8856
        %v9060 = vunpack.c.l.b16 %v8870
        %v9061 = vunpack.c.l.b16 %v8880
        %v9062 = vunpack.c.l.b16 %v8894
        %v9063 = vunpack.c.l.b16 %v8904
        %v9064 = vunpack.c.l.b16 %v8918
        %v9065 = vunpack.c.l.b16 %v8928
        %v9066 = vunpack.c.l.b16 %v8942
        %v9067 = vunpack.c.l.b16 %v8952
        %v9068 = vunpack.c.l.b16 %v8966
        %v9069 = vunpack.c.l.b16 %v8976
        %v9070 = vunpack.c.l.b16 %v8990
        %v9071 = vunpack.c.l.b16 %v9000
        %v9072 = vunpack.c.l.b16 %v9014
        %v9073 = vunpack.c.l.b16 %v9024
        %v9074 = vpack.c.b16 %v9043, %v9042
        %v9075 = vpack.c.b16 %v9045, %v9044
        %v9076 = vpack.c.b16 %v9047, %v9046
        %v9077 = vpack.c.b16 %v9049, %v9048
        %v9078 = vpack.c.b16 %v9051, %v9050
        %v9079 = vpack.c.b16 %v9053, %v9052
        %v9080 = vpack.c.b16 %v9055, %v9054
        %v9081 = vpack.c.b16 %v9057, %v9056
        %v9082 = vpack.c.b16 %v9059, %v9058
        %v9083 = vpack.c.b16 %v9061, %v9060
        %v9084 = vpack.c.b16 %v9063, %v9062
        %v9085 = vpack.c.b16 %v9065, %v9064
        %v9086 = vpack.c.b16 %v9067, %v9066
        %v9087 = vpack.c.b16 %v9069, %v9068
        %v9088 = vpack.c.b16 %v9071, %v9070
        %v9089 = vpack.c.b16 %v9073, %v9072
        %v9122 = vunpack.c.l.b16 %v9026
        %v9123 = vunpack.c.l.b16 %v9027
        %v9124 = vunpack.c.l.b16 %v9028
        %v9125 = vunpack.c.l.b16 %v9029
        %v9126 = vunpack.c.l.b16 %v9030
        %v9127 = vunpack.c.l.b16 %v9031
        %v9128 = vunpack.c.l.b16 %v9032
        %v9129 = vunpack.c.l.b16 %v9033
        %v9130 = vunpack.c.l.b16 %v9034
        %v9131 = vunpack.c.l.b16 %v9035
        %v9132 = vunpack.c.l.b16 %v9036
        %v9133 = vunpack.c.l.b16 %v9037
        %v9134 = vunpack.c.l.b16 %v9038
        %v9135 = vunpack.c.l.b16 %v9039
        %v9136 = vunpack.c.l.b16 %v9040
        %v9137 = vunpack.c.l.b16 %v9041
        %v9138 = vpack.c.b16 %v9123, %v9122
        %v9139 = vpack.c.b16 %v9125, %v9124
        %v9140 = vpack.c.b16 %v9127, %v9126
        %v9141 = vpack.c.b16 %v9129, %v9128
        %v9142 = vpack.c.b16 %v9131, %v9130
        %v9143 = vpack.c.b16 %v9133, %v9132
        %v9144 = vpack.c.b16 %v9135, %v9134
        %v9145 = vpack.c.b16 %v9137, %v9136
        %9154 = vmatprep.subr.bf16.mxu0 0
        %9155 = vmatpush1.bf16.msra.mxu0 %v9138
        %9156 = vmatprep.subr.bf16.mxu0 0
        %9157 = vmatpush1.bf16.msra.mxu0 %v9139
        %9158 = vmatprep.subr.bf16.mxu0 0
        %9159 = vmatpush1.bf16.msra.mxu0 %v9140
        %9160 = vmatprep.subr.bf16.mxu0 0
        %9161 = vmatpush1.bf16.msra.mxu0 %v9141
        %9162 = vmatprep.subr.bf16.mxu0 0
        %9163 = vmatpush1.bf16.msra.mxu0 %v9142
        %9164 = vmatprep.subr.bf16.mxu0 0
        %9165 = vmatpush1.bf16.msra.mxu0 %v9143
        %9166 = vmatprep.subr.bf16.mxu0 0
        %9167 = vmatpush1.bf16.msra.mxu0 %v9144
        %9168 = vmatprep.subr.bf16.mxu0 0
        %9169 = vmatpush1.bf16.msra.mxu0 %v9145
        %9170 = vmatprep.subr.bf16.mxu0 0
        %9171 = vmatpush1.bf16.msra.mxu0 0
        %9172 = vmatprep.subr.bf16.mxu0 0
        %9173 = vmatpush1.bf16.msra.mxu0 0
        %9174 = vmatprep.subr.bf16.mxu0 0
        %9175 = vmatpush1.bf16.msra.mxu0 0
        %9176 = vmatprep.subr.bf16.mxu0 0
        %9177 = vmatpush1.bf16.msra.mxu0 0
        %9178 = vmatprep.subr.bf16.mxu0 0
        %9179 = vmatpush1.bf16.msra.mxu0 0
        %9180 = vmatprep.subr.bf16.mxu0 0
        %9181 = vmatpush1.bf16.msra.mxu0 0
        %9182 = vmatprep.subr.bf16.mxu0 0
        %9183 = vmatpush1.bf16.msra.mxu0 0
        %9184 = vmatprep.subr.bf16.mxu0 0
        %9185 = vmatpush1.bf16.msra.mxu0 0
        %9186 = vmatprep.mubr.bf16.mxu0 0
        %9187 = vmatmul.mubr.bf16.gmra.mrb[0].mxu0 %v9074
        %v9188 = vpop.f32.mrb[0].mxu0
        %v9189 = vadd.f32 0.0, %v9188
        %v9190 = vpop.f32.mrb[0].mxu0
        %v9191 = vpop.f32.mrb[0].mxu0
        %v9192 = vadd.f32 0.0, %v9191
        %v9193 = vpop.f32.mrb[0].mxu0
        %9194 = vmatprep.mubr.bf16.mxu0 0
        %9195 = vmatmul.mubr.bf16.gmra.mrb[0].mxu0 %v9075
        %v9196 = vpop.f32.mrb[0].mxu0
        %v9197 = vadd.f32 0.0, %v9196
        %v9198 = vpop.f32.mrb[0].mxu0
        %v9199 = vpop.f32.mrb[0].mxu0
        %v9200 = vadd.f32 0.0, %v9199
        %v9201 = vpop.f32.mrb[0].mxu0
        %9202 = vmatprep.mubr.bf16.mxu0 0
        %9203 = vmatmul.mubr.bf16.gmra.mrb[0].mxu0 %v9076
        %v9204 = vpop.f32.mrb[0].mxu0
        %v9205 = vadd.f32 0.0, %v9204
        %v9206 = vpop.f32.mrb[0].mxu0
        %v9207 = vpop.f32.mrb[0].mxu0
        %v9208 = vadd.f32 0.0, %v9207
        %v9209 = vpop.f32.mrb[0].mxu0
        %9210 = vmatprep.mubr.bf16.mxu0 0
        %9211 = vmatmul.mubr.bf16.gmra.mrb[0].mxu0 %v9077
        %v9212 = vpop.f32.mrb[0].mxu0
        %v9213 = vadd.f32 0.0, %v9212
        %v9214 = vpop.f32.mrb[0].mxu0
        %v9215 = vpop.f32.mrb[0].mxu0
        %v9216 = vadd.f32 0.0, %v9215
        %v9217 = vpop.f32.mrb[0].mxu0
        %9218 = vmatprep.mubr.bf16.mxu0 0
        %9219 = vmatmul.mubr.bf16.gmra.mrb[0].mxu0 %v9078
        %v9220 = vpop.f32.mrb[0].mxu0
        %v9221 = vadd.f32 0.0, %v9220
        %v9222 = vpop.f32.mrb[0].mxu0
        %v9223 = vpop.f32.mrb[0].mxu0
        %v9224 = vadd.f32 0.0, %v9223
        %v9225 = vpop.f32.mrb[0].mxu0
        %9226 = vmatprep.mubr.bf16.mxu0 0
        %9227 = vmatmul.mubr.bf16.gmra.mrb[0].mxu0 %v9079
        %v9228 = vpop.f32.mrb[0].mxu0
        %v9229 = vadd.f32 0.0, %v9228
        %v9230 = vpop.f32.mrb[0].mxu0
        %v9231 = vpop.f32.mrb[0].mxu0
        %v9232 = vadd.f32 0.0, %v9231
        %v9233 = vpop.f32.mrb[0].mxu0
        %9234 = vmatprep.mubr.bf16.mxu0 0
        %9235 = vmatmul.mubr.bf16.gmra.mrb[0].mxu0 %v9080
        %v9236 = vpop.f32.mrb[0].mxu0
        %v9237 = vadd.f32 0.0, %v9236
        %v9238 = vpop.f32.mrb[0].mxu0
        %v9239 = vpop.f32.mrb[0].mxu0
        %v9240 = vadd.f32 0.0, %v9239
        %v9241 = vpop.f32.mrb[0].mxu0
        %9242 = vmatprep.mubr.bf16.mxu0 0
        %9243 = vmatmul.mubr.bf16.gmra.mrb[0].mxu0 %v9081
        %v9244 = vpop.f32.mrb[0].mxu0
        %v9245 = vadd.f32 0.0, %v9244
        %v9246 = vpop.f32.mrb[0].mxu0
        %v9247 = vpop.f32.mrb[0].mxu0
        %v9248 = vadd.f32 0.0, %v9247
        %v9249 = vpop.f32.mrb[0].mxu0
        %9250 = vmatprep.mubr.bf16.mxu0 0
        %9251 = vmatmul.mubr.bf16.gmra.mrb[0].mxu0 %v9082
        %v9252 = vpop.f32.mrb[0].mxu0
        %v9253 = vadd.f32 0.0, %v9252
        %v9254 = vpop.f32.mrb[0].mxu0
        %v9255 = vpop.f32.mrb[0].mxu0
        %v9256 = vadd.f32 0.0, %v9255
        %v9257 = vpop.f32.mrb[0].mxu0
        %9258 = vmatprep.mubr.bf16.mxu0 0
        %9259 = vmatmul.mubr.bf16.gmra.mrb[0].mxu0 %v9083
        %v9260 = vpop.f32.mrb[0].mxu0
        %v9261 = vadd.f32 0.0, %v9260
        %v9262 = vpop.f32.mrb[0].mxu0
        %v9263 = vpop.f32.mrb[0].mxu0
        %v9264 = vadd.f32 0.0, %v9263
        %v9265 = vpop.f32.mrb[0].mxu0
        %9266 = vmatprep.mubr.bf16.mxu0 0
        %9267 = vmatmul.mubr.bf16.gmra.mrb[0].mxu0 %v9084
        %v9268 = vpop.f32.mrb[0].mxu0
        %v9269 = vadd.f32 0.0, %v9268
        %v9270 = vpop.f32.mrb[0].mxu0
        %v9271 = vpop.f32.mrb[0].mxu0
        %v9272 = vadd.f32 0.0, %v9271
        %v9273 = vpop.f32.mrb[0].mxu0
        %9274 = vmatprep.mubr.bf16.mxu0 0
        %9275 = vmatmul.mubr.bf16.gmra.mrb[0].mxu0 %v9085
        %v9276 = vpop.f32.mrb[0].mxu0
        %v9277 = vadd.f32 0.0, %v9276
        %v9278 = vpop.f32.mrb[0].mxu0
        %v9279 = vpop.f32.mrb[0].mxu0
        %v9280 = vadd.f32 0.0, %v9279
        %v9281 = vpop.f32.mrb[0].mxu0
        %9282 = vmatprep.mubr.bf16.mxu0 0
        %9283 = vmatmul.mubr.bf16.gmra.mrb[0].mxu0 %v9086
        %v9284 = vpop.f32.mrb[0].mxu0
        %v9285 = vadd.f32 0.0, %v9284
        %v9286 = vpop.f32.mrb[0].mxu0
        %v9287 = vpop.f32.mrb[0].mxu0
        %v9288 = vadd.f32 0.0, %v9287
        %v9289 = vpop.f32.mrb[0].mxu0
        %9290 = vmatprep.mubr.bf16.mxu0 0
        %9291 = vmatmul.mubr.bf16.gmra.mrb[0].mxu0 %v9087
        %v9292 = vpop.f32.mrb[0].mxu0
        %v9293 = vadd.f32 0.0, %v9292
        %v9294 = vpop.f32.mrb[0].mxu0
        %v9295 = vpop.f32.mrb[0].mxu0
        %v9296 = vadd.f32 0.0, %v9295
        %v9297 = vpop.f32.mrb[0].mxu0
        %9298 = vmatprep.mubr.bf16.mxu0 0
        %9299 = vmatmul.mubr.bf16.gmra.mrb[0].mxu0 %v9088
        %v9300 = vpop.f32.mrb[0].mxu0
        %v9301 = vadd.f32 0.0, %v9300
        %v9302 = vpop.f32.mrb[0].mxu0
        %v9303 = vpop.f32.mrb[0].mxu0
        %v9304 = vadd.f32 0.0, %v9303
        %v9305 = vpop.f32.mrb[0].mxu0
        %9306 = vmatprep.mubr.bf16.mxu0 0
        %9307 = vmatmul.mubr.bf16.gmra.mrb[0].mxu0 %v9089
        %v9308 = vpop.f32.mrb[0].mxu0
        %v9309 = vadd.f32 0.0, %v9308
        %v9310 = vpop.f32.mrb[0].mxu0
        %v9311 = vpop.f32.mrb[0].mxu0
        %v9312 = vadd.f32 0.0, %v9311
        %v9313 = vpop.f32.mrb[0].mxu0
        %9314 = vdwg.mxu0
        %v9315 = vadd.f32 %v8561, %v9189
        %v9316 = vadd.f32 %v8562, %v9192
        %v9317 = vadd.f32 %v8563, %v9197
        %v9318 = vadd.f32 %v8564, %v9200
        %v9319 = vadd.f32 %v8565, %v9205
        %v9320 = vadd.f32 %v8566, %v9208
        %v9321 = vadd.f32 %v8567, %v9213
        %v9322 = vadd.f32 %v8568, %v9216
        %v9323 = vadd.f32 %v8569, %v9221
        %v9324 = vadd.f32 %v8570, %v9224
        %v9325 = vadd.f32 %v8571, %v9229
        %v9326 = vadd.f32 %v8572, %v9232
        %v9327 = vadd.f32 %v8573, %v9237
        %v9328 = vadd.f32 %v8574, %v9240
        %v9329 = vadd.f32 %v8575, %v9245
        %v9330 = vadd.f32 %v8576, %v9248
        %v9331 = vadd.f32 %v8577, %v9253
        %v9332 = vadd.f32 %v8578, %v9256
        %v9333 = vadd.f32 %v8579, %v9261
        %v9334 = vadd.f32 %v8580, %v9264
        %v9335 = vadd.f32 %v8581, %v9269
        %v9336 = vadd.f32 %v8582, %v9272
        %v9337 = vadd.f32 %v8583, %v9277
        %v9338 = vadd.f32 %v8584, %v9280
        %v9339 = vadd.f32 %v8585, %v9285
        %v9340 = vadd.f32 %v8586, %v9288
        %v9341 = vadd.f32 %v8587, %v9293
        %v9342 = vadd.f32 %v8588, %v9296
        %v9343 = vadd.f32 %v8589, %v9301
        %v9344 = vadd.f32 %v8590, %v9304
        %v9345 = vadd.f32 %v8591, %v9309
        %v9346 = vadd.f32 %v8592, %v9312
        %s9347 = scalar_lea.vmem [#allocation2], 40
        %v9348 = vld [vmem:[%s9347 + $0x4] sm:$0x8]
        %v9349 = vld [vmem:[%s9347 + $0x8] sm:$0xf]
        %v9350 = vld [vmem:[%s9347 + $0xc] sm:$0xf]
        %v9351 = vld [vmem:[%s9347 + $0x18] sm:$0x8]
        %v9352 = vld [vmem:[%s9347 + $0x1c] sm:$0xf]
        %v9353 = vld [vmem:[%s9347 + $0x20] sm:$0xf]
        %v9354 = vld [vmem:[%s9347 + $0x2c] sm:$0x8]
        %v9355 = vld [vmem:[%s9347 + $0x30] sm:$0xf]
        %v9356 = vld [vmem:[%s9347 + $0x34] sm:$0xf]
        %v9357 = vld [vmem:[%s9347 + $0x40] sm:$0x8]
        %v9358 = vld [vmem:[%s9347 + $0x44] sm:$0xf]
        %v9359 = vld [vmem:[%s9347 + $0x48] sm:$0xf]
        %v9360 = vld [vmem:[%s9347 + $0x54] sm:$0x8]
        %v9361 = vld [vmem:[%s9347 + $0x58] sm:$0xf]
        %v9362 = vld [vmem:[%s9347 + $0x5c] sm:$0xf]
        %v9363 = vld [vmem:[%s9347 + $0x68] sm:$0x8]
        %v9364 = vld [vmem:[%s9347 + $0x6c] sm:$0xf]
        %v9365 = vld [vmem:[%s9347 + $0x70] sm:$0xf]
        %v9366 = vld [vmem:[%s9347 + $0x7c] sm:$0x8]
        %v9367 = vld [vmem:[%s9347 + $0x80] sm:$0xf]
        %v9368 = vld [vmem:[%s9347 + $0x84] sm:$0xf]
        %v9369 = vld [vmem:[%s9347 + $0x90] sm:$0x8]
        %v9370 = vld [vmem:[%s9347 + $0x94] sm:$0xf]
        %v9371 = vld [vmem:[%s9347 + $0x98] sm:$0xf]
        %v9372 = vld [vmem:[%s9347 + $0xa4] sm:$0x8]
        %v9373 = vld [vmem:[%s9347 + $0xa8] sm:$0xf]
        %v9374 = vld [vmem:[%s9347 + $0xac] sm:$0xf]
        %v9375 = vld [vmem:[%s9347 + $0xb8] sm:$0x8]
        %v9376 = vld [vmem:[%s9347 + $0xbc] sm:$0xf]
        %v9377 = vld [vmem:[%s9347 + $0xc0] sm:$0xf]
        %v9378 = vld [vmem:[%s9347 + $0xcc] sm:$0x8]
        %v9379 = vld [vmem:[%s9347 + $0xd0] sm:$0xf]
        %v9380 = vld [vmem:[%s9347 + $0xd4] sm:$0xf]
        %v9381 = vld [vmem:[%s9347 + $0xe0] sm:$0x8]
        %v9382 = vld [vmem:[%s9347 + $0xe4] sm:$0xf]
        %v9383 = vld [vmem:[%s9347 + $0xe8] sm:$0xf]
        %v9384 = vld [vmem:[%s9347 + $0xf4] sm:$0x8]
        %v9385 = vld [vmem:[%s9347 + $0xf8] sm:$0xf]
        %v9386 = vld [vmem:[%s9347 + $0xfc] sm:$0xf]
        %v9387 = vld [vmem:[%s9347 + $0x108] sm:$0x8]
        %v9388 = vld [vmem:[%s9347 + $0x10c] sm:$0xf]
        %v9389 = vld [vmem:[%s9347 + $0x110] sm:$0xf]
        %v9390 = vld [vmem:[%s9347 + $0x11c] sm:$0x8]
        %v9391 = vld [vmem:[%s9347 + $0x120] sm:$0xf]
        %v9392 = vld [vmem:[%s9347 + $0x124] sm:$0xf]
        %v9393 = vld [vmem:[%s9347 + $0x130] sm:$0x8]
        %v9394 = vld [vmem:[%s9347 + $0x134] sm:$0xf]
        %v9395 = vld [vmem:[%s9347 + $0x138] sm:$0xf]
        %v9397 = vshrl.u32 %v9348, 16
        %v9399 = vrot.slane %v9397, 7
        %v9400 = vrot.slane %v9399, 4
        %v9402 = vshrl.u32 %v9349, 16
        %v9404 = vrot.slane %v9402, 7
        %v9405 = vshll.u32 %v9349, 16
        %v9407 = vor.u32 %v9404, %v9405
        %v9408 = vsel %vm5735, %v9400, %v9407
        %v9409 = vrot.slane %v9404, 4
        %v9411 = vshrl.u32 %v9350, 16
        %v9413 = vrot.slane %v9411, 7
        %v9414 = vshll.u32 %v9350, 16
        %v9416 = vor.u32 %v9413, %v9414
        %v9417 = vsel %vm5735, %v9409, %v9416
        %v9419 = vshrl.u32 %v9351, 16
        %v9421 = vrot.slane %v9419, 7
        %v9422 = vrot.slane %v9421, 4
        %v9424 = vshrl.u32 %v9352, 16
        %v9426 = vrot.slane %v9424, 7
        %v9427 = vshll.u32 %v9352, 16
        %v9429 = vor.u32 %v9426, %v9427
        %v9430 = vsel %vm5735, %v9422, %v9429
        %v9431 = vrot.slane %v9426, 4
        %v9433 = vshrl.u32 %v9353, 16
        %v9435 = vrot.slane %v9433, 7
        %v9436 = vshll.u32 %v9353, 16
        %v9438 = vor.u32 %v9435, %v9436
        %v9439 = vsel %vm5735, %v9431, %v9438
        %v9441 = vshrl.u32 %v9354, 16
        %v9443 = vrot.slane %v9441, 7
        %v9444 = vrot.slane %v9443, 4
        %v9446 = vshrl.u32 %v9355, 16
        %v9448 = vrot.slane %v9446, 7
        %v9449 = vshll.u32 %v9355, 16
        %v9451 = vor.u32 %v9448, %v9449
        %v9452 = vsel %vm5735, %v9444, %v9451
        %v9453 = vrot.slane %v9448, 4
        %v9455 = vshrl.u32 %v9356, 16
        %v9457 = vrot.slane %v9455, 7
        %v9458 = vshll.u32 %v9356, 16
        %v9460 = vor.u32 %v9457, %v9458
        %v9461 = vsel %vm5735, %v9453, %v9460
        %v9463 = vshrl.u32 %v9357, 16
        %v9465 = vrot.slane %v9463, 7
        %v9466 = vrot.slane %v9465, 4
        %v9468 = vshrl.u32 %v9358, 16
        %v9470 = vrot.slane %v9468, 7
        %v9471 = vshll.u32 %v9358, 16
        %v9473 = vor.u32 %v9470, %v9471
        %v9474 = vsel %vm5735, %v9466, %v9473
        %v9475 = vrot.slane %v9470, 4
        %v9477 = vshrl.u32 %v9359, 16
        %v9479 = vrot.slane %v9477, 7
        %v9480 = vshll.u32 %v9359, 16
        %v9482 = vor.u32 %v9479, %v9480
        %v9483 = vsel %vm5735, %v9475, %v9482
        %v9485 = vshrl.u32 %v9360, 16
        %v9487 = vrot.slane %v9485, 7
        %v9488 = vrot.slane %v9487, 4
        %v9490 = vshrl.u32 %v9361, 16
        %v9492 = vrot.slane %v9490, 7
        %v9493 = vshll.u32 %v9361, 16
        %v9495 = vor.u32 %v9492, %v9493
        %v9496 = vsel %vm5735, %v9488, %v9495
        %v9497 = vrot.slane %v9492, 4
        %v9499 = vshrl.u32 %v9362, 16
        %v9501 = vrot.slane %v9499, 7
        %v9502 = vshll.u32 %v9362, 16
        %v9504 = vor.u32 %v9501, %v9502
        %v9505 = vsel %vm5735, %v9497, %v9504
        %v9507 = vshrl.u32 %v9363, 16
        %v9509 = vrot.slane %v9507, 7
        %v9510 = vrot.slane %v9509, 4
        %v9512 = vshrl.u32 %v9364, 16
        %v9514 = vrot.slane %v9512, 7
        %v9515 = vshll.u32 %v9364, 16
        %v9517 = vor.u32 %v9514, %v9515
        %v9518 = vsel %vm5735, %v9510, %v9517
        %v9519 = vrot.slane %v9514, 4
        %v9521 = vshrl.u32 %v9365, 16
        %v9523 = vrot.slane %v9521, 7
        %v9524 = vshll.u32 %v9365, 16
        %v9526 = vor.u32 %v9523, %v9524
        %v9527 = vsel %vm5735, %v9519, %v9526
        %v9529 = vshrl.u32 %v9366, 16
        %v9531 = vrot.slane %v9529, 7
        %v9532 = vrot.slane %v9531, 4
        %v9534 = vshrl.u32 %v9367, 16
        %v9536 = vrot.slane %v9534, 7
        %v9537 = vshll.u32 %v9367, 16
        %v9539 = vor.u32 %v9536, %v9537
        %v9540 = vsel %vm5735, %v9532, %v9539
        %v9541 = vrot.slane %v9536, 4
        %v9543 = vshrl.u32 %v9368, 16
        %v9545 = vrot.slane %v9543, 7
        %v9546 = vshll.u32 %v9368, 16
        %v9548 = vor.u32 %v9545, %v9546
        %v9549 = vsel %vm5735, %v9541, %v9548
        %v9551 = vshrl.u32 %v9369, 16
        %v9553 = vrot.slane %v9551, 7
        %v9554 = vrot.slane %v9553, 4
        %v9556 = vshrl.u32 %v9370, 16
        %v9558 = vrot.slane %v9556, 7
        %v9559 = vshll.u32 %v9370, 16
        %v9561 = vor.u32 %v9558, %v9559
        %v9562 = vsel %vm5735, %v9554, %v9561
        %v9563 = vrot.slane %v9558, 4
        %v9565 = vshrl.u32 %v9371, 16
        %v9567 = vrot.slane %v9565, 7
        %v9568 = vshll.u32 %v9371, 16
        %v9570 = vor.u32 %v9567, %v9568
        %v9571 = vsel %vm5735, %v9563, %v9570
        %v9573 = vshrl.u32 %v9372, 16
        %v9575 = vrot.slane %v9573, 7
        %v9576 = vrot.slane %v9575, 4
        %v9578 = vshrl.u32 %v9373, 16
        %v9580 = vrot.slane %v9578, 7
        %v9581 = vshll.u32 %v9373, 16
        %v9583 = vor.u32 %v9580, %v9581
        %v9584 = vsel %vm5735, %v9576, %v9583
        %v9585 = vrot.slane %v9580, 4
        %v9587 = vshrl.u32 %v9374, 16
        %v9589 = vrot.slane %v9587, 7
        %v9590 = vshll.u32 %v9374, 16
        %v9592 = vor.u32 %v9589, %v9590
        %v9593 = vsel %vm5735, %v9585, %v9592
        %v9595 = vshrl.u32 %v9375, 16
        %v9597 = vrot.slane %v9595, 7
        %v9598 = vrot.slane %v9597, 4
        %v9600 = vshrl.u32 %v9376, 16
        %v9602 = vrot.slane %v9600, 7
        %v9603 = vshll.u32 %v9376, 16
        %v9605 = vor.u32 %v9602, %v9603
        %v9606 = vsel %vm5735, %v9598, %v9605
        %v9607 = vrot.slane %v9602, 4
        %v9609 = vshrl.u32 %v9377, 16
        %v9611 = vrot.slane %v9609, 7
        %v9612 = vshll.u32 %v9377, 16
        %v9614 = vor.u32 %v9611, %v9612
        %v9615 = vsel %vm5735, %v9607, %v9614
        %v9617 = vshrl.u32 %v9378, 16
        %v9619 = vrot.slane %v9617, 7
        %v9620 = vrot.slane %v9619, 4
        %v9622 = vshrl.u32 %v9379, 16
        %v9624 = vrot.slane %v9622, 7
        %v9625 = vshll.u32 %v9379, 16
        %v9627 = vor.u32 %v9624, %v9625
        %v9628 = vsel %vm5735, %v9620, %v9627
        %v9629 = vrot.slane %v9624, 4
        %v9631 = vshrl.u32 %v9380, 16
        %v9633 = vrot.slane %v9631, 7
        %v9634 = vshll.u32 %v9380, 16
        %v9636 = vor.u32 %v9633, %v9634
        %v9637 = vsel %vm5735, %v9629, %v9636
        %v9639 = vshrl.u32 %v9381, 16
        %v9641 = vrot.slane %v9639, 7
        %v9642 = vrot.slane %v9641, 4
        %v9644 = vshrl.u32 %v9382, 16
        %v9646 = vrot.slane %v9644, 7
        %v9647 = vshll.u32 %v9382, 16
        %v9649 = vor.u32 %v9646, %v9647
        %v9650 = vsel %vm5735, %v9642, %v9649
        %v9651 = vrot.slane %v9646, 4
        %v9653 = vshrl.u32 %v9383, 16
        %v9655 = vrot.slane %v9653, 7
        %v9656 = vshll.u32 %v9383, 16
        %v9658 = vor.u32 %v9655, %v9656
        %v9659 = vsel %vm5735, %v9651, %v9658
        %v9661 = vshrl.u32 %v9384, 16
        %v9663 = vrot.slane %v9661, 7
        %v9664 = vrot.slane %v9663, 4
        %v9666 = vshrl.u32 %v9385, 16
        %v9668 = vrot.slane %v9666, 7
        %v9669 = vshll.u32 %v9385, 16
        %v9671 = vor.u32 %v9668, %v9669
        %v9672 = vsel %vm5735, %v9664, %v9671
        %v9673 = vrot.slane %v9668, 4
        %v9675 = vshrl.u32 %v9386, 16
        %v9677 = vrot.slane %v9675, 7
        %v9678 = vshll.u32 %v9386, 16
        %v9680 = vor.u32 %v9677, %v9678
        %v9681 = vsel %vm5735, %v9673, %v9680
        %v9683 = vshrl.u32 %v9387, 16
        %v9685 = vrot.slane %v9683, 7
        %v9686 = vrot.slane %v9685, 4
        %v9688 = vshrl.u32 %v9388, 16
        %v9690 = vrot.slane %v9688, 7
        %v9691 = vshll.u32 %v9388, 16
        %v9693 = vor.u32 %v9690, %v9691
        %v9694 = vsel %vm5735, %v9686, %v9693
        %v9695 = vrot.slane %v9690, 4
        %v9697 = vshrl.u32 %v9389, 16
        %v9699 = vrot.slane %v9697, 7
        %v9700 = vshll.u32 %v9389, 16
        %v9702 = vor.u32 %v9699, %v9700
        %v9703 = vsel %vm5735, %v9695, %v9702
        %v9705 = vshrl.u32 %v9390, 16
        %v9707 = vrot.slane %v9705, 7
        %v9708 = vrot.slane %v9707, 4
        %v9710 = vshrl.u32 %v9391, 16
        %v9712 = vrot.slane %v9710, 7
        %v9713 = vshll.u32 %v9391, 16
        %v9715 = vor.u32 %v9712, %v9713
        %v9716 = vsel %vm5735, %v9708, %v9715
        %v9717 = vrot.slane %v9712, 4
        %v9719 = vshrl.u32 %v9392, 16
        %v9721 = vrot.slane %v9719, 7
        %v9722 = vshll.u32 %v9392, 16
        %v9724 = vor.u32 %v9721, %v9722
        %v9725 = vsel %vm5735, %v9717, %v9724
        %v9727 = vshrl.u32 %v9393, 16
        %v9729 = vrot.slane %v9727, 7
        %v9730 = vrot.slane %v9729, 4
        %v9732 = vshrl.u32 %v9394, 16
        %v9734 = vrot.slane %v9732, 7
        %v9735 = vshll.u32 %v9394, 16
        %v9737 = vor.u32 %v9734, %v9735
        %v9738 = vsel %vm5735, %v9730, %v9737
        %v9739 = vrot.slane %v9734, 4
        %v9741 = vshrl.u32 %v9395, 16
        %v9743 = vrot.slane %v9741, 7
        %v9744 = vshll.u32 %v9395, 16
        %v9746 = vor.u32 %v9743, %v9744
        %v9747 = vsel %vm5735, %v9739, %v9746
        %s9748 = scalar_lea.vmem %s3, 384
        %v9749 = vld [vmem:[%s9748] sm:$0xf]
        %v9750 = vld [vmem:[%s9748 + $0x4] sm:$0xf]
        %v9751 = vld [vmem:[%s9748 + $0x8] sm:$0xf]
        %v9752 = vld [vmem:[%s9748 + $0xc] sm:$0xf]
        %v9753 = vld [vmem:[%s9748 + $0x10] sm:$0xf]
        %v9754 = vld [vmem:[%s9748 + $0x14] sm:$0xf]
        %v9755 = vld [vmem:[%s9748 + $0x18] sm:$0xf]
        %v9756 = vld [vmem:[%s9748 + $0x1c] sm:$0xf]
        %v9757 = vld [vmem:[%s9748 + $0x20] sm:$0xf]
        %v9758 = vld [vmem:[%s9748 + $0x24] sm:$0xf]
        %v9759 = vld [vmem:[%s9748 + $0x28] sm:$0xf]
        %v9760 = vld [vmem:[%s9748 + $0x2c] sm:$0xf]
        %v9761 = vld [vmem:[%s9748 + $0x30] sm:$0xf]
        %v9762 = vld [vmem:[%s9748 + $0x34] sm:$0xf]
        %v9763 = vld [vmem:[%s9748 + $0x38] sm:$0xf]
        %v9764 = vld [vmem:[%s9748 + $0x3c] sm:$0xf]
        %v9765 = vunpack.c.l.b16 %v9408
        %v9766 = vunpack.c.l.b16 %v9417
        %v9767 = vunpack.c.l.b16 %v9430
        %v9768 = vunpack.c.l.b16 %v9439
        %v9769 = vunpack.c.l.b16 %v9452
        %v9770 = vunpack.c.l.b16 %v9461
        %v9771 = vunpack.c.l.b16 %v9474
        %v9772 = vunpack.c.l.b16 %v9483
        %v9773 = vunpack.c.l.b16 %v9496
        %v9774 = vunpack.c.l.b16 %v9505
        %v9775 = vunpack.c.l.b16 %v9518
        %v9776 = vunpack.c.l.b16 %v9527
        %v9777 = vunpack.c.l.b16 %v9540
        %v9778 = vunpack.c.l.b16 %v9549
        %v9779 = vunpack.c.l.b16 %v9562
        %v9780 = vunpack.c.l.b16 %v9571
        %v9781 = vunpack.c.l.b16 %v9584
        %v9782 = vunpack.c.l.b16 %v9593
        %v9783 = vunpack.c.l.b16 %v9606
        %v9784 = vunpack.c.l.b16 %v9615
        %v9785 = vunpack.c.l.b16 %v9628
        %v9786 = vunpack.c.l.b16 %v9637
        %v9787 = vunpack.c.l.b16 %v9650
        %v9788 = vunpack.c.l.b16 %v9659
        %v9789 = vunpack.c.l.b16 %v9672
        %v9790 = vunpack.c.l.b16 %v9681
        %v9791 = vunpack.c.l.b16 %v9694
        %v9792 = vunpack.c.l.b16 %v9703
        %v9793 = vunpack.c.l.b16 %v9716
        %v9794 = vunpack.c.l.b16 %v9725
        %v9795 = vunpack.c.l.b16 %v9738
        %v9796 = vunpack.c.l.b16 %v9747
        %v9797 = vpack.c.b16 %v9766, %v9765
        %v9798 = vpack.c.b16 %v9768, %v9767
        %v9799 = vpack.c.b16 %v9770, %v9769
        %v9800 = vpack.c.b16 %v9772, %v9771
        %v9801 = vpack.c.b16 %v9774, %v9773
        %v9802 = vpack.c.b16 %v9776, %v9775
        %v9803 = vpack.c.b16 %v9778, %v9777
        %v9804 = vpack.c.b16 %v9780, %v9779
        %v9805 = vpack.c.b16 %v9782, %v9781
        %v9806 = vpack.c.b16 %v9784, %v9783
        %v9807 = vpack.c.b16 %v9786, %v9785
        %v9808 = vpack.c.b16 %v9788, %v9787
        %v9809 = vpack.c.b16 %v9790, %v9789
        %v9810 = vpack.c.b16 %v9792, %v9791
        %v9811 = vpack.c.b16 %v9794, %v9793
        %v9812 = vpack.c.b16 %v9796, %v9795
        %v9845 = vunpack.c.l.b16 %v9749
        %v9846 = vunpack.c.l.b16 %v9750
        %v9847 = vunpack.c.l.b16 %v9751
        %v9848 = vunpack.c.l.b16 %v9752
        %v9849 = vunpack.c.l.b16 %v9753
        %v9850 = vunpack.c.l.b16 %v9754
        %v9851 = vunpack.c.l.b16 %v9755
        %v9852 = vunpack.c.l.b16 %v9756
        %v9853 = vunpack.c.l.b16 %v9757
        %v9854 = vunpack.c.l.b16 %v9758
        %v9855 = vunpack.c.l.b16 %v9759
        %v9856 = vunpack.c.l.b16 %v9760
        %v9857 = vunpack.c.l.b16 %v9761
        %v9858 = vunpack.c.l.b16 %v9762
        %v9859 = vunpack.c.l.b16 %v9763
        %v9860 = vunpack.c.l.b16 %v9764
        %v9861 = vpack.c.b16 %v9846, %v9845
        %v9862 = vpack.c.b16 %v9848, %v9847
        %v9863 = vpack.c.b16 %v9850, %v9849
        %v9864 = vpack.c.b16 %v9852, %v9851
        %v9865 = vpack.c.b16 %v9854, %v9853
        %v9866 = vpack.c.b16 %v9856, %v9855
        %v9867 = vpack.c.b16 %v9858, %v9857
        %v9868 = vpack.c.b16 %v9860, %v9859
        %9877 = vmatprep.subr.bf16.mxu0 0
        %9878 = vmatpush1.bf16.msra.mxu0 %v9861
        %9879 = vmatprep.subr.bf16.mxu0 0
        %9880 = vmatpush1.bf16.msra.mxu0 %v9862
        %9881 = vmatprep.subr.bf16.mxu0 0
        %9882 = vmatpush1.bf16.msra.mxu0 %v9863
        %9883 = vmatprep.subr.bf16.mxu0 0
        %9884 = vmatpush1.bf16.msra.mxu0 %v9864
        %9885 = vmatprep.subr.bf16.mxu0 0
        %9886 = vmatpush1.bf16.msra.mxu0 %v9865
        %9887 = vmatprep.subr.bf16.mxu0 0
        %9888 = vmatpush1.bf16.msra.mxu0 %v9866
        %9889 = vmatprep.subr.bf16.mxu0 0
        %9890 = vmatpush1.bf16.msra.mxu0 %v9867
        %9891 = vmatprep.subr.bf16.mxu0 0
        %9892 = vmatpush1.bf16.msra.mxu0 %v9868
        %9893 = vmatprep.subr.bf16.mxu0 0
        %9894 = vmatpush1.bf16.msra.mxu0 0
        %9895 = vmatprep.subr.bf16.mxu0 0
        %9896 = vmatpush1.bf16.msra.mxu0 0
        %9897 = vmatprep.subr.bf16.mxu0 0
        %9898 = vmatpush1.bf16.msra.mxu0 0
        %9899 = vmatprep.subr.bf16.mxu0 0
        %9900 = vmatpush1.bf16.msra.mxu0 0
        %9901 = vmatprep.subr.bf16.mxu0 0
        %9902 = vmatpush1.bf16.msra.mxu0 0
        %9903 = vmatprep.subr.bf16.mxu0 0
        %9904 = vmatpush1.bf16.msra.mxu0 0
        %9905 = vmatprep.subr.bf16.mxu0 0
        %9906 = vmatpush1.bf16.msra.mxu0 0
        %9907 = vmatprep.subr.bf16.mxu0 0
        %9908 = vmatpush1.bf16.msra.mxu0 0
        %9909 = vmatprep.mubr.bf16.mxu0 0
        %9910 = vmatmul.mubr.bf16.gmra.mrb[0].mxu0 %v9797
        %v9911 = vpop.f32.mrb[0].mxu0
        %v9912 = vadd.f32 0.0, %v9911
        %v9913 = vpop.f32.mrb[0].mxu0
        %v9914 = vpop.f32.mrb[0].mxu0
        %v9915 = vadd.f32 0.0, %v9914
        %v9916 = vpop.f32.mrb[0].mxu0
        %9917 = vmatprep.mubr.bf16.mxu0 0
        %9918 = vmatmul.mubr.bf16.gmra.mrb[0].mxu0 %v9798
        %v9919 = vpop.f32.mrb[0].mxu0
        %v9920 = vadd.f32 0.0, %v9919
        %v9921 = vpop.f32.mrb[0].mxu0
        %v9922 = vpop.f32.mrb[0].mxu0
        %v9923 = vadd.f32 0.0, %v9922
        %v9924 = vpop.f32.mrb[0].mxu0
        %9925 = vmatprep.mubr.bf16.mxu0 0
        %9926 = vmatmul.mubr.bf16.gmra.mrb[0].mxu0 %v9799
        %v9927 = vpop.f32.mrb[0].mxu0
        %v9928 = vadd.f32 0.0, %v9927
        %v9929 = vpop.f32.mrb[0].mxu0
        %v9930 = vpop.f32.mrb[0].mxu0
        %v9931 = vadd.f32 0.0, %v9930
        %v9932 = vpop.f32.mrb[0].mxu0
        %9933 = vmatprep.mubr.bf16.mxu0 0
        %9934 = vmatmul.mubr.bf16.gmra.mrb[0].mxu0 %v9800
        %v9935 = vpop.f32.mrb[0].mxu0
        %v9936 = vadd.f32 0.0, %v9935
        %v9937 = vpop.f32.mrb[0].mxu0
        %v9938 = vpop.f32.mrb[0].mxu0
        %v9939 = vadd.f32 0.0, %v9938
        %v9940 = vpop.f32.mrb[0].mxu0
        %9941 = vmatprep.mubr.bf16.mxu0 0
        %9942 = vmatmul.mubr.bf16.gmra.mrb[0].mxu0 %v9801
        %v9943 = vpop.f32.mrb[0].mxu0
        %v9944 = vadd.f32 0.0, %v9943
        %v9945 = vpop.f32.mrb[0].mxu0
        %v9946 = vpop.f32.mrb[0].mxu0
        %v9947 = vadd.f32 0.0, %v9946
        %v9948 = vpop.f32.mrb[0].mxu0
        %9949 = vmatprep.mubr.bf16.mxu0 0
        %9950 = vmatmul.mubr.bf16.gmra.mrb[0].mxu0 %v9802
        %v9951 = vpop.f32.mrb[0].mxu0
        %v9952 = vadd.f32 0.0, %v9951
        %v9953 = vpop.f32.mrb[0].mxu0
        %v9954 = vpop.f32.mrb[0].mxu0
        %v9955 = vadd.f32 0.0, %v9954
        %v9956 = vpop.f32.mrb[0].mxu0
        %9957 = vmatprep.mubr.bf16.mxu0 0
        %9958 = vmatmul.mubr.bf16.gmra.mrb[0].mxu0 %v9803
        %v9959 = vpop.f32.mrb[0].mxu0
        %v9960 = vadd.f32 0.0, %v9959
        %v9961 = vpop.f32.mrb[0].mxu0
        %v9962 = vpop.f32.mrb[0].mxu0
        %v9963 = vadd.f32 0.0, %v9962
        %v9964 = vpop.f32.mrb[0].mxu0
        %9965 = vmatprep.mubr.bf16.mxu0 0
        %9966 = vmatmul.mubr.bf16.gmra.mrb[0].mxu0 %v9804
        %v9967 = vpop.f32.mrb[0].mxu0
        %v9968 = vadd.f32 0.0, %v9967
        %v9969 = vpop.f32.mrb[0].mxu0
        %v9970 = vpop.f32.mrb[0].mxu0
        %v9971 = vadd.f32 0.0, %v9970
        %v9972 = vpop.f32.mrb[0].mxu0
        %9973 = vmatprep.mubr.bf16.mxu0 0
        %9974 = vmatmul.mubr.bf16.gmra.mrb[0].mxu0 %v9805
        %v9975 = vpop.f32.mrb[0].mxu0
        %v9976 = vadd.f32 0.0, %v9975
        %v9977 = vpop.f32.mrb[0].mxu0
        %v9978 = vpop.f32.mrb[0].mxu0
        %v9979 = vadd.f32 0.0, %v9978
        %v9980 = vpop.f32.mrb[0].mxu0
        %9981 = vmatprep.mubr.bf16.mxu0 0
        %9982 = vmatmul.mubr.bf16.gmra.mrb[0].mxu0 %v9806
        %v9983 = vpop.f32.mrb[0].mxu0
        %v9984 = vadd.f32 0.0, %v9983
        %v9985 = vpop.f32.mrb[0].mxu0
        %v9986 = vpop.f32.mrb[0].mxu0
        %v9987 = vadd.f32 0.0, %v9986
        %v9988 = vpop.f32.mrb[0].mxu0
        %9989 = vmatprep.mubr.bf16.mxu0 0
        %9990 = vmatmul.mubr.bf16.gmra.mrb[0].mxu0 %v9807
        %v9991 = vpop.f32.mrb[0].mxu0
        %v9992 = vadd.f32 0.0, %v9991
        %v9993 = vpop.f32.mrb[0].mxu0
        %v9994 = vpop.f32.mrb[0].mxu0
        %v9995 = vadd.f32 0.0, %v9994
        %v9996 = vpop.f32.mrb[0].mxu0
        %9997 = vmatprep.mubr.bf16.mxu0 0
        %9998 = vmatmul.mubr.bf16.gmra.mrb[0].mxu0 %v9808
        %v9999 = vpop.f32.mrb[0].mxu0
        %v10000 = vadd.f32 0.0, %v9999
        %v10001 = vpop.f32.mrb[0].mxu0
        %v10002 = vpop.f32.mrb[0].mxu0
        %v10003 = vadd.f32 0.0, %v10002
        %v10004 = vpop.f32.mrb[0].mxu0
        %10005 = vmatprep.mubr.bf16.mxu0 0
        %10006 = vmatmul.mubr.bf16.gmra.mrb[0].mxu0 %v9809
        %v10007 = vpop.f32.mrb[0].mxu0
        %v10008 = vadd.f32 0.0, %v10007
        %v10009 = vpop.f32.mrb[0].mxu0
        %v10010 = vpop.f32.mrb[0].mxu0
        %v10011 = vadd.f32 0.0, %v10010
        %v10012 = vpop.f32.mrb[0].mxu0
        %10013 = vmatprep.mubr.bf16.mxu0 0
        %10014 = vmatmul.mubr.bf16.gmra.mrb[0].mxu0 %v9810
        %v10015 = vpop.f32.mrb[0].mxu0
        %v10016 = vadd.f32 0.0, %v10015
        %v10017 = vpop.f32.mrb[0].mxu0
        %v10018 = vpop.f32.mrb[0].mxu0
        %v10019 = vadd.f32 0.0, %v10018
        %v10020 = vpop.f32.mrb[0].mxu0
        %10021 = vmatprep.mubr.bf16.mxu0 0
        %10022 = vmatmul.mubr.bf16.gmra.mrb[0].mxu0 %v9811
        %v10023 = vpop.f32.mrb[0].mxu0
        %v10024 = vadd.f32 0.0, %v10023
        %v10025 = vpop.f32.mrb[0].mxu0
        %v10026 = vpop.f32.mrb[0].mxu0
        %v10027 = vadd.f32 0.0, %v10026
        %v10028 = vpop.f32.mrb[0].mxu0
        %10029 = vmatprep.mubr.bf16.mxu0 0
        %10030 = vmatmul.mubr.bf16.gmra.mrb[0].mxu0 %v9812
        %v10031 = vpop.f32.mrb[0].mxu0
        %v10032 = vadd.f32 0.0, %v10031
        %v10033 = vpop.f32.mrb[0].mxu0
        %v10034 = vpop.f32.mrb[0].mxu0
        %v10035 = vadd.f32 0.0, %v10034
        %v10036 = vpop.f32.mrb[0].mxu0
        %10037 = vdwg.mxu0
        %v10038 = vadd.f32 %v9315, %v9912
        %v10039 = vadd.f32 %v9316, %v9915
        %v10040 = vadd.f32 %v9317, %v9920
        %v10041 = vadd.f32 %v9318, %v9923
        %v10042 = vadd.f32 %v9319, %v9928
        %v10043 = vadd.f32 %v9320, %v9931
        %v10044 = vadd.f32 %v9321, %v9936
        %v10045 = vadd.f32 %v9322, %v9939
        %v10046 = vadd.f32 %v9323, %v9944
        %v10047 = vadd.f32 %v9324, %v9947
        %v10048 = vadd.f32 %v9325, %v9952
        %v10049 = vadd.f32 %v9326, %v9955
        %v10050 = vadd.f32 %v9327, %v9960
        %v10051 = vadd.f32 %v9328, %v9963
        %v10052 = vadd.f32 %v9329, %v9968
        %v10053 = vadd.f32 %v9330, %v9971
        %v10054 = vadd.f32 %v9331, %v9976
        %v10055 = vadd.f32 %v9332, %v9979
        %v10056 = vadd.f32 %v9333, %v9984
        %v10057 = vadd.f32 %v9334, %v9987
        %v10058 = vadd.f32 %v9335, %v9992
        %v10059 = vadd.f32 %v9336, %v9995
        %v10060 = vadd.f32 %v9337, %v10000
        %v10061 = vadd.f32 %v9338, %v10003
        %v10062 = vadd.f32 %v9339, %v10008
        %v10063 = vadd.f32 %v9340, %v10011
        %v10064 = vadd.f32 %v9341, %v10016
        %v10065 = vadd.f32 %v9342, %v10019
        %v10066 = vadd.f32 %v9343, %v10024
        %v10067 = vadd.f32 %v9344, %v10027
        %v10068 = vadd.f32 %v9345, %v10032
        %v10069 = vadd.f32 %v9346, %v10035
        %s10070 = scalar_lea.vmem %s3, 448
        %v10071 = vld [vmem:[%s10070] sm:$0xf]
        %v10072 = vld [vmem:[%s10070 + $0x4] sm:$0xf]
        %v10073 = vld [vmem:[%s10070 + $0x8] sm:$0xf]
        %v10074 = vld [vmem:[%s10070 + $0xc] sm:$0xf]
        %v10075 = vld [vmem:[%s10070 + $0x10] sm:$0xf]
        %v10076 = vld [vmem:[%s10070 + $0x14] sm:$0xf]
        %v10077 = vld [vmem:[%s10070 + $0x18] sm:$0xf]
        %v10078 = vld [vmem:[%s10070 + $0x1c] sm:$0xf]
        %v10079 = vld [vmem:[%s10070 + $0x20] sm:$0xf]
        %v10080 = vld [vmem:[%s10070 + $0x24] sm:$0xf]
        %v10081 = vld [vmem:[%s10070 + $0x28] sm:$0xf]
        %v10082 = vld [vmem:[%s10070 + $0x2c] sm:$0xf]
        %v10083 = vld [vmem:[%s10070 + $0x30] sm:$0xf]
        %v10084 = vld [vmem:[%s10070 + $0x34] sm:$0xf]
        %v10085 = vld [vmem:[%s10070 + $0x38] sm:$0xf]
        %v10086 = vld [vmem:[%s10070 + $0x3c] sm:$0xf]
        %v10119 = vunpack.c.l.b16 %v9349
        %v10120 = vunpack.c.l.b16 %v9350
        %v10121 = vunpack.c.l.b16 %v9352
        %v10122 = vunpack.c.l.b16 %v9353
        %v10123 = vunpack.c.l.b16 %v9355
        %v10124 = vunpack.c.l.b16 %v9356
        %v10125 = vunpack.c.l.b16 %v9358
        %v10126 = vunpack.c.l.b16 %v9359
        %v10127 = vunpack.c.l.b16 %v9361
        %v10128 = vunpack.c.l.b16 %v9362
        %v10129 = vunpack.c.l.b16 %v9364
        %v10130 = vunpack.c.l.b16 %v9365
        %v10131 = vunpack.c.l.b16 %v9367
        %v10132 = vunpack.c.l.b16 %v9368
        %v10133 = vunpack.c.l.b16 %v9370
        %v10134 = vunpack.c.l.b16 %v9371
        %v10135 = vunpack.c.l.b16 %v9373
        %v10136 = vunpack.c.l.b16 %v9374
        %v10137 = vunpack.c.l.b16 %v9376
        %v10138 = vunpack.c.l.b16 %v9377
        %v10139 = vunpack.c.l.b16 %v9379
        %v10140 = vunpack.c.l.b16 %v9380
        %v10141 = vunpack.c.l.b16 %v9382
        %v10142 = vunpack.c.l.b16 %v9383
        %v10143 = vunpack.c.l.b16 %v9385
        %v10144 = vunpack.c.l.b16 %v9386
        %v10145 = vunpack.c.l.b16 %v9388
        %v10146 = vunpack.c.l.b16 %v9389
        %v10147 = vunpack.c.l.b16 %v9391
        %v10148 = vunpack.c.l.b16 %v9392
        %v10149 = vunpack.c.l.b16 %v9394
        %v10150 = vunpack.c.l.b16 %v9395
        %v10151 = vpack.c.b16 %v10120, %v10119
        %v10152 = vpack.c.b16 %v10122, %v10121
        %v10153 = vpack.c.b16 %v10124, %v10123
        %v10154 = vpack.c.b16 %v10126, %v10125
        %v10155 = vpack.c.b16 %v10128, %v10127
        %v10156 = vpack.c.b16 %v10130, %v10129
        %v10157 = vpack.c.b16 %v10132, %v10131
        %v10158 = vpack.c.b16 %v10134, %v10133
        %v10159 = vpack.c.b16 %v10136, %v10135
        %v10160 = vpack.c.b16 %v10138, %v10137
        %v10161 = vpack.c.b16 %v10140, %v10139
        %v10162 = vpack.c.b16 %v10142, %v10141
        %v10163 = vpack.c.b16 %v10144, %v10143
        %v10164 = vpack.c.b16 %v10146, %v10145
        %v10165 = vpack.c.b16 %v10148, %v10147
        %v10166 = vpack.c.b16 %v10150, %v10149
        %v10199 = vunpack.c.l.b16 %v10071
        %v10200 = vunpack.c.l.b16 %v10072
        %v10201 = vunpack.c.l.b16 %v10073
        %v10202 = vunpack.c.l.b16 %v10074
        %v10203 = vunpack.c.l.b16 %v10075
        %v10204 = vunpack.c.l.b16 %v10076
        %v10205 = vunpack.c.l.b16 %v10077
        %v10206 = vunpack.c.l.b16 %v10078
        %v10207 = vunpack.c.l.b16 %v10079
        %v10208 = vunpack.c.l.b16 %v10080
        %v10209 = vunpack.c.l.b16 %v10081
        %v10210 = vunpack.c.l.b16 %v10082
        %v10211 = vunpack.c.l.b16 %v10083
        %v10212 = vunpack.c.l.b16 %v10084
        %v10213 = vunpack.c.l.b16 %v10085
        %v10214 = vunpack.c.l.b16 %v10086
        %v10215 = vpack.c.b16 %v10200, %v10199
        %v10216 = vpack.c.b16 %v10202, %v10201
        %v10217 = vpack.c.b16 %v10204, %v10203
        %v10218 = vpack.c.b16 %v10206, %v10205
        %v10219 = vpack.c.b16 %v10208, %v10207
        %v10220 = vpack.c.b16 %v10210, %v10209
        %v10221 = vpack.c.b16 %v10212, %v10211
        %v10222 = vpack.c.b16 %v10214, %v10213
        %10231 = vmatprep.subr.bf16.mxu0 0
        %10232 = vmatpush1.bf16.msra.mxu0 %v10215
        %10233 = vmatprep.subr.bf16.mxu0 0
        %10234 = vmatpush1.bf16.msra.mxu0 %v10216
        %10235 = vmatprep.subr.bf16.mxu0 0
        %10236 = vmatpush1.bf16.msra.mxu0 %v10217
        %10237 = vmatprep.subr.bf16.mxu0 0
        %10238 = vmatpush1.bf16.msra.mxu0 %v10218
        %10239 = vmatprep.subr.bf16.mxu0 0
        %10240 = vmatpush1.bf16.msra.mxu0 %v10219
        %10241 = vmatprep.subr.bf16.mxu0 0
        %10242 = vmatpush1.bf16.msra.mxu0 %v10220
        %10243 = vmatprep.subr.bf16.mxu0 0
        %10244 = vmatpush1.bf16.msra.mxu0 %v10221
        %10245 = vmatprep.subr.bf16.mxu0 0
        %10246 = vmatpush1.bf16.msra.mxu0 %v10222
        %10247 = vmatprep.subr.bf16.mxu0 0
        %10248 = vmatpush1.bf16.msra.mxu0 0
        %10249 = vmatprep.subr.bf16.mxu0 0
        %10250 = vmatpush1.bf16.msra.mxu0 0
        %10251 = vmatprep.subr.bf16.mxu0 0
        %10252 = vmatpush1.bf16.msra.mxu0 0
        %10253 = vmatprep.subr.bf16.mxu0 0
        %10254 = vmatpush1.bf16.msra.mxu0 0
        %10255 = vmatprep.subr.bf16.mxu0 0
        %10256 = vmatpush1.bf16.msra.mxu0 0
        %10257 = vmatprep.subr.bf16.mxu0 0
        %10258 = vmatpush1.bf16.msra.mxu0 0
        %10259 = vmatprep.subr.bf16.mxu0 0
        %10260 = vmatpush1.bf16.msra.mxu0 0
        %10261 = vmatprep.subr.bf16.mxu0 0
        %10262 = vmatpush1.bf16.msra.mxu0 0
        %10263 = vmatprep.mubr.bf16.mxu0 0
        %10264 = vmatmul.mubr.bf16.gmra.mrb[0].mxu0 %v10151
        %v10265 = vpop.f32.mrb[0].mxu0
        %v10266 = vadd.f32 0.0, %v10265
        %v10267 = vpop.f32.mrb[0].mxu0
        %v10268 = vpop.f32.mrb[0].mxu0
        %v10269 = vadd.f32 0.0, %v10268
        %v10270 = vpop.f32.mrb[0].mxu0
        %10271 = vmatprep.mubr.bf16.mxu0 0
        %10272 = vmatmul.mubr.bf16.gmra.mrb[0].mxu0 %v10152
        %v10273 = vpop.f32.mrb[0].mxu0
        %v10274 = vadd.f32 0.0, %v10273
        %v10275 = vpop.f32.mrb[0].mxu0
        %v10276 = vpop.f32.mrb[0].mxu0
        %v10277 = vadd.f32 0.0, %v10276
        %v10278 = vpop.f32.mrb[0].mxu0
        %10279 = vmatprep.mubr.bf16.mxu0 0
        %10280 = vmatmul.mubr.bf16.gmra.mrb[0].mxu0 %v10153
        %v10281 = vpop.f32.mrb[0].mxu0
        %v10282 = vadd.f32 0.0, %v10281
        %v10283 = vpop.f32.mrb[0].mxu0
        %v10284 = vpop.f32.mrb[0].mxu0
        %v10285 = vadd.f32 0.0, %v10284
        %v10286 = vpop.f32.mrb[0].mxu0
        %10287 = vmatprep.mubr.bf16.mxu0 0
        %10288 = vmatmul.mubr.bf16.gmra.mrb[0].mxu0 %v10154
        %v10289 = vpop.f32.mrb[0].mxu0
        %v10290 = vadd.f32 0.0, %v10289
        %v10291 = vpop.f32.mrb[0].mxu0
        %v10292 = vpop.f32.mrb[0].mxu0
        %v10293 = vadd.f32 0.0, %v10292
        %v10294 = vpop.f32.mrb[0].mxu0
        %10295 = vmatprep.mubr.bf16.mxu0 0
        %10296 = vmatmul.mubr.bf16.gmra.mrb[0].mxu0 %v10155
        %v10297 = vpop.f32.mrb[0].mxu0
        %v10298 = vadd.f32 0.0, %v10297
        %v10299 = vpop.f32.mrb[0].mxu0
        %v10300 = vpop.f32.mrb[0].mxu0
        %v10301 = vadd.f32 0.0, %v10300
        %v10302 = vpop.f32.mrb[0].mxu0
        %10303 = vmatprep.mubr.bf16.mxu0 0
        %10304 = vmatmul.mubr.bf16.gmra.mrb[0].mxu0 %v10156
        %v10305 = vpop.f32.mrb[0].mxu0
        %v10306 = vadd.f32 0.0, %v10305
        %v10307 = vpop.f32.mrb[0].mxu0
        %v10308 = vpop.f32.mrb[0].mxu0
        %v10309 = vadd.f32 0.0, %v10308
        %v10310 = vpop.f32.mrb[0].mxu0
        %10311 = vmatprep.mubr.bf16.mxu0 0
        %10312 = vmatmul.mubr.bf16.gmra.mrb[0].mxu0 %v10157
        %v10313 = vpop.f32.mrb[0].mxu0
        %v10314 = vadd.f32 0.0, %v10313
        %v10315 = vpop.f32.mrb[0].mxu0
        %v10316 = vpop.f32.mrb[0].mxu0
        %v10317 = vadd.f32 0.0, %v10316
        %v10318 = vpop.f32.mrb[0].mxu0
        %10319 = vmatprep.mubr.bf16.mxu0 0
        %10320 = vmatmul.mubr.bf16.gmra.mrb[0].mxu0 %v10158
        %v10321 = vpop.f32.mrb[0].mxu0
        %v10322 = vadd.f32 0.0, %v10321
        %v10323 = vpop.f32.mrb[0].mxu0
        %v10324 = vpop.f32.mrb[0].mxu0
        %v10325 = vadd.f32 0.0, %v10324
        %v10326 = vpop.f32.mrb[0].mxu0
        %10327 = vmatprep.mubr.bf16.mxu0 0
        %10328 = vmatmul.mubr.bf16.gmra.mrb[0].mxu0 %v10159
        %v10329 = vpop.f32.mrb[0].mxu0
        %v10330 = vadd.f32 0.0, %v10329
        %v10331 = vpop.f32.mrb[0].mxu0
        %v10332 = vpop.f32.mrb[0].mxu0
        %v10333 = vadd.f32 0.0, %v10332
        %v10334 = vpop.f32.mrb[0].mxu0
        %10335 = vmatprep.mubr.bf16.mxu0 0
        %10336 = vmatmul.mubr.bf16.gmra.mrb[0].mxu0 %v10160
        %v10337 = vpop.f32.mrb[0].mxu0
        %v10338 = vadd.f32 0.0, %v10337
        %v10339 = vpop.f32.mrb[0].mxu0
        %v10340 = vpop.f32.mrb[0].mxu0
        %v10341 = vadd.f32 0.0, %v10340
        %v10342 = vpop.f32.mrb[0].mxu0
        %10343 = vmatprep.mubr.bf16.mxu0 0
        %10344 = vmatmul.mubr.bf16.gmra.mrb[0].mxu0 %v10161
        %v10345 = vpop.f32.mrb[0].mxu0
        %v10346 = vadd.f32 0.0, %v10345
        %v10347 = vpop.f32.mrb[0].mxu0
        %v10348 = vpop.f32.mrb[0].mxu0
        %v10349 = vadd.f32 0.0, %v10348
        %v10350 = vpop.f32.mrb[0].mxu0
        %10351 = vmatprep.mubr.bf16.mxu0 0
        %10352 = vmatmul.mubr.bf16.gmra.mrb[0].mxu0 %v10162
        %v10353 = vpop.f32.mrb[0].mxu0
        %v10354 = vadd.f32 0.0, %v10353
        %v10355 = vpop.f32.mrb[0].mxu0
        %v10356 = vpop.f32.mrb[0].mxu0
        %v10357 = vadd.f32 0.0, %v10356
        %v10358 = vpop.f32.mrb[0].mxu0
        %10359 = vmatprep.mubr.bf16.mxu0 0
        %10360 = vmatmul.mubr.bf16.gmra.mrb[0].mxu0 %v10163
        %v10361 = vpop.f32.mrb[0].mxu0
        %v10362 = vadd.f32 0.0, %v10361
        %v10363 = vpop.f32.mrb[0].mxu0
        %v10364 = vpop.f32.mrb[0].mxu0
        %v10365 = vadd.f32 0.0, %v10364
        %v10366 = vpop.f32.mrb[0].mxu0
        %10367 = vmatprep.mubr.bf16.mxu0 0
        %10368 = vmatmul.mubr.bf16.gmra.mrb[0].mxu0 %v10164
        %v10369 = vpop.f32.mrb[0].mxu0
        %v10370 = vadd.f32 0.0, %v10369
        %v10371 = vpop.f32.mrb[0].mxu0
        %v10372 = vpop.f32.mrb[0].mxu0
        %v10373 = vadd.f32 0.0, %v10372
        %v10374 = vpop.f32.mrb[0].mxu0
        %10375 = vmatprep.mubr.bf16.mxu0 0
        %10376 = vmatmul.mubr.bf16.gmra.mrb[0].mxu0 %v10165
        %v10377 = vpop.f32.mrb[0].mxu0
        %v10378 = vadd.f32 0.0, %v10377
        %v10379 = vpop.f32.mrb[0].mxu0
        %v10380 = vpop.f32.mrb[0].mxu0
        %v10381 = vadd.f32 0.0, %v10380
        %v10382 = vpop.f32.mrb[0].mxu0
        %10383 = vmatprep.mubr.bf16.mxu0 0
        %10384 = vmatmul.mubr.bf16.gmra.mrb[0].mxu0 %v10166
        %v10385 = vpop.f32.mrb[0].mxu0
        %v10386 = vadd.f32 0.0, %v10385
        %v10387 = vpop.f32.mrb[0].mxu0
        %v10388 = vpop.f32.mrb[0].mxu0
        %v10389 = vadd.f32 0.0, %v10388
        %v10390 = vpop.f32.mrb[0].mxu0
        %10391 = vdwg.mxu0
        %v10392 = vadd.f32 %v10038, %v10266
        %v10393 = vadd.f32 %v10039, %v10269
        %v10394 = vadd.f32 %v10040, %v10274
        %v10395 = vadd.f32 %v10041, %v10277
        %v10396 = vadd.f32 %v10042, %v10282
        %v10397 = vadd.f32 %v10043, %v10285
        %v10398 = vadd.f32 %v10044, %v10290
        %v10399 = vadd.f32 %v10045, %v10293
        %v10400 = vadd.f32 %v10046, %v10298
        %v10401 = vadd.f32 %v10047, %v10301
        %v10402 = vadd.f32 %v10048, %v10306
        %v10403 = vadd.f32 %v10049, %v10309
        %v10404 = vadd.f32 %v10050, %v10314
        %v10405 = vadd.f32 %v10051, %v10317
        %v10406 = vadd.f32 %v10052, %v10322
        %v10407 = vadd.f32 %v10053, %v10325
        %v10408 = vadd.f32 %v10054, %v10330
        %v10409 = vadd.f32 %v10055, %v10333
        %v10410 = vadd.f32 %v10056, %v10338
        %v10411 = vadd.f32 %v10057, %v10341
        %v10412 = vadd.f32 %v10058, %v10346
        %v10413 = vadd.f32 %v10059, %v10349
        %v10414 = vadd.f32 %v10060, %v10354
        %v10415 = vadd.f32 %v10061, %v10357
        %v10416 = vadd.f32 %v10062, %v10362
        %v10417 = vadd.f32 %v10063, %v10365
        %v10418 = vadd.f32 %v10064, %v10370
        %v10419 = vadd.f32 %v10065, %v10373
        %v10420 = vadd.f32 %v10066, %v10378
        %v10421 = vadd.f32 %v10067, %v10381
        %v10422 = vadd.f32 %v10068, %v10386
        %v10423 = vadd.f32 %v10069, %v10389
        %v10424 = vld [vmem:[%s9347 + $0x8] sm:$0xf]
        %v10425 = vld [vmem:[%s9347 + $0xc] sm:$0xf]
        %v10426 = vld [vmem:[%s9347 + $0x10] sm:$0x1]
        %v10427 = vld [vmem:[%s9347 + $0x1c] sm:$0xf]
        %v10428 = vld [vmem:[%s9347 + $0x20] sm:$0xf]
        %v10429 = vld [vmem:[%s9347 + $0x24] sm:$0x1]
        %v10430 = vld [vmem:[%s9347 + $0x30] sm:$0xf]
        %v10431 = vld [vmem:[%s9347 + $0x34] sm:$0xf]
        %v10432 = vld [vmem:[%s9347 + $0x38] sm:$0x1]
        %v10433 = vld [vmem:[%s9347 + $0x44] sm:$0xf]
        %v10434 = vld [vmem:[%s9347 + $0x48] sm:$0xf]
        %v10435 = vld [vmem:[%s9347 + $0x4c] sm:$0x1]
        %v10436 = vld [vmem:[%s9347 + $0x58] sm:$0xf]
        %v10437 = vld [vmem:[%s9347 + $0x5c] sm:$0xf]
        %v10438 = vld [vmem:[%s9347 + $0x60] sm:$0x1]
        %v10439 = vld [vmem:[%s9347 + $0x6c] sm:$0xf]
        %v10440 = vld [vmem:[%s9347 + $0x70] sm:$0xf]
        %v10441 = vld [vmem:[%s9347 + $0x74] sm:$0x1]
        %v10442 = vld [vmem:[%s9347 + $0x80] sm:$0xf]
        %v10443 = vld [vmem:[%s9347 + $0x84] sm:$0xf]
        %v10444 = vld [vmem:[%s9347 + $0x88] sm:$0x1]
        %v10445 = vld [vmem:[%s9347 + $0x94] sm:$0xf]
        %v10446 = vld [vmem:[%s9347 + $0x98] sm:$0xf]
        %v10447 = vld [vmem:[%s9347 + $0x9c] sm:$0x1]
        %v10448 = vld [vmem:[%s9347 + $0xa8] sm:$0xf]
        %v10449 = vld [vmem:[%s9347 + $0xac] sm:$0xf]
        %v10450 = vld [vmem:[%s9347 + $0xb0] sm:$0x1]
        %v10451 = vld [vmem:[%s9347 + $0xbc] sm:$0xf]
        %v10452 = vld [vmem:[%s9347 + $0xc0] sm:$0xf]
        %v10453 = vld [vmem:[%s9347 + $0xc4] sm:$0x1]
        %v10454 = vld [vmem:[%s9347 + $0xd0] sm:$0xf]
        %v10455 = vld [vmem:[%s9347 + $0xd4] sm:$0xf]
        %v10456 = vld [vmem:[%s9347 + $0xd8] sm:$0x1]
        %v10457 = vld [vmem:[%s9347 + $0xe4] sm:$0xf]
        %v10458 = vld [vmem:[%s9347 + $0xe8] sm:$0xf]
        %v10459 = vld [vmem:[%s9347 + $0xec] sm:$0x1]
        %v10460 = vld [vmem:[%s9347 + $0xf8] sm:$0xf]
        %v10461 = vld [vmem:[%s9347 + $0xfc] sm:$0xf]
        %v10462 = vld [vmem:[%s9347 + $0x100] sm:$0x1]
        %v10463 = vld [vmem:[%s9347 + $0x10c] sm:$0xf]
        %v10464 = vld [vmem:[%s9347 + $0x110] sm:$0xf]
        %v10465 = vld [vmem:[%s9347 + $0x114] sm:$0x1]
        %v10466 = vld [vmem:[%s9347 + $0x120] sm:$0xf]
        %v10467 = vld [vmem:[%s9347 + $0x124] sm:$0xf]
        %v10468 = vld [vmem:[%s9347 + $0x128] sm:$0x1]
        %v10469 = vld [vmem:[%s9347 + $0x134] sm:$0xf]
        %v10470 = vld [vmem:[%s9347 + $0x138] sm:$0xf]
        %v10471 = vld [vmem:[%s9347 + $0x13c] sm:$0x1]
        %v10473 = vshrl.u32 %v10424, 16
        %v10475 = vrot.slane %v10473, 4
        %v10476 = vshll.u32 %v10424, 16
        %v10478 = vrot.slane %v10476, 5
        %v10479 = vor.u32 %v10475, %v10478
        %v10480 = vrot.slane %v10479, 4
        %v10482 = vshll.u32 %v10425, 16
        %v10484 = vrot.slane %v10482, 5
        %v10485 = vsel %vm820, %v10480, %v10484
        %v10486 = vshrl.u32 %v10425, 16
        %v10488 = vrot.slane %v10486, 4
        %v10489 = vor.u32 %v10488, %v10484
        %v10490 = vrot.slane %v10489, 4
        %v10492 = vshll.u32 %v10426, 16
        %v10494 = vrot.slane %v10492, 5
        %v10495 = vsel %vm820, %v10490, %v10494
        %v10497 = vshrl.u32 %v10427, 16
        %v10499 = vrot.slane %v10497, 4
        %v10500 = vshll.u32 %v10427, 16
        %v10502 = vrot.slane %v10500, 5
        %v10503 = vor.u32 %v10499, %v10502
        %v10504 = vrot.slane %v10503, 4
        %v10506 = vshll.u32 %v10428, 16
        %v10508 = vrot.slane %v10506, 5
        %v10509 = vsel %vm820, %v10504, %v10508
        %v10510 = vshrl.u32 %v10428, 16
        %v10512 = vrot.slane %v10510, 4
        %v10513 = vor.u32 %v10512, %v10508
        %v10514 = vrot.slane %v10513, 4
        %v10516 = vshll.u32 %v10429, 16
        %v10518 = vrot.slane %v10516, 5
        %v10519 = vsel %vm820, %v10514, %v10518
        %v10521 = vshrl.u32 %v10430, 16
        %v10523 = vrot.slane %v10521, 4
        %v10524 = vshll.u32 %v10430, 16
        %v10526 = vrot.slane %v10524, 5
        %v10527 = vor.u32 %v10523, %v10526
        %v10528 = vrot.slane %v10527, 4
        %v10530 = vshll.u32 %v10431, 16
        %v10532 = vrot.slane %v10530, 5
        %v10533 = vsel %vm820, %v10528, %v10532
        %v10534 = vshrl.u32 %v10431, 16
        %v10536 = vrot.slane %v10534, 4
        %v10537 = vor.u32 %v10536, %v10532
        %v10538 = vrot.slane %v10537, 4
        %v10540 = vshll.u32 %v10432, 16
        %v10542 = vrot.slane %v10540, 5
        %v10543 = vsel %vm820, %v10538, %v10542
        %v10545 = vshrl.u32 %v10433, 16
        %v10547 = vrot.slane %v10545, 4
        %v10548 = vshll.u32 %v10433, 16
        %v10550 = vrot.slane %v10548, 5
        %v10551 = vor.u32 %v10547, %v10550
        %v10552 = vrot.slane %v10551, 4
        %v10554 = vshll.u32 %v10434, 16
        %v10556 = vrot.slane %v10554, 5
        %v10557 = vsel %vm820, %v10552, %v10556
        %v10558 = vshrl.u32 %v10434, 16
        %v10560 = vrot.slane %v10558, 4
        %v10561 = vor.u32 %v10560, %v10556
        %v10562 = vrot.slane %v10561, 4
        %v10564 = vshll.u32 %v10435, 16
        %v10566 = vrot.slane %v10564, 5
        %v10567 = vsel %vm820, %v10562, %v10566
        %v10569 = vshrl.u32 %v10436, 16
        %v10571 = vrot.slane %v10569, 4
        %v10572 = vshll.u32 %v10436, 16
        %v10574 = vrot.slane %v10572, 5
        %v10575 = vor.u32 %v10571, %v10574
        %v10576 = vrot.slane %v10575, 4
        %v10578 = vshll.u32 %v10437, 16
        %v10580 = vrot.slane %v10578, 5
        %v10581 = vsel %vm820, %v10576, %v10580
        %v10582 = vshrl.u32 %v10437, 16
        %v10584 = vrot.slane %v10582, 4
        %v10585 = vor.u32 %v10584, %v10580
        %v10586 = vrot.slane %v10585, 4
        %v10588 = vshll.u32 %v10438, 16
        %v10590 = vrot.slane %v10588, 5
        %v10591 = vsel %vm820, %v10586, %v10590
        %v10593 = vshrl.u32 %v10439, 16
        %v10595 = vrot.slane %v10593, 4
        %v10596 = vshll.u32 %v10439, 16
        %v10598 = vrot.slane %v10596, 5
        %v10599 = vor.u32 %v10595, %v10598
        %v10600 = vrot.slane %v10599, 4
        %v10602 = vshll.u32 %v10440, 16
        %v10604 = vrot.slane %v10602, 5
        %v10605 = vsel %vm820, %v10600, %v10604
        %v10606 = vshrl.u32 %v10440, 16
        %v10608 = vrot.slane %v10606, 4
        %v10609 = vor.u32 %v10608, %v10604
        %v10610 = vrot.slane %v10609, 4
        %v10612 = vshll.u32 %v10441, 16
        %v10614 = vrot.slane %v10612, 5
        %v10615 = vsel %vm820, %v10610, %v10614
        %v10617 = vshrl.u32 %v10442, 16
        %v10619 = vrot.slane %v10617, 4
        %v10620 = vshll.u32 %v10442, 16
        %v10622 = vrot.slane %v10620, 5
        %v10623 = vor.u32 %v10619, %v10622
        %v10624 = vrot.slane %v10623, 4
        %v10626 = vshll.u32 %v10443, 16
        %v10628 = vrot.slane %v10626, 5
        %v10629 = vsel %vm820, %v10624, %v10628
        %v10630 = vshrl.u32 %v10443, 16
        %v10632 = vrot.slane %v10630, 4
        %v10633 = vor.u32 %v10632, %v10628
        %v10634 = vrot.slane %v10633, 4
        %v10636 = vshll.u32 %v10444, 16
        %v10638 = vrot.slane %v10636, 5
        %v10639 = vsel %vm820, %v10634, %v10638
        %v10641 = vshrl.u32 %v10445, 16
        %v10643 = vrot.slane %v10641, 4
        %v10644 = vshll.u32 %v10445, 16
        %v10646 = vrot.slane %v10644, 5
        %v10647 = vor.u32 %v10643, %v10646
        %v10648 = vrot.slane %v10647, 4
        %v10650 = vshll.u32 %v10446, 16
        %v10652 = vrot.slane %v10650, 5
        %v10653 = vsel %vm820, %v10648, %v10652
        %v10654 = vshrl.u32 %v10446, 16
        %v10656 = vrot.slane %v10654, 4
        %v10657 = vor.u32 %v10656, %v10652
        %v10658 = vrot.slane %v10657, 4
        %v10660 = vshll.u32 %v10447, 16
        %v10662 = vrot.slane %v10660, 5
        %v10663 = vsel %vm820, %v10658, %v10662
        %v10665 = vshrl.u32 %v10448, 16
        %v10667 = vrot.slane %v10665, 4
        %v10668 = vshll.u32 %v10448, 16
        %v10670 = vrot.slane %v10668, 5
        %v10671 = vor.u32 %v10667, %v10670
        %v10672 = vrot.slane %v10671, 4
        %v10674 = vshll.u32 %v10449, 16
        %v10676 = vrot.slane %v10674, 5
        %v10677 = vsel %vm820, %v10672, %v10676
        %v10678 = vshrl.u32 %v10449, 16
        %v10680 = vrot.slane %v10678, 4
        %v10681 = vor.u32 %v10680, %v10676
        %v10682 = vrot.slane %v10681, 4
        %v10684 = vshll.u32 %v10450, 16
        %v10686 = vrot.slane %v10684, 5
        %v10687 = vsel %vm820, %v10682, %v10686
        %v10689 = vshrl.u32 %v10451, 16
        %v10691 = vrot.slane %v10689, 4
        %v10692 = vshll.u32 %v10451, 16
        %v10694 = vrot.slane %v10692, 5
        %v10695 = vor.u32 %v10691, %v10694
        %v10696 = vrot.slane %v10695, 4
        %v10698 = vshll.u32 %v10452, 16
        %v10700 = vrot.slane %v10698, 5
        %v10701 = vsel %vm820, %v10696, %v10700
        %v10702 = vshrl.u32 %v10452, 16
        %v10704 = vrot.slane %v10702, 4
        %v10705 = vor.u32 %v10704, %v10700
        %v10706 = vrot.slane %v10705, 4
        %v10708 = vshll.u32 %v10453, 16
        %v10710 = vrot.slane %v10708, 5
        %v10711 = vsel %vm820, %v10706, %v10710
        %v10713 = vshrl.u32 %v10454, 16
        %v10715 = vrot.slane %v10713, 4
        %v10716 = vshll.u32 %v10454, 16
        %v10718 = vrot.slane %v10716, 5
        %v10719 = vor.u32 %v10715, %v10718
        %v10720 = vrot.slane %v10719, 4
        %v10722 = vshll.u32 %v10455, 16
        %v10724 = vrot.slane %v10722, 5
        %v10725 = vsel %vm820, %v10720, %v10724
        %v10726 = vshrl.u32 %v10455, 16
        %v10728 = vrot.slane %v10726, 4
        %v10729 = vor.u32 %v10728, %v10724
        %v10730 = vrot.slane %v10729, 4
        %v10732 = vshll.u32 %v10456, 16
        %v10734 = vrot.slane %v10732, 5
        %v10735 = vsel %vm820, %v10730, %v10734
        %v10737 = vshrl.u32 %v10457, 16
        %v10739 = vrot.slane %v10737, 4
        %v10740 = vshll.u32 %v10457, 16
        %v10742 = vrot.slane %v10740, 5
        %v10743 = vor.u32 %v10739, %v10742
        %v10744 = vrot.slane %v10743, 4
        %v10746 = vshll.u32 %v10458, 16
        %v10748 = vrot.slane %v10746, 5
        %v10749 = vsel %vm820, %v10744, %v10748
        %v10750 = vshrl.u32 %v10458, 16
        %v10752 = vrot.slane %v10750, 4
        %v10753 = vor.u32 %v10752, %v10748
        %v10754 = vrot.slane %v10753, 4
        %v10756 = vshll.u32 %v10459, 16
        %v10758 = vrot.slane %v10756, 5
        %v10759 = vsel %vm820, %v10754, %v10758
        %v10761 = vshrl.u32 %v10460, 16
        %v10763 = vrot.slane %v10761, 4
        %v10764 = vshll.u32 %v10460, 16
        %v10766 = vrot.slane %v10764, 5
        %v10767 = vor.u32 %v10763, %v10766
        %v10768 = vrot.slane %v10767, 4
        %v10770 = vshll.u32 %v10461, 16
        %v10772 = vrot.slane %v10770, 5
        %v10773 = vsel %vm820, %v10768, %v10772
        %v10774 = vshrl.u32 %v10461, 16
        %v10776 = vrot.slane %v10774, 4
        %v10777 = vor.u32 %v10776, %v10772
        %v10778 = vrot.slane %v10777, 4
        %v10780 = vshll.u32 %v10462, 16
        %v10782 = vrot.slane %v10780, 5
        %v10783 = vsel %vm820, %v10778, %v10782
        %v10785 = vshrl.u32 %v10463, 16
        %v10787 = vrot.slane %v10785, 4
        %v10788 = vshll.u32 %v10463, 16
        %v10790 = vrot.slane %v10788, 5
        %v10791 = vor.u32 %v10787, %v10790
        %v10792 = vrot.slane %v10791, 4
        %v10794 = vshll.u32 %v10464, 16
        %v10796 = vrot.slane %v10794, 5
        %v10797 = vsel %vm820, %v10792, %v10796
        %v10798 = vshrl.u32 %v10464, 16
        %v10800 = vrot.slane %v10798, 4
        %v10801 = vor.u32 %v10800, %v10796
        %v10802 = vrot.slane %v10801, 4
        %v10804 = vshll.u32 %v10465, 16
        %v10806 = vrot.slane %v10804, 5
        %v10807 = vsel %vm820, %v10802, %v10806
        %v10809 = vshrl.u32 %v10466, 16
        %v10811 = vrot.slane %v10809, 4
        %v10812 = vshll.u32 %v10466, 16
        %v10814 = vrot.slane %v10812, 5
        %v10815 = vor.u32 %v10811, %v10814
        %v10816 = vrot.slane %v10815, 4
        %v10818 = vshll.u32 %v10467, 16
        %v10820 = vrot.slane %v10818, 5
        %v10821 = vsel %vm820, %v10816, %v10820
        %v10822 = vshrl.u32 %v10467, 16
        %v10824 = vrot.slane %v10822, 4
        %v10825 = vor.u32 %v10824, %v10820
        %v10826 = vrot.slane %v10825, 4
        %v10828 = vshll.u32 %v10468, 16
        %v10830 = vrot.slane %v10828, 5
        %v10831 = vsel %vm820, %v10826, %v10830
        %v10833 = vshrl.u32 %v10469, 16
        %v10835 = vrot.slane %v10833, 4
        %v10836 = vshll.u32 %v10469, 16
        %v10838 = vrot.slane %v10836, 5
        %v10839 = vor.u32 %v10835, %v10838
        %v10840 = vrot.slane %v10839, 4
        %v10842 = vshll.u32 %v10470, 16
        %v10844 = vrot.slane %v10842, 5
        %v10845 = vsel %vm820, %v10840, %v10844
        %v10846 = vshrl.u32 %v10470, 16
        %v10848 = vrot.slane %v10846, 4
        %v10849 = vor.u32 %v10848, %v10844
        %v10850 = vrot.slane %v10849, 4
        %v10852 = vshll.u32 %v10471, 16
        %v10854 = vrot.slane %v10852, 5
        %v10855 = vsel %vm820, %v10850, %v10854
        %s10856 = scalar_lea.vmem %s3, 512
        %v10857 = vld [vmem:[%s10856] sm:$0xf]
        %v10858 = vld [vmem:[%s10856 + $0x4] sm:$0xf]
        %v10859 = vld [vmem:[%s10856 + $0x8] sm:$0xf]
        %v10860 = vld [vmem:[%s10856 + $0xc] sm:$0xf]
        %v10861 = vld [vmem:[%s10856 + $0x10] sm:$0xf]
        %v10862 = vld [vmem:[%s10856 + $0x14] sm:$0xf]
        %v10863 = vld [vmem:[%s10856 + $0x18] sm:$0xf]
        %v10864 = vld [vmem:[%s10856 + $0x1c] sm:$0xf]
        %v10865 = vld [vmem:[%s10856 + $0x20] sm:$0xf]
        %v10866 = vld [vmem:[%s10856 + $0x24] sm:$0xf]
        %v10867 = vld [vmem:[%s10856 + $0x28] sm:$0xf]
        %v10868 = vld [vmem:[%s10856 + $0x2c] sm:$0xf]
        %v10869 = vld [vmem:[%s10856 + $0x30] sm:$0xf]
        %v10870 = vld [vmem:[%s10856 + $0x34] sm:$0xf]
        %v10871 = vld [vmem:[%s10856 + $0x38] sm:$0xf]
        %v10872 = vld [vmem:[%s10856 + $0x3c] sm:$0xf]
        %v10873 = vunpack.c.l.b16 %v10485
        %v10874 = vunpack.c.l.b16 %v10495
        %v10875 = vunpack.c.l.b16 %v10509
        %v10876 = vunpack.c.l.b16 %v10519
        %v10877 = vunpack.c.l.b16 %v10533
        %v10878 = vunpack.c.l.b16 %v10543
        %v10879 = vunpack.c.l.b16 %v10557
        %v10880 = vunpack.c.l.b16 %v10567
        %v10881 = vunpack.c.l.b16 %v10581
        %v10882 = vunpack.c.l.b16 %v10591
        %v10883 = vunpack.c.l.b16 %v10605
        %v10884 = vunpack.c.l.b16 %v10615
        %v10885 = vunpack.c.l.b16 %v10629
        %v10886 = vunpack.c.l.b16 %v10639
        %v10887 = vunpack.c.l.b16 %v10653
        %v10888 = vunpack.c.l.b16 %v10663
        %v10889 = vunpack.c.l.b16 %v10677
        %v10890 = vunpack.c.l.b16 %v10687
        %v10891 = vunpack.c.l.b16 %v10701
        %v10892 = vunpack.c.l.b16 %v10711
        %v10893 = vunpack.c.l.b16 %v10725
        %v10894 = vunpack.c.l.b16 %v10735
        %v10895 = vunpack.c.l.b16 %v10749
        %v10896 = vunpack.c.l.b16 %v10759
        %v10897 = vunpack.c.l.b16 %v10773
        %v10898 = vunpack.c.l.b16 %v10783
        %v10899 = vunpack.c.l.b16 %v10797
        %v10900 = vunpack.c.l.b16 %v10807
        %v10901 = vunpack.c.l.b16 %v10821
        %v10902 = vunpack.c.l.b16 %v10831
        %v10903 = vunpack.c.l.b16 %v10845
        %v10904 = vunpack.c.l.b16 %v10855
        %v10905 = vpack.c.b16 %v10874, %v10873
        %v10906 = vpack.c.b16 %v10876, %v10875
        %v10907 = vpack.c.b16 %v10878, %v10877
        %v10908 = vpack.c.b16 %v10880, %v10879
        %v10909 = vpack.c.b16 %v10882, %v10881
        %v10910 = vpack.c.b16 %v10884, %v10883
        %v10911 = vpack.c.b16 %v10886, %v10885
        %v10912 = vpack.c.b16 %v10888, %v10887
        %v10913 = vpack.c.b16 %v10890, %v10889
        %v10914 = vpack.c.b16 %v10892, %v10891
        %v10915 = vpack.c.b16 %v10894, %v10893
        %v10916 = vpack.c.b16 %v10896, %v10895
        %v10917 = vpack.c.b16 %v10898, %v10897
        %v10918 = vpack.c.b16 %v10900, %v10899
        %v10919 = vpack.c.b16 %v10902, %v10901
        %v10920 = vpack.c.b16 %v10904, %v10903
        %v10953 = vunpack.c.l.b16 %v10857
        %v10954 = vunpack.c.l.b16 %v10858
        %v10955 = vunpack.c.l.b16 %v10859
        %v10956 = vunpack.c.l.b16 %v10860
        %v10957 = vunpack.c.l.b16 %v10861
        %v10958 = vunpack.c.l.b16 %v10862
        %v10959 = vunpack.c.l.b16 %v10863
        %v10960 = vunpack.c.l.b16 %v10864
        %v10961 = vunpack.c.l.b16 %v10865
        %v10962 = vunpack.c.l.b16 %v10866
        %v10963 = vunpack.c.l.b16 %v10867
        %v10964 = vunpack.c.l.b16 %v10868
        %v10965 = vunpack.c.l.b16 %v10869
        %v10966 = vunpack.c.l.b16 %v10870
        %v10967 = vunpack.c.l.b16 %v10871
        %v10968 = vunpack.c.l.b16 %v10872
        %v10969 = vpack.c.b16 %v10954, %v10953
        %v10970 = vpack.c.b16 %v10956, %v10955
        %v10971 = vpack.c.b16 %v10958, %v10957
        %v10972 = vpack.c.b16 %v10960, %v10959
        %v10973 = vpack.c.b16 %v10962, %v10961
        %v10974 = vpack.c.b16 %v10964, %v10963
        %v10975 = vpack.c.b16 %v10966, %v10965
        %v10976 = vpack.c.b16 %v10968, %v10967
        %10985 = vmatprep.subr.bf16.mxu0 0
        %10986 = vmatpush1.bf16.msra.mxu0 %v10969
        %10987 = vmatprep.subr.bf16.mxu0 0
        %10988 = vmatpush1.bf16.msra.mxu0 %v10970
        %10989 = vmatprep.subr.bf16.mxu0 0
        %10990 = vmatpush1.bf16.msra.mxu0 %v10971
        %10991 = vmatprep.subr.bf16.mxu0 0
        %10992 = vmatpush1.bf16.msra.mxu0 %v10972
        %10993 = vmatprep.subr.bf16.mxu0 0
        %10994 = vmatpush1.bf16.msra.mxu0 %v10973
        %10995 = vmatprep.subr.bf16.mxu0 0
        %10996 = vmatpush1.bf16.msra.mxu0 %v10974
        %10997 = vmatprep.subr.bf16.mxu0 0
        %10998 = vmatpush1.bf16.msra.mxu0 %v10975
        %10999 = vmatprep.subr.bf16.mxu0 0
        %11000 = vmatpush1.bf16.msra.mxu0 %v10976
        %11001 = vmatprep.subr.bf16.mxu0 0
        %11002 = vmatpush1.bf16.msra.mxu0 0
        %11003 = vmatprep.subr.bf16.mxu0 0
        %11004 = vmatpush1.bf16.msra.mxu0 0
        %11005 = vmatprep.subr.bf16.mxu0 0
        %11006 = vmatpush1.bf16.msra.mxu0 0
        %11007 = vmatprep.subr.bf16.mxu0 0
        %11008 = vmatpush1.bf16.msra.mxu0 0
        %11009 = vmatprep.subr.bf16.mxu0 0
        %11010 = vmatpush1.bf16.msra.mxu0 0
        %11011 = vmatprep.subr.bf16.mxu0 0
        %11012 = vmatpush1.bf16.msra.mxu0 0
        %11013 = vmatprep.subr.bf16.mxu0 0
        %11014 = vmatpush1.bf16.msra.mxu0 0
        %11015 = vmatprep.subr.bf16.mxu0 0
        %11016 = vmatpush1.bf16.msra.mxu0 0
        %11017 = vmatprep.mubr.bf16.mxu0 0
        %11018 = vmatmul.mubr.bf16.gmra.mrb[0].mxu0 %v10905
        %v11019 = vpop.f32.mrb[0].mxu0
        %v11020 = vadd.f32 0.0, %v11019
        %v11021 = vpop.f32.mrb[0].mxu0
        %v11022 = vpop.f32.mrb[0].mxu0
        %v11023 = vadd.f32 0.0, %v11022
        %v11024 = vpop.f32.mrb[0].mxu0
        %11025 = vmatprep.mubr.bf16.mxu0 0
        %11026 = vmatmul.mubr.bf16.gmra.mrb[0].mxu0 %v10906
        %v11027 = vpop.f32.mrb[0].mxu0
        %v11028 = vadd.f32 0.0, %v11027
        %v11029 = vpop.f32.mrb[0].mxu0
        %v11030 = vpop.f32.mrb[0].mxu0
        %v11031 = vadd.f32 0.0, %v11030
        %v11032 = vpop.f32.mrb[0].mxu0
        %11033 = vmatprep.mubr.bf16.mxu0 0
        %11034 = vmatmul.mubr.bf16.gmra.mrb[0].mxu0 %v10907
        %v11035 = vpop.f32.mrb[0].mxu0
        %v11036 = vadd.f32 0.0, %v11035
        %v11037 = vpop.f32.mrb[0].mxu0
        %v11038 = vpop.f32.mrb[0].mxu0
        %v11039 = vadd.f32 0.0, %v11038
        %v11040 = vpop.f32.mrb[0].mxu0
        %11041 = vmatprep.mubr.bf16.mxu0 0
        %11042 = vmatmul.mubr.bf16.gmra.mrb[0].mxu0 %v10908
        %v11043 = vpop.f32.mrb[0].mxu0
        %v11044 = vadd.f32 0.0, %v11043
        %v11045 = vpop.f32.mrb[0].mxu0
        %v11046 = vpop.f32.mrb[0].mxu0
        %v11047 = vadd.f32 0.0, %v11046
        %v11048 = vpop.f32.mrb[0].mxu0
        %11049 = vmatprep.mubr.bf16.mxu0 0
        %11050 = vmatmul.mubr.bf16.gmra.mrb[0].mxu0 %v10909
        %v11051 = vpop.f32.mrb[0].mxu0
        %v11052 = vadd.f32 0.0, %v11051
        %v11053 = vpop.f32.mrb[0].mxu0
        %v11054 = vpop.f32.mrb[0].mxu0
        %v11055 = vadd.f32 0.0, %v11054
        %v11056 = vpop.f32.mrb[0].mxu0
        %11057 = vmatprep.mubr.bf16.mxu0 0
        %11058 = vmatmul.mubr.bf16.gmra.mrb[0].mxu0 %v10910
        %v11059 = vpop.f32.mrb[0].mxu0
        %v11060 = vadd.f32 0.0, %v11059
        %v11061 = vpop.f32.mrb[0].mxu0
        %v11062 = vpop.f32.mrb[0].mxu0
        %v11063 = vadd.f32 0.0, %v11062
        %v11064 = vpop.f32.mrb[0].mxu0
        %11065 = vmatprep.mubr.bf16.mxu0 0
        %11066 = vmatmul.mubr.bf16.gmra.mrb[0].mxu0 %v10911
        %v11067 = vpop.f32.mrb[0].mxu0
        %v11068 = vadd.f32 0.0, %v11067
        %v11069 = vpop.f32.mrb[0].mxu0
        %v11070 = vpop.f32.mrb[0].mxu0
        %v11071 = vadd.f32 0.0, %v11070
        %v11072 = vpop.f32.mrb[0].mxu0
        %11073 = vmatprep.mubr.bf16.mxu0 0
        %11074 = vmatmul.mubr.bf16.gmra.mrb[0].mxu0 %v10912
        %v11075 = vpop.f32.mrb[0].mxu0
        %v11076 = vadd.f32 0.0, %v11075
        %v11077 = vpop.f32.mrb[0].mxu0
        %v11078 = vpop.f32.mrb[0].mxu0
        %v11079 = vadd.f32 0.0, %v11078
        %v11080 = vpop.f32.mrb[0].mxu0
        %11081 = vmatprep.mubr.bf16.mxu0 0
        %11082 = vmatmul.mubr.bf16.gmra.mrb[0].mxu0 %v10913
        %v11083 = vpop.f32.mrb[0].mxu0
        %v11084 = vadd.f32 0.0, %v11083
        %v11085 = vpop.f32.mrb[0].mxu0
        %v11086 = vpop.f32.mrb[0].mxu0
        %v11087 = vadd.f32 0.0, %v11086
        %v11088 = vpop.f32.mrb[0].mxu0
        %11089 = vmatprep.mubr.bf16.mxu0 0
        %11090 = vmatmul.mubr.bf16.gmra.mrb[0].mxu0 %v10914
        %v11091 = vpop.f32.mrb[0].mxu0
        %v11092 = vadd.f32 0.0, %v11091
        %v11093 = vpop.f32.mrb[0].mxu0
        %v11094 = vpop.f32.mrb[0].mxu0
        %v11095 = vadd.f32 0.0, %v11094
        %v11096 = vpop.f32.mrb[0].mxu0
        %11097 = vmatprep.mubr.bf16.mxu0 0
        %11098 = vmatmul.mubr.bf16.gmra.mrb[0].mxu0 %v10915
        %v11099 = vpop.f32.mrb[0].mxu0
        %v11100 = vadd.f32 0.0, %v11099
        %v11101 = vpop.f32.mrb[0].mxu0
        %v11102 = vpop.f32.mrb[0].mxu0
        %v11103 = vadd.f32 0.0, %v11102
        %v11104 = vpop.f32.mrb[0].mxu0
        %11105 = vmatprep.mubr.bf16.mxu0 0
        %11106 = vmatmul.mubr.bf16.gmra.mrb[0].mxu0 %v10916
        %v11107 = vpop.f32.mrb[0].mxu0
        %v11108 = vadd.f32 0.0, %v11107
        %v11109 = vpop.f32.mrb[0].mxu0
        %v11110 = vpop.f32.mrb[0].mxu0
        %v11111 = vadd.f32 0.0, %v11110
        %v11112 = vpop.f32.mrb[0].mxu0
        %11113 = vmatprep.mubr.bf16.mxu0 0
        %11114 = vmatmul.mubr.bf16.gmra.mrb[0].mxu0 %v10917
        %v11115 = vpop.f32.mrb[0].mxu0
        %v11116 = vadd.f32 0.0, %v11115
        %v11117 = vpop.f32.mrb[0].mxu0
        %v11118 = vpop.f32.mrb[0].mxu0
        %v11119 = vadd.f32 0.0, %v11118
        %v11120 = vpop.f32.mrb[0].mxu0
        %11121 = vmatprep.mubr.bf16.mxu0 0
        %11122 = vmatmul.mubr.bf16.gmra.mrb[0].mxu0 %v10918
        %v11123 = vpop.f32.mrb[0].mxu0
        %v11124 = vadd.f32 0.0, %v11123
        %v11125 = vpop.f32.mrb[0].mxu0
        %v11126 = vpop.f32.mrb[0].mxu0
        %v11127 = vadd.f32 0.0, %v11126
        %v11128 = vpop.f32.mrb[0].mxu0
        %11129 = vmatprep.mubr.bf16.mxu0 0
        %11130 = vmatmul.mubr.bf16.gmra.mrb[0].mxu0 %v10919
        %v11131 = vpop.f32.mrb[0].mxu0
        %v11132 = vadd.f32 0.0, %v11131
        %v11133 = vpop.f32.mrb[0].mxu0
        %v11134 = vpop.f32.mrb[0].mxu0
        %v11135 = vadd.f32 0.0, %v11134
        %v11136 = vpop.f32.mrb[0].mxu0
        %11137 = vmatprep.mubr.bf16.mxu0 0
        %11138 = vmatmul.mubr.bf16.gmra.mrb[0].mxu0 %v10920
        %v11139 = vpop.f32.mrb[0].mxu0
        %v11140 = vadd.f32 0.0, %v11139
        %v11141 = vpop.f32.mrb[0].mxu0
        %v11142 = vpop.f32.mrb[0].mxu0
        %v11143 = vadd.f32 0.0, %v11142
        %v11144 = vpop.f32.mrb[0].mxu0
        %11145 = vdwg.mxu0
        %v11146 = vadd.f32 %v10392, %v11020
        %v11147 = vadd.f32 %v10393, %v11023
        %v11148 = vadd.f32 %v10394, %v11028
        %v11149 = vadd.f32 %v10395, %v11031
        %v11150 = vadd.f32 %v10396, %v11036
        %v11151 = vadd.f32 %v10397, %v11039
        %v11152 = vadd.f32 %v10398, %v11044
        %v11153 = vadd.f32 %v10399, %v11047
        %v11154 = vadd.f32 %v10400, %v11052
        %v11155 = vadd.f32 %v10401, %v11055
        %v11156 = vadd.f32 %v10402, %v11060
        %v11157 = vadd.f32 %v10403, %v11063
        %v11158 = vadd.f32 %v10404, %v11068
        %v11159 = vadd.f32 %v10405, %v11071
        %v11160 = vadd.f32 %v10406, %v11076
        %v11161 = vadd.f32 %v10407, %v11079
        %v11162 = vadd.f32 %v10408, %v11084
        %v11163 = vadd.f32 %v10409, %v11087
        %v11164 = vadd.f32 %v10410, %v11092
        %v11165 = vadd.f32 %v10411, %v11095
        %v11166 = vadd.f32 %v10412, %v11100
        %v11167 = vadd.f32 %v10413, %v11103
        %v11168 = vadd.f32 %v10414, %v11108
        %v11169 = vadd.f32 %v10415, %v11111
        %v11170 = vadd.f32 %v10416, %v11116
        %v11171 = vadd.f32 %v10417, %v11119
        %v11172 = vadd.f32 %v10418, %v11124
        %v11173 = vadd.f32 %v10419, %v11127
        %v11174 = vadd.f32 %v10420, %v11132
        %v11175 = vadd.f32 %v10421, %v11135
        %v11176 = vadd.f32 %v10422, %v11140
        %v11177 = vadd.f32 %v10423, %v11143
        %vm11178 = vcmp.ge.f32.partialorder %v11146, 0.0
        %vm11179 = vcmp.ge.f32.partialorder %v11147, 0.0
        %vm11180 = vcmp.ge.f32.partialorder %v11148, 0.0
        %vm11181 = vcmp.ge.f32.partialorder %v11149, 0.0
        %vm11182 = vcmp.ge.f32.partialorder %v11150, 0.0
        %vm11183 = vcmp.ge.f32.partialorder %v11151, 0.0
        %vm11184 = vcmp.ge.f32.partialorder %v11152, 0.0
        %vm11185 = vcmp.ge.f32.partialorder %v11153, 0.0
        %vm11186 = vcmp.ge.f32.partialorder %v11154, 0.0
        %vm11187 = vcmp.ge.f32.partialorder %v11155, 0.0
        %vm11188 = vcmp.ge.f32.partialorder %v11156, 0.0
        %vm11189 = vcmp.ge.f32.partialorder %v11157, 0.0
        %vm11190 = vcmp.ge.f32.partialorder %v11158, 0.0
        %vm11191 = vcmp.ge.f32.partialorder %v11159, 0.0
        %vm11192 = vcmp.ge.f32.partialorder %v11160, 0.0
        %vm11193 = vcmp.ge.f32.partialorder %v11161, 0.0
        %vm11194 = vcmp.ge.f32.partialorder %v11162, 0.0
        %vm11195 = vcmp.ge.f32.partialorder %v11163, 0.0
        %vm11196 = vcmp.ge.f32.partialorder %v11164, 0.0
        %vm11197 = vcmp.ge.f32.partialorder %v11165, 0.0
        %vm11198 = vcmp.ge.f32.partialorder %v11166, 0.0
        %vm11199 = vcmp.ge.f32.partialorder %v11167, 0.0
        %vm11200 = vcmp.ge.f32.partialorder %v11168, 0.0
        %vm11201 = vcmp.ge.f32.partialorder %v11169, 0.0
        %vm11202 = vcmp.ge.f32.partialorder %v11170, 0.0
        %vm11203 = vcmp.ge.f32.partialorder %v11171, 0.0
        %vm11204 = vcmp.ge.f32.partialorder %v11172, 0.0
        %vm11205 = vcmp.ge.f32.partialorder %v11173, 0.0
        %vm11206 = vcmp.ge.f32.partialorder %v11174, 0.0
        %vm11207 = vcmp.ge.f32.partialorder %v11175, 0.0
        %vm11208 = vcmp.ge.f32.partialorder %v11176, 0.0
        %vm11209 = vcmp.ge.f32.partialorder %v11177, 0.0
        %v11210 = vmul.f32 %v11146, 0.2
        %v11211 = vmul.f32 %v11147, 0.2
        %v11212 = vmul.f32 %v11148, 0.2
        %v11213 = vmul.f32 %v11149, 0.2
        %v11214 = vmul.f32 %v11150, 0.2
        %v11215 = vmul.f32 %v11151, 0.2
        %v11216 = vmul.f32 %v11152, 0.2
        %v11217 = vmul.f32 %v11153, 0.2
        %v11218 = vmul.f32 %v11154, 0.2
        %v11219 = vmul.f32 %v11155, 0.2
        %v11220 = vmul.f32 %v11156, 0.2
        %v11221 = vmul.f32 %v11157, 0.2
        %v11222 = vmul.f32 %v11158, 0.2
        %v11223 = vmul.f32 %v11159, 0.2
        %v11224 = vmul.f32 %v11160, 0.2
        %v11225 = vmul.f32 %v11161, 0.2
        %v11226 = vmul.f32 %v11162, 0.2
        %v11227 = vmul.f32 %v11163, 0.2
        %v11228 = vmul.f32 %v11164, 0.2
        %v11229 = vmul.f32 %v11165, 0.2
        %v11230 = vmul.f32 %v11166, 0.2
        %v11231 = vmul.f32 %v11167, 0.2
        %v11232 = vmul.f32 %v11168, 0.2
        %v11233 = vmul.f32 %v11169, 0.2
        %v11234 = vmul.f32 %v11170, 0.2
        %v11235 = vmul.f32 %v11171, 0.2
        %v11236 = vmul.f32 %v11172, 0.2
        %v11237 = vmul.f32 %v11173, 0.2
        %v11238 = vmul.f32 %v11174, 0.2
        %v11239 = vmul.f32 %v11175, 0.2
        %v11240 = vmul.f32 %v11176, 0.2
        %v11241 = vmul.f32 %v11177, 0.2
        %v11242 = vsel %vm11178, %v11146, %v11210
        %v11243 = vsel %vm11179, %v11147, %v11211
        %v11244 = vsel %vm11180, %v11148, %v11212
        %v11245 = vsel %vm11181, %v11149, %v11213
        %v11246 = vsel %vm11182, %v11150, %v11214
        %v11247 = vsel %vm11183, %v11151, %v11215
        %v11248 = vsel %vm11184, %v11152, %v11216
        %v11249 = vsel %vm11185, %v11153, %v11217
        %v11250 = vsel %vm11186, %v11154, %v11218
        %v11251 = vsel %vm11187, %v11155, %v11219
        %v11252 = vsel %vm11188, %v11156, %v11220
        %v11253 = vsel %vm11189, %v11157, %v11221
        %v11254 = vsel %vm11190, %v11158, %v11222
        %v11255 = vsel %vm11191, %v11159, %v11223
        %v11256 = vsel %vm11192, %v11160, %v11224
        %v11257 = vsel %vm11193, %v11161, %v11225
        %v11258 = vsel %vm11194, %v11162, %v11226
        %v11259 = vsel %vm11195, %v11163, %v11227
        %v11260 = vsel %vm11196, %v11164, %v11228
        %v11261 = vsel %vm11197, %v11165, %v11229
        %v11262 = vsel %vm11198, %v11166, %v11230
        %v11263 = vsel %vm11199, %v11167, %v11231
        %v11264 = vsel %vm11200, %v11168, %v11232
        %v11265 = vsel %vm11201, %v11169, %v11233
        %v11266 = vsel %vm11202, %v11170, %v11234
        %v11267 = vsel %vm11203, %v11171, %v11235
        %v11268 = vsel %vm11204, %v11172, %v11236
        %v11269 = vsel %vm11205, %v11173, %v11237
        %v11270 = vsel %vm11206, %v11174, %v11238
        %v11271 = vsel %vm11207, %v11175, %v11239
        %v11272 = vsel %vm11208, %v11176, %v11240
        %v11273 = vsel %vm11209, %v11177, %v11241
        %v11274 = vld [vmem:[%s8] sm:$0xff]
        %v11275 = vld [vmem:[%s8 + $0x8] sm:$0xff]
        %v11276 = vld [vmem:[%s8 + $0x10] sm:$0xff]
        %v11277 = vld [vmem:[%s8 + $0x18] sm:$0xff]
        %v11278 = vld [vmem:[%s8 + $0x20] sm:$0xff]
        %v11279 = vld [vmem:[%s8 + $0x28] sm:$0xff]
        %v11280 = vld [vmem:[%s8 + $0x30] sm:$0xff]
        %v11281 = vld [vmem:[%s8 + $0x38] sm:$0xff]
        %v11282 = vld [vmem:[%s8 + $0x40] sm:$0xff]
        %v11283 = vld [vmem:[%s8 + $0x48] sm:$0xff]
        %v11284 = vld [vmem:[%s8 + $0x50] sm:$0xff]
        %v11285 = vld [vmem:[%s8 + $0x58] sm:$0xff]
        %v11286 = vld [vmem:[%s8 + $0x60] sm:$0xff]
        %v11287 = vld [vmem:[%s8 + $0x68] sm:$0xff]
        %v11288 = vld [vmem:[%s8 + $0x70] sm:$0xff]
        %v11289 = vld [vmem:[%s8 + $0x78] sm:$0xff]
        %v11290 = vld [vmem:[%s350] sm:$0xf]
        %v11291 = vld [vmem:[%s350 + $0x4] sm:$0xf]
        %v11292 = vld [vmem:[%s350 + $0x8] sm:$0xf]
        %v11293 = vld [vmem:[%s350 + $0xc] sm:$0xf]
        %v11294 = vld [vmem:[%s350 + $0x10] sm:$0xf]
        %v11295 = vld [vmem:[%s350 + $0x14] sm:$0xf]
        %v11296 = vld [vmem:[%s350 + $0x18] sm:$0xf]
        %v11297 = vld [vmem:[%s350 + $0x1c] sm:$0xf]
        %v11298 = vld [vmem:[%s4] sm:$0xf]
        %v11299 = vld [vmem:[%s4 + $0x4] sm:$0xf]
        %v11300 = vld [vmem:[%s4 + $0x8] sm:$0xf]
        %v11301 = vld [vmem:[%s4 + $0xc] sm:$0xf]
        %v11302 = vld [vmem:[%s4 + $0x10] sm:$0xf]
        %v11303 = vld [vmem:[%s4 + $0x14] sm:$0xf]
        %v11304 = vld [vmem:[%s4 + $0x18] sm:$0xf]
        %v11305 = vld [vmem:[%s4 + $0x1c] sm:$0xf]
        %v11306 = vld [vmem:[%s5] sm:$0x1]
        %v11308 = vlaneseq
        %v11309 = vshrl.u32 %v11308, 7
        %v11310 = vsub.s32 0, %v11309
        %v11311 = vrot.slane %v11306, %v11310
        %v11321 = vunpack.c.l.b16 %v11290
        %v11322 = vunpack.c.l.b16 %v11291
        %v11323 = vunpack.c.l.b16 %v11292
        %v11324 = vunpack.c.l.b16 %v11293
        %v11325 = vunpack.c.l.b16 %v11294
        %v11326 = vunpack.c.l.b16 %v11295
        %v11327 = vunpack.c.l.b16 %v11296
        %v11328 = vunpack.c.l.b16 %v11297
        %v11329 = vpack.c.b16 %v11322, %v11321
        %v11330 = vpack.c.b16 %v11324, %v11323
        %v11331 = vpack.c.b16 %v11326, %v11325
        %v11332 = vpack.c.b16 %v11328, %v11327
        %v11341 = vunpack.c.l.b16 %v11298
        %v11342 = vunpack.c.l.b16 %v11299
        %v11343 = vunpack.c.l.b16 %v11300
        %v11344 = vunpack.c.l.b16 %v11301
        %v11345 = vunpack.c.l.b16 %v11302
        %v11346 = vunpack.c.l.b16 %v11303
        %v11347 = vunpack.c.l.b16 %v11304
        %v11348 = vunpack.c.l.b16 %v11305
        %v11349 = vpack.c.b16 %v11342, %v11341
        %v11350 = vpack.c.b16 %v11344, %v11343
        %v11351 = vpack.c.b16 %v11346, %v11345
        %v11352 = vpack.c.b16 %v11348, %v11347
        %v11358 = vsel %vm528, %v11329, 0
        %v11361 = vsel %vm528, %v11330, 0
        %v11364 = vsel %vm528, %v11331, 0
        %v11367 = vsel %vm528, %v11332, 0
        %11369 = vmatprep.subr.bf16.mxu0 0
        %11370 = vmatpush1.bf16.msra.mxu0 %v11349
        %11371 = vmatprep.subr.bf16.mxu0 0
        %11372 = vmatpush1.bf16.msra.mxu0 %v11350
        %11373 = vmatprep.subr.bf16.mxu0 0
        %11374 = vmatpush1.bf16.msra.mxu0 %v11351
        %11375 = vmatprep.subr.bf16.mxu0 0
        %11376 = vmatpush1.bf16.msra.mxu0 %v11352
        %11377 = vmatprep.subr.bf16.mxu0 0
        %11378 = vmatpush1.bf16.msra.mxu0 0
        %11379 = vmatprep.subr.bf16.mxu0 0
        %11380 = vmatpush1.bf16.msra.mxu0 0
        %11381 = vmatprep.subr.bf16.mxu0 0
        %11382 = vmatpush1.bf16.msra.mxu0 0
        %11383 = vmatprep.subr.bf16.mxu0 0
        %11384 = vmatpush1.bf16.msra.mxu0 0
        %11385 = vmatprep.subr.bf16.mxu0 0
        %11386 = vmatpush1.bf16.msra.mxu0 0
        %11387 = vmatprep.subr.bf16.mxu0 0
        %11388 = vmatpush1.bf16.msra.mxu0 0
        %11389 = vmatprep.subr.bf16.mxu0 0
        %11390 = vmatpush1.bf16.msra.mxu0 0
        %11391 = vmatprep.subr.bf16.mxu0 0
        %11392 = vmatpush1.bf16.msra.mxu0 0
        %11393 = vmatprep.subr.bf16.mxu0 0
        %11394 = vmatpush1.bf16.msra.mxu0 0
        %11395 = vmatprep.subr.bf16.mxu0 0
        %11396 = vmatpush1.bf16.msra.mxu0 0
        %11397 = vmatprep.subr.bf16.mxu0 0
        %11398 = vmatpush1.bf16.msra.mxu0 0
        %11399 = vmatprep.subr.bf16.mxu0 0
        %11400 = vmatpush1.bf16.msra.mxu0 0
        %11401 = vmatprep.mubr.bf16.mxu0 0
        %11402 = vmatmul.mubr.bf16.gmra.mrb[0].mxu0 %v11358
        %v11403 = vpop.f32.mrb[0].mxu0
        %v11404 = vadd.f32 %v11311, %v11403
        %v11405 = vpop.f32.mrb[0].mxu0
        %v11406 = vpop.f32.mrb[0].mxu0
        %v11407 = vadd.f32 %v11311, %v11406
        %v11408 = vpop.f32.mrb[0].mxu0
        %11409 = vmatprep.mubr.bf16.mxu0 0
        %11410 = vmatmul.mubr.bf16.gmra.mrb[0].mxu0 %v11361
        %v11411 = vpop.f32.mrb[0].mxu0
        %v11412 = vadd.f32 %v11311, %v11411
        %v11413 = vpop.f32.mrb[0].mxu0
        %v11414 = vpop.f32.mrb[0].mxu0
        %v11415 = vadd.f32 %v11311, %v11414
        %v11416 = vpop.f32.mrb[0].mxu0
        %11417 = vmatprep.mubr.bf16.mxu0 0
        %11418 = vmatmul.mubr.bf16.gmra.mrb[0].mxu0 %v11364
        %v11419 = vpop.f32.mrb[0].mxu0
        %v11420 = vadd.f32 %v11311, %v11419
        %v11421 = vpop.f32.mrb[0].mxu0
        %v11422 = vpop.f32.mrb[0].mxu0
        %v11423 = vadd.f32 %v11311, %v11422
        %v11424 = vpop.f32.mrb[0].mxu0
        %11425 = vmatprep.mubr.bf16.mxu0 0
        %11426 = vmatmul.mubr.bf16.gmra.mrb[0].mxu0 %v11367
        %v11427 = vpop.f32.mrb[0].mxu0
        %v11428 = vadd.f32 %v11311, %v11427
        %v11429 = vpop.f32.mrb[0].mxu0
        %v11430 = vpop.f32.mrb[0].mxu0
        %v11431 = vadd.f32 %v11311, %v11430
        %v11432 = vpop.f32.mrb[0].mxu0
        %11433 = vdwg.mxu0
        %11434 = vmatprep.subr.mxu0 0.0
        %11435 = vmatpush1.msra.mxu0 %v11242
        %11436 = vmatprep.subr.mxu0 0.0
        %11437 = vmatpush1.msra.mxu0 %v11243
        %11438 = vmatprep.subr.mxu0 0.0
        %11439 = vmatpush1.msra.mxu0 %v11244
        %11440 = vmatprep.subr.mxu0 0.0
        %11441 = vmatpush1.msra.mxu0 %v11245
        %11442 = vmatprep.subr.mxu0 0.0
        %11443 = vmatpush1.msra.mxu0 %v11246
        %11444 = vmatprep.subr.mxu0 0.0
        %11445 = vmatpush1.msra.mxu0 %v11247
        %11446 = vmatprep.subr.mxu0 0.0
        %11447 = vmatpush1.msra.mxu0 %v11248
        %11448 = vmatprep.subr.mxu0 0.0
        %11449 = vmatpush1.msra.mxu0 %v11249
        %11450 = vmatprep.subr.mxu0 0.0
        %11451 = vmatpush1.msra.mxu0 %v11250
        %11452 = vmatprep.subr.mxu0 0.0
        %11453 = vmatpush1.msra.mxu0 %v11251
        %11454 = vmatprep.subr.mxu0 0.0
        %11455 = vmatpush1.msra.mxu0 %v11252
        %11456 = vmatprep.subr.mxu0 0.0
        %11457 = vmatpush1.msra.mxu0 %v11253
        %11458 = vmatprep.subr.mxu0 0.0
        %11459 = vmatpush1.msra.mxu0 %v11254
        %11460 = vmatprep.subr.mxu0 0.0
        %11461 = vmatpush1.msra.mxu0 %v11255
        %11462 = vmatprep.subr.mxu0 0.0
        %11463 = vmatpush1.msra.mxu0 %v11256
        %11464 = vmatprep.subr.mxu0 0.0
        %11465 = vmatpush1.msra.mxu0 %v11257
        %11466 = vmatprep.subr.mxu0 0.0
        %11467 = vmatpush1.msra.mxu0 %v11258
        %11468 = vmatprep.subr.mxu0 0.0
        %11469 = vmatpush1.msra.mxu0 %v11259
        %11470 = vmatprep.subr.mxu0 0.0
        %11471 = vmatpush1.msra.mxu0 %v11260
        %11472 = vmatprep.subr.mxu0 0.0
        %11473 = vmatpush1.msra.mxu0 %v11261
        %11474 = vmatprep.subr.mxu0 0.0
        %11475 = vmatpush1.msra.mxu0 %v11262
        %11476 = vmatprep.subr.mxu0 0.0
        %11477 = vmatpush1.msra.mxu0 %v11263
        %11478 = vmatprep.subr.mxu0 0.0
        %11479 = vmatpush1.msra.mxu0 %v11264
        %11480 = vmatprep.subr.mxu0 0.0
        %11481 = vmatpush1.msra.mxu0 %v11265
        %11482 = vmatprep.subr.mxu0 0.0
        %11483 = vmatpush1.msra.mxu0 %v11266
        %11484 = vmatprep.subr.mxu0 0.0
        %11485 = vmatpush1.msra.mxu0 %v11267
        %11486 = vmatprep.subr.mxu0 0.0
        %11487 = vmatpush1.msra.mxu0 %v11268
        %11488 = vmatprep.subr.mxu0 0.0
        %11489 = vmatpush1.msra.mxu0 %v11269
        %11490 = vmatprep.subr.mxu0 0.0
        %11491 = vmatpush1.msra.mxu0 %v11270
        %11492 = vmatprep.subr.mxu0 0.0
        %11493 = vmatpush1.msra.mxu0 %v11271
        %11494 = vmatprep.subr.mxu0 0.0
        %11495 = vmatpush1.msra.mxu0 %v11272
        %11496 = vmatprep.subr.mxu0 0.0
        %11497 = vmatpush1.msra.mxu0 %v11273
        %11498 = vmatprep.mubr.f32.mxu0 %v11275
        %11499 = vmatmul.mubr.f32.gmra.mrb[0].mxu0 %v11274
        %v11500 = vpop.f32.mrb[0].mxu0
        %v11501 = vadd.f32 %v11404, %v11500
        %v11502 = vpop.f32.mrb[0].mxu0
        %11503 = vmatprep.mubr.f32.mxu0 %v11277
        %11504 = vmatmul.mubr.f32.gmra.mrb[0].mxu0 %v11276
        %v11505 = vpop.f32.mrb[0].mxu0
        %v11506 = vadd.f32 %v11407, %v11505
        %v11507 = vpop.f32.mrb[0].mxu0
        %11508 = vmatprep.mubr.f32.mxu0 %v11279
        %11509 = vmatmul.mubr.f32.gmra.mrb[0].mxu0 %v11278
        %v11510 = vpop.f32.mrb[0].mxu0
        %v11511 = vadd.f32 %v11412, %v11510
        %v11512 = vpop.f32.mrb[0].mxu0
        %11513 = vmatprep.mubr.f32.mxu0 %v11281
        %11514 = vmatmul.mubr.f32.gmra.mrb[0].mxu0 %v11280
        %v11515 = vpop.f32.mrb[0].mxu0
        %v11516 = vadd.f32 %v11415, %v11515
        %v11517 = vpop.f32.mrb[0].mxu0
        %11518 = vmatprep.mubr.f32.mxu0 %v11283
        %11519 = vmatmul.mubr.f32.gmra.mrb[0].mxu0 %v11282
        %v11520 = vpop.f32.mrb[0].mxu0
        %v11521 = vadd.f32 %v11420, %v11520
        %v11522 = vpop.f32.mrb[0].mxu0
        %11523 = vmatprep.mubr.f32.mxu0 %v11285
        %11524 = vmatmul.mubr.f32.gmra.mrb[0].mxu0 %v11284
        %v11525 = vpop.f32.mrb[0].mxu0
        %v11526 = vadd.f32 %v11423, %v11525
        %v11527 = vpop.f32.mrb[0].mxu0
        %11528 = vmatprep.mubr.f32.mxu0 %v11287
        %11529 = vmatmul.mubr.f32.gmra.mrb[0].mxu0 %v11286
        %v11530 = vpop.f32.mrb[0].mxu0
        %v11531 = vadd.f32 %v11428, %v11530
        %v11532 = vpop.f32.mrb[0].mxu0
        %11533 = vmatprep.mubr.f32.mxu0 %v11289
        %11534 = vmatmul.mubr.f32.gmra.mrb[0].mxu0 %v11288
        %v11535 = vpop.f32.mrb[0].mxu0
        %v11536 = vadd.f32 %v11431, %v11535
        %v11537 = vpop.f32.mrb[0].mxu0
        %11538 = vdwg.mxu0
        %v11539 = vmul.f32 %v11501, 0.70710677
        %v11540 = vmul.f32 %v11506, 0.70710677
        %v11541 = vmul.f32 %v11511, 0.70710677
        %v11542 = vmul.f32 %v11516, 0.70710677
        %v11543 = vmul.f32 %v11521, 0.70710677
        %v11544 = vmul.f32 %v11526, 0.70710677
        %v11545 = vmul.f32 %v11531, 0.70710677
        %v11546 = vmul.f32 %v11536, 0.70710677
        %11547 = vst [vmem:[%s340] sm:$0xff] %v11539
        %11548 = vst [vmem:[%s340 + $0x8] sm:$0xff] %v11540
        %11549 = vst [vmem:[%s340 + $0x10] sm:$0xff] %v11541
        %11550 = vst [vmem:[%s340 + $0x18] sm:$0xff] %v11542
        %11551 = vst [vmem:[%s340 + $0x20] sm:$0xff] %v11543
        %11552 = vst [vmem:[%s340 + $0x28] sm:$0xff] %v11544
        %11553 = vst [vmem:[%s340 + $0x30] sm:$0xff] %v11545
        %11554 = vst [vmem:[%s340 + $0x38] sm:$0xff] %v11546
        %s11555 = sand.u32 %s230, 1
        %s11556 = scalar_lea.sflag [#allocation4], %s11555
        %s11557 = sand.u32 %s230, 1
        %s11558 = smul.addr %s11557, 64
        %s11559 = scalar_lea.vmem [#allocation3], %s11558
        // Predicated region
        $region57: #{residual_cc_block.1} parent=55 // pred_check
          %p11560 = pneg %p240
        $region58: #{residual_cc_block.1} parent=55 // pred_check_branch
          %11562 = sbr.rel (%p11560) target = $region60
        $region59: #{residual_cc_block.1} parent=55 // pred_region
          %s11564 = ssub.s32 1024, 1024
          %11565 = vsyncadd %s11556, %s11564
          %s11566 = smul.addr %s23, 8
          %s11567 = smul.addr %s11566, 128
          %s11568 = scalar_lea.hbm %s9, %s11567
          %s11569 = sshll.u32 %s11559, 4
          %s11570 = int_to_ptr.vmem [resolvable:$true] %s11569
          %11575 = dma.vmem_to_hbm [thread:$0]  %s11570, 1024, %s11568, %s11556, 128, 128, 8
        $region60: #{residual_cc_block.1} parent=55 // pred_fallthru
          _
      $region56: #{residual_cc_block.1} parent=5 // pred_fallthru
        _
      %p11576 = scmp.le.s32.totalorder 2, %s18
      // Predicated region
      $region61: #{residual_cc_block.1} parent=5 // pred_check
        %p11577 = pneg %p11576
      $region62: #{residual_cc_block.1} parent=5 // pred_check_branch
        %11579 = sbr.rel (%p11577) target = $region64
      $region63: #{residual_cc_block.1} parent=5 // pred_region
        %s11580 = ssub.s32 %s18, 2
        // Predicated region
        $region65: #{residual_cc_block.1} parent=63 // pred_check
          %p11581 = pneg %p246
        $region66: #{residual_cc_block.1} parent=63 // pred_check_branch
          %11583 = sbr.rel (%p11581) target = $region68
        $region67: #{residual_cc_block.1} parent=63 // pred_region
          %s11584 = sand.u32 %s231, 1
          %s11585 = scalar_lea.sflag [#allocation4], %s11584
          %s11586 = sand.u32 %s231, 1
          %s11587 = smul.addr %s11586, 64
          %s11588 = scalar_lea.vmem [#allocation3], %s11587
          %11589 = dma.done %s11585, 1024
        $region68: #{residual_cc_block.1} parent=63 // pred_fallthru
          _
      $region64: #{residual_cc_block.1} parent=5 // pred_fallthru
        _
    $region6: #{residual_cc_block.1} parent=1 // loop_footer
      %s22 = sadd.s32 1, %s18
    $region7: #{residual_cc_block.1} parent=1 // loop_footer_branch
      %17 = sbr.rel target = $region3
    $region8: #{residual_cc_block.1} parent=1 // loop_exit
      _
    %11590 = vsyncpa [#allocation4], 1
    %s11591 = scalar_lea.sflag [#allocation4], 1
    %11592 = vsyncpa %s11591, 1

</llo_original>
